<compile_context>
chip_gen: v6e
topology: v6e:2x2x1
jax: 0.10.0
libtpu: 0.0.40
codegen_flags: <defaults>
</compile_context>

<pallas_src>
import functools

import jax
import jax.numpy as jnp
import numpy as np
from jax import lax
from jax.experimental import pallas as pl
from jax.experimental.pallas import tpu as pltpu

KSIZE = 4
STRIDE = 2
PAD = 1
NEG_SLOPE = 0.2

LANE = 128                      # last-dim tiling quantum
SUBLANE = 16                    # bf16 second-minor quantum
MAX_TILE_K = 2048               # K-slab size for the big late-layer contractions
VMEM_LIMIT = 32 * 1024 * 1024   # explicit scoped-VMEM budget (v5e default is 16 MiB)


def _round_up(x, m):
    return (x + m - 1) // m * m


def _cdiv(a, b):
    return -(-a // b)


# ----------------------------------------------------------------------------
# Pallas kernels
# ----------------------------------------------------------------------------
def _mm_bias_act_kernel(x_ref, w_ref, b_ref, o_ref, *, apply_lrelu):
    """Single-K fused matmul: out = act(x @ w + b).  No accumulator scratch."""
    acc = jnp.dot(x_ref[...], w_ref[...], preferred_element_type=jnp.float32)
    acc = acc + b_ref[...]                        # (1, Cout) broadcasts over M
    if apply_lrelu:
        acc = jnp.where(acc >= 0, acc, NEG_SLOPE * acc)
    o_ref[...] = acc.astype(o_ref.dtype)


def _mm_bias_act_ktiled_kernel(x_ref, w_ref, b_ref, o_ref, acc_ref, *,
                               apply_lrelu, n_k):
    """K-tiled fused matmul with an f32 VMEM accumulator (K > MAX_TILE_K)."""
    k = pl.program_id(1)

    @pl.when(k == 0)
    def _():
        acc_ref[...] = jnp.zeros_like(acc_ref)

    acc_ref[...] += jnp.dot(x_ref[...], w_ref[...],
                            preferred_element_type=jnp.float32)

    @pl.when(k == n_k - 1)
    def _():
        acc = acc_ref[...] + b_ref[...]
        if apply_lrelu:
            acc = jnp.where(acc >= 0, acc, NEG_SLOPE * acc)
        o_ref[...] = acc.astype(o_ref.dtype)


def _matvec_bias_kernel(x_ref, w_ref, b_ref, o_ref):
    """Cout=1 classifier: VPU K-reduction, no 128-lane output padding waste."""
    x = x_ref[...].astype(jnp.float32)
    w = w_ref[...].astype(jnp.float32)            # (1, K) broadcasts over M
    out = jnp.sum(x * w, axis=-1, keepdims=True) + b_ref[...]
    o_ref[...] = out.astype(o_ref.dtype)


# ----------------------------------------------------------------------------
# im2col (k=4, s=2, p=1) in NHWC, exploiting the stride-2 structure so the
# extraction is 2 slices + reshape + concat per axis (no 16-slice stack).
# Column order is (kh, kw, Cin) — matches the (2,3,1,0) weight transpose.
# ----------------------------------------------------------------------------
def _extract_patches(x_nhwc):
    n, h, w, c = x_nhwc.shape
    ho, wo = h // STRIDE, w // STRIDE
    xp = jnp.pad(x_nhwc, ((0, 0), (PAD, PAD), (PAD, PAD), (0, 0)))
    wp = STRIDE * wo + 2
    r0 = xp[:, 0:2 * ho, :, :].reshape(n, ho, 2, wp, c)              # kh = 0, 1
    r1 = xp[:, 2:2 * ho + 2, :, :].reshape(n, ho, 2, wp, c)          # kh = 2, 3
    rows = jnp.concatenate([r0, r1], axis=2)                         # (n, ho, 4, wp, c)
    c0 = rows[:, :, :, 0:2 * wo, :].reshape(n, ho, 4, wo, 2, c)      # kw = 0, 1
    c1 = rows[:, :, :, 2:2 * wo + 2, :].reshape(n, ho, 4, wo, 2, c)  # kw = 2, 3
    patches = jnp.concatenate([c0, c1], axis=4)                      # (n, ho, 4, wo, 4, c)
    patches = jnp.transpose(patches, (0, 1, 3, 2, 4, 5))             # (n, ho, wo, kh, kw, c)
    return patches.reshape(n * ho * wo, KSIZE * KSIZE * c), (n, ho, wo)


def _pad_cin(x_nhwc):
    cin = x_nhwc.shape[-1]
    cin_p = _round_up(cin, 8)        # K = 16*cin_p becomes a 128-multiple
    if cin_p != cin:
        x_nhwc = jnp.pad(x_nhwc, ((0, 0), (0, 0), (0, 0), (0, cin_p - cin)))
    return x_nhwc, cin, cin_p


def _weight_matrix(w_oihw, cin, cin_p, cout, cout_p):
    # (Cout, Cin, kh, kw) -> (kh, kw, Cin_p, Cout_p) -> (16*Cin_p, Cout_p)
    wt = jnp.transpose(w_oihw, (2, 3, 1, 0))
    wt = jnp.pad(wt, ((0, 0), (0, 0), (0, cin_p - cin), (0, cout_p - cout)))
    return wt.reshape(KSIZE * KSIZE * cin_p, cout_p).astype(jnp.bfloat16)


def _pick_tile_m(m, k):
    # Adaptive M tile: small-K layers afford bigger tiles (amortize per-step
    # overhead); split >= 2 ways when M is large so the "parallel" axis feeds
    # both v7x TensorCores.  Budget stays well under 32 MiB scoped VMEM.
    cap = 1024 if k <= MAX_TILE_K else 512
    if m < 512:
        return m                              # whole-M full-dim block, no padding
    n_tiles = max(2, _cdiv(m, cap))
    return _round_up(_cdiv(m, n_tiles), SUBLANE)


# ----------------------------------------------------------------------------
# One conv + LeakyReLU layer:  cheap im2col -> fused Pallas matmul (bf16 out)
# ----------------------------------------------------------------------------
def _conv_layer_pallas(x_nhwc, w_oihw, bias, apply_lrelu):
    x_nhwc, cin, cin_p = _pad_cin(x_nhwc.astype(jnp.bfloat16))
    cout = w_oihw.shape[0]
    cout_p = _round_up(cout, LANE)

    patches, (n, ho, wo) = _extract_patches(x_nhwc)
    m, k = patches.shape                       # k = 16*cin_p (128-multiple)

    tile_m = _pick_tile_m(m, k)
    m_p = _round_up(m, tile_m)
    if m_p != m:                               # rare small remainder only
        patches = jnp.pad(patches, ((0, m_p - m), (0, 0)))

    wmat = _weight_matrix(w_oihw, cin, cin_p, cout, cout_p)
    bias_p = jnp.pad(bias.astype(jnp.float32),
                     (0, cout_p - cout)).reshape(1, cout_p)

    n_m = m_p // tile_m

    if k <= MAX_TILE_K:
        out = pl.pallas_call(
            functools.partial(_mm_bias_act_kernel, apply_lrelu=apply_lrelu),
            out_shape=jax.ShapeDtypeStruct((m_p, cout_p), jnp.bfloat16),
            grid=(n_m,),
            in_specs=[
                pl.BlockSpec((tile_m, k), lambda i: (i, 0)),
                pl.BlockSpec((k, cout_p), lambda i: (0, 0)),
                pl.BlockSpec((1, cout_p), lambda i: (0, 0)),
            ],
            out_specs=pl.BlockSpec((tile_m, cout_p), lambda i: (i, 0)),
            compiler_params=pltpu.CompilerParams(
                dimension_semantics=("parallel",),
                vmem_limit_bytes=VMEM_LIMIT),
        )(patches, wmat, bias_p)
    else:
        tile_k = min(k, MAX_TILE_K)
        while k % tile_k:                      # k is a 128-multiple; terminates
            tile_k -= LANE
        n_k = k // tile_k
        out = pl.pallas_call(
            functools.partial(_mm_bias_act_ktiled_kernel,
                              apply_lrelu=apply_lrelu, n_k=n_k),
            out_shape=jax.ShapeDtypeStruct((m_p, cout_p), jnp.bfloat16),
            grid=(n_m, n_k),
            in_specs=[
                pl.BlockSpec((tile_m, tile_k), lambda i, j: (i, j)),
                pl.BlockSpec((tile_k, cout_p), lambda i, j: (j, 0)),
                pl.BlockSpec((1, cout_p), lambda i, j: (0, 0)),
            ],
            out_specs=pl.BlockSpec((tile_m, cout_p), lambda i, j: (i, 0)),
            scratch_shapes=[pltpu.VMEM((tile_m, cout_p), jnp.float32)],
            compiler_params=pltpu.CompilerParams(
                dimension_semantics=("parallel", "arbitrary"),
                vmem_limit_bytes=VMEM_LIMIT),
        )(patches, wmat, bias_p)

    return out[:m, :cout].reshape(n, ho, wo, cout)


# ----------------------------------------------------------------------------
# Classifier layer (Cout = 1): im2col -> VPU K-reduction kernel, f32 logits
# ----------------------------------------------------------------------------
def _classifier_layer_pallas(x_nhwc, w_oihw, bias):
    x_nhwc, cin, cin_p = _pad_cin(x_nhwc.astype(jnp.bfloat16))
    patches, (n, ho, wo) = _extract_patches(x_nhwc)
    m, k = patches.shape

    tile_m = m if m <= 128 else _round_up(_cdiv(m, _cdiv(m, 128)), SUBLANE)
    m_p = _round_up(m, tile_m)
    if m_p != m:
        patches = jnp.pad(patches, ((0, m_p - m), (0, 0)))

    wt = jnp.transpose(w_oihw, (2, 3, 1, 0))                  # (4, 4, cin, 1)
    wt = jnp.pad(wt, ((0, 0), (0, 0), (0, cin_p - cin), (0, 0)))
    wvec = wt.reshape(1, k).astype(jnp.bfloat16)
    bias2d = bias.astype(jnp.float32).reshape(1, 1)

    out = pl.pallas_call(
        _matvec_bias_kernel,
        out_shape=jax.ShapeDtypeStruct((m_p, 1), jnp.float32),
        grid=(m_p // tile_m,),
        in_specs=[
            pl.BlockSpec((tile_m, k), lambda i: (i, 0)),
            pl.BlockSpec((1, k), lambda i: (0, 0)),
            pl.BlockSpec((1, 1), lambda i: (0, 0)),
        ],
        out_specs=pl.BlockSpec((tile_m, 1), lambda i: (i, 0)),
        compiler_params=pltpu.CompilerParams(
            dimension_semantics=("parallel",),
            vmem_limit_bytes=VMEM_LIMIT),
    )(patches, wvec, bias2d)
    return out[:m].reshape(n, ho, wo, 1)


# ----------------------------------------------------------------------------
# Discriminator forward (NCHW in, NCHW out — mirrors the PyTorch module)
# ----------------------------------------------------------------------------
def discriminator_forward(x_nchw, params):
    x = jnp.transpose(x_nchw, (0, 2, 3, 1))                # NCHW -> NHWC once
    *hidden, (w_last, b_last) = params
    for w, b in hidden:
        x = _conv_layer_pallas(x, w, b, apply_lrelu=True)  # bf16 activations
    if w_last.shape[0] == 1:
        x = _classifier_layer_pallas(x, w_last, b_last)    # f32 logits
    else:
        x = _conv_layer_pallas(x, w_last, b_last, apply_lrelu=False)
        x = x.astype(jnp.float32)
    return jnp.transpose(x, (0, 3, 1, 2))                  # NHWC -> NCHW once


# ----------------------------------------------------------------------------
# Deterministic parameter init (PyTorch-like scale: 1/sqrt(fan_in))
# ----------------------------------------------------------------------------
def make_params(key, num_classes, ndf):
    channels = [num_classes, ndf, ndf * 2, ndf * 4, ndf * 8, 1]
    params = []
    for li in range(5):
        cin, cout = channels[li], channels[li + 1]
        key, kw, kb = jax.random.split(key, 3)
        fan_in = cin * KSIZE * KSIZE
        scale = 1.0 / np.sqrt(fan_in)
        w = jax.random.normal(kw, (cout, cin, KSIZE, KSIZE), jnp.float32) * scale
        b = jax.random.normal(kb, (cout,), jnp.float32) * scale
        params.append((w, b))
    return params


# ----------------------------------------------------------------------------
# Pure-JAX reference (lax.conv, f32) for correctness checking
# ----------------------------------------------------------------------------
def reference_forward(x_nchw, params):
    x = x_nchw
    for idx, (w, b) in enumerate(params):
        x = lax.conv_general_dilated(
            x, w,
            window_strides=(STRIDE, STRIDE),
            padding=[(PAD, PAD), (PAD, PAD)],
            dimension_numbers=("NCHW", "OIHW", "NCHW"),
        ) + b.reshape(1, -1, 1, 1)
        if idx < len(params) - 1:
            x = jnp.where(x >= 0, x, NEG_SLOPE * x)
    return x


if __name__ == "__main__":
    num_classes = 4
    ndf = 64         # module default; exercises single-K, K-tiled and classifier paths
    batch = 2
    spatial = 32     # 32 -> 16 -> 8 -> 4 -> 2 -> 1 through the 5 stride-2 convs

    key = jax.random.PRNGKey(0)
    key, kx = jax.random.split(key)
    x = jax.random.normal(kx, (batch, num_classes, spatial, spatial), jnp.float32)
    params = make_params(key, num_classes, ndf)

    out = jax.jit(discriminator_forward)(x, params)
    out = jax.block_until_ready(out)
    assert out.shape == (batch, 1, 1, 1), out.shape

    ref = reference_forward(x, params)
    # bf16 activations / bf16 MXU path vs f32 reference -> modest tolerance.
    np.testing.assert_allclose(np.asarray(out, dtype=np.float32), np.asarray(ref),
                               rtol=5e-2, atol=5e-2)

    print("KERNEL_OK")
</pallas_src>

<mosaic_0001>
module attributes {stable_mosaic.version = 11 : i64} {
  func.func @_mm_bias_act_kernel(%arg0: i32, %arg1: memref<256x128xbf16, #tpu.memory_space<vmem>>, %arg2: memref<128x128xbf16, #tpu.memory_space<vmem>>, %arg3: memref<1x128xf32, #tpu.memory_space<vmem>>, %arg4: memref<256x128xbf16, #tpu.memory_space<vmem>>) attributes {dimension_semantics = [#tpu.dimension_semantics<parallel>], iteration_bounds = array<i64: 2>, scalar_prefetch = 0 : i64, scratch_operands = 0 : i64, tpu.core_type = #tpu.core_type<tc>, window_params = [{transform_indices = @transform_0, window_bounds = array<i64: 256, 128>}, {pipeline_mode = #tpu.pipeline_mode<synchronous>, transform_indices = @transform_1, window_bounds = array<i64: 128, 128>}, {pipeline_mode = #tpu.pipeline_mode<synchronous>, transform_indices = @transform_2, window_bounds = array<i64: 1, 128>}, {transform_indices = @transform_3, window_bounds = array<i64: 256, 128>}]} {
    %c0 = arith.constant 0 : index
    %c0_0 = arith.constant 0 : index
    %0 = vector.load %arg1[%c0, %c0_0] : memref<256x128xbf16, #tpu.memory_space<vmem>>, vector<256x128xbf16>
    %c0_1 = arith.constant 0 : index
    %c0_2 = arith.constant 0 : index
    %1 = vector.load %arg2[%c0_1, %c0_2] : memref<128x128xbf16, #tpu.memory_space<vmem>>, vector<128x128xbf16>
    %cst = arith.constant dense<0.000000e+00> : vector<256x128xf32>
    %2 = tpu.matmul %0, %1, %cst {dimension_numbers = #tpu.dot_dimension_numbers<[1], [0], [0], [1], [0, 0, 1, 1], [], []>} : vector<256x128xbf16>, vector<128x128xbf16>, vector<256x128xf32> -> vector<256x128xf32>
    %c0_3 = arith.constant 0 : index
    %c0_4 = arith.constant 0 : index
    %3 = vector.load %arg3[%c0_3, %c0_4] : memref<1x128xf32, #tpu.memory_space<vmem>>, vector<1x128xf32>
    %4 = vector.broadcast %3 : vector<1x128xf32> to vector<256x128xf32>
    %5 = arith.addf %2, %4 : vector<256x128xf32>
    %cst_5 = arith.constant 0.000000e+00 : f32
    %6 = vector.broadcast %cst_5 : f32 to vector<256x128xf32>
    %7 = arith.cmpf oge, %5, %6 : vector<256x128xf32>
    %cst_6 = arith.constant 2.000000e-01 : f32
    %8 = vector.broadcast %cst_6 : f32 to vector<256x128xf32>
    %9 = arith.mulf %8, %5 : vector<256x128xf32>
    %10 = arith.select %7, %5, %9 : vector<256x128xi1>, vector<256x128xf32>
    %11 = arith.truncf %10 : vector<256x128xf32> to vector<256x128xbf16>
    %c0_7 = arith.constant 0 : index
    %c0_8 = arith.constant 0 : index
    %12 = vector.load %arg4[%c0_7, %c0_8] : memref<256x128xbf16, #tpu.memory_space<vmem>>, vector<256x128xbf16>
    tpu.vector_store %arg4[%c0_7, %c0_8], %11 {strides = array<i32>} : memref<256x128xbf16, #tpu.memory_space<vmem>>, vector<256x128xbf16>,
    return
  }
  func.func @transform_0(%arg0: i32) -> (i32, i32) {
    %c0_i32 = arith.constant 0 : i32
    %c0_i32_0 = arith.constant 0 : i32
    return %arg0, %c0_i32 : i32, i32
  }
  func.func @transform_1(%arg0: i32) -> (i32, i32) {
    %c0_i32 = arith.constant 0 : i32
    %c0_i32_0 = arith.constant 0 : i32
    %c0_i32_1 = arith.constant 0 : i32
    return %c0_i32, %c0_i32_0 : i32, i32
  }
  func.func @transform_2(%arg0: i32) -> (i32, i32) {
    %c0_i32 = arith.constant 0 : i32
    %c0_i32_0 = arith.constant 0 : i32
    %c0_i32_1 = arith.constant 0 : i32
    return %c0_i32, %c0_i32_0 : i32, i32
  }
  func.func @transform_3(%arg0: i32) -> (i32, i32) {
    %c0_i32 = arith.constant 0 : i32
    %c0_i32_0 = arith.constant 0 : i32
    return %arg0, %c0_i32 : i32, i32
  }
}

module attributes {stable_mosaic.version = 11 : i64} {
  func.func @_mm_bias_act_kernel(%arg0: i32, %arg1: memref<128x1024xbf16, #tpu.memory_space<vmem>>, %arg2: memref<1024x128xbf16, #tpu.memory_space<vmem>>, %arg3: memref<1x128xf32, #tpu.memory_space<vmem>>, %arg4: memref<128x128xbf16, #tpu.memory_space<vmem>>) attributes {dimension_semantics = [#tpu.dimension_semantics<parallel>], iteration_bounds = array<i64: 1>, scalar_prefetch = 0 : i64, scratch_operands = 0 : i64, tpu.core_type = #tpu.core_type<tc>, window_params = [{transform_indices = @transform_0, window_bounds = array<i64: 128, 1024>}, {pipeline_mode = #tpu.pipeline_mode<synchronous>, transform_indices = @transform_1, window_bounds = array<i64: 1024, 128>}, {pipeline_mode = #tpu.pipeline_mode<synchronous>, transform_indices = @transform_2, window_bounds = array<i64: 1, 128>}, {transform_indices = @transform_3, window_bounds = array<i64: 128, 128>}]} {
    %c0 = arith.constant 0 : index
    %c0_0 = arith.constant 0 : index
    %0 = vector.load %arg1[%c0, %c0_0] : memref<128x1024xbf16, #tpu.memory_space<vmem>>, vector<128x1024xbf16>
    %c0_1 = arith.constant 0 : index
    %c0_2 = arith.constant 0 : index
    %1 = vector.load %arg2[%c0_1, %c0_2] : memref<1024x128xbf16, #tpu.memory_space<vmem>>, vector<1024x128xbf16>
    %cst = arith.constant dense<0.000000e+00> : vector<128x128xf32>
    %2 = tpu.matmul %0, %1, %cst {dimension_numbers = #tpu.dot_dimension_numbers<[1], [0], [0], [1], [0, 0, 1, 1], [], []>} : vector<128x1024xbf16>, vector<1024x128xbf16>, vector<128x128xf32> -> vector<128x128xf32>
    %c0_3 = arith.constant 0 : index
    %c0_4 = arith.constant 0 : index
    %3 = vector.load %arg3[%c0_3, %c0_4] : memref<1x128xf32, #tpu.memory_space<vmem>>, vector<1x128xf32>
    %4 = vector.broadcast %3 : vector<1x128xf32> to vector<128x128xf32>
    %5 = arith.addf %2, %4 : vector<128x128xf32>
    %cst_5 = arith.constant 0.000000e+00 : f32
    %6 = vector.broadcast %cst_5 : f32 to vector<128x128xf32>
    %7 = arith.cmpf oge, %5, %6 : vector<128x128xf32>
    %cst_6 = arith.constant 2.000000e-01 : f32
    %8 = vector.broadcast %cst_6 : f32 to vector<128x128xf32>
    %9 = arith.mulf %8, %5 : vector<128x128xf32>
    %10 = arith.select %7, %5, %9 : vector<128x128xi1>, vector<128x128xf32>
    %11 = arith.truncf %10 : vector<128x128xf32> to vector<128x128xbf16>
    %c0_7 = arith.constant 0 : index
    %c0_8 = arith.constant 0 : index
    %12 = vector.load %arg4[%c0_7, %c0_8] : memref<128x128xbf16, #tpu.memory_space<vmem>>, vector<128x128xbf16>
    tpu.vector_store %arg4[%c0_7, %c0_8], %11 {strides = array<i32>} : memref<128x128xbf16, #tpu.memory_space<vmem>>, vector<128x128xbf16>,
    return
  }
  func.func @transform_0(%arg0: i32) -> (i32, i32) {
    %c0_i32 = arith.constant 0 : i32
    %c0_i32_0 = arith.constant 0 : i32
    return %arg0, %c0_i32 : i32, i32
  }
  func.func @transform_1(%arg0: i32) -> (i32, i32) {
    %c0_i32 = arith.constant 0 : i32
    %c0_i32_0 = arith.constant 0 : i32
    %c0_i32_1 = arith.constant 0 : i32
    return %c0_i32, %c0_i32_0 : i32, i32
  }
  func.func @transform_2(%arg0: i32) -> (i32, i32) {
    %c0_i32 = arith.constant 0 : i32
    %c0_i32_0 = arith.constant 0 : i32
    %c0_i32_1 = arith.constant 0 : i32
    return %c0_i32, %c0_i32_0 : i32, i32
  }
  func.func @transform_3(%arg0: i32) -> (i32, i32) {
    %c0_i32 = arith.constant 0 : i32
    %c0_i32_0 = arith.constant 0 : i32
    return %arg0, %c0_i32 : i32, i32
  }
}

module attributes {stable_mosaic.version = 11 : i64} {
  func.func @_mm_bias_act_kernel(%arg0: i32, %arg1: memref<32x2048xbf16, #tpu.memory_space<vmem>>, %arg2: memref<2048x256xbf16, #tpu.memory_space<vmem>>, %arg3: memref<1x256xf32, #tpu.memory_space<vmem>>, %arg4: memref<32x256xbf16, #tpu.memory_space<vmem>>) attributes {dimension_semantics = [#tpu.dimension_semantics<parallel>], iteration_bounds = array<i64: 1>, scalar_prefetch = 0 : i64, scratch_operands = 0 : i64, tpu.core_type = #tpu.core_type<tc>, window_params = [{transform_indices = @transform_0, window_bounds = array<i64: 32, 2048>}, {pipeline_mode = #tpu.pipeline_mode<synchronous>, transform_indices = @transform_1, window_bounds = array<i64: 2048, 256>}, {pipeline_mode = #tpu.pipeline_mode<synchronous>, transform_indices = @transform_2, window_bounds = array<i64: 1, 256>}, {transform_indices = @transform_3, window_bounds = array<i64: 32, 256>}]} {
    %c0 = arith.constant 0 : index
    %c0_0 = arith.constant 0 : index
    %0 = vector.load %arg1[%c0, %c0_0] : memref<32x2048xbf16, #tpu.memory_space<vmem>>, vector<32x2048xbf16>
    %c0_1 = arith.constant 0 : index
    %c0_2 = arith.constant 0 : index
    %1 = vector.load %arg2[%c0_1, %c0_2] : memref<2048x256xbf16, #tpu.memory_space<vmem>>, vector<2048x256xbf16>
    %cst = arith.constant dense<0.000000e+00> : vector<32x256xf32>
    %2 = tpu.matmul %0, %1, %cst {dimension_numbers = #tpu.dot_dimension_numbers<[1], [0], [0], [1], [0, 0, 1, 1], [], []>} : vector<32x2048xbf16>, vector<2048x256xbf16>, vector<32x256xf32> -> vector<32x256xf32>
    %c0_3 = arith.constant 0 : index
    %c0_4 = arith.constant 0 : index
    %3 = vector.load %arg3[%c0_3, %c0_4] : memref<1x256xf32, #tpu.memory_space<vmem>>, vector<1x256xf32>
    %4 = vector.broadcast %3 : vector<1x256xf32> to vector<32x256xf32>
    %5 = arith.addf %2, %4 : vector<32x256xf32>
    %cst_5 = arith.constant 0.000000e+00 : f32
    %6 = vector.broadcast %cst_5 : f32 to vector<32x256xf32>
    %7 = arith.cmpf oge, %5, %6 : vector<32x256xf32>
    %cst_6 = arith.constant 2.000000e-01 : f32
    %8 = vector.broadcast %cst_6 : f32 to vector<32x256xf32>
    %9 = arith.mulf %8, %5 : vector<32x256xf32>
    %10 = arith.select %7, %5, %9 : vector<32x256xi1>, vector<32x256xf32>
    %11 = arith.truncf %10 : vector<32x256xf32> to vector<32x256xbf16>
    %c0_7 = arith.constant 0 : index
    %c0_8 = arith.constant 0 : index
    %12 = vector.load %arg4[%c0_7, %c0_8] : memref<32x256xbf16, #tpu.memory_space<vmem>>, vector<32x256xbf16>
    tpu.vector_store %arg4[%c0_7, %c0_8], %11 {strides = array<i32>} : memref<32x256xbf16, #tpu.memory_space<vmem>>, vector<32x256xbf16>,
    return
  }
  func.func @transform_0(%arg0: i32) -> (i32, i32) {
    %c0_i32 = arith.constant 0 : i32
    %c0_i32_0 = arith.constant 0 : i32
    return %arg0, %c0_i32 : i32, i32
  }
  func.func @transform_1(%arg0: i32) -> (i32, i32) {
    %c0_i32 = arith.constant 0 : i32
    %c0_i32_0 = arith.constant 0 : i32
    %c0_i32_1 = arith.constant 0 : i32
    return %c0_i32, %c0_i32_0 : i32, i32
  }
  func.func @transform_2(%arg0: i32) -> (i32, i32) {
    %c0_i32 = arith.constant 0 : i32
    %c0_i32_0 = arith.constant 0 : i32
    %c0_i32_1 = arith.constant 0 : i32
    return %c0_i32, %c0_i32_0 : i32, i32
  }
  func.func @transform_3(%arg0: i32) -> (i32, i32) {
    %c0_i32 = arith.constant 0 : i32
    %c0_i32_0 = arith.constant 0 : i32
    return %arg0, %c0_i32 : i32, i32
  }
}

module attributes {stable_mosaic.version = 11 : i64} {
  func.func @_mm_bias_act_ktiled_kernel(%arg0: i32, %arg1: i32, %arg2: memref<8x2048xbf16, #tpu.memory_space<vmem>>, %arg3: memref<2048x512xbf16, #tpu.memory_space<vmem>>, %arg4: memref<1x512xf32, #tpu.memory_space<vmem>>, %arg5: memref<8x512xbf16, #tpu.memory_space<vmem>>, %arg6: memref<8x512xf32, #tpu.memory_space<vmem>>) attributes {dimension_semantics = [#tpu.dimension_semantics<parallel>, #tpu.dimension_semantics<arbitrary>], iteration_bounds = array<i64: 1, 2>, scalar_prefetch = 0 : i64, scratch_operands = 1 : i64, tpu.core_type = #tpu.core_type<tc>, window_params = [{transform_indices = @transform_0, window_bounds = array<i64: 8, 2048>}, {transform_indices = @transform_1, window_bounds = array<i64: 2048, 512>}, {pipeline_mode = #tpu.pipeline_mode<synchronous>, transform_indices = @transform_2, window_bounds = array<i64: 1, 512>}, {transform_indices = @transform_3, window_bounds = array<i64: 8, 512>}]} {
    %c0_i32 = arith.constant 0 : i32
    %0 = arith.cmpi eq, %arg1, %c0_i32 : i32
    %1 = arith.extui %0 : i1 to i32
    %c0_i32_0 = arith.constant 0 : i32
    %2 = arith.cmpi ne, %1, %c0_i32_0 : i32
    scf.if %2 {
      %cst_9 = arith.constant 0.000000e+00 : f32
      %12 = vector.broadcast %cst_9 : f32 to vector<8x512xf32>
      %c0_10 = arith.constant 0 : index
      %c0_11 = arith.constant 0 : index
      %13 = vector.load %arg6[%c0_10, %c0_11] : memref<8x512xf32, #tpu.memory_space<vmem>>, vector<8x512xf32>
      tpu.vector_store %arg6[%c0_10, %c0_11], %12 {strides = array<i32>} : memref<8x512xf32, #tpu.memory_space<vmem>>, vector<8x512xf32>,
    } else {
    }
    %c0 = arith.constant 0 : index
    %c0_1 = arith.constant 0 : index
    %3 = vector.load %arg6[%c0, %c0_1] : memref<8x512xf32, #tpu.memory_space<vmem>>, vector<8x512xf32>
    %c0_2 = arith.constant 0 : index
    %c0_3 = arith.constant 0 : index
    %4 = vector.load %arg2[%c0_2, %c0_3] : memref<8x2048xbf16, #tpu.memory_space<vmem>>, vector<8x2048xbf16>
    %c0_4 = arith.constant 0 : index
    %c0_5 = arith.constant 0 : index
    %5 = vector.load %arg3[%c0_4, %c0_5] : memref<2048x512xbf16, #tpu.memory_space<vmem>>, vector<2048x512xbf16>
    %cst = arith.constant dense<0.000000e+00> : vector<8x512xf32>
    %6 = tpu.matmul %4, %5, %cst {dimension_numbers = #tpu.dot_dimension_numbers<[1], [0], [0], [1], [0, 0, 1, 1], [], []>} : vector<8x2048xbf16>, vector<2048x512xbf16>, vector<8x512xf32> -> vector<8x512xf32>
    %7 = arith.addf %3, %6 : vector<8x512xf32>
    %c0_6 = arith.constant 0 : index
    %c0_7 = arith.constant 0 : index
    %8 = vector.load %arg6[%c0_6, %c0_7] : memref<8x512xf32, #tpu.memory_space<vmem>>, vector<8x512xf32>
    tpu.vector_store %arg6[%c0_6, %c0_7], %7 {strides = array<i32>} : memref<8x512xf32, #tpu.memory_space<vmem>>, vector<8x512xf32>,
    %c1_i32 = arith.constant 1 : i32
    %9 = arith.cmpi eq, %arg1, %c1_i32 : i32
    %10 = arith.extui %9 : i1 to i32
    %c0_i32_8 = arith.constant 0 : i32
    %11 = arith.cmpi ne, %10, %c0_i32_8 : i32
    scf.if %11 {
      %c0_9 = arith.constant 0 : index
      %c0_10 = arith.constant 0 : index
      %12 = vector.load %arg6[%c0_9, %c0_10] : memref<8x512xf32, #tpu.memory_space<vmem>>, vector<8x512xf32>
      %c0_11 = arith.constant 0 : index
      %c0_12 = arith.constant 0 : index
      %13 = vector.load %arg4[%c0_11, %c0_12] : memref<1x512xf32, #tpu.memory_space<vmem>>, vector<1x512xf32>
      %14 = vector.broadcast %13 : vector<1x512xf32> to vector<8x512xf32>
      %15 = arith.addf %12, %14 : vector<8x512xf32>
      %cst_13 = arith.constant 0.000000e+00 : f32
      %16 = vector.broadcast %cst_13 : f32 to vector<8x512xf32>
      %17 = arith.cmpf oge, %15, %16 : vector<8x512xf32>
      %cst_14 = arith.constant 2.000000e-01 : f32
      %18 = vector.broadcast %cst_14 : f32 to vector<8x512xf32>
      %19 = arith.mulf %18, %15 : vector<8x512xf32>
      %20 = arith.select %17, %15, %19 : vector<8x512xi1>, vector<8x512xf32>
      %21 = arith.truncf %20 : vector<8x512xf32> to vector<8x512xbf16>
      %c0_15 = arith.constant 0 : index
      %c0_16 = arith.constant 0 : index
      %22 = vector.load %arg5[%c0_15, %c0_16] : memref<8x512xbf16, #tpu.memory_space<vmem>>, vector<8x512xbf16>
      tpu.vector_store %arg5[%c0_15, %c0_16], %21 {strides = array<i32>} : memref<8x512xbf16, #tpu.memory_space<vmem>>, vector<8x512xbf16>,
    } else {
    }
    return
  }
  func.func @transform_0(%arg0: i32, %arg1: i32) -> (i32, i32) {
    %c0_i32 = arith.constant 0 : i32
    return %arg0, %arg1 : i32, i32
  }
  func.func @transform_1(%arg0: i32, %arg1: i32) -> (i32, i32) {
    %c0_i32 = arith.constant 0 : i32
    %c0_i32_0 = arith.constant 0 : i32
    return %arg1, %c0_i32 : i32, i32
  }
  func.func @transform_2(%arg0: i32, %arg1: i32) -> (i32, i32) {
    %c0_i32 = arith.constant 0 : i32
    %c0_i32_0 = arith.constant 0 : i32
    %c0_i32_1 = arith.constant 0 : i32
    return %c0_i32, %c0_i32_0 : i32, i32
  }
  func.func @transform_3(%arg0: i32, %arg1: i32) -> (i32, i32) {
    %c0_i32 = arith.constant 0 : i32
    %c0_i32_0 = arith.constant 0 : i32
    return %arg0, %c0_i32 : i32, i32
  }
}

module attributes {stable_mosaic.version = 11 : i64} {
  func.func @_matvec_bias_kernel(%arg0: i32, %arg1: memref<2x8192xbf16, #tpu.memory_space<vmem>>, %arg2: memref<1x8192xbf16, #tpu.memory_space<vmem>>, %arg3: memref<1x1xf32, #tpu.memory_space<vmem>>, %arg4: memref<2x1xf32, #tpu.memory_space<vmem>>) attributes {dimension_semantics = [#tpu.dimension_semantics<parallel>], iteration_bounds = array<i64: 1>, scalar_prefetch = 0 : i64, scratch_operands = 0 : i64, tpu.core_type = #tpu.core_type<tc>, window_params = [{transform_indices = @transform_0, window_bounds = array<i64: 2, 8192>}, {pipeline_mode = #tpu.pipeline_mode<synchronous>, transform_indices = @transform_1, window_bounds = array<i64: 1, 8192>}, {pipeline_mode = #tpu.pipeline_mode<synchronous>, transform_indices = @transform_2, window_bounds = array<i64: 1, 1>}, {transform_indices = @transform_3, window_bounds = array<i64: 2, 1>}]} {
    %c0 = arith.constant 0 : index
    %c0_0 = arith.constant 0 : index
    %0 = vector.load %arg1[%c0, %c0_0] : memref<2x8192xbf16, #tpu.memory_space<vmem>>, vector<2x8192xbf16>
    %1 = arith.extf %0 : vector<2x8192xbf16> to vector<2x8192xf32>
    %c0_1 = arith.constant 0 : index
    %c0_2 = arith.constant 0 : index
    %2 = vector.load %arg2[%c0_1, %c0_2] : memref<1x8192xbf16, #tpu.memory_space<vmem>>, vector<1x8192xbf16>
    %3 = arith.extf %2 : vector<1x8192xbf16> to vector<1x8192xf32>
    %4 = vector.broadcast %3 : vector<1x8192xf32> to vector<2x8192xf32>
    %5 = arith.mulf %1, %4 : vector<2x8192xf32>
    %cst = arith.constant dense<0.000000e+00> : vector<2xf32>
    %6 = vector.multi_reduction <add>, %5, %cst [1] : vector<2x8192xf32> to vector<2xf32>
    %7 = vector.shape_cast %6 : vector<2xf32> to vector<2x1xf32>
    %c0_3 = arith.constant 0 : index
    %c0_4 = arith.constant 0 : index
    %8 = vector.load %arg3[%c0_3, %c0_4] : memref<1x1xf32, #tpu.memory_space<vmem>>, vector<1x1xf32>
    %9 = vector.broadcast %8 : vector<1x1xf32> to vector<2x1xf32>
    %10 = arith.addf %7, %9 : vector<2x1xf32>
    %c0_5 = arith.constant 0 : index
    %c0_6 = arith.constant 0 : index
    %11 = vector.load %arg4[%c0_5, %c0_6] : memref<2x1xf32, #tpu.memory_space<vmem>>, vector<2x1xf32>
    tpu.vector_store %arg4[%c0_5, %c0_6], %10 {strides = array<i32>} : memref<2x1xf32, #tpu.memory_space<vmem>>, vector<2x1xf32>,
    return
  }
  func.func @transform_0(%arg0: i32) -> (i32, i32) {
    %c0_i32 = arith.constant 0 : i32
    %c0_i32_0 = arith.constant 0 : i32
    return %arg0, %c0_i32 : i32, i32
  }
  func.func @transform_1(%arg0: i32) -> (i32, i32) {
    %c0_i32 = arith.constant 0 : i32
    %c0_i32_0 = arith.constant 0 : i32
    %c0_i32_1 = arith.constant 0 : i32
    return %c0_i32, %c0_i32_0 : i32, i32
  }
  func.func @transform_2(%arg0: i32) -> (i32, i32) {
    %c0_i32 = arith.constant 0 : i32
    %c0_i32_0 = arith.constant 0 : i32
    %c0_i32_1 = arith.constant 0 : i32
    return %c0_i32, %c0_i32_0 : i32, i32
  }
  func.func @transform_3(%arg0: i32) -> (i32, i32) {
    %c0_i32 = arith.constant 0 : i32
    %c0_i32_0 = arith.constant 0 : i32
    return %arg0, %c0_i32 : i32, i32
  }
}

</mosaic_0001>

<llo_original>
// kernel: discriminator_forward.5
$region0: #{discriminator_forward.5}
  #allocation0 [shape = 'u32[]', space=smem, size = 0x4, offset = 0x4, fixed_abs, tag = 'smem constant byte address 0x4 - core index']
  #allocation1 [shape = 'u32[144,128]{1,0:T(1,128)}', space=vmem, size = 0x12000, scoped, tag = 'internal scratch']
  %s0 = inlined_call_operand.vmem [shape: bf16[512,128], index: 0, kind: input, shape index: {}]
  %s1 = inlined_call_operand.vmem [shape: bf16[128,128], index: 1, kind: input, shape index: {}]
  %s2 = inlined_call_operand.vmem [shape: f32[1,128], index: 2, kind: input, shape index: {}]
  %s3 = inlined_call_operand.vmem [shape: bf16[512,128], index: 3, kind: output, shape index: {}]
  %s4 = sld [smem:[#allocation0]]
  $region45: #{discriminator_forward.5} parent=0
    _
  %s6 = ssub.s32 1, %s4
  %s7 = scalar_select 0, %s6, %s4
  loop: start=0, step=1, limit=4
  $region2: #{discriminator_forward.5} parent=0 // loop_pre_header
    _
  $region3: #{discriminator_forward.5} parent=0 // loop_header
    %s9 = sphi 0, %s13
    %p10 = scmp.ge.s32.totalorder %s9, 4
    %s19 = sphi 0, %s21
    %s22 = sphi 0, %s19
    %s23 = sphi 0, %s22
    %s39 = sphi 0, %s23
    %s43 = sphi 0, %s43
    %s45 = sphi 0, %s43
    %s46 = sphi 0, %s45
    %s60 = sphi 0, %s46
    %s64 = sphi 0, %s64
    %s66 = sphi 0, %s64
    %s67 = sphi 0, %s66
    %s81 = sphi 0, %s67
    %s87 = sphi 0, %s89
    %s90 = sphi 0, %s87
    %s91 = sphi 0, %s90
    %s107 = sphi 0, %s91
  $region4: #{discriminator_forward.5} parent=0 // loop_header_branch
    %12 = sbr.rel (%p10) target = $region8
  $region5: #{discriminator_forward.5} parent=0 // loop_body
    %s14 = ssub.s32 %s9, 1
    %s15 = ssub.s32 %s9, 2
    %s16 = sadd.s32 %s9, 1
    %s17 = ssub.s32 %s9, %s16
    %p18 = scmp.eq.s32.totalorder %s17, 0
    %s20 = sadd.s32 %s19, 1
    %s21 = scalar_select %p18, %s19, %s20
    %p24 = pneg %p18
    %p25 = scmp.eq.s32.totalorder %s9, 1
    %p26 = por %p24, %p25
    %p27 = scmp.ne.s32.totalorder %s19, %s22
    %p28 = scmp.eq.s32.totalorder %s9, 0
    %p29 = por %p27, %p28
    %p30 = scmp.ne.s32.totalorder %s19, %s22
    %p31 = scmp.eq.s32.totalorder %s14, 1
    %p32 = por %p30, %p31
    %p33 = scmp.ne.s32.totalorder %s22, %s23
    %p34 = scmp.eq.s32.totalorder %s14, 0
    %p35 = por %p33, %p34
    %p36 = scmp.ne.s32.totalorder %s22, %s23
    %p37 = scmp.eq.s32.totalorder %s15, 1
    %p38 = por %p36, %p37
    %p40 = scmp.ne.s32.totalorder %s23, %s39
    %p41 = scmp.eq.s32.totalorder %s15, 0
    %p42 = por %p40, %p41
    %s44 = sadd.s32 %s43, 1
    %p47 = scmp.eq.s32.totalorder %s9, 1
    %p48 = scmp.ne.s32.totalorder %s43, %s45
    %p49 = scmp.eq.s32.totalorder %s9, 0
    %p50 = por %p48, %p49
    %p51 = scmp.ne.s32.totalorder %s43, %s45
    %p52 = scmp.eq.s32.totalorder %s14, 1
    %p53 = por %p51, %p52
    %p54 = scmp.ne.s32.totalorder %s45, %s46
    %p55 = scmp.eq.s32.totalorder %s14, 0
    %p56 = por %p54, %p55
    %p57 = scmp.ne.s32.totalorder %s45, %s46
    %p58 = scmp.eq.s32.totalorder %s15, 1
    %p59 = por %p57, %p58
    %p61 = scmp.ne.s32.totalorder %s46, %s60
    %p62 = scmp.eq.s32.totalorder %s15, 0
    %p63 = por %p61, %p62
    %s65 = sadd.s32 %s64, 1
    %p68 = scmp.eq.s32.totalorder %s9, 1
    %p69 = scmp.ne.s32.totalorder %s64, %s66
    %p70 = scmp.eq.s32.totalorder %s9, 0
    %p71 = por %p69, %p70
    %p72 = scmp.ne.s32.totalorder %s64, %s66
    %p73 = scmp.eq.s32.totalorder %s14, 1
    %p74 = por %p72, %p73
    %p75 = scmp.ne.s32.totalorder %s66, %s67
    %p76 = scmp.eq.s32.totalorder %s14, 0
    %p77 = por %p75, %p76
    %p78 = scmp.ne.s32.totalorder %s66, %s67
    %p79 = scmp.eq.s32.totalorder %s15, 1
    %p80 = por %p78, %p79
    %p82 = scmp.ne.s32.totalorder %s67, %s81
    %p83 = scmp.eq.s32.totalorder %s15, 0
    %p84 = por %p82, %p83
    %s85 = ssub.s32 %s9, %s16
    %p86 = scmp.eq.s32.totalorder %s85, 0
    %s88 = sadd.s32 %s87, 1
    %s89 = scalar_select %p86, %s87, %s88
    %p92 = pneg %p86
    %p93 = scmp.eq.s32.totalorder %s9, 1
    %p94 = por %p92, %p93
    %p95 = scmp.ne.s32.totalorder %s87, %s90
    %p96 = scmp.eq.s32.totalorder %s9, 0
    %p97 = por %p95, %p96
    %p98 = scmp.ne.s32.totalorder %s87, %s90
    %p99 = scmp.eq.s32.totalorder %s14, 1
    %p100 = por %p98, %p99
    %p101 = scmp.ne.s32.totalorder %s90, %s91
    %p102 = scmp.eq.s32.totalorder %s14, 0
    %p103 = por %p101, %p102
    %p104 = scmp.ne.s32.totalorder %s90, %s91
    %p105 = scmp.eq.s32.totalorder %s15, 1
    %p106 = por %p104, %p105
    %p108 = scmp.ne.s32.totalorder %s91, %s107
    %p109 = scmp.eq.s32.totalorder %s15, 0
    %p110 = por %p108, %p109
    %p111 = scmp.le.s32.totalorder 1, %s9
    %p112 = scmp.lt.s32.totalorder %s9, 3
    %p113 = pnand %p111, %p112
    %p114 = pneg %p113
    // Predicated region
    $region9: #{discriminator_forward.5} parent=5 // pred_check
      _
    $region10: #{discriminator_forward.5} parent=5 // pred_check_branch
      %116 = sbr.rel (%p113) target = $region12
    $region11: #{discriminator_forward.5} parent=5 // pred_region
      %s117 = ssub.s32 %s9, 1
      // Predicated region
      $region13: #{discriminator_forward.5} parent=11 // pred_check
        %p118 = pneg %p56
      $region14: #{discriminator_forward.5} parent=11 // pred_check_branch
        %120 = sbr.rel (%p118) target = $region16
      $region15: #{discriminator_forward.5} parent=11 // pred_region
        _
      $region16: #{discriminator_forward.5} parent=11 // pred_fallthru
        _
      // Predicated region
      $region17: #{discriminator_forward.5} parent=11 // pred_check
        %p121 = pneg %p77
      $region18: #{discriminator_forward.5} parent=11 // pred_check_branch
        %123 = sbr.rel (%p121) target = $region20
      $region19: #{discriminator_forward.5} parent=11 // pred_region
        _
      $region20: #{discriminator_forward.5} parent=11 // pred_fallthru
        _
    $region12: #{discriminator_forward.5} parent=5 // pred_fallthru
      _
    %p124 = scmp.lt.s32.totalorder %s9, 2
    // Predicated region
    $region21: #{discriminator_forward.5} parent=5 // pred_check
      %p125 = pneg %p124
    $region22: #{discriminator_forward.5} parent=5 // pred_check_branch
      %127 = sbr.rel (%p125) target = $region24
    $region23: #{discriminator_forward.5} parent=5 // pred_region
      // Predicated region
      $region25: #{discriminator_forward.5} parent=23 // pred_check
        %p128 = pneg %p29
      $region26: #{discriminator_forward.5} parent=23 // pred_check_branch
        %130 = sbr.rel (%p128) target = $region28
      $region27: #{discriminator_forward.5} parent=23 // pred_region
        %s131 = smul.u32 32, %s9
        %p132 = scmp.lt.s32.totalorder %s131, 63
        %s133 = scalar_select %p132, %s131, 63
        %s134 = smul.addr %s133, 4
        %s135 = scalar_lea.vmem %s0, %s134
        %s136 = smul.u32 32, %s9
      $region28: #{discriminator_forward.5} parent=23 // pred_fallthru
        _
    $region24: #{discriminator_forward.5} parent=5 // pred_fallthru
      _
    %p137 = scmp.le.s32.totalorder 1, %s9
    %p138 = scmp.lt.s32.totalorder %s9, 3
    %p139 = pnand %p137, %p138
    %p140 = pneg %p139
    // Predicated region
    $region29: #{discriminator_forward.5} parent=5 // pred_check
      _
    $region30: #{discriminator_forward.5} parent=5 // pred_check_branch
      %142 = sbr.rel (%p139) target = $region32
    $region31: #{discriminator_forward.5} parent=5 // pred_region
      %s143 = ssub.s32 %s9, 1
      %s144 = smul.u32 32, %s14
      %p145 = scmp.lt.s32.totalorder %s144, 63
      %s146 = scalar_select %p145, %s144, 63
      %s147 = smul.addr %s146, 4
      %s148 = scalar_lea.vmem %s0, %s147
      %p149 = pneg %p35
      %p150 = pneg %p32
      %p151 = pneg %p56
      %p152 = pneg %p53
      %p153 = pneg %p77
      %p154 = pneg %p74
      %p155 = pneg %p103
      %p156 = pneg %p100
      %s157 = smul.u32 32, %s14
      %p158 = scmp.lt.s32.totalorder %s157, 63
      %s159 = scalar_select %p158, %s157, 63
      %s160 = smul.addr %s159, 4
      %s161 = scalar_lea.vmem %s3, %s160
      %s162 = smul.u32 32, %s14
      %p163 = scmp.lt.s32.totalorder %s162, 63
      %s164 = scalar_select %p163, %s162, 63
      %s165 = smul.addr %s164, 4
      %s166 = scalar_lea.vmem %s0, %s165
      %s167 = smul.u32 32, %s14
      %s168 = smul.u32 32, %s14
      %p169 = scmp.lt.s32.totalorder %s168, 63
      %s170 = scalar_select %p169, %s168, 63
      %s171 = smul.addr %s170, 4
      %s172 = scalar_lea.vmem %s3, %s171
      %s173 = smul.u32 32, %s14
      %v175 = vld [vmem:[%s166] sm:$0xf]
      %v176 = vld [vmem:[%s166 + $0x4] sm:$0xf]
      %v177 = vld [vmem:[%s166 + $0x8] sm:$0xf]
      %v178 = vld [vmem:[%s166 + $0xc] sm:$0xf]
      %v179 = vld [vmem:[%s166 + $0x10] sm:$0xf]
      %v180 = vld [vmem:[%s166 + $0x14] sm:$0xf]
      %v181 = vld [vmem:[%s166 + $0x18] sm:$0xf]
      %v182 = vld [vmem:[%s166 + $0x1c] sm:$0xf]
      %v183 = vld [vmem:[%s166 + $0x20] sm:$0xf]
      %v184 = vld [vmem:[%s166 + $0x24] sm:$0xf]
      %v185 = vld [vmem:[%s166 + $0x28] sm:$0xf]
      %v186 = vld [vmem:[%s166 + $0x2c] sm:$0xf]
      %v187 = vld [vmem:[%s166 + $0x30] sm:$0xf]
      %v188 = vld [vmem:[%s166 + $0x34] sm:$0xf]
      %v189 = vld [vmem:[%s166 + $0x38] sm:$0xf]
      %v190 = vld [vmem:[%s166 + $0x3c] sm:$0xf]
      %v191 = vld [vmem:[%s166 + $0x40] sm:$0xf]
      %v192 = vld [vmem:[%s166 + $0x44] sm:$0xf]
      %v193 = vld [vmem:[%s166 + $0x48] sm:$0xf]
      %v194 = vld [vmem:[%s166 + $0x4c] sm:$0xf]
      %v195 = vld [vmem:[%s166 + $0x50] sm:$0xf]
      %v196 = vld [vmem:[%s166 + $0x54] sm:$0xf]
      %v197 = vld [vmem:[%s166 + $0x58] sm:$0xf]
      %v198 = vld [vmem:[%s166 + $0x5c] sm:$0xf]
      %v199 = vld [vmem:[%s166 + $0x60] sm:$0xf]
      %v200 = vld [vmem:[%s166 + $0x64] sm:$0xf]
      %v201 = vld [vmem:[%s166 + $0x68] sm:$0xf]
      %v202 = vld [vmem:[%s166 + $0x6c] sm:$0xf]
      %v203 = vld [vmem:[%s166 + $0x70] sm:$0xf]
      %v204 = vld [vmem:[%s166 + $0x74] sm:$0xf]
      %v205 = vld [vmem:[%s166 + $0x78] sm:$0xf]
      %v206 = vld [vmem:[%s166 + $0x7c] sm:$0xf]
      %v207 = vld [vmem:[%s1] sm:$0xf]
      %v208 = vld [vmem:[%s1 + $0x4] sm:$0xf]
      %v209 = vld [vmem:[%s1 + $0x8] sm:$0xf]
      %v210 = vld [vmem:[%s1 + $0xc] sm:$0xf]
      %v211 = vld [vmem:[%s1 + $0x10] sm:$0xf]
      %v212 = vld [vmem:[%s1 + $0x14] sm:$0xf]
      %v213 = vld [vmem:[%s1 + $0x18] sm:$0xf]
      %v214 = vld [vmem:[%s1 + $0x1c] sm:$0xf]
      %v215 = vld [vmem:[%s1 + $0x20] sm:$0xf]
      %v216 = vld [vmem:[%s1 + $0x24] sm:$0xf]
      %v217 = vld [vmem:[%s1 + $0x28] sm:$0xf]
      %v218 = vld [vmem:[%s1 + $0x2c] sm:$0xf]
      %v219 = vld [vmem:[%s1 + $0x30] sm:$0xf]
      %v220 = vld [vmem:[%s1 + $0x34] sm:$0xf]
      %v221 = vld [vmem:[%s1 + $0x38] sm:$0xf]
      %v222 = vld [vmem:[%s1 + $0x3c] sm:$0xf]
      %v223 = vld [vmem:[%s2] sm:$0x1]
      %v225 = vlaneseq
      %v226 = vshrl.u32 %v225, 7
      %v227 = vsub.s32 0, %v226
      %v228 = vrot.slane %v223, %v227
      %v262 = vunpack.c.l.b16 %v175
      %v263 = vunpack.c.l.b16 %v176
      %v264 = vunpack.c.l.b16 %v177
      %v265 = vunpack.c.l.b16 %v178
      %v266 = vunpack.c.l.b16 %v179
      %v267 = vunpack.c.l.b16 %v180
      %v268 = vunpack.c.l.b16 %v181
      %v269 = vunpack.c.l.b16 %v182
      %v270 = vunpack.c.l.b16 %v183
      %v271 = vunpack.c.l.b16 %v184
      %v272 = vunpack.c.l.b16 %v185
      %v273 = vunpack.c.l.b16 %v186
      %v274 = vunpack.c.l.b16 %v187
      %v275 = vunpack.c.l.b16 %v188
      %v276 = vunpack.c.l.b16 %v189
      %v277 = vunpack.c.l.b16 %v190
      %v278 = vunpack.c.l.b16 %v191
      %v279 = vunpack.c.l.b16 %v192
      %v280 = vunpack.c.l.b16 %v193
      %v281 = vunpack.c.l.b16 %v194
      %v282 = vunpack.c.l.b16 %v195
      %v283 = vunpack.c.l.b16 %v196
      %v284 = vunpack.c.l.b16 %v197
      %v285 = vunpack.c.l.b16 %v198
      %v286 = vunpack.c.l.b16 %v199
      %v287 = vunpack.c.l.b16 %v200
      %v288 = vunpack.c.l.b16 %v201
      %v289 = vunpack.c.l.b16 %v202
      %v290 = vunpack.c.l.b16 %v203
      %v291 = vunpack.c.l.b16 %v204
      %v292 = vunpack.c.l.b16 %v205
      %v293 = vunpack.c.l.b16 %v206
      %v294 = vpack.c.b16 %v263, %v262
      %v295 = vpack.c.b16 %v265, %v264
      %v296 = vpack.c.b16 %v267, %v266
      %v297 = vpack.c.b16 %v269, %v268
      %v298 = vpack.c.b16 %v271, %v270
      %v299 = vpack.c.b16 %v273, %v272
      %v300 = vpack.c.b16 %v275, %v274
      %v301 = vpack.c.b16 %v277, %v276
      %v302 = vpack.c.b16 %v279, %v278
      %v303 = vpack.c.b16 %v281, %v280
      %v304 = vpack.c.b16 %v283, %v282
      %v305 = vpack.c.b16 %v285, %v284
      %v306 = vpack.c.b16 %v287, %v286
      %v307 = vpack.c.b16 %v289, %v288
      %v308 = vpack.c.b16 %v291, %v290
      %v309 = vpack.c.b16 %v293, %v292
      %v342 = vunpack.c.l.b16 %v207
      %v343 = vunpack.c.l.b16 %v208
      %v344 = vunpack.c.l.b16 %v209
      %v345 = vunpack.c.l.b16 %v210
      %v346 = vunpack.c.l.b16 %v211
      %v347 = vunpack.c.l.b16 %v212
      %v348 = vunpack.c.l.b16 %v213
      %v349 = vunpack.c.l.b16 %v214
      %v350 = vunpack.c.l.b16 %v215
      %v351 = vunpack.c.l.b16 %v216
      %v352 = vunpack.c.l.b16 %v217
      %v353 = vunpack.c.l.b16 %v218
      %v354 = vunpack.c.l.b16 %v219
      %v355 = vunpack.c.l.b16 %v220
      %v356 = vunpack.c.l.b16 %v221
      %v357 = vunpack.c.l.b16 %v222
      %v358 = vpack.c.b16 %v343, %v342
      %v359 = vpack.c.b16 %v345, %v344
      %v360 = vpack.c.b16 %v347, %v346
      %v361 = vpack.c.b16 %v349, %v348
      %v362 = vpack.c.b16 %v351, %v350
      %v363 = vpack.c.b16 %v353, %v352
      %v364 = vpack.c.b16 %v355, %v354
      %v365 = vpack.c.b16 %v357, %v356
      %374 = vmatprep.subr.bf16.mxu0 0
      %375 = vmatpush1.bf16.msra.mxu0 %v365
      %376 = vmatprep.subr.bf16.mxu0 0
      %377 = vmatpush1.bf16.msra.mxu0 %v364
      %378 = vmatprep.subr.bf16.mxu0 0
      %379 = vmatpush1.bf16.msra.mxu0 %v363
      %380 = vmatprep.subr.bf16.mxu0 0
      %381 = vmatpush1.bf16.msra.mxu0 %v362
      %382 = vmatprep.subr.bf16.mxu0 0
      %383 = vmatpush1.bf16.msra.mxu0 %v361
      %384 = vmatprep.subr.bf16.mxu0 0
      %385 = vmatpush1.bf16.msra.mxu0 %v360
      %386 = vmatprep.subr.bf16.mxu0 0
      %387 = vmatpush1.bf16.msra.mxu0 %v359
      %388 = vmatprep.subr.bf16.mxu0 0
      %389 = vmatpush1.bf16.msra.mxu0 %v358
      %390 = vmatprep.subr.bf16.mxu0 0
      %391 = vmatpush2.bf16.msra.mxu0 0
      %392 = vmatprep.subr.bf16.mxu0 0
      %393 = vmatpush2.bf16.msra.mxu0 0
      %394 = vmatprep.subr.bf16.mxu0 0
      %395 = vmatpush2.bf16.msra.mxu0 0
      %396 = vmatprep.subr.bf16.mxu0 0
      %397 = vmatpush2.bf16.msra.mxu0 0
      %398 = vmatprep.subr.bf16.mxu0 0
      %399 = vmatpush2.bf16.msra.mxu0 0
      %400 = vmatprep.subr.bf16.mxu0 0
      %401 = vmatpush2.bf16.msra.mxu0 0
      %402 = vmatprep.subr.bf16.mxu0 0
      %403 = vmatpush2.bf16.msra.mxu0 0
      %404 = vmatprep.subr.bf16.mxu0 0
      %405 = vmatpush2.bf16.msra.mxu0 0
      %406 = vmatprep.mubr.bf16.mxu0 0
      %407 = vmatmul.mubr.bf16.gmra.mxu0 %v294
      %v408 = vpop.f32.mrf.mxu0
      %v409 = vadd.f32 %v228, %v408
      %v410 = vpop.f32.mrf.mxu0
      %v411 = vpop.f32.mrf.mxu0
      %v412 = vadd.f32 %v228, %v411
      %v413 = vpop.f32.mrf.mxu0
      %414 = vmatprep.mubr.bf16.mxu0 0
      %415 = vmatmul.mubr.bf16.gmra.mxu0 %v295
      %v416 = vpop.f32.mrf.mxu0
      %v417 = vadd.f32 %v228, %v416
      %v418 = vpop.f32.mrf.mxu0
      %v419 = vpop.f32.mrf.mxu0
      %v420 = vadd.f32 %v228, %v419
      %v421 = vpop.f32.mrf.mxu0
      %422 = vmatprep.mubr.bf16.mxu0 0
      %423 = vmatmul.mubr.bf16.gmra.mxu0 %v296
      %v424 = vpop.f32.mrf.mxu0
      %v425 = vadd.f32 %v228, %v424
      %v426 = vpop.f32.mrf.mxu0
      %v427 = vpop.f32.mrf.mxu0
      %v428 = vadd.f32 %v228, %v427
      %v429 = vpop.f32.mrf.mxu0
      %430 = vmatprep.mubr.bf16.mxu0 0
      %431 = vmatmul.mubr.bf16.gmra.mxu0 %v297
      %v432 = vpop.f32.mrf.mxu0
      %v433 = vadd.f32 %v228, %v432
      %v434 = vpop.f32.mrf.mxu0
      %v435 = vpop.f32.mrf.mxu0
      %v436 = vadd.f32 %v228, %v435
      %v437 = vpop.f32.mrf.mxu0
      %438 = vmatprep.mubr.bf16.mxu0 0
      %439 = vmatmul.mubr.bf16.gmra.mxu0 %v298
      %v440 = vpop.f32.mrf.mxu0
      %v441 = vadd.f32 %v228, %v440
      %v442 = vpop.f32.mrf.mxu0
      %v443 = vpop.f32.mrf.mxu0
      %v444 = vadd.f32 %v228, %v443
      %v445 = vpop.f32.mrf.mxu0
      %446 = vmatprep.mubr.bf16.mxu0 0
      %447 = vmatmul.mubr.bf16.gmra.mxu0 %v299
      %v448 = vpop.f32.mrf.mxu0
      %v449 = vadd.f32 %v228, %v448
      %v450 = vpop.f32.mrf.mxu0
      %v451 = vpop.f32.mrf.mxu0
      %v452 = vadd.f32 %v228, %v451
      %v453 = vpop.f32.mrf.mxu0
      %454 = vmatprep.mubr.bf16.mxu0 0
      %455 = vmatmul.mubr.bf16.gmra.mxu0 %v300
      %v456 = vpop.f32.mrf.mxu0
      %v457 = vadd.f32 %v228, %v456
      %v458 = vpop.f32.mrf.mxu0
      %v459 = vpop.f32.mrf.mxu0
      %v460 = vadd.f32 %v228, %v459
      %v461 = vpop.f32.mrf.mxu0
      %462 = vmatprep.mubr.bf16.mxu0 0
      %463 = vmatmul.mubr.bf16.gmra.mxu0 %v301
      %v464 = vpop.f32.mrf.mxu0
      %v465 = vadd.f32 %v228, %v464
      %v466 = vpop.f32.mrf.mxu0
      %v467 = vpop.f32.mrf.mxu0
      %v468 = vadd.f32 %v228, %v467
      %v469 = vpop.f32.mrf.mxu0
      %470 = vmatprep.mubr.bf16.mxu0 0
      %471 = vmatmul.mubr.bf16.gmra.mxu0 %v302
      %v472 = vpop.f32.mrf.mxu0
      %v473 = vadd.f32 %v228, %v472
      %v474 = vpop.f32.mrf.mxu0
      %v475 = vpop.f32.mrf.mxu0
      %v476 = vadd.f32 %v228, %v475
      %v477 = vpop.f32.mrf.mxu0
      %478 = vmatprep.mubr.bf16.mxu0 0
      %479 = vmatmul.mubr.bf16.gmra.mxu0 %v303
      %v480 = vpop.f32.mrf.mxu0
      %v481 = vadd.f32 %v228, %v480
      %v482 = vpop.f32.mrf.mxu0
      %v483 = vpop.f32.mrf.mxu0
      %v484 = vadd.f32 %v228, %v483
      %v485 = vpop.f32.mrf.mxu0
      %486 = vmatprep.mubr.bf16.mxu0 0
      %487 = vmatmul.mubr.bf16.gmra.mxu0 %v304
      %v488 = vpop.f32.mrf.mxu0
      %v489 = vadd.f32 %v228, %v488
      %v490 = vpop.f32.mrf.mxu0
      %v491 = vpop.f32.mrf.mxu0
      %v492 = vadd.f32 %v228, %v491
      %v493 = vpop.f32.mrf.mxu0
      %494 = vmatprep.mubr.bf16.mxu0 0
      %495 = vmatmul.mubr.bf16.gmra.mxu0 %v305
      %v496 = vpop.f32.mrf.mxu0
      %v497 = vadd.f32 %v228, %v496
      %v498 = vpop.f32.mrf.mxu0
      %v499 = vpop.f32.mrf.mxu0
      %v500 = vadd.f32 %v228, %v499
      %v501 = vpop.f32.mrf.mxu0
      %502 = vmatprep.mubr.bf16.mxu0 0
      %503 = vmatmul.mubr.bf16.gmra.mxu0 %v306
      %v504 = vpop.f32.mrf.mxu0
      %v505 = vadd.f32 %v228, %v504
      %v506 = vpop.f32.mrf.mxu0
      %v507 = vpop.f32.mrf.mxu0
      %v508 = vadd.f32 %v228, %v507
      %v509 = vpop.f32.mrf.mxu0
      %510 = vmatprep.mubr.bf16.mxu0 0
      %511 = vmatmul.mubr.bf16.gmra.mxu0 %v307
      %v512 = vpop.f32.mrf.mxu0
      %v513 = vadd.f32 %v228, %v512
      %v514 = vpop.f32.mrf.mxu0
      %v515 = vpop.f32.mrf.mxu0
      %v516 = vadd.f32 %v228, %v515
      %v517 = vpop.f32.mrf.mxu0
      %518 = vmatprep.mubr.bf16.mxu0 0
      %519 = vmatmul.mubr.bf16.gmra.mxu0 %v308
      %v520 = vpop.f32.mrf.mxu0
      %v521 = vadd.f32 %v228, %v520
      %v522 = vpop.f32.mrf.mxu0
      %v523 = vpop.f32.mrf.mxu0
      %v524 = vadd.f32 %v228, %v523
      %v525 = vpop.f32.mrf.mxu0
      %526 = vmatprep.mubr.bf16.mxu0 0
      %527 = vmatmul.mubr.bf16.gmra.mxu0 %v309
      %v528 = vpop.f32.mrf.mxu0
      %v529 = vadd.f32 %v228, %v528
      %v530 = vpop.f32.mrf.mxu0
      %v531 = vpop.f32.mrf.mxu0
      %v532 = vadd.f32 %v228, %v531
      %v533 = vpop.f32.mrf.mxu0
      %534 = vdwg.mxu0
      %vm535 = vcmp.ge.f32.partialorder %v409, 0.0
      %vm536 = vcmp.ge.f32.partialorder %v412, 0.0
      %vm537 = vcmp.ge.f32.partialorder %v417, 0.0
      %vm538 = vcmp.ge.f32.partialorder %v420, 0.0
      %vm539 = vcmp.ge.f32.partialorder %v425, 0.0
      %vm540 = vcmp.ge.f32.partialorder %v428, 0.0
      %vm541 = vcmp.ge.f32.partialorder %v433, 0.0
      %vm542 = vcmp.ge.f32.partialorder %v436, 0.0
      %vm543 = vcmp.ge.f32.partialorder %v441, 0.0
      %vm544 = vcmp.ge.f32.partialorder %v444, 0.0
      %vm545 = vcmp.ge.f32.partialorder %v449, 0.0
      %vm546 = vcmp.ge.f32.partialorder %v452, 0.0
      %vm547 = vcmp.ge.f32.partialorder %v457, 0.0
      %vm548 = vcmp.ge.f32.partialorder %v460, 0.0
      %vm549 = vcmp.ge.f32.partialorder %v465, 0.0
      %vm550 = vcmp.ge.f32.partialorder %v468, 0.0
      %vm551 = vcmp.ge.f32.partialorder %v473, 0.0
      %vm552 = vcmp.ge.f32.partialorder %v476, 0.0
      %vm553 = vcmp.ge.f32.partialorder %v481, 0.0
      %vm554 = vcmp.ge.f32.partialorder %v484, 0.0
      %vm555 = vcmp.ge.f32.partialorder %v489, 0.0
      %vm556 = vcmp.ge.f32.partialorder %v492, 0.0
      %vm557 = vcmp.ge.f32.partialorder %v497, 0.0
      %vm558 = vcmp.ge.f32.partialorder %v500, 0.0
      %vm559 = vcmp.ge.f32.partialorder %v505, 0.0
      %vm560 = vcmp.ge.f32.partialorder %v508, 0.0
      %vm561 = vcmp.ge.f32.partialorder %v513, 0.0
      %vm562 = vcmp.ge.f32.partialorder %v516, 0.0
      %vm563 = vcmp.ge.f32.partialorder %v521, 0.0
      %vm564 = vcmp.ge.f32.partialorder %v524, 0.0
      %vm565 = vcmp.ge.f32.partialorder %v529, 0.0
      %vm566 = vcmp.ge.f32.partialorder %v532, 0.0
      %v567 = vmul.f32 %v409, 0.2
      %v568 = vmul.f32 %v412, 0.2
      %v569 = vmul.f32 %v417, 0.2
      %v570 = vmul.f32 %v420, 0.2
      %v571 = vmul.f32 %v425, 0.2
      %v572 = vmul.f32 %v428, 0.2
      %v573 = vmul.f32 %v433, 0.2
      %v574 = vmul.f32 %v436, 0.2
      %v575 = vmul.f32 %v441, 0.2
      %v576 = vmul.f32 %v444, 0.2
      %v577 = vmul.f32 %v449, 0.2
      %v578 = vmul.f32 %v452, 0.2
      %v579 = vmul.f32 %v457, 0.2
      %v580 = vmul.f32 %v460, 0.2
      %v581 = vmul.f32 %v465, 0.2
      %v582 = vmul.f32 %v468, 0.2
      %v583 = vmul.f32 %v473, 0.2
      %v584 = vmul.f32 %v476, 0.2
      %v585 = vmul.f32 %v481, 0.2
      %v586 = vmul.f32 %v484, 0.2
      %v587 = vmul.f32 %v489, 0.2
      %v588 = vmul.f32 %v492, 0.2
      %v589 = vmul.f32 %v497, 0.2
      %v590 = vmul.f32 %v500, 0.2
      %v591 = vmul.f32 %v505, 0.2
      %v592 = vmul.f32 %v508, 0.2
      %v593 = vmul.f32 %v513, 0.2
      %v594 = vmul.f32 %v516, 0.2
      %v595 = vmul.f32 %v521, 0.2
      %v596 = vmul.f32 %v524, 0.2
      %v597 = vmul.f32 %v529, 0.2
      %v598 = vmul.f32 %v532, 0.2
      %v599 = vsel %vm535, %v409, %v567
      %v600 = vsel %vm536, %v412, %v568
      %v601 = vsel %vm537, %v417, %v569
      %v602 = vsel %vm538, %v420, %v570
      %v603 = vsel %vm539, %v425, %v571
      %v604 = vsel %vm540, %v428, %v572
      %v605 = vsel %vm541, %v433, %v573
      %v606 = vsel %vm542, %v436, %v574
      %v607 = vsel %vm543, %v441, %v575
      %v608 = vsel %vm544, %v444, %v576
      %v609 = vsel %vm545, %v449, %v577
      %v610 = vsel %vm546, %v452, %v578
      %v611 = vsel %vm547, %v457, %v579
      %v612 = vsel %vm548, %v460, %v580
      %v613 = vsel %vm549, %v465, %v581
      %v614 = vsel %vm550, %v468, %v582
      %v615 = vsel %vm551, %v473, %v583
      %v616 = vsel %vm552, %v476, %v584
      %v617 = vsel %vm553, %v481, %v585
      %v618 = vsel %vm554, %v484, %v586
      %v619 = vsel %vm555, %v489, %v587
      %v620 = vsel %vm556, %v492, %v588
      %v621 = vsel %vm557, %v497, %v589
      %v622 = vsel %vm558, %v500, %v590
      %v623 = vsel %vm559, %v505, %v591
      %v624 = vsel %vm560, %v508, %v592
      %v625 = vsel %vm561, %v513, %v593
      %v626 = vsel %vm562, %v516, %v594
      %v627 = vsel %vm563, %v521, %v595
      %v628 = vsel %vm564, %v524, %v596
      %v629 = vsel %vm565, %v529, %v597
      %v630 = vsel %vm566, %v532, %v598
      %v631 = vpack.c.bf16 %v600, %v599
      %v632 = vpack.c.bf16 %v602, %v601
      %v633 = vpack.c.bf16 %v604, %v603
      %v634 = vpack.c.bf16 %v606, %v605
      %v635 = vpack.c.bf16 %v608, %v607
      %v636 = vpack.c.bf16 %v610, %v609
      %v637 = vpack.c.bf16 %v612, %v611
      %v638 = vpack.c.bf16 %v614, %v613
      %v639 = vpack.c.bf16 %v616, %v615
      %v640 = vpack.c.bf16 %v618, %v617
      %v641 = vpack.c.bf16 %v620, %v619
      %v642 = vpack.c.bf16 %v622, %v621
      %v643 = vpack.c.bf16 %v624, %v623
      %v644 = vpack.c.bf16 %v626, %v625
      %v645 = vpack.c.bf16 %v628, %v627
      %v646 = vpack.c.bf16 %v630, %v629
      %v663 = vunpack.c.l.b16 %v631
      %v664 = vunpack.c.h.b16 %v631
      %v665 = vunpack.c.l.b16 %v632
      %v666 = vunpack.c.h.b16 %v632
      %v667 = vunpack.c.l.b16 %v633
      %v668 = vunpack.c.h.b16 %v633
      %v669 = vunpack.c.l.b16 %v634
      %v670 = vunpack.c.h.b16 %v634
      %v671 = vunpack.c.l.b16 %v635
      %v672 = vunpack.c.h.b16 %v635
      %v673 = vunpack.c.l.b16 %v636
      %v674 = vunpack.c.h.b16 %v636
      %v675 = vunpack.c.l.b16 %v637
      %v676 = vunpack.c.h.b16 %v637
      %v677 = vunpack.c.l.b16 %v638
      %v678 = vunpack.c.h.b16 %v638
      %v679 = vunpack.c.l.b16 %v639
      %v680 = vunpack.c.h.b16 %v639
      %v681 = vunpack.c.l.b16 %v640
      %v682 = vunpack.c.h.b16 %v640
      %v683 = vunpack.c.l.b16 %v641
      %v684 = vunpack.c.h.b16 %v641
      %v685 = vunpack.c.l.b16 %v642
      %v686 = vunpack.c.h.b16 %v642
      %v687 = vunpack.c.l.b16 %v643
      %v688 = vunpack.c.h.b16 %v643
      %v689 = vunpack.c.l.b16 %v644
      %v690 = vunpack.c.h.b16 %v644
      %v691 = vunpack.c.l.b16 %v645
      %v692 = vunpack.c.h.b16 %v645
      %v693 = vunpack.c.l.b16 %v646
      %v694 = vunpack.c.h.b16 %v646
      %v695 = vpack.c.b16 %v663, %v663
      %v696 = vpack.c.b16 %v664, %v664
      %v697 = vpack.c.b16 %v665, %v665
      %v698 = vpack.c.b16 %v666, %v666
      %v699 = vpack.c.b16 %v667, %v667
      %v700 = vpack.c.b16 %v668, %v668
      %v701 = vpack.c.b16 %v669, %v669
      %v702 = vpack.c.b16 %v670, %v670
      %v703 = vpack.c.b16 %v671, %v671
      %v704 = vpack.c.b16 %v672, %v672
      %v705 = vpack.c.b16 %v673, %v673
      %v706 = vpack.c.b16 %v674, %v674
      %v707 = vpack.c.b16 %v675, %v675
      %v708 = vpack.c.b16 %v676, %v676
      %v709 = vpack.c.b16 %v677, %v677
      %v710 = vpack.c.b16 %v678, %v678
      %v711 = vpack.c.b16 %v679, %v679
      %v712 = vpack.c.b16 %v680, %v680
      %v713 = vpack.c.b16 %v681, %v681
      %v714 = vpack.c.b16 %v682, %v682
      %v715 = vpack.c.b16 %v683, %v683
      %v716 = vpack.c.b16 %v684, %v684
      %v717 = vpack.c.b16 %v685, %v685
      %v718 = vpack.c.b16 %v686, %v686
      %v719 = vpack.c.b16 %v687, %v687
      %v720 = vpack.c.b16 %v688, %v688
      %v721 = vpack.c.b16 %v689, %v689
      %v722 = vpack.c.b16 %v690, %v690
      %v723 = vpack.c.b16 %v691, %v691
      %v724 = vpack.c.b16 %v692, %v692
      %v725 = vpack.c.b16 %v693, %v693
      %v726 = vpack.c.b16 %v694, %v694
      %759 = vst [vmem:[%s172] sm:$0xf] %v695
      %760 = vst [vmem:[%s172 + $0x4] sm:$0xf] %v696
      %761 = vst [vmem:[%s172 + $0x8] sm:$0xf] %v697
      %762 = vst [vmem:[%s172 + $0xc] sm:$0xf] %v698
      %763 = vst [vmem:[%s172 + $0x10] sm:$0xf] %v699
      %764 = vst [vmem:[%s172 + $0x14] sm:$0xf] %v700
      %765 = vst [vmem:[%s172 + $0x18] sm:$0xf] %v701
      %766 = vst [vmem:[%s172 + $0x1c] sm:$0xf] %v702
      %767 = vst [vmem:[%s172 + $0x20] sm:$0xf] %v703
      %768 = vst [vmem:[%s172 + $0x24] sm:$0xf] %v704
      %769 = vst [vmem:[%s172 + $0x28] sm:$0xf] %v705
      %770 = vst [vmem:[%s172 + $0x2c] sm:$0xf] %v706
      %771 = vst [vmem:[%s172 + $0x30] sm:$0xf] %v707
      %772 = vst [vmem:[%s172 + $0x34] sm:$0xf] %v708
      %773 = vst [vmem:[%s172 + $0x38] sm:$0xf] %v709
      %774 = vst [vmem:[%s172 + $0x3c] sm:$0xf] %v710
      %775 = vst [vmem:[%s172 + $0x40] sm:$0xf] %v711
      %776 = vst [vmem:[%s172 + $0x44] sm:$0xf] %v712
      %777 = vst [vmem:[%s172 + $0x48] sm:$0xf] %v713
      %778 = vst [vmem:[%s172 + $0x4c] sm:$0xf] %v714
      %779 = vst [vmem:[%s172 + $0x50] sm:$0xf] %v715
      %780 = vst [vmem:[%s172 + $0x54] sm:$0xf] %v716
      %781 = vst [vmem:[%s172 + $0x58] sm:$0xf] %v717
      %782 = vst [vmem:[%s172 + $0x5c] sm:$0xf] %v718
      %783 = vst [vmem:[%s172 + $0x60] sm:$0xf] %v719
      %784 = vst [vmem:[%s172 + $0x64] sm:$0xf] %v720
      %785 = vst [vmem:[%s172 + $0x68] sm:$0xf] %v721
      %786 = vst [vmem:[%s172 + $0x6c] sm:$0xf] %v722
      %787 = vst [vmem:[%s172 + $0x70] sm:$0xf] %v723
      %788 = vst [vmem:[%s172 + $0x74] sm:$0xf] %v724
      %789 = vst [vmem:[%s172 + $0x78] sm:$0xf] %v725
      %790 = vst [vmem:[%s172 + $0x7c] sm:$0xf] %v726
      %s791 = smul.u32 32, %s14
      %p792 = scmp.lt.s32.totalorder %s791, 63
      %s793 = scalar_select %p792, %s791, 63
      %s794 = smul.addr %s793, 4
      %s795 = scalar_lea.vmem %s3, %s794
      // Predicated region
      $region33: #{discriminator_forward.5} parent=31 // pred_check
        %p796 = pneg %p100
      $region34: #{discriminator_forward.5} parent=31 // pred_check_branch
        %798 = sbr.rel (%p796) target = $region36
      $region35: #{discriminator_forward.5} parent=31 // pred_region
        %s799 = smul.u32 32, %s14
      $region36: #{discriminator_forward.5} parent=31 // pred_fallthru
        _
    $region32: #{discriminator_forward.5} parent=5 // pred_fallthru
      _
    %p800 = scmp.le.s32.totalorder 2, %s9
    // Predicated region
    $region37: #{discriminator_forward.5} parent=5 // pred_check
      %p801 = pneg %p800
    $region38: #{discriminator_forward.5} parent=5 // pred_check_branch
      %803 = sbr.rel (%p801) target = $region40
    $region39: #{discriminator_forward.5} parent=5 // pred_region
      %s804 = ssub.s32 %s9, 2
      // Predicated region
      $region41: #{discriminator_forward.5} parent=39 // pred_check
        %p805 = pneg %p106
      $region42: #{discriminator_forward.5} parent=39 // pred_check_branch
        %807 = sbr.rel (%p805) target = $region44
      $region43: #{discriminator_forward.5} parent=39 // pred_region
        %s808 = smul.u32 32, %s15
        %p809 = scmp.lt.s32.totalorder %s808, 63
        %s810 = scalar_select %p809, %s808, 63
        %s811 = smul.addr %s810, 4
        %s812 = scalar_lea.vmem %s3, %s811
      $region44: #{discriminator_forward.5} parent=39 // pred_fallthru
        _
    $region40: #{discriminator_forward.5} parent=5 // pred_fallthru
      _
  $region6: #{discriminator_forward.5} parent=0 // loop_footer
    %s13 = sadd.s32 1, %s9
  $region7: #{discriminator_forward.5} parent=0 // loop_footer_branch
    %8 = sbr.rel target = $region3
  $region8: #{discriminator_forward.5} parent=0 // loop_exit
    _

// kernel: discriminator_forward.6
$region0: #{discriminator_forward.6}
  #allocation0 [shape = 'u32[]', space=smem, size = 0x4, offset = 0x4, fixed_abs, tag = 'smem constant byte address 0x4 - core index']
  #allocation1 [shape = 'u32[144,128]{1,0:T(1,128)}', space=vmem, size = 0x12000, scoped, tag = 'internal scratch']
  %s0 = inlined_call_operand.vmem [shape: bf16[128,1024], index: 0, kind: input, shape index: {}]
  %s1 = inlined_call_operand.vmem [shape: bf16[1024,128], index: 1, kind: input, shape index: {}]
  %s2 = inlined_call_operand.vmem [shape: f32[1,128], index: 2, kind: input, shape index: {}]
  %s3 = inlined_call_operand.vmem [shape: bf16[128,128], index: 3, kind: output, shape index: {}]
  %s4 = sld [smem:[#allocation0]]
  $region22: #{discriminator_forward.6} parent=0
    _
  %s6 = ssub.s32 1, %s4
  %s7 = scalar_select 0, %s6, %s4
  // Predicated region
  $region2: #{discriminator_forward.6} parent=0 // pred_check
    _
  $region3: #{discriminator_forward.6} parent=0 // pred_check_branch
    %9 = sbr.rel (0) target = $region5
  $region4: #{discriminator_forward.6} parent=0 // pred_region
    _
  $region5: #{discriminator_forward.6} parent=0 // pred_fallthru
    _
  // Predicated region
  $region6: #{discriminator_forward.6} parent=0 // pred_check
    _
  $region7: #{discriminator_forward.6} parent=0 // pred_check_branch
    %11 = sbr.rel (0) target = $region9
  $region8: #{discriminator_forward.6} parent=0 // pred_region
    _
  $region9: #{discriminator_forward.6} parent=0 // pred_fallthru
    _
  // Predicated region
  $region10: #{discriminator_forward.6} parent=0 // pred_check
    _
  $region11: #{discriminator_forward.6} parent=0 // pred_check_branch
    %13 = sbr.rel (0) target = $region13
  $region12: #{discriminator_forward.6} parent=0 // pred_region
    _
  $region13: #{discriminator_forward.6} parent=0 // pred_fallthru
    _
  %v15 = vld [vmem:[%s0] sm:$0xff]
  %v16 = vld [vmem:[%s0 + $0x8] sm:$0xff]
  %v17 = vld [vmem:[%s0 + $0x10] sm:$0xff]
  %v18 = vld [vmem:[%s0 + $0x18] sm:$0xff]
  %v19 = vld [vmem:[%s0 + $0x20] sm:$0xff]
  %v20 = vld [vmem:[%s0 + $0x28] sm:$0xff]
  %v21 = vld [vmem:[%s0 + $0x30] sm:$0xff]
  %v22 = vld [vmem:[%s0 + $0x38] sm:$0xff]
  %v23 = vld [vmem:[%s0 + $0x40] sm:$0xff]
  %v24 = vld [vmem:[%s0 + $0x48] sm:$0xff]
  %v25 = vld [vmem:[%s0 + $0x50] sm:$0xff]
  %v26 = vld [vmem:[%s0 + $0x58] sm:$0xff]
  %v27 = vld [vmem:[%s0 + $0x60] sm:$0xff]
  %v28 = vld [vmem:[%s0 + $0x68] sm:$0xff]
  %v29 = vld [vmem:[%s0 + $0x70] sm:$0xff]
  %v30 = vld [vmem:[%s0 + $0x78] sm:$0xff]
  %v31 = vld [vmem:[%s0 + $0x80] sm:$0xff]
  %v32 = vld [vmem:[%s0 + $0x88] sm:$0xff]
  %v33 = vld [vmem:[%s0 + $0x90] sm:$0xff]
  %v34 = vld [vmem:[%s0 + $0x98] sm:$0xff]
  %v35 = vld [vmem:[%s0 + $0xa0] sm:$0xff]
  %v36 = vld [vmem:[%s0 + $0xa8] sm:$0xff]
  %v37 = vld [vmem:[%s0 + $0xb0] sm:$0xff]
  %v38 = vld [vmem:[%s0 + $0xb8] sm:$0xff]
  %v39 = vld [vmem:[%s0 + $0xc0] sm:$0xff]
  %v40 = vld [vmem:[%s0 + $0xc8] sm:$0xff]
  %v41 = vld [vmem:[%s0 + $0xd0] sm:$0xff]
  %v42 = vld [vmem:[%s0 + $0xd8] sm:$0xff]
  %v43 = vld [vmem:[%s0 + $0xe0] sm:$0xff]
  %v44 = vld [vmem:[%s0 + $0xe8] sm:$0xff]
  %v45 = vld [vmem:[%s0 + $0xf0] sm:$0xff]
  %v46 = vld [vmem:[%s0 + $0xf8] sm:$0xff]
  %v47 = vld [vmem:[%s0 + $0x100] sm:$0xff]
  %v48 = vld [vmem:[%s0 + $0x108] sm:$0xff]
  %v49 = vld [vmem:[%s0 + $0x110] sm:$0xff]
  %v50 = vld [vmem:[%s0 + $0x118] sm:$0xff]
  %v51 = vld [vmem:[%s0 + $0x120] sm:$0xff]
  %v52 = vld [vmem:[%s0 + $0x128] sm:$0xff]
  %v53 = vld [vmem:[%s0 + $0x130] sm:$0xff]
  %v54 = vld [vmem:[%s0 + $0x138] sm:$0xff]
  %v55 = vld [vmem:[%s0 + $0x140] sm:$0xff]
  %v56 = vld [vmem:[%s0 + $0x148] sm:$0xff]
  %v57 = vld [vmem:[%s0 + $0x150] sm:$0xff]
  %v58 = vld [vmem:[%s0 + $0x158] sm:$0xff]
  %v59 = vld [vmem:[%s0 + $0x160] sm:$0xff]
  %v60 = vld [vmem:[%s0 + $0x168] sm:$0xff]
  %v61 = vld [vmem:[%s0 + $0x170] sm:$0xff]
  %v62 = vld [vmem:[%s0 + $0x178] sm:$0xff]
  %v63 = vld [vmem:[%s0 + $0x180] sm:$0xff]
  %v64 = vld [vmem:[%s0 + $0x188] sm:$0xff]
  %v65 = vld [vmem:[%s0 + $0x190] sm:$0xff]
  %v66 = vld [vmem:[%s0 + $0x198] sm:$0xff]
  %v67 = vld [vmem:[%s0 + $0x1a0] sm:$0xff]
  %v68 = vld [vmem:[%s0 + $0x1a8] sm:$0xff]
  %v69 = vld [vmem:[%s0 + $0x1b0] sm:$0xff]
  %v70 = vld [vmem:[%s0 + $0x1b8] sm:$0xff]
  %v71 = vld [vmem:[%s0 + $0x1c0] sm:$0xff]
  %v72 = vld [vmem:[%s0 + $0x1c8] sm:$0xff]
  %v73 = vld [vmem:[%s0 + $0x1d0] sm:$0xff]
  %v74 = vld [vmem:[%s0 + $0x1d8] sm:$0xff]
  %v75 = vld [vmem:[%s0 + $0x1e0] sm:$0xff]
  %v76 = vld [vmem:[%s0 + $0x1e8] sm:$0xff]
  %v77 = vld [vmem:[%s0 + $0x1f0] sm:$0xff]
  %v78 = vld [vmem:[%s0 + $0x1f8] sm:$0xff]
  %v79 = vld [vmem:[%s1] sm:$0xf]
  %v80 = vld [vmem:[%s1 + $0x4] sm:$0xf]
  %v81 = vld [vmem:[%s1 + $0x8] sm:$0xf]
  %v82 = vld [vmem:[%s1 + $0xc] sm:$0xf]
  %v83 = vld [vmem:[%s1 + $0x10] sm:$0xf]
  %v84 = vld [vmem:[%s1 + $0x14] sm:$0xf]
  %v85 = vld [vmem:[%s1 + $0x18] sm:$0xf]
  %v86 = vld [vmem:[%s1 + $0x1c] sm:$0xf]
  %v87 = vld [vmem:[%s1 + $0x20] sm:$0xf]
  %v88 = vld [vmem:[%s1 + $0x24] sm:$0xf]
  %v89 = vld [vmem:[%s1 + $0x28] sm:$0xf]
  %v90 = vld [vmem:[%s1 + $0x2c] sm:$0xf]
  %v91 = vld [vmem:[%s1 + $0x30] sm:$0xf]
  %v92 = vld [vmem:[%s1 + $0x34] sm:$0xf]
  %v93 = vld [vmem:[%s1 + $0x38] sm:$0xf]
  %v94 = vld [vmem:[%s1 + $0x3c] sm:$0xf]
  %v95 = vld [vmem:[%s1 + $0x40] sm:$0xf]
  %v96 = vld [vmem:[%s1 + $0x44] sm:$0xf]
  %v97 = vld [vmem:[%s1 + $0x48] sm:$0xf]
  %v98 = vld [vmem:[%s1 + $0x4c] sm:$0xf]
  %v99 = vld [vmem:[%s1 + $0x50] sm:$0xf]
  %v100 = vld [vmem:[%s1 + $0x54] sm:$0xf]
  %v101 = vld [vmem:[%s1 + $0x58] sm:$0xf]
  %v102 = vld [vmem:[%s1 + $0x5c] sm:$0xf]
  %v103 = vld [vmem:[%s1 + $0x60] sm:$0xf]
  %v104 = vld [vmem:[%s1 + $0x64] sm:$0xf]
  %v105 = vld [vmem:[%s1 + $0x68] sm:$0xf]
  %v106 = vld [vmem:[%s1 + $0x6c] sm:$0xf]
  %v107 = vld [vmem:[%s1 + $0x70] sm:$0xf]
  %v108 = vld [vmem:[%s1 + $0x74] sm:$0xf]
  %v109 = vld [vmem:[%s1 + $0x78] sm:$0xf]
  %v110 = vld [vmem:[%s1 + $0x7c] sm:$0xf]
  %v111 = vld [vmem:[%s1 + $0x80] sm:$0xf]
  %v112 = vld [vmem:[%s1 + $0x84] sm:$0xf]
  %v113 = vld [vmem:[%s1 + $0x88] sm:$0xf]
  %v114 = vld [vmem:[%s1 + $0x8c] sm:$0xf]
  %v115 = vld [vmem:[%s1 + $0x90] sm:$0xf]
  %v116 = vld [vmem:[%s1 + $0x94] sm:$0xf]
  %v117 = vld [vmem:[%s1 + $0x98] sm:$0xf]
  %v118 = vld [vmem:[%s1 + $0x9c] sm:$0xf]
  %v119 = vld [vmem:[%s1 + $0xa0] sm:$0xf]
  %v120 = vld [vmem:[%s1 + $0xa4] sm:$0xf]
  %v121 = vld [vmem:[%s1 + $0xa8] sm:$0xf]
  %v122 = vld [vmem:[%s1 + $0xac] sm:$0xf]
  %v123 = vld [vmem:[%s1 + $0xb0] sm:$0xf]
  %v124 = vld [vmem:[%s1 + $0xb4] sm:$0xf]
  %v125 = vld [vmem:[%s1 + $0xb8] sm:$0xf]
  %v126 = vld [vmem:[%s1 + $0xbc] sm:$0xf]
  %v127 = vld [vmem:[%s1 + $0xc0] sm:$0xf]
  %v128 = vld [vmem:[%s1 + $0xc4] sm:$0xf]
  %v129 = vld [vmem:[%s1 + $0xc8] sm:$0xf]
  %v130 = vld [vmem:[%s1 + $0xcc] sm:$0xf]
  %v131 = vld [vmem:[%s1 + $0xd0] sm:$0xf]
  %v132 = vld [vmem:[%s1 + $0xd4] sm:$0xf]
  %v133 = vld [vmem:[%s1 + $0xd8] sm:$0xf]
  %v134 = vld [vmem:[%s1 + $0xdc] sm:$0xf]
  %v135 = vld [vmem:[%s1 + $0xe0] sm:$0xf]
  %v136 = vld [vmem:[%s1 + $0xe4] sm:$0xf]
  %v137 = vld [vmem:[%s1 + $0xe8] sm:$0xf]
  %v138 = vld [vmem:[%s1 + $0xec] sm:$0xf]
  %v139 = vld [vmem:[%s1 + $0xf0] sm:$0xf]
  %v140 = vld [vmem:[%s1 + $0xf4] sm:$0xf]
  %v141 = vld [vmem:[%s1 + $0xf8] sm:$0xf]
  %v142 = vld [vmem:[%s1 + $0xfc] sm:$0xf]
  %v143 = vld [vmem:[%s1 + $0x100] sm:$0xf]
  %v144 = vld [vmem:[%s1 + $0x104] sm:$0xf]
  %v145 = vld [vmem:[%s1 + $0x108] sm:$0xf]
  %v146 = vld [vmem:[%s1 + $0x10c] sm:$0xf]
  %v147 = vld [vmem:[%s1 + $0x110] sm:$0xf]
  %v148 = vld [vmem:[%s1 + $0x114] sm:$0xf]
  %v149 = vld [vmem:[%s1 + $0x118] sm:$0xf]
  %v150 = vld [vmem:[%s1 + $0x11c] sm:$0xf]
  %v151 = vld [vmem:[%s1 + $0x120] sm:$0xf]
  %v152 = vld [vmem:[%s1 + $0x124] sm:$0xf]
  %v153 = vld [vmem:[%s1 + $0x128] sm:$0xf]
  %v154 = vld [vmem:[%s1 + $0x12c] sm:$0xf]
  %v155 = vld [vmem:[%s1 + $0x130] sm:$0xf]
  %v156 = vld [vmem:[%s1 + $0x134] sm:$0xf]
  %v157 = vld [vmem:[%s1 + $0x138] sm:$0xf]
  %v158 = vld [vmem:[%s1 + $0x13c] sm:$0xf]
  %v159 = vld [vmem:[%s1 + $0x140] sm:$0xf]
  %v160 = vld [vmem:[%s1 + $0x144] sm:$0xf]
  %v161 = vld [vmem:[%s1 + $0x148] sm:$0xf]
  %v162 = vld [vmem:[%s1 + $0x14c] sm:$0xf]
  %v163 = vld [vmem:[%s1 + $0x150] sm:$0xf]
  %v164 = vld [vmem:[%s1 + $0x154] sm:$0xf]
  %v165 = vld [vmem:[%s1 + $0x158] sm:$0xf]
  %v166 = vld [vmem:[%s1 + $0x15c] sm:$0xf]
  %v167 = vld [vmem:[%s1 + $0x160] sm:$0xf]
  %v168 = vld [vmem:[%s1 + $0x164] sm:$0xf]
  %v169 = vld [vmem:[%s1 + $0x168] sm:$0xf]
  %v170 = vld [vmem:[%s1 + $0x16c] sm:$0xf]
  %v171 = vld [vmem:[%s1 + $0x170] sm:$0xf]
  %v172 = vld [vmem:[%s1 + $0x174] sm:$0xf]
  %v173 = vld [vmem:[%s1 + $0x178] sm:$0xf]
  %v174 = vld [vmem:[%s1 + $0x17c] sm:$0xf]
  %v175 = vld [vmem:[%s1 + $0x180] sm:$0xf]
  %v176 = vld [vmem:[%s1 + $0x184] sm:$0xf]
  %v177 = vld [vmem:[%s1 + $0x188] sm:$0xf]
  %v178 = vld [vmem:[%s1 + $0x18c] sm:$0xf]
  %v179 = vld [vmem:[%s1 + $0x190] sm:$0xf]
  %v180 = vld [vmem:[%s1 + $0x194] sm:$0xf]
  %v181 = vld [vmem:[%s1 + $0x198] sm:$0xf]
  %v182 = vld [vmem:[%s1 + $0x19c] sm:$0xf]
  %v183 = vld [vmem:[%s1 + $0x1a0] sm:$0xf]
  %v184 = vld [vmem:[%s1 + $0x1a4] sm:$0xf]
  %v185 = vld [vmem:[%s1 + $0x1a8] sm:$0xf]
  %v186 = vld [vmem:[%s1 + $0x1ac] sm:$0xf]
  %v187 = vld [vmem:[%s1 + $0x1b0] sm:$0xf]
  %v188 = vld [vmem:[%s1 + $0x1b4] sm:$0xf]
  %v189 = vld [vmem:[%s1 + $0x1b8] sm:$0xf]
  %v190 = vld [vmem:[%s1 + $0x1bc] sm:$0xf]
  %v191 = vld [vmem:[%s1 + $0x1c0] sm:$0xf]
  %v192 = vld [vmem:[%s1 + $0x1c4] sm:$0xf]
  %v193 = vld [vmem:[%s1 + $0x1c8] sm:$0xf]
  %v194 = vld [vmem:[%s1 + $0x1cc] sm:$0xf]
  %v195 = vld [vmem:[%s1 + $0x1d0] sm:$0xf]
  %v196 = vld [vmem:[%s1 + $0x1d4] sm:$0xf]
  %v197 = vld [vmem:[%s1 + $0x1d8] sm:$0xf]
  %v198 = vld [vmem:[%s1 + $0x1dc] sm:$0xf]
  %v199 = vld [vmem:[%s1 + $0x1e0] sm:$0xf]
  %v200 = vld [vmem:[%s1 + $0x1e4] sm:$0xf]
  %v201 = vld [vmem:[%s1 + $0x1e8] sm:$0xf]
  %v202 = vld [vmem:[%s1 + $0x1ec] sm:$0xf]
  %v203 = vld [vmem:[%s1 + $0x1f0] sm:$0xf]
  %v204 = vld [vmem:[%s1 + $0x1f4] sm:$0xf]
  %v205 = vld [vmem:[%s1 + $0x1f8] sm:$0xf]
  %v206 = vld [vmem:[%s1 + $0x1fc] sm:$0xf]
  %v207 = vld [vmem:[%s2] sm:$0x1]
  %v209 = vlaneseq
  %v210 = vshrl.u32 %v209, 7
  %v211 = vsub.s32 0, %v210
  %v212 = vrot.slane %v207, %v211
  %v278 = vunpack.c.l.b16 %v15
  %v279 = vunpack.c.h.b16 %v15
  %v280 = vunpack.c.l.b16 %v16
  %v281 = vunpack.c.h.b16 %v16
  %v282 = vunpack.c.l.b16 %v17
  %v283 = vunpack.c.h.b16 %v17
  %v284 = vunpack.c.l.b16 %v18
  %v285 = vunpack.c.h.b16 %v18
  %v286 = vunpack.c.l.b16 %v19
  %v287 = vunpack.c.h.b16 %v19
  %v288 = vunpack.c.l.b16 %v20
  %v289 = vunpack.c.h.b16 %v20
  %v290 = vunpack.c.l.b16 %v21
  %v291 = vunpack.c.h.b16 %v21
  %v292 = vunpack.c.l.b16 %v22
  %v293 = vunpack.c.h.b16 %v22
  %v294 = vunpack.c.l.b16 %v23
  %v295 = vunpack.c.h.b16 %v23
  %v296 = vunpack.c.l.b16 %v24
  %v297 = vunpack.c.h.b16 %v24
  %v298 = vunpack.c.l.b16 %v25
  %v299 = vunpack.c.h.b16 %v25
  %v300 = vunpack.c.l.b16 %v26
  %v301 = vunpack.c.h.b16 %v26
  %v302 = vunpack.c.l.b16 %v27
  %v303 = vunpack.c.h.b16 %v27
  %v304 = vunpack.c.l.b16 %v28
  %v305 = vunpack.c.h.b16 %v28
  %v306 = vunpack.c.l.b16 %v29
  %v307 = vunpack.c.h.b16 %v29
  %v308 = vunpack.c.l.b16 %v30
  %v309 = vunpack.c.h.b16 %v30
  %v310 = vunpack.c.l.b16 %v31
  %v311 = vunpack.c.h.b16 %v31
  %v312 = vunpack.c.l.b16 %v32
  %v313 = vunpack.c.h.b16 %v32
  %v314 = vunpack.c.l.b16 %v33
  %v315 = vunpack.c.h.b16 %v33
  %v316 = vunpack.c.l.b16 %v34
  %v317 = vunpack.c.h.b16 %v34
  %v318 = vunpack.c.l.b16 %v35
  %v319 = vunpack.c.h.b16 %v35
  %v320 = vunpack.c.l.b16 %v36
  %v321 = vunpack.c.h.b16 %v36
  %v322 = vunpack.c.l.b16 %v37
  %v323 = vunpack.c.h.b16 %v37
  %v324 = vunpack.c.l.b16 %v38
  %v325 = vunpack.c.h.b16 %v38
  %v326 = vunpack.c.l.b16 %v39
  %v327 = vunpack.c.h.b16 %v39
  %v328 = vunpack.c.l.b16 %v40
  %v329 = vunpack.c.h.b16 %v40
  %v330 = vunpack.c.l.b16 %v41
  %v331 = vunpack.c.h.b16 %v41
  %v332 = vunpack.c.l.b16 %v42
  %v333 = vunpack.c.h.b16 %v42
  %v334 = vunpack.c.l.b16 %v43
  %v335 = vunpack.c.h.b16 %v43
  %v336 = vunpack.c.l.b16 %v44
  %v337 = vunpack.c.h.b16 %v44
  %v338 = vunpack.c.l.b16 %v45
  %v339 = vunpack.c.h.b16 %v45
  %v340 = vunpack.c.l.b16 %v46
  %v341 = vunpack.c.h.b16 %v46
  %v342 = vunpack.c.l.b16 %v47
  %v343 = vunpack.c.h.b16 %v47
  %v344 = vunpack.c.l.b16 %v48
  %v345 = vunpack.c.h.b16 %v48
  %v346 = vunpack.c.l.b16 %v49
  %v347 = vunpack.c.h.b16 %v49
  %v348 = vunpack.c.l.b16 %v50
  %v349 = vunpack.c.h.b16 %v50
  %v350 = vunpack.c.l.b16 %v51
  %v351 = vunpack.c.h.b16 %v51
  %v352 = vunpack.c.l.b16 %v52
  %v353 = vunpack.c.h.b16 %v52
  %v354 = vunpack.c.l.b16 %v53
  %v355 = vunpack.c.h.b16 %v53
  %v356 = vunpack.c.l.b16 %v54
  %v357 = vunpack.c.h.b16 %v54
  %v358 = vunpack.c.l.b16 %v55
  %v359 = vunpack.c.h.b16 %v55
  %v360 = vunpack.c.l.b16 %v56
  %v361 = vunpack.c.h.b16 %v56
  %v362 = vunpack.c.l.b16 %v57
  %v363 = vunpack.c.h.b16 %v57
  %v364 = vunpack.c.l.b16 %v58
  %v365 = vunpack.c.h.b16 %v58
  %v366 = vunpack.c.l.b16 %v59
  %v367 = vunpack.c.h.b16 %v59
  %v368 = vunpack.c.l.b16 %v60
  %v369 = vunpack.c.h.b16 %v60
  %v370 = vunpack.c.l.b16 %v61
  %v371 = vunpack.c.h.b16 %v61
  %v372 = vunpack.c.l.b16 %v62
  %v373 = vunpack.c.h.b16 %v62
  %v374 = vunpack.c.l.b16 %v63
  %v375 = vunpack.c.h.b16 %v63
  %v376 = vunpack.c.l.b16 %v64
  %v377 = vunpack.c.h.b16 %v64
  %v378 = vunpack.c.l.b16 %v65
  %v379 = vunpack.c.h.b16 %v65
  %v380 = vunpack.c.l.b16 %v66
  %v381 = vunpack.c.h.b16 %v66
  %v382 = vunpack.c.l.b16 %v67
  %v383 = vunpack.c.h.b16 %v67
  %v384 = vunpack.c.l.b16 %v68
  %v385 = vunpack.c.h.b16 %v68
  %v386 = vunpack.c.l.b16 %v69
  %v387 = vunpack.c.h.b16 %v69
  %v388 = vunpack.c.l.b16 %v70
  %v389 = vunpack.c.h.b16 %v70
  %v390 = vunpack.c.l.b16 %v71
  %v391 = vunpack.c.h.b16 %v71
  %v392 = vunpack.c.l.b16 %v72
  %v393 = vunpack.c.h.b16 %v72
  %v394 = vunpack.c.l.b16 %v73
  %v395 = vunpack.c.h.b16 %v73
  %v396 = vunpack.c.l.b16 %v74
  %v397 = vunpack.c.h.b16 %v74
  %v398 = vunpack.c.l.b16 %v75
  %v399 = vunpack.c.h.b16 %v75
  %v400 = vunpack.c.l.b16 %v76
  %v401 = vunpack.c.h.b16 %v76
  %v402 = vunpack.c.l.b16 %v77
  %v403 = vunpack.c.h.b16 %v77
  %v404 = vunpack.c.l.b16 %v78
  %v405 = vunpack.c.h.b16 %v78
  %v406 = vpack.c.b16 %v286, %v278
  %v407 = vpack.c.b16 %v287, %v279
  %v408 = vpack.c.b16 %v288, %v280
  %v409 = vpack.c.b16 %v289, %v281
  %v410 = vpack.c.b16 %v290, %v282
  %v411 = vpack.c.b16 %v291, %v283
  %v412 = vpack.c.b16 %v292, %v284
  %v413 = vpack.c.b16 %v293, %v285
  %v414 = vpack.c.b16 %v302, %v294
  %v415 = vpack.c.b16 %v303, %v295
  %v416 = vpack.c.b16 %v304, %v296
  %v417 = vpack.c.b16 %v305, %v297
  %v418 = vpack.c.b16 %v306, %v298
  %v419 = vpack.c.b16 %v307, %v299
  %v420 = vpack.c.b16 %v308, %v300
  %v421 = vpack.c.b16 %v309, %v301
  %v422 = vpack.c.b16 %v318, %v310
  %v423 = vpack.c.b16 %v319, %v311
  %v424 = vpack.c.b16 %v320, %v312
  %v425 = vpack.c.b16 %v321, %v313
  %v426 = vpack.c.b16 %v322, %v314
  %v427 = vpack.c.b16 %v323, %v315
  %v428 = vpack.c.b16 %v324, %v316
  %v429 = vpack.c.b16 %v325, %v317
  %v430 = vpack.c.b16 %v334, %v326
  %v431 = vpack.c.b16 %v335, %v327
  %v432 = vpack.c.b16 %v336, %v328
  %v433 = vpack.c.b16 %v337, %v329
  %v434 = vpack.c.b16 %v338, %v330
  %v435 = vpack.c.b16 %v339, %v331
  %v436 = vpack.c.b16 %v340, %v332
  %v437 = vpack.c.b16 %v341, %v333
  %v438 = vpack.c.b16 %v350, %v342
  %v439 = vpack.c.b16 %v351, %v343
  %v440 = vpack.c.b16 %v352, %v344
  %v441 = vpack.c.b16 %v353, %v345
  %v442 = vpack.c.b16 %v354, %v346
  %v443 = vpack.c.b16 %v355, %v347
  %v444 = vpack.c.b16 %v356, %v348
  %v445 = vpack.c.b16 %v357, %v349
  %v446 = vpack.c.b16 %v366, %v358
  %v447 = vpack.c.b16 %v367, %v359
  %v448 = vpack.c.b16 %v368, %v360
  %v449 = vpack.c.b16 %v369, %v361
  %v450 = vpack.c.b16 %v370, %v362
  %v451 = vpack.c.b16 %v371, %v363
  %v452 = vpack.c.b16 %v372, %v364
  %v453 = vpack.c.b16 %v373, %v365
  %v454 = vpack.c.b16 %v382, %v374
  %v455 = vpack.c.b16 %v383, %v375
  %v456 = vpack.c.b16 %v384, %v376
  %v457 = vpack.c.b16 %v385, %v377
  %v458 = vpack.c.b16 %v386, %v378
  %v459 = vpack.c.b16 %v387, %v379
  %v460 = vpack.c.b16 %v388, %v380
  %v461 = vpack.c.b16 %v389, %v381
  %v462 = vpack.c.b16 %v398, %v390
  %v463 = vpack.c.b16 %v399, %v391
  %v464 = vpack.c.b16 %v400, %v392
  %v465 = vpack.c.b16 %v401, %v393
  %v466 = vpack.c.b16 %v402, %v394
  %v467 = vpack.c.b16 %v403, %v395
  %v468 = vpack.c.b16 %v404, %v396
  %v469 = vpack.c.b16 %v405, %v397
  %v662 = vunpack.c.l.b16 %v79
  %v663 = vunpack.c.l.b16 %v80
  %v664 = vunpack.c.l.b16 %v81
  %v665 = vunpack.c.l.b16 %v82
  %v666 = vunpack.c.l.b16 %v83
  %v667 = vunpack.c.l.b16 %v84
  %v668 = vunpack.c.l.b16 %v85
  %v669 = vunpack.c.l.b16 %v86
  %v670 = vunpack.c.l.b16 %v87
  %v671 = vunpack.c.l.b16 %v88
  %v672 = vunpack.c.l.b16 %v89
  %v673 = vunpack.c.l.b16 %v90
  %v674 = vunpack.c.l.b16 %v91
  %v675 = vunpack.c.l.b16 %v92
  %v676 = vunpack.c.l.b16 %v93
  %v677 = vunpack.c.l.b16 %v94
  %v678 = vunpack.c.l.b16 %v95
  %v679 = vunpack.c.l.b16 %v96
  %v680 = vunpack.c.l.b16 %v97
  %v681 = vunpack.c.l.b16 %v98
  %v682 = vunpack.c.l.b16 %v99
  %v683 = vunpack.c.l.b16 %v100
  %v684 = vunpack.c.l.b16 %v101
  %v685 = vunpack.c.l.b16 %v102
  %v686 = vunpack.c.l.b16 %v103
  %v687 = vunpack.c.l.b16 %v104
  %v688 = vunpack.c.l.b16 %v105
  %v689 = vunpack.c.l.b16 %v106
  %v690 = vunpack.c.l.b16 %v107
  %v691 = vunpack.c.l.b16 %v108
  %v692 = vunpack.c.l.b16 %v109
  %v693 = vunpack.c.l.b16 %v110
  %v694 = vunpack.c.l.b16 %v111
  %v695 = vunpack.c.l.b16 %v112
  %v696 = vunpack.c.l.b16 %v113
  %v697 = vunpack.c.l.b16 %v114
  %v698 = vunpack.c.l.b16 %v115
  %v699 = vunpack.c.l.b16 %v116
  %v700 = vunpack.c.l.b16 %v117
  %v701 = vunpack.c.l.b16 %v118
  %v702 = vunpack.c.l.b16 %v119
  %v703 = vunpack.c.l.b16 %v120
  %v704 = vunpack.c.l.b16 %v121
  %v705 = vunpack.c.l.b16 %v122
  %v706 = vunpack.c.l.b16 %v123
  %v707 = vunpack.c.l.b16 %v124
  %v708 = vunpack.c.l.b16 %v125
  %v709 = vunpack.c.l.b16 %v126
  %v710 = vunpack.c.l.b16 %v127
  %v711 = vunpack.c.l.b16 %v128
  %v712 = vunpack.c.l.b16 %v129
  %v713 = vunpack.c.l.b16 %v130
  %v714 = vunpack.c.l.b16 %v131
  %v715 = vunpack.c.l.b16 %v132
  %v716 = vunpack.c.l.b16 %v133
  %v717 = vunpack.c.l.b16 %v134
  %v718 = vunpack.c.l.b16 %v135
  %v719 = vunpack.c.l.b16 %v136
  %v720 = vunpack.c.l.b16 %v137
  %v721 = vunpack.c.l.b16 %v138
  %v722 = vunpack.c.l.b16 %v139
  %v723 = vunpack.c.l.b16 %v140
  %v724 = vunpack.c.l.b16 %v141
  %v725 = vunpack.c.l.b16 %v142
  %v726 = vunpack.c.l.b16 %v143
  %v727 = vunpack.c.l.b16 %v144
  %v728 = vunpack.c.l.b16 %v145
  %v729 = vunpack.c.l.b16 %v146
  %v730 = vunpack.c.l.b16 %v147
  %v731 = vunpack.c.l.b16 %v148
  %v732 = vunpack.c.l.b16 %v149
  %v733 = vunpack.c.l.b16 %v150
  %v734 = vunpack.c.l.b16 %v151
  %v735 = vunpack.c.l.b16 %v152
  %v736 = vunpack.c.l.b16 %v153
  %v737 = vunpack.c.l.b16 %v154
  %v738 = vunpack.c.l.b16 %v155
  %v739 = vunpack.c.l.b16 %v156
  %v740 = vunpack.c.l.b16 %v157
  %v741 = vunpack.c.l.b16 %v158
  %v742 = vunpack.c.l.b16 %v159
  %v743 = vunpack.c.l.b16 %v160
  %v744 = vunpack.c.l.b16 %v161
  %v745 = vunpack.c.l.b16 %v162
  %v746 = vunpack.c.l.b16 %v163
  %v747 = vunpack.c.l.b16 %v164
  %v748 = vunpack.c.l.b16 %v165
  %v749 = vunpack.c.l.b16 %v166
  %v750 = vunpack.c.l.b16 %v167
  %v751 = vunpack.c.l.b16 %v168
  %v752 = vunpack.c.l.b16 %v169
  %v753 = vunpack.c.l.b16 %v170
  %v754 = vunpack.c.l.b16 %v171
  %v755 = vunpack.c.l.b16 %v172
  %v756 = vunpack.c.l.b16 %v173
  %v757 = vunpack.c.l.b16 %v174
  %v758 = vunpack.c.l.b16 %v175
  %v759 = vunpack.c.l.b16 %v176
  %v760 = vunpack.c.l.b16 %v177
  %v761 = vunpack.c.l.b16 %v178
  %v762 = vunpack.c.l.b16 %v179
  %v763 = vunpack.c.l.b16 %v180
  %v764 = vunpack.c.l.b16 %v181
  %v765 = vunpack.c.l.b16 %v182
  %v766 = vunpack.c.l.b16 %v183
  %v767 = vunpack.c.l.b16 %v184
  %v768 = vunpack.c.l.b16 %v185
  %v769 = vunpack.c.l.b16 %v186
  %v770 = vunpack.c.l.b16 %v187
  %v771 = vunpack.c.l.b16 %v188
  %v772 = vunpack.c.l.b16 %v189
  %v773 = vunpack.c.l.b16 %v190
  %v774 = vunpack.c.l.b16 %v191
  %v775 = vunpack.c.l.b16 %v192
  %v776 = vunpack.c.l.b16 %v193
  %v777 = vunpack.c.l.b16 %v194
  %v778 = vunpack.c.l.b16 %v195
  %v779 = vunpack.c.l.b16 %v196
  %v780 = vunpack.c.l.b16 %v197
  %v781 = vunpack.c.l.b16 %v198
  %v782 = vunpack.c.l.b16 %v199
  %v783 = vunpack.c.l.b16 %v200
  %v784 = vunpack.c.l.b16 %v201
  %v785 = vunpack.c.l.b16 %v202
  %v786 = vunpack.c.l.b16 %v203
  %v787 = vunpack.c.l.b16 %v204
  %v788 = vunpack.c.l.b16 %v205
  %v789 = vunpack.c.l.b16 %v206
  %v790 = vpack.c.b16 %v663, %v662
  %v791 = vpack.c.b16 %v665, %v664
  %v792 = vpack.c.b16 %v667, %v666
  %v793 = vpack.c.b16 %v669, %v668
  %v794 = vpack.c.b16 %v671, %v670
  %v795 = vpack.c.b16 %v673, %v672
  %v796 = vpack.c.b16 %v675, %v674
  %v797 = vpack.c.b16 %v677, %v676
  %v798 = vpack.c.b16 %v679, %v678
  %v799 = vpack.c.b16 %v681, %v680
  %v800 = vpack.c.b16 %v683, %v682
  %v801 = vpack.c.b16 %v685, %v684
  %v802 = vpack.c.b16 %v687, %v686
  %v803 = vpack.c.b16 %v689, %v688
  %v804 = vpack.c.b16 %v691, %v690
  %v805 = vpack.c.b16 %v693, %v692
  %v806 = vpack.c.b16 %v695, %v694
  %v807 = vpack.c.b16 %v697, %v696
  %v808 = vpack.c.b16 %v699, %v698
  %v809 = vpack.c.b16 %v701, %v700
  %v810 = vpack.c.b16 %v703, %v702
  %v811 = vpack.c.b16 %v705, %v704
  %v812 = vpack.c.b16 %v707, %v706
  %v813 = vpack.c.b16 %v709, %v708
  %v814 = vpack.c.b16 %v711, %v710
  %v815 = vpack.c.b16 %v713, %v712
  %v816 = vpack.c.b16 %v715, %v714
  %v817 = vpack.c.b16 %v717, %v716
  %v818 = vpack.c.b16 %v719, %v718
  %v819 = vpack.c.b16 %v721, %v720
  %v820 = vpack.c.b16 %v723, %v722
  %v821 = vpack.c.b16 %v725, %v724
  %v822 = vpack.c.b16 %v727, %v726
  %v823 = vpack.c.b16 %v729, %v728
  %v824 = vpack.c.b16 %v731, %v730
  %v825 = vpack.c.b16 %v733, %v732
  %v826 = vpack.c.b16 %v735, %v734
  %v827 = vpack.c.b16 %v737, %v736
  %v828 = vpack.c.b16 %v739, %v738
  %v829 = vpack.c.b16 %v741, %v740
  %v830 = vpack.c.b16 %v743, %v742
  %v831 = vpack.c.b16 %v745, %v744
  %v832 = vpack.c.b16 %v747, %v746
  %v833 = vpack.c.b16 %v749, %v748
  %v834 = vpack.c.b16 %v751, %v750
  %v835 = vpack.c.b16 %v753, %v752
  %v836 = vpack.c.b16 %v755, %v754
  %v837 = vpack.c.b16 %v757, %v756
  %v838 = vpack.c.b16 %v759, %v758
  %v839 = vpack.c.b16 %v761, %v760
  %v840 = vpack.c.b16 %v763, %v762
  %v841 = vpack.c.b16 %v765, %v764
  %v842 = vpack.c.b16 %v767, %v766
  %v843 = vpack.c.b16 %v769, %v768
  %v844 = vpack.c.b16 %v771, %v770
  %v845 = vpack.c.b16 %v773, %v772
  %v846 = vpack.c.b16 %v775, %v774
  %v847 = vpack.c.b16 %v777, %v776
  %v848 = vpack.c.b16 %v779, %v778
  %v849 = vpack.c.b16 %v781, %v780
  %v850 = vpack.c.b16 %v783, %v782
  %v851 = vpack.c.b16 %v785, %v784
  %v852 = vpack.c.b16 %v787, %v786
  %v853 = vpack.c.b16 %v789, %v788
  %918 = vmatprep.subr.bf16.mxu0 0
  %919 = vmatpush1.bf16.msra.mxu0 %v797
  %920 = vmatprep.subr.bf16.mxu0 0
  %921 = vmatpush1.bf16.msra.mxu0 %v796
  %922 = vmatprep.subr.bf16.mxu0 0
  %923 = vmatpush1.bf16.msra.mxu0 %v795
  %924 = vmatprep.subr.bf16.mxu0 0
  %925 = vmatpush1.bf16.msra.mxu0 %v794
  %926 = vmatprep.subr.bf16.mxu0 0
  %927 = vmatpush1.bf16.msra.mxu0 %v793
  %928 = vmatprep.subr.bf16.mxu0 0
  %929 = vmatpush1.bf16.msra.mxu0 %v792
  %930 = vmatprep.subr.bf16.mxu0 0
  %931 = vmatpush1.bf16.msra.mxu0 %v791
  %932 = vmatprep.subr.bf16.mxu0 0
  %933 = vmatpush1.bf16.msra.mxu0 %v790
  %934 = vmatprep.subr.bf16.mxu0 0
  %935 = vmatpush2.bf16.msra.mxu0 %v805
  %936 = vmatprep.subr.bf16.mxu0 0
  %937 = vmatpush2.bf16.msra.mxu0 %v804
  %938 = vmatprep.subr.bf16.mxu0 0
  %939 = vmatpush2.bf16.msra.mxu0 %v803
  %940 = vmatprep.subr.bf16.mxu0 0
  %941 = vmatpush2.bf16.msra.mxu0 %v802
  %942 = vmatprep.subr.bf16.mxu0 0
  %943 = vmatpush2.bf16.msra.mxu0 %v801
  %944 = vmatprep.subr.bf16.mxu0 0
  %945 = vmatpush2.bf16.msra.mxu0 %v800
  %946 = vmatprep.subr.bf16.mxu0 0
  %947 = vmatpush2.bf16.msra.mxu0 %v799
  %948 = vmatprep.subr.bf16.mxu0 0
  %949 = vmatpush2.bf16.msra.mxu0 %v798
  %950 = vmatprep.mubr.bf16.mxu0 %v407
  %951 = vmatmul.mubr.bf16.gmra.mxu0 %v406
  %v952 = vpop.f32.mrf.mxu0
  %v953 = vadd.f32 %v212, %v952
  %v954 = vpop.f32.mrf.mxu0
  %v955 = vpop.f32.mrf.mxu0
  %v956 = vadd.f32 %v212, %v955
  %v957 = vpop.f32.mrf.mxu0
  %958 = vmatprep.mubr.bf16.mxu0 %v415
  %959 = vmatmul.mubr.bf16.gmra.mxu0 %v414
  %v960 = vpop.f32.mrf.mxu0
  %v961 = vadd.f32 %v212, %v960
  %v962 = vpop.f32.mrf.mxu0
  %v963 = vpop.f32.mrf.mxu0
  %v964 = vadd.f32 %v212, %v963
  %v965 = vpop.f32.mrf.mxu0
  %966 = vmatprep.mubr.bf16.mxu0 %v423
  %967 = vmatmul.mubr.bf16.gmra.mxu0 %v422
  %v968 = vpop.f32.mrf.mxu0
  %v969 = vadd.f32 %v212, %v968
  %v970 = vpop.f32.mrf.mxu0
  %v971 = vpop.f32.mrf.mxu0
  %v972 = vadd.f32 %v212, %v971
  %v973 = vpop.f32.mrf.mxu0
  %974 = vmatprep.mubr.bf16.mxu0 %v431
  %975 = vmatmul.mubr.bf16.gmra.mxu0 %v430
  %v976 = vpop.f32.mrf.mxu0
  %v977 = vadd.f32 %v212, %v976
  %v978 = vpop.f32.mrf.mxu0
  %v979 = vpop.f32.mrf.mxu0
  %v980 = vadd.f32 %v212, %v979
  %v981 = vpop.f32.mrf.mxu0
  %982 = vmatprep.mubr.bf16.mxu0 %v439
  %983 = vmatmul.mubr.bf16.gmra.mxu0 %v438
  %v984 = vpop.f32.mrf.mxu0
  %v985 = vadd.f32 %v212, %v984
  %v986 = vpop.f32.mrf.mxu0
  %v987 = vpop.f32.mrf.mxu0
  %v988 = vadd.f32 %v212, %v987
  %v989 = vpop.f32.mrf.mxu0
  %990 = vmatprep.mubr.bf16.mxu0 %v447
  %991 = vmatmul.mubr.bf16.gmra.mxu0 %v446
  %v992 = vpop.f32.mrf.mxu0
  %v993 = vadd.f32 %v212, %v992
  %v994 = vpop.f32.mrf.mxu0
  %v995 = vpop.f32.mrf.mxu0
  %v996 = vadd.f32 %v212, %v995
  %v997 = vpop.f32.mrf.mxu0
  %998 = vmatprep.mubr.bf16.mxu0 %v455
  %999 = vmatmul.mubr.bf16.gmra.mxu0 %v454
  %v1000 = vpop.f32.mrf.mxu0
  %v1001 = vadd.f32 %v212, %v1000
  %v1002 = vpop.f32.mrf.mxu0
  %v1003 = vpop.f32.mrf.mxu0
  %v1004 = vadd.f32 %v212, %v1003
  %v1005 = vpop.f32.mrf.mxu0
  %1006 = vmatprep.mubr.bf16.mxu0 %v463
  %1007 = vmatmul.mubr.bf16.gmra.mxu0 %v462
  %v1008 = vpop.f32.mrf.mxu0
  %v1009 = vadd.f32 %v212, %v1008
  %v1010 = vpop.f32.mrf.mxu0
  %v1011 = vpop.f32.mrf.mxu0
  %v1012 = vadd.f32 %v212, %v1011
  %v1013 = vpop.f32.mrf.mxu0
  %1014 = vdwg.mxu0
  %1015 = vmatprep.subr.bf16.mxu0 0
  %1016 = vmatpush1.bf16.msra.mxu0 %v813
  %1017 = vmatprep.subr.bf16.mxu0 0
  %1018 = vmatpush1.bf16.msra.mxu0 %v812
  %1019 = vmatprep.subr.bf16.mxu0 0
  %1020 = vmatpush1.bf16.msra.mxu0 %v811
  %1021 = vmatprep.subr.bf16.mxu0 0
  %1022 = vmatpush1.bf16.msra.mxu0 %v810
  %1023 = vmatprep.subr.bf16.mxu0 0
  %1024 = vmatpush1.bf16.msra.mxu0 %v809
  %1025 = vmatprep.subr.bf16.mxu0 0
  %1026 = vmatpush1.bf16.msra.mxu0 %v808
  %1027 = vmatprep.subr.bf16.mxu0 0
  %1028 = vmatpush1.bf16.msra.mxu0 %v807
  %1029 = vmatprep.subr.bf16.mxu0 0
  %1030 = vmatpush1.bf16.msra.mxu0 %v806
  %1031 = vmatprep.subr.bf16.mxu0 0
  %1032 = vmatpush2.bf16.msra.mxu0 %v821
  %1033 = vmatprep.subr.bf16.mxu0 0
  %1034 = vmatpush2.bf16.msra.mxu0 %v820
  %1035 = vmatprep.subr.bf16.mxu0 0
  %1036 = vmatpush2.bf16.msra.mxu0 %v819
  %1037 = vmatprep.subr.bf16.mxu0 0
  %1038 = vmatpush2.bf16.msra.mxu0 %v818
  %1039 = vmatprep.subr.bf16.mxu0 0
  %1040 = vmatpush2.bf16.msra.mxu0 %v817
  %1041 = vmatprep.subr.bf16.mxu0 0
  %1042 = vmatpush2.bf16.msra.mxu0 %v816
  %1043 = vmatprep.subr.bf16.mxu0 0
  %1044 = vmatpush2.bf16.msra.mxu0 %v815
  %1045 = vmatprep.subr.bf16.mxu0 0
  %1046 = vmatpush2.bf16.msra.mxu0 %v814
  %1047 = vmatprep.mubr.bf16.mxu0 %v409
  %1048 = vmatmul.mubr.bf16.gmra.mxu0 %v408
  %v1049 = vpop.f32.mrf.mxu0
  %v1050 = vadd.f32 %v953, %v1049
  %v1051 = vpop.f32.mrf.mxu0
  %v1052 = vpop.f32.mrf.mxu0
  %v1053 = vadd.f32 %v956, %v1052
  %v1054 = vpop.f32.mrf.mxu0
  %1055 = vmatprep.mubr.bf16.mxu0 %v417
  %1056 = vmatmul.mubr.bf16.gmra.mxu0 %v416
  %v1057 = vpop.f32.mrf.mxu0
  %v1058 = vadd.f32 %v961, %v1057
  %v1059 = vpop.f32.mrf.mxu0
  %v1060 = vpop.f32.mrf.mxu0
  %v1061 = vadd.f32 %v964, %v1060
  %v1062 = vpop.f32.mrf.mxu0
  %1063 = vmatprep.mubr.bf16.mxu0 %v425
  %1064 = vmatmul.mubr.bf16.gmra.mxu0 %v424
  %v1065 = vpop.f32.mrf.mxu0
  %v1066 = vadd.f32 %v969, %v1065
  %v1067 = vpop.f32.mrf.mxu0
  %v1068 = vpop.f32.mrf.mxu0
  %v1069 = vadd.f32 %v972, %v1068
  %v1070 = vpop.f32.mrf.mxu0
  %1071 = vmatprep.mubr.bf16.mxu0 %v433
  %1072 = vmatmul.mubr.bf16.gmra.mxu0 %v432
  %v1073 = vpop.f32.mrf.mxu0
  %v1074 = vadd.f32 %v977, %v1073
  %v1075 = vpop.f32.mrf.mxu0
  %v1076 = vpop.f32.mrf.mxu0
  %v1077 = vadd.f32 %v980, %v1076
  %v1078 = vpop.f32.mrf.mxu0
  %1079 = vmatprep.mubr.bf16.mxu0 %v441
  %1080 = vmatmul.mubr.bf16.gmra.mxu0 %v440
  %v1081 = vpop.f32.mrf.mxu0
  %v1082 = vadd.f32 %v985, %v1081
  %v1083 = vpop.f32.mrf.mxu0
  %v1084 = vpop.f32.mrf.mxu0
  %v1085 = vadd.f32 %v988, %v1084
  %v1086 = vpop.f32.mrf.mxu0
  %1087 = vmatprep.mubr.bf16.mxu0 %v449
  %1088 = vmatmul.mubr.bf16.gmra.mxu0 %v448
  %v1089 = vpop.f32.mrf.mxu0
  %v1090 = vadd.f32 %v993, %v1089
  %v1091 = vpop.f32.mrf.mxu0
  %v1092 = vpop.f32.mrf.mxu0
  %v1093 = vadd.f32 %v996, %v1092
  %v1094 = vpop.f32.mrf.mxu0
  %1095 = vmatprep.mubr.bf16.mxu0 %v457
  %1096 = vmatmul.mubr.bf16.gmra.mxu0 %v456
  %v1097 = vpop.f32.mrf.mxu0
  %v1098 = vadd.f32 %v1001, %v1097
  %v1099 = vpop.f32.mrf.mxu0
  %v1100 = vpop.f32.mrf.mxu0
  %v1101 = vadd.f32 %v1004, %v1100
  %v1102 = vpop.f32.mrf.mxu0
  %1103 = vmatprep.mubr.bf16.mxu0 %v465
  %1104 = vmatmul.mubr.bf16.gmra.mxu0 %v464
  %v1105 = vpop.f32.mrf.mxu0
  %v1106 = vadd.f32 %v1009, %v1105
  %v1107 = vpop.f32.mrf.mxu0
  %v1108 = vpop.f32.mrf.mxu0
  %v1109 = vadd.f32 %v1012, %v1108
  %v1110 = vpop.f32.mrf.mxu0
  %1111 = vdwg.mxu0
  %1112 = vmatprep.subr.bf16.mxu0 0
  %1113 = vmatpush1.bf16.msra.mxu0 %v829
  %1114 = vmatprep.subr.bf16.mxu0 0
  %1115 = vmatpush1.bf16.msra.mxu0 %v828
  %1116 = vmatprep.subr.bf16.mxu0 0
  %1117 = vmatpush1.bf16.msra.mxu0 %v827
  %1118 = vmatprep.subr.bf16.mxu0 0
  %1119 = vmatpush1.bf16.msra.mxu0 %v826
  %1120 = vmatprep.subr.bf16.mxu0 0
  %1121 = vmatpush1.bf16.msra.mxu0 %v825
  %1122 = vmatprep.subr.bf16.mxu0 0
  %1123 = vmatpush1.bf16.msra.mxu0 %v824
  %1124 = vmatprep.subr.bf16.mxu0 0
  %1125 = vmatpush1.bf16.msra.mxu0 %v823
  %1126 = vmatprep.subr.bf16.mxu0 0
  %1127 = vmatpush1.bf16.msra.mxu0 %v822
  %1128 = vmatprep.subr.bf16.mxu0 0
  %1129 = vmatpush2.bf16.msra.mxu0 %v837
  %1130 = vmatprep.subr.bf16.mxu0 0
  %1131 = vmatpush2.bf16.msra.mxu0 %v836
  %1132 = vmatprep.subr.bf16.mxu0 0
  %1133 = vmatpush2.bf16.msra.mxu0 %v835
  %1134 = vmatprep.subr.bf16.mxu0 0
  %1135 = vmatpush2.bf16.msra.mxu0 %v834
  %1136 = vmatprep.subr.bf16.mxu0 0
  %1137 = vmatpush2.bf16.msra.mxu0 %v833
  %1138 = vmatprep.subr.bf16.mxu0 0
  %1139 = vmatpush2.bf16.msra.mxu0 %v832
  %1140 = vmatprep.subr.bf16.mxu0 0
  %1141 = vmatpush2.bf16.msra.mxu0 %v831
  %1142 = vmatprep.subr.bf16.mxu0 0
  %1143 = vmatpush2.bf16.msra.mxu0 %v830
  %1144 = vmatprep.mubr.bf16.mxu0 %v411
  %1145 = vmatmul.mubr.bf16.gmra.mxu0 %v410
  %v1146 = vpop.f32.mrf.mxu0
  %v1147 = vadd.f32 %v1050, %v1146
  %v1148 = vpop.f32.mrf.mxu0
  %v1149 = vpop.f32.mrf.mxu0
  %v1150 = vadd.f32 %v1053, %v1149
  %v1151 = vpop.f32.mrf.mxu0
  %1152 = vmatprep.mubr.bf16.mxu0 %v419
  %1153 = vmatmul.mubr.bf16.gmra.mxu0 %v418
  %v1154 = vpop.f32.mrf.mxu0
  %v1155 = vadd.f32 %v1058, %v1154
  %v1156 = vpop.f32.mrf.mxu0
  %v1157 = vpop.f32.mrf.mxu0
  %v1158 = vadd.f32 %v1061, %v1157
  %v1159 = vpop.f32.mrf.mxu0
  %1160 = vmatprep.mubr.bf16.mxu0 %v427
  %1161 = vmatmul.mubr.bf16.gmra.mxu0 %v426
  %v1162 = vpop.f32.mrf.mxu0
  %v1163 = vadd.f32 %v1066, %v1162
  %v1164 = vpop.f32.mrf.mxu0
  %v1165 = vpop.f32.mrf.mxu0
  %v1166 = vadd.f32 %v1069, %v1165
  %v1167 = vpop.f32.mrf.mxu0
  %1168 = vmatprep.mubr.bf16.mxu0 %v435
  %1169 = vmatmul.mubr.bf16.gmra.mxu0 %v434
  %v1170 = vpop.f32.mrf.mxu0
  %v1171 = vadd.f32 %v1074, %v1170
  %v1172 = vpop.f32.mrf.mxu0
  %v1173 = vpop.f32.mrf.mxu0
  %v1174 = vadd.f32 %v1077, %v1173
  %v1175 = vpop.f32.mrf.mxu0
  %1176 = vmatprep.mubr.bf16.mxu0 %v443
  %1177 = vmatmul.mubr.bf16.gmra.mxu0 %v442
  %v1178 = vpop.f32.mrf.mxu0
  %v1179 = vadd.f32 %v1082, %v1178
  %v1180 = vpop.f32.mrf.mxu0
  %v1181 = vpop.f32.mrf.mxu0
  %v1182 = vadd.f32 %v1085, %v1181
  %v1183 = vpop.f32.mrf.mxu0
  %1184 = vmatprep.mubr.bf16.mxu0 %v451
  %1185 = vmatmul.mubr.bf16.gmra.mxu0 %v450
  %v1186 = vpop.f32.mrf.mxu0
  %v1187 = vadd.f32 %v1090, %v1186
  %v1188 = vpop.f32.mrf.mxu0
  %v1189 = vpop.f32.mrf.mxu0
  %v1190 = vadd.f32 %v1093, %v1189
  %v1191 = vpop.f32.mrf.mxu0
  %1192 = vmatprep.mubr.bf16.mxu0 %v459
  %1193 = vmatmul.mubr.bf16.gmra.mxu0 %v458
  %v1194 = vpop.f32.mrf.mxu0
  %v1195 = vadd.f32 %v1098, %v1194
  %v1196 = vpop.f32.mrf.mxu0
  %v1197 = vpop.f32.mrf.mxu0
  %v1198 = vadd.f32 %v1101, %v1197
  %v1199 = vpop.f32.mrf.mxu0
  %1200 = vmatprep.mubr.bf16.mxu0 %v467
  %1201 = vmatmul.mubr.bf16.gmra.mxu0 %v466
  %v1202 = vpop.f32.mrf.mxu0
  %v1203 = vadd.f32 %v1106, %v1202
  %v1204 = vpop.f32.mrf.mxu0
  %v1205 = vpop.f32.mrf.mxu0
  %v1206 = vadd.f32 %v1109, %v1205
  %v1207 = vpop.f32.mrf.mxu0
  %1208 = vdwg.mxu0
  %1209 = vmatprep.subr.bf16.mxu0 0
  %1210 = vmatpush1.bf16.msra.mxu0 %v845
  %1211 = vmatprep.subr.bf16.mxu0 0
  %1212 = vmatpush1.bf16.msra.mxu0 %v844
  %1213 = vmatprep.subr.bf16.mxu0 0
  %1214 = vmatpush1.bf16.msra.mxu0 %v843
  %1215 = vmatprep.subr.bf16.mxu0 0
  %1216 = vmatpush1.bf16.msra.mxu0 %v842
  %1217 = vmatprep.subr.bf16.mxu0 0
  %1218 = vmatpush1.bf16.msra.mxu0 %v841
  %1219 = vmatprep.subr.bf16.mxu0 0
  %1220 = vmatpush1.bf16.msra.mxu0 %v840
  %1221 = vmatprep.subr.bf16.mxu0 0
  %1222 = vmatpush1.bf16.msra.mxu0 %v839
  %1223 = vmatprep.subr.bf16.mxu0 0
  %1224 = vmatpush1.bf16.msra.mxu0 %v838
  %1225 = vmatprep.subr.bf16.mxu0 0
  %1226 = vmatpush2.bf16.msra.mxu0 %v853
  %1227 = vmatprep.subr.bf16.mxu0 0
  %1228 = vmatpush2.bf16.msra.mxu0 %v852
  %1229 = vmatprep.subr.bf16.mxu0 0
  %1230 = vmatpush2.bf16.msra.mxu0 %v851
  %1231 = vmatprep.subr.bf16.mxu0 0
  %1232 = vmatpush2.bf16.msra.mxu0 %v850
  %1233 = vmatprep.subr.bf16.mxu0 0
  %1234 = vmatpush2.bf16.msra.mxu0 %v849
  %1235 = vmatprep.subr.bf16.mxu0 0
  %1236 = vmatpush2.bf16.msra.mxu0 %v848
  %1237 = vmatprep.subr.bf16.mxu0 0
  %1238 = vmatpush2.bf16.msra.mxu0 %v847
  %1239 = vmatprep.subr.bf16.mxu0 0
  %1240 = vmatpush2.bf16.msra.mxu0 %v846
  %1241 = vmatprep.mubr.bf16.mxu0 %v413
  %1242 = vmatmul.mubr.bf16.gmra.mxu0 %v412
  %v1243 = vpop.f32.mrf.mxu0
  %v1244 = vadd.f32 %v1147, %v1243
  %v1245 = vpop.f32.mrf.mxu0
  %v1246 = vpop.f32.mrf.mxu0
  %v1247 = vadd.f32 %v1150, %v1246
  %v1248 = vpop.f32.mrf.mxu0
  %1249 = vmatprep.mubr.bf16.mxu0 %v421
  %1250 = vmatmul.mubr.bf16.gmra.mxu0 %v420
  %v1251 = vpop.f32.mrf.mxu0
  %v1252 = vadd.f32 %v1155, %v1251
  %v1253 = vpop.f32.mrf.mxu0
  %v1254 = vpop.f32.mrf.mxu0
  %v1255 = vadd.f32 %v1158, %v1254
  %v1256 = vpop.f32.mrf.mxu0
  %1257 = vmatprep.mubr.bf16.mxu0 %v429
  %1258 = vmatmul.mubr.bf16.gmra.mxu0 %v428
  %v1259 = vpop.f32.mrf.mxu0
  %v1260 = vadd.f32 %v1163, %v1259
  %v1261 = vpop.f32.mrf.mxu0
  %v1262 = vpop.f32.mrf.mxu0
  %v1263 = vadd.f32 %v1166, %v1262
  %v1264 = vpop.f32.mrf.mxu0
  %1265 = vmatprep.mubr.bf16.mxu0 %v437
  %1266 = vmatmul.mubr.bf16.gmra.mxu0 %v436
  %v1267 = vpop.f32.mrf.mxu0
  %v1268 = vadd.f32 %v1171, %v1267
  %v1269 = vpop.f32.mrf.mxu0
  %v1270 = vpop.f32.mrf.mxu0
  %v1271 = vadd.f32 %v1174, %v1270
  %v1272 = vpop.f32.mrf.mxu0
  %1273 = vmatprep.mubr.bf16.mxu0 %v445
  %1274 = vmatmul.mubr.bf16.gmra.mxu0 %v444
  %v1275 = vpop.f32.mrf.mxu0
  %v1276 = vadd.f32 %v1179, %v1275
  %v1277 = vpop.f32.mrf.mxu0
  %v1278 = vpop.f32.mrf.mxu0
  %v1279 = vadd.f32 %v1182, %v1278
  %v1280 = vpop.f32.mrf.mxu0
  %1281 = vmatprep.mubr.bf16.mxu0 %v453
  %1282 = vmatmul.mubr.bf16.gmra.mxu0 %v452
  %v1283 = vpop.f32.mrf.mxu0
  %v1284 = vadd.f32 %v1187, %v1283
  %v1285 = vpop.f32.mrf.mxu0
  %v1286 = vpop.f32.mrf.mxu0
  %v1287 = vadd.f32 %v1190, %v1286
  %v1288 = vpop.f32.mrf.mxu0
  %1289 = vmatprep.mubr.bf16.mxu0 %v461
  %1290 = vmatmul.mubr.bf16.gmra.mxu0 %v460
  %v1291 = vpop.f32.mrf.mxu0
  %v1292 = vadd.f32 %v1195, %v1291
  %v1293 = vpop.f32.mrf.mxu0
  %v1294 = vpop.f32.mrf.mxu0
  %v1295 = vadd.f32 %v1198, %v1294
  %v1296 = vpop.f32.mrf.mxu0
  %1297 = vmatprep.mubr.bf16.mxu0 %v469
  %1298 = vmatmul.mubr.bf16.gmra.mxu0 %v468
  %v1299 = vpop.f32.mrf.mxu0
  %v1300 = vadd.f32 %v1203, %v1299
  %v1301 = vpop.f32.mrf.mxu0
  %v1302 = vpop.f32.mrf.mxu0
  %v1303 = vadd.f32 %v1206, %v1302
  %v1304 = vpop.f32.mrf.mxu0
  %1305 = vdwg.mxu0
  %vm1306 = vcmp.ge.f32.partialorder %v1244, 0.0
  %vm1307 = vcmp.ge.f32.partialorder %v1247, 0.0
  %vm1308 = vcmp.ge.f32.partialorder %v1252, 0.0
  %vm1309 = vcmp.ge.f32.partialorder %v1255, 0.0
  %vm1310 = vcmp.ge.f32.partialorder %v1260, 0.0
  %vm1311 = vcmp.ge.f32.partialorder %v1263, 0.0
  %vm1312 = vcmp.ge.f32.partialorder %v1268, 0.0
  %vm1313 = vcmp.ge.f32.partialorder %v1271, 0.0
  %vm1314 = vcmp.ge.f32.partialorder %v1276, 0.0
  %vm1315 = vcmp.ge.f32.partialorder %v1279, 0.0
  %vm1316 = vcmp.ge.f32.partialorder %v1284, 0.0
  %vm1317 = vcmp.ge.f32.partialorder %v1287, 0.0
  %vm1318 = vcmp.ge.f32.partialorder %v1292, 0.0
  %vm1319 = vcmp.ge.f32.partialorder %v1295, 0.0
  %vm1320 = vcmp.ge.f32.partialorder %v1300, 0.0
  %vm1321 = vcmp.ge.f32.partialorder %v1303, 0.0
  %v1322 = vmul.f32 %v1244, 0.2
  %v1323 = vmul.f32 %v1247, 0.2
  %v1324 = vmul.f32 %v1252, 0.2
  %v1325 = vmul.f32 %v1255, 0.2
  %v1326 = vmul.f32 %v1260, 0.2
  %v1327 = vmul.f32 %v1263, 0.2
  %v1328 = vmul.f32 %v1268, 0.2
  %v1329 = vmul.f32 %v1271, 0.2
  %v1330 = vmul.f32 %v1276, 0.2
  %v1331 = vmul.f32 %v1279, 0.2
  %v1332 = vmul.f32 %v1284, 0.2
  %v1333 = vmul.f32 %v1287, 0.2
  %v1334 = vmul.f32 %v1292, 0.2
  %v1335 = vmul.f32 %v1295, 0.2
  %v1336 = vmul.f32 %v1300, 0.2
  %v1337 = vmul.f32 %v1303, 0.2
  %v1338 = vsel %vm1306, %v1244, %v1322
  %v1339 = vsel %vm1307, %v1247, %v1323
  %v1340 = vsel %vm1308, %v1252, %v1324
  %v1341 = vsel %vm1309, %v1255, %v1325
  %v1342 = vsel %vm1310, %v1260, %v1326
  %v1343 = vsel %vm1311, %v1263, %v1327
  %v1344 = vsel %vm1312, %v1268, %v1328
  %v1345 = vsel %vm1313, %v1271, %v1329
  %v1346 = vsel %vm1314, %v1276, %v1330
  %v1347 = vsel %vm1315, %v1279, %v1331
  %v1348 = vsel %vm1316, %v1284, %v1332
  %v1349 = vsel %vm1317, %v1287, %v1333
  %v1350 = vsel %vm1318, %v1292, %v1334
  %v1351 = vsel %vm1319, %v1295, %v1335
  %v1352 = vsel %vm1320, %v1300, %v1336
  %v1353 = vsel %vm1321, %v1303, %v1337
  %v1354 = vpack.c.bf16 %v1339, %v1338
  %v1355 = vpack.c.bf16 %v1341, %v1340
  %v1356 = vpack.c.bf16 %v1343, %v1342
  %v1357 = vpack.c.bf16 %v1345, %v1344
  %v1358 = vpack.c.bf16 %v1347, %v1346
  %v1359 = vpack.c.bf16 %v1349, %v1348
  %v1360 = vpack.c.bf16 %v1351, %v1350
  %v1361 = vpack.c.bf16 %v1353, %v1352
  %v1370 = vunpack.c.l.b16 %v1354
  %v1371 = vunpack.c.h.b16 %v1354
  %v1372 = vunpack.c.l.b16 %v1355
  %v1373 = vunpack.c.h.b16 %v1355
  %v1374 = vunpack.c.l.b16 %v1356
  %v1375 = vunpack.c.h.b16 %v1356
  %v1376 = vunpack.c.l.b16 %v1357
  %v1377 = vunpack.c.h.b16 %v1357
  %v1378 = vunpack.c.l.b16 %v1358
  %v1379 = vunpack.c.h.b16 %v1358
  %v1380 = vunpack.c.l.b16 %v1359
  %v1381 = vunpack.c.h.b16 %v1359
  %v1382 = vunpack.c.l.b16 %v1360
  %v1383 = vunpack.c.h.b16 %v1360
  %v1384 = vunpack.c.l.b16 %v1361
  %v1385 = vunpack.c.h.b16 %v1361
  %v1386 = vpack.c.b16 %v1370, %v1370
  %v1387 = vpack.c.b16 %v1371, %v1371
  %v1388 = vpack.c.b16 %v1372, %v1372
  %v1389 = vpack.c.b16 %v1373, %v1373
  %v1390 = vpack.c.b16 %v1374, %v1374
  %v1391 = vpack.c.b16 %v1375, %v1375
  %v1392 = vpack.c.b16 %v1376, %v1376
  %v1393 = vpack.c.b16 %v1377, %v1377
  %v1394 = vpack.c.b16 %v1378, %v1378
  %v1395 = vpack.c.b16 %v1379, %v1379
  %v1396 = vpack.c.b16 %v1380, %v1380
  %v1397 = vpack.c.b16 %v1381, %v1381
  %v1398 = vpack.c.b16 %v1382, %v1382
  %v1399 = vpack.c.b16 %v1383, %v1383
  %v1400 = vpack.c.b16 %v1384, %v1384
  %v1401 = vpack.c.b16 %v1385, %v1385
  %1418 = vst [vmem:[%s3] sm:$0xf] %v1386
  %1419 = vst [vmem:[%s3 + $0x4] sm:$0xf] %v1387
  %1420 = vst [vmem:[%s3 + $0x8] sm:$0xf] %v1388
  %1421 = vst [vmem:[%s3 + $0xc] sm:$0xf] %v1389
  %1422 = vst [vmem:[%s3 + $0x10] sm:$0xf] %v1390
  %1423 = vst [vmem:[%s3 + $0x14] sm:$0xf] %v1391
  %1424 = vst [vmem:[%s3 + $0x18] sm:$0xf] %v1392
  %1425 = vst [vmem:[%s3 + $0x1c] sm:$0xf] %v1393
  %1426 = vst [vmem:[%s3 + $0x20] sm:$0xf] %v1394
  %1427 = vst [vmem:[%s3 + $0x24] sm:$0xf] %v1395
  %1428 = vst [vmem:[%s3 + $0x28] sm:$0xf] %v1396
  %1429 = vst [vmem:[%s3 + $0x2c] sm:$0xf] %v1397
  %1430 = vst [vmem:[%s3 + $0x30] sm:$0xf] %v1398
  %1431 = vst [vmem:[%s3 + $0x34] sm:$0xf] %v1399
  %1432 = vst [vmem:[%s3 + $0x38] sm:$0xf] %v1400
  %1433 = vst [vmem:[%s3 + $0x3c] sm:$0xf] %v1401
  // Predicated region
  $region14: #{discriminator_forward.6} parent=0 // pred_check
    _
  $region15: #{discriminator_forward.6} parent=0 // pred_check_branch
    %1435 = sbr.rel (0) target = $region17
  $region16: #{discriminator_forward.6} parent=0 // pred_region
    _
  $region17: #{discriminator_forward.6} parent=0 // pred_fallthru
    _
  // Predicated region
  $region18: #{discriminator_forward.6} parent=0 // pred_check
    _
  $region19: #{discriminator_forward.6} parent=0 // pred_check_branch
    %1437 = sbr.rel (0) target = $region21
  $region20: #{discriminator_forward.6} parent=0 // pred_region
    _
  $region21: #{discriminator_forward.6} parent=0 // pred_fallthru
    _

// kernel: discriminator_forward.7
$region0: #{discriminator_forward.7}
  #allocation0 [shape = 'u32[]', space=smem, size = 0x4, offset = 0x4, fixed_abs, tag = 'smem constant byte address 0x4 - core index']
  #allocation1 [shape = 'u32[144,128]{1,0:T(1,128)}', space=vmem, size = 0x12000, scoped, tag = 'internal scratch']
  %s0 = inlined_call_operand.vmem [shape: bf16[32,2048], index: 0, kind: input, shape index: {}]
  %s1 = inlined_call_operand.vmem [shape: bf16[2048,256], index: 1, kind: input, shape index: {}]
  %s2 = inlined_call_operand.vmem [shape: f32[1,256], index: 2, kind: input, shape index: {}]
  %s3 = inlined_call_operand.vmem [shape: bf16[32,256], index: 3, kind: output, shape index: {}]
  %s4 = sld [smem:[#allocation0]]
  $region22: #{discriminator_forward.7} parent=0
    _
  %s6 = ssub.s32 1, %s4
  %s7 = scalar_select 0, %s6, %s4
  // Predicated region
  $region2: #{discriminator_forward.7} parent=0 // pred_check
    _
  $region3: #{discriminator_forward.7} parent=0 // pred_check_branch
    %9 = sbr.rel (0) target = $region5
  $region4: #{discriminator_forward.7} parent=0 // pred_region
    _
  $region5: #{discriminator_forward.7} parent=0 // pred_fallthru
    _
  // Predicated region
  $region6: #{discriminator_forward.7} parent=0 // pred_check
    _
  $region7: #{discriminator_forward.7} parent=0 // pred_check_branch
    %11 = sbr.rel (0) target = $region9
  $region8: #{discriminator_forward.7} parent=0 // pred_region
    _
  $region9: #{discriminator_forward.7} parent=0 // pred_fallthru
    _
  // Predicated region
  $region10: #{discriminator_forward.7} parent=0 // pred_check
    _
  $region11: #{discriminator_forward.7} parent=0 // pred_check_branch
    %13 = sbr.rel (0) target = $region13
  $region12: #{discriminator_forward.7} parent=0 // pred_region
    _
  $region13: #{discriminator_forward.7} parent=0 // pred_fallthru
    _
  %v14 = vld [vmem:[%s0] sm:$0xff]
  %v15 = vld [vmem:[%s0 + $0x8] sm:$0xff]
  %v16 = vld [vmem:[%s0 + $0x10] sm:$0xff]
  %v17 = vld [vmem:[%s0 + $0x18] sm:$0xff]
  %v18 = vld [vmem:[%s0 + $0x20] sm:$0xff]
  %v19 = vld [vmem:[%s0 + $0x28] sm:$0xff]
  %v20 = vld [vmem:[%s0 + $0x30] sm:$0xff]
  %v21 = vld [vmem:[%s0 + $0x38] sm:$0xff]
  %v22 = vld [vmem:[%s0 + $0x40] sm:$0xff]
  %v23 = vld [vmem:[%s0 + $0x48] sm:$0xff]
  %v24 = vld [vmem:[%s0 + $0x50] sm:$0xff]
  %v25 = vld [vmem:[%s0 + $0x58] sm:$0xff]
  %v26 = vld [vmem:[%s0 + $0x60] sm:$0xff]
  %v27 = vld [vmem:[%s0 + $0x68] sm:$0xff]
  %v28 = vld [vmem:[%s0 + $0x70] sm:$0xff]
  %v29 = vld [vmem:[%s0 + $0x78] sm:$0xff]
  %v30 = vld [vmem:[%s0 + $0x80] sm:$0xff]
  %v31 = vld [vmem:[%s0 + $0x88] sm:$0xff]
  %v32 = vld [vmem:[%s0 + $0x90] sm:$0xff]
  %v33 = vld [vmem:[%s0 + $0x98] sm:$0xff]
  %v34 = vld [vmem:[%s0 + $0xa0] sm:$0xff]
  %v35 = vld [vmem:[%s0 + $0xa8] sm:$0xff]
  %v36 = vld [vmem:[%s0 + $0xb0] sm:$0xff]
  %v37 = vld [vmem:[%s0 + $0xb8] sm:$0xff]
  %v38 = vld [vmem:[%s0 + $0xc0] sm:$0xff]
  %v39 = vld [vmem:[%s0 + $0xc8] sm:$0xff]
  %v40 = vld [vmem:[%s0 + $0xd0] sm:$0xff]
  %v41 = vld [vmem:[%s0 + $0xd8] sm:$0xff]
  %v42 = vld [vmem:[%s0 + $0xe0] sm:$0xff]
  %v43 = vld [vmem:[%s0 + $0xe8] sm:$0xff]
  %v44 = vld [vmem:[%s0 + $0xf0] sm:$0xff]
  %v45 = vld [vmem:[%s0 + $0xf8] sm:$0xff]
  %v46 = vld [vmem:[%s1] sm:$0xff]
  %v47 = vld [vmem:[%s1 + $0x8] sm:$0xff]
  %v48 = vld [vmem:[%s1 + $0x10] sm:$0xff]
  %v49 = vld [vmem:[%s1 + $0x18] sm:$0xff]
  %v50 = vld [vmem:[%s1 + $0x20] sm:$0xff]
  %v51 = vld [vmem:[%s1 + $0x28] sm:$0xff]
  %v52 = vld [vmem:[%s1 + $0x30] sm:$0xff]
  %v53 = vld [vmem:[%s1 + $0x38] sm:$0xff]
  %v54 = vld [vmem:[%s1 + $0x40] sm:$0xff]
  %v55 = vld [vmem:[%s1 + $0x48] sm:$0xff]
  %v56 = vld [vmem:[%s1 + $0x50] sm:$0xff]
  %v57 = vld [vmem:[%s1 + $0x58] sm:$0xff]
  %v58 = vld [vmem:[%s1 + $0x60] sm:$0xff]
  %v59 = vld [vmem:[%s1 + $0x68] sm:$0xff]
  %v60 = vld [vmem:[%s1 + $0x70] sm:$0xff]
  %v61 = vld [vmem:[%s1 + $0x78] sm:$0xff]
  %v62 = vld [vmem:[%s1 + $0x80] sm:$0xff]
  %v63 = vld [vmem:[%s1 + $0x88] sm:$0xff]
  %v64 = vld [vmem:[%s1 + $0x90] sm:$0xff]
  %v65 = vld [vmem:[%s1 + $0x98] sm:$0xff]
  %v66 = vld [vmem:[%s1 + $0xa0] sm:$0xff]
  %v67 = vld [vmem:[%s1 + $0xa8] sm:$0xff]
  %v68 = vld [vmem:[%s1 + $0xb0] sm:$0xff]
  %v69 = vld [vmem:[%s1 + $0xb8] sm:$0xff]
  %v70 = vld [vmem:[%s1 + $0xc0] sm:$0xff]
  %v71 = vld [vmem:[%s1 + $0xc8] sm:$0xff]
  %v72 = vld [vmem:[%s1 + $0xd0] sm:$0xff]
  %v73 = vld [vmem:[%s1 + $0xd8] sm:$0xff]
  %v74 = vld [vmem:[%s1 + $0xe0] sm:$0xff]
  %v75 = vld [vmem:[%s1 + $0xe8] sm:$0xff]
  %v76 = vld [vmem:[%s1 + $0xf0] sm:$0xff]
  %v77 = vld [vmem:[%s1 + $0xf8] sm:$0xff]
  %v78 = vld [vmem:[%s1 + $0x100] sm:$0xff]
  %v79 = vld [vmem:[%s1 + $0x108] sm:$0xff]
  %v80 = vld [vmem:[%s1 + $0x110] sm:$0xff]
  %v81 = vld [vmem:[%s1 + $0x118] sm:$0xff]
  %v82 = vld [vmem:[%s1 + $0x120] sm:$0xff]
  %v83 = vld [vmem:[%s1 + $0x128] sm:$0xff]
  %v84 = vld [vmem:[%s1 + $0x130] sm:$0xff]
  %v85 = vld [vmem:[%s1 + $0x138] sm:$0xff]
  %v86 = vld [vmem:[%s1 + $0x140] sm:$0xff]
  %v87 = vld [vmem:[%s1 + $0x148] sm:$0xff]
  %v88 = vld [vmem:[%s1 + $0x150] sm:$0xff]
  %v89 = vld [vmem:[%s1 + $0x158] sm:$0xff]
  %v90 = vld [vmem:[%s1 + $0x160] sm:$0xff]
  %v91 = vld [vmem:[%s1 + $0x168] sm:$0xff]
  %v92 = vld [vmem:[%s1 + $0x170] sm:$0xff]
  %v93 = vld [vmem:[%s1 + $0x178] sm:$0xff]
  %v94 = vld [vmem:[%s1 + $0x180] sm:$0xff]
  %v95 = vld [vmem:[%s1 + $0x188] sm:$0xff]
  %v96 = vld [vmem:[%s1 + $0x190] sm:$0xff]
  %v97 = vld [vmem:[%s1 + $0x198] sm:$0xff]
  %v98 = vld [vmem:[%s1 + $0x1a0] sm:$0xff]
  %v99 = vld [vmem:[%s1 + $0x1a8] sm:$0xff]
  %v100 = vld [vmem:[%s1 + $0x1b0] sm:$0xff]
  %v101 = vld [vmem:[%s1 + $0x1b8] sm:$0xff]
  %v102 = vld [vmem:[%s1 + $0x1c0] sm:$0xff]
  %v103 = vld [vmem:[%s1 + $0x1c8] sm:$0xff]
  %v104 = vld [vmem:[%s1 + $0x1d0] sm:$0xff]
  %v105 = vld [vmem:[%s1 + $0x1d8] sm:$0xff]
  %v106 = vld [vmem:[%s1 + $0x1e0] sm:$0xff]
  %v107 = vld [vmem:[%s1 + $0x1e8] sm:$0xff]
  %v108 = vld [vmem:[%s1 + $0x1f0] sm:$0xff]
  %v109 = vld [vmem:[%s1 + $0x1f8] sm:$0xff]
  %v110 = vld [vmem:[%s1 + $0x200] sm:$0xff]
  %v111 = vld [vmem:[%s1 + $0x208] sm:$0xff]
  %v112 = vld [vmem:[%s1 + $0x210] sm:$0xff]
  %v113 = vld [vmem:[%s1 + $0x218] sm:$0xff]
  %v114 = vld [vmem:[%s1 + $0x220] sm:$0xff]
  %v115 = vld [vmem:[%s1 + $0x228] sm:$0xff]
  %v116 = vld [vmem:[%s1 + $0x230] sm:$0xff]
  %v117 = vld [vmem:[%s1 + $0x238] sm:$0xff]
  %v118 = vld [vmem:[%s1 + $0x240] sm:$0xff]
  %v119 = vld [vmem:[%s1 + $0x248] sm:$0xff]
  %v120 = vld [vmem:[%s1 + $0x250] sm:$0xff]
  %v121 = vld [vmem:[%s1 + $0x258] sm:$0xff]
  %v122 = vld [vmem:[%s1 + $0x260] sm:$0xff]
  %v123 = vld [vmem:[%s1 + $0x268] sm:$0xff]
  %v124 = vld [vmem:[%s1 + $0x270] sm:$0xff]
  %v125 = vld [vmem:[%s1 + $0x278] sm:$0xff]
  %v126 = vld [vmem:[%s1 + $0x280] sm:$0xff]
  %v127 = vld [vmem:[%s1 + $0x288] sm:$0xff]
  %v128 = vld [vmem:[%s1 + $0x290] sm:$0xff]
  %v129 = vld [vmem:[%s1 + $0x298] sm:$0xff]
  %v130 = vld [vmem:[%s1 + $0x2a0] sm:$0xff]
  %v131 = vld [vmem:[%s1 + $0x2a8] sm:$0xff]
  %v132 = vld [vmem:[%s1 + $0x2b0] sm:$0xff]
  %v133 = vld [vmem:[%s1 + $0x2b8] sm:$0xff]
  %v134 = vld [vmem:[%s1 + $0x2c0] sm:$0xff]
  %v135 = vld [vmem:[%s1 + $0x2c8] sm:$0xff]
  %v136 = vld [vmem:[%s1 + $0x2d0] sm:$0xff]
  %v137 = vld [vmem:[%s1 + $0x2d8] sm:$0xff]
  %v138 = vld [vmem:[%s1 + $0x2e0] sm:$0xff]
  %v139 = vld [vmem:[%s1 + $0x2e8] sm:$0xff]
  %v140 = vld [vmem:[%s1 + $0x2f0] sm:$0xff]
  %v141 = vld [vmem:[%s1 + $0x2f8] sm:$0xff]
  %v142 = vld [vmem:[%s1 + $0x300] sm:$0xff]
  %v143 = vld [vmem:[%s1 + $0x308] sm:$0xff]
  %v144 = vld [vmem:[%s1 + $0x310] sm:$0xff]
  %v145 = vld [vmem:[%s1 + $0x318] sm:$0xff]
  %v146 = vld [vmem:[%s1 + $0x320] sm:$0xff]
  %v147 = vld [vmem:[%s1 + $0x328] sm:$0xff]
  %v148 = vld [vmem:[%s1 + $0x330] sm:$0xff]
  %v149 = vld [vmem:[%s1 + $0x338] sm:$0xff]
  %v150 = vld [vmem:[%s1 + $0x340] sm:$0xff]
  %v151 = vld [vmem:[%s1 + $0x348] sm:$0xff]
  %v152 = vld [vmem:[%s1 + $0x350] sm:$0xff]
  %v153 = vld [vmem:[%s1 + $0x358] sm:$0xff]
  %v154 = vld [vmem:[%s1 + $0x360] sm:$0xff]
  %v155 = vld [vmem:[%s1 + $0x368] sm:$0xff]
  %v156 = vld [vmem:[%s1 + $0x370] sm:$0xff]
  %v157 = vld [vmem:[%s1 + $0x378] sm:$0xff]
  %v158 = vld [vmem:[%s1 + $0x380] sm:$0xff]
  %v159 = vld [vmem:[%s1 + $0x388] sm:$0xff]
  %v160 = vld [vmem:[%s1 + $0x390] sm:$0xff]
  %v161 = vld [vmem:[%s1 + $0x398] sm:$0xff]
  %v162 = vld [vmem:[%s1 + $0x3a0] sm:$0xff]
  %v163 = vld [vmem:[%s1 + $0x3a8] sm:$0xff]
  %v164 = vld [vmem:[%s1 + $0x3b0] sm:$0xff]
  %v165 = vld [vmem:[%s1 + $0x3b8] sm:$0xff]
  %v166 = vld [vmem:[%s1 + $0x3c0] sm:$0xff]
  %v167 = vld [vmem:[%s1 + $0x3c8] sm:$0xff]
  %v168 = vld [vmem:[%s1 + $0x3d0] sm:$0xff]
  %v169 = vld [vmem:[%s1 + $0x3d8] sm:$0xff]
  %v170 = vld [vmem:[%s1 + $0x3e0] sm:$0xff]
  %v171 = vld [vmem:[%s1 + $0x3e8] sm:$0xff]
  %v172 = vld [vmem:[%s1 + $0x3f0] sm:$0xff]
  %v173 = vld [vmem:[%s1 + $0x3f8] sm:$0xff]
  %v174 = vld [vmem:[%s1 + $0x400] sm:$0xff]
  %v175 = vld [vmem:[%s1 + $0x408] sm:$0xff]
  %v176 = vld [vmem:[%s1 + $0x410] sm:$0xff]
  %v177 = vld [vmem:[%s1 + $0x418] sm:$0xff]
  %v178 = vld [vmem:[%s1 + $0x420] sm:$0xff]
  %v179 = vld [vmem:[%s1 + $0x428] sm:$0xff]
  %v180 = vld [vmem:[%s1 + $0x430] sm:$0xff]
  %v181 = vld [vmem:[%s1 + $0x438] sm:$0xff]
  %v182 = vld [vmem:[%s1 + $0x440] sm:$0xff]
  %v183 = vld [vmem:[%s1 + $0x448] sm:$0xff]
  %v184 = vld [vmem:[%s1 + $0x450] sm:$0xff]
  %v185 = vld [vmem:[%s1 + $0x458] sm:$0xff]
  %v186 = vld [vmem:[%s1 + $0x460] sm:$0xff]
  %v187 = vld [vmem:[%s1 + $0x468] sm:$0xff]
  %v188 = vld [vmem:[%s1 + $0x470] sm:$0xff]
  %v189 = vld [vmem:[%s1 + $0x478] sm:$0xff]
  %v190 = vld [vmem:[%s1 + $0x480] sm:$0xff]
  %v191 = vld [vmem:[%s1 + $0x488] sm:$0xff]
  %v192 = vld [vmem:[%s1 + $0x490] sm:$0xff]
  %v193 = vld [vmem:[%s1 + $0x498] sm:$0xff]
  %v194 = vld [vmem:[%s1 + $0x4a0] sm:$0xff]
  %v195 = vld [vmem:[%s1 + $0x4a8] sm:$0xff]
  %v196 = vld [vmem:[%s1 + $0x4b0] sm:$0xff]
  %v197 = vld [vmem:[%s1 + $0x4b8] sm:$0xff]
  %v198 = vld [vmem:[%s1 + $0x4c0] sm:$0xff]
  %v199 = vld [vmem:[%s1 + $0x4c8] sm:$0xff]
  %v200 = vld [vmem:[%s1 + $0x4d0] sm:$0xff]
  %v201 = vld [vmem:[%s1 + $0x4d8] sm:$0xff]
  %v202 = vld [vmem:[%s1 + $0x4e0] sm:$0xff]
  %v203 = vld [vmem:[%s1 + $0x4e8] sm:$0xff]
  %v204 = vld [vmem:[%s1 + $0x4f0] sm:$0xff]
  %v205 = vld [vmem:[%s1 + $0x4f8] sm:$0xff]
  %v206 = vld [vmem:[%s1 + $0x500] sm:$0xff]
  %v207 = vld [vmem:[%s1 + $0x508] sm:$0xff]
  %v208 = vld [vmem:[%s1 + $0x510] sm:$0xff]
  %v209 = vld [vmem:[%s1 + $0x518] sm:$0xff]
  %v210 = vld [vmem:[%s1 + $0x520] sm:$0xff]
  %v211 = vld [vmem:[%s1 + $0x528] sm:$0xff]
  %v212 = vld [vmem:[%s1 + $0x530] sm:$0xff]
  %v213 = vld [vmem:[%s1 + $0x538] sm:$0xff]
  %v214 = vld [vmem:[%s1 + $0x540] sm:$0xff]
  %v215 = vld [vmem:[%s1 + $0x548] sm:$0xff]
  %v216 = vld [vmem:[%s1 + $0x550] sm:$0xff]
  %v217 = vld [vmem:[%s1 + $0x558] sm:$0xff]
  %v218 = vld [vmem:[%s1 + $0x560] sm:$0xff]
  %v219 = vld [vmem:[%s1 + $0x568] sm:$0xff]
  %v220 = vld [vmem:[%s1 + $0x570] sm:$0xff]
  %v221 = vld [vmem:[%s1 + $0x578] sm:$0xff]
  %v222 = vld [vmem:[%s1 + $0x580] sm:$0xff]
  %v223 = vld [vmem:[%s1 + $0x588] sm:$0xff]
  %v224 = vld [vmem:[%s1 + $0x590] sm:$0xff]
  %v225 = vld [vmem:[%s1 + $0x598] sm:$0xff]
  %v226 = vld [vmem:[%s1 + $0x5a0] sm:$0xff]
  %v227 = vld [vmem:[%s1 + $0x5a8] sm:$0xff]
  %v228 = vld [vmem:[%s1 + $0x5b0] sm:$0xff]
  %v229 = vld [vmem:[%s1 + $0x5b8] sm:$0xff]
  %v230 = vld [vmem:[%s1 + $0x5c0] sm:$0xff]
  %v231 = vld [vmem:[%s1 + $0x5c8] sm:$0xff]
  %v232 = vld [vmem:[%s1 + $0x5d0] sm:$0xff]
  %v233 = vld [vmem:[%s1 + $0x5d8] sm:$0xff]
  %v234 = vld [vmem:[%s1 + $0x5e0] sm:$0xff]
  %v235 = vld [vmem:[%s1 + $0x5e8] sm:$0xff]
  %v236 = vld [vmem:[%s1 + $0x5f0] sm:$0xff]
  %v237 = vld [vmem:[%s1 + $0x5f8] sm:$0xff]
  %v238 = vld [vmem:[%s1 + $0x600] sm:$0xff]
  %v239 = vld [vmem:[%s1 + $0x608] sm:$0xff]
  %v240 = vld [vmem:[%s1 + $0x610] sm:$0xff]
  %v241 = vld [vmem:[%s1 + $0x618] sm:$0xff]
  %v242 = vld [vmem:[%s1 + $0x620] sm:$0xff]
  %v243 = vld [vmem:[%s1 + $0x628] sm:$0xff]
  %v244 = vld [vmem:[%s1 + $0x630] sm:$0xff]
  %v245 = vld [vmem:[%s1 + $0x638] sm:$0xff]
  %v246 = vld [vmem:[%s1 + $0x640] sm:$0xff]
  %v247 = vld [vmem:[%s1 + $0x648] sm:$0xff]
  %v248 = vld [vmem:[%s1 + $0x650] sm:$0xff]
  %v249 = vld [vmem:[%s1 + $0x658] sm:$0xff]
  %v250 = vld [vmem:[%s1 + $0x660] sm:$0xff]
  %v251 = vld [vmem:[%s1 + $0x668] sm:$0xff]
  %v252 = vld [vmem:[%s1 + $0x670] sm:$0xff]
  %v253 = vld [vmem:[%s1 + $0x678] sm:$0xff]
  %v254 = vld [vmem:[%s1 + $0x680] sm:$0xff]
  %v255 = vld [vmem:[%s1 + $0x688] sm:$0xff]
  %v256 = vld [vmem:[%s1 + $0x690] sm:$0xff]
  %v257 = vld [vmem:[%s1 + $0x698] sm:$0xff]
  %v258 = vld [vmem:[%s1 + $0x6a0] sm:$0xff]
  %v259 = vld [vmem:[%s1 + $0x6a8] sm:$0xff]
  %v260 = vld [vmem:[%s1 + $0x6b0] sm:$0xff]
  %v261 = vld [vmem:[%s1 + $0x6b8] sm:$0xff]
  %v262 = vld [vmem:[%s1 + $0x6c0] sm:$0xff]
  %v263 = vld [vmem:[%s1 + $0x6c8] sm:$0xff]
  %v264 = vld [vmem:[%s1 + $0x6d0] sm:$0xff]
  %v265 = vld [vmem:[%s1 + $0x6d8] sm:$0xff]
  %v266 = vld [vmem:[%s1 + $0x6e0] sm:$0xff]
  %v267 = vld [vmem:[%s1 + $0x6e8] sm:$0xff]
  %v268 = vld [vmem:[%s1 + $0x6f0] sm:$0xff]
  %v269 = vld [vmem:[%s1 + $0x6f8] sm:$0xff]
  %v270 = vld [vmem:[%s1 + $0x700] sm:$0xff]
  %v271 = vld [vmem:[%s1 + $0x708] sm:$0xff]
  %v272 = vld [vmem:[%s1 + $0x710] sm:$0xff]
  %v273 = vld [vmem:[%s1 + $0x718] sm:$0xff]
  %v274 = vld [vmem:[%s1 + $0x720] sm:$0xff]
  %v275 = vld [vmem:[%s1 + $0x728] sm:$0xff]
  %v276 = vld [vmem:[%s1 + $0x730] sm:$0xff]
  %v277 = vld [vmem:[%s1 + $0x738] sm:$0xff]
  %v278 = vld [vmem:[%s1 + $0x740] sm:$0xff]
  %v279 = vld [vmem:[%s1 + $0x748] sm:$0xff]
  %v280 = vld [vmem:[%s1 + $0x750] sm:$0xff]
  %v281 = vld [vmem:[%s1 + $0x758] sm:$0xff]
  %v282 = vld [vmem:[%s1 + $0x760] sm:$0xff]
  %v283 = vld [vmem:[%s1 + $0x768] sm:$0xff]
  %v284 = vld [vmem:[%s1 + $0x770] sm:$0xff]
  %v285 = vld [vmem:[%s1 + $0x778] sm:$0xff]
  %v286 = vld [vmem:[%s1 + $0x780] sm:$0xff]
  %v287 = vld [vmem:[%s1 + $0x788] sm:$0xff]
  %v288 = vld [vmem:[%s1 + $0x790] sm:$0xff]
  %v289 = vld [vmem:[%s1 + $0x798] sm:$0xff]
  %v290 = vld [vmem:[%s1 + $0x7a0] sm:$0xff]
  %v291 = vld [vmem:[%s1 + $0x7a8] sm:$0xff]
  %v292 = vld [vmem:[%s1 + $0x7b0] sm:$0xff]
  %v293 = vld [vmem:[%s1 + $0x7b8] sm:$0xff]
  %v294 = vld [vmem:[%s1 + $0x7c0] sm:$0xff]
  %v295 = vld [vmem:[%s1 + $0x7c8] sm:$0xff]
  %v296 = vld [vmem:[%s1 + $0x7d0] sm:$0xff]
  %v297 = vld [vmem:[%s1 + $0x7d8] sm:$0xff]
  %v298 = vld [vmem:[%s1 + $0x7e0] sm:$0xff]
  %v299 = vld [vmem:[%s1 + $0x7e8] sm:$0xff]
  %v300 = vld [vmem:[%s1 + $0x7f0] sm:$0xff]
  %v301 = vld [vmem:[%s1 + $0x7f8] sm:$0xff]
  %v302 = vld [vmem:[%s2] sm:$0x3]
  %v304 = vlaneseq
  %v305 = vshrl.u32 %v304, 7
  %v306 = vsub.s32 0, %v305
  %v307 = vrot.slane %v302, %v306
  %v308 = vlaneseq
  %v309 = vshrl.u32 %v308, 7
  %v310 = vsub.s32 1, %v309
  %v311 = vrot.slane %v302, %v310
  %v346 = vunpack.c.l.b16 %v14
  %v347 = vunpack.c.h.b16 %v14
  %v348 = vunpack.c.l.b16 %v15
  %v349 = vunpack.c.h.b16 %v15
  %v350 = vunpack.c.l.b16 %v16
  %v351 = vunpack.c.h.b16 %v16
  %v352 = vunpack.c.l.b16 %v17
  %v353 = vunpack.c.h.b16 %v17
  %v354 = vunpack.c.l.b16 %v18
  %v355 = vunpack.c.h.b16 %v18
  %v356 = vunpack.c.l.b16 %v19
  %v357 = vunpack.c.h.b16 %v19
  %v358 = vunpack.c.l.b16 %v20
  %v359 = vunpack.c.h.b16 %v20
  %v360 = vunpack.c.l.b16 %v21
  %v361 = vunpack.c.h.b16 %v21
  %v362 = vunpack.c.l.b16 %v22
  %v363 = vunpack.c.h.b16 %v22
  %v364 = vunpack.c.l.b16 %v23
  %v365 = vunpack.c.h.b16 %v23
  %v366 = vunpack.c.l.b16 %v24
  %v367 = vunpack.c.h.b16 %v24
  %v368 = vunpack.c.l.b16 %v25
  %v369 = vunpack.c.h.b16 %v25
  %v370 = vunpack.c.l.b16 %v26
  %v371 = vunpack.c.h.b16 %v26
  %v372 = vunpack.c.l.b16 %v27
  %v373 = vunpack.c.h.b16 %v27
  %v374 = vunpack.c.l.b16 %v28
  %v375 = vunpack.c.h.b16 %v28
  %v376 = vunpack.c.l.b16 %v29
  %v377 = vunpack.c.h.b16 %v29
  %v378 = vunpack.c.l.b16 %v30
  %v379 = vunpack.c.h.b16 %v30
  %v380 = vunpack.c.l.b16 %v31
  %v381 = vunpack.c.h.b16 %v31
  %v382 = vunpack.c.l.b16 %v32
  %v383 = vunpack.c.h.b16 %v32
  %v384 = vunpack.c.l.b16 %v33
  %v385 = vunpack.c.h.b16 %v33
  %v386 = vunpack.c.l.b16 %v34
  %v387 = vunpack.c.h.b16 %v34
  %v388 = vunpack.c.l.b16 %v35
  %v389 = vunpack.c.h.b16 %v35
  %v390 = vunpack.c.l.b16 %v36
  %v391 = vunpack.c.h.b16 %v36
  %v392 = vunpack.c.l.b16 %v37
  %v393 = vunpack.c.h.b16 %v37
  %v394 = vunpack.c.l.b16 %v38
  %v395 = vunpack.c.h.b16 %v38
  %v396 = vunpack.c.l.b16 %v39
  %v397 = vunpack.c.h.b16 %v39
  %v398 = vunpack.c.l.b16 %v40
  %v399 = vunpack.c.h.b16 %v40
  %v400 = vunpack.c.l.b16 %v41
  %v401 = vunpack.c.h.b16 %v41
  %v402 = vunpack.c.l.b16 %v42
  %v403 = vunpack.c.h.b16 %v42
  %v404 = vunpack.c.l.b16 %v43
  %v405 = vunpack.c.h.b16 %v43
  %v406 = vunpack.c.l.b16 %v44
  %v407 = vunpack.c.h.b16 %v44
  %v408 = vunpack.c.l.b16 %v45
  %v409 = vunpack.c.h.b16 %v45
  %v410 = vpack.c.b16 %v362, %v346
  %v411 = vpack.c.b16 %v363, %v347
  %v412 = vpack.c.b16 %v364, %v348
  %v413 = vpack.c.b16 %v365, %v349
  %v414 = vpack.c.b16 %v366, %v350
  %v415 = vpack.c.b16 %v367, %v351
  %v416 = vpack.c.b16 %v368, %v352
  %v417 = vpack.c.b16 %v369, %v353
  %v418 = vpack.c.b16 %v370, %v354
  %v419 = vpack.c.b16 %v371, %v355
  %v420 = vpack.c.b16 %v372, %v356
  %v421 = vpack.c.b16 %v373, %v357
  %v422 = vpack.c.b16 %v374, %v358
  %v423 = vpack.c.b16 %v375, %v359
  %v424 = vpack.c.b16 %v376, %v360
  %v425 = vpack.c.b16 %v377, %v361
  %v426 = vpack.c.b16 %v394, %v378
  %v427 = vpack.c.b16 %v395, %v379
  %v428 = vpack.c.b16 %v396, %v380
  %v429 = vpack.c.b16 %v397, %v381
  %v430 = vpack.c.b16 %v398, %v382
  %v431 = vpack.c.b16 %v399, %v383
  %v432 = vpack.c.b16 %v400, %v384
  %v433 = vpack.c.b16 %v401, %v385
  %v434 = vpack.c.b16 %v402, %v386
  %v435 = vpack.c.b16 %v403, %v387
  %v436 = vpack.c.b16 %v404, %v388
  %v437 = vpack.c.b16 %v405, %v389
  %v438 = vpack.c.b16 %v406, %v390
  %v439 = vpack.c.b16 %v407, %v391
  %v440 = vpack.c.b16 %v408, %v392
  %v441 = vpack.c.b16 %v409, %v393
  %v730 = vunpack.c.l.b16 %v46
  %v731 = vunpack.c.h.b16 %v46
  %v732 = vunpack.c.l.b16 %v47
  %v733 = vunpack.c.h.b16 %v47
  %v734 = vunpack.c.l.b16 %v48
  %v735 = vunpack.c.h.b16 %v48
  %v736 = vunpack.c.l.b16 %v49
  %v737 = vunpack.c.h.b16 %v49
  %v738 = vunpack.c.l.b16 %v50
  %v739 = vunpack.c.h.b16 %v50
  %v740 = vunpack.c.l.b16 %v51
  %v741 = vunpack.c.h.b16 %v51
  %v742 = vunpack.c.l.b16 %v52
  %v743 = vunpack.c.h.b16 %v52
  %v744 = vunpack.c.l.b16 %v53
  %v745 = vunpack.c.h.b16 %v53
  %v746 = vunpack.c.l.b16 %v54
  %v747 = vunpack.c.h.b16 %v54
  %v748 = vunpack.c.l.b16 %v55
  %v749 = vunpack.c.h.b16 %v55
  %v750 = vunpack.c.l.b16 %v56
  %v751 = vunpack.c.h.b16 %v56
  %v752 = vunpack.c.l.b16 %v57
  %v753 = vunpack.c.h.b16 %v57
  %v754 = vunpack.c.l.b16 %v58
  %v755 = vunpack.c.h.b16 %v58
  %v756 = vunpack.c.l.b16 %v59
  %v757 = vunpack.c.h.b16 %v59
  %v758 = vunpack.c.l.b16 %v60
  %v759 = vunpack.c.h.b16 %v60
  %v760 = vunpack.c.l.b16 %v61
  %v761 = vunpack.c.h.b16 %v61
  %v762 = vunpack.c.l.b16 %v62
  %v763 = vunpack.c.h.b16 %v62
  %v764 = vunpack.c.l.b16 %v63
  %v765 = vunpack.c.h.b16 %v63
  %v766 = vunpack.c.l.b16 %v64
  %v767 = vunpack.c.h.b16 %v64
  %v768 = vunpack.c.l.b16 %v65
  %v769 = vunpack.c.h.b16 %v65
  %v770 = vunpack.c.l.b16 %v66
  %v771 = vunpack.c.h.b16 %v66
  %v772 = vunpack.c.l.b16 %v67
  %v773 = vunpack.c.h.b16 %v67
  %v774 = vunpack.c.l.b16 %v68
  %v775 = vunpack.c.h.b16 %v68
  %v776 = vunpack.c.l.b16 %v69
  %v777 = vunpack.c.h.b16 %v69
  %v778 = vunpack.c.l.b16 %v70
  %v779 = vunpack.c.h.b16 %v70
  %v780 = vunpack.c.l.b16 %v71
  %v781 = vunpack.c.h.b16 %v71
  %v782 = vunpack.c.l.b16 %v72
  %v783 = vunpack.c.h.b16 %v72
  %v784 = vunpack.c.l.b16 %v73
  %v785 = vunpack.c.h.b16 %v73
  %v786 = vunpack.c.l.b16 %v74
  %v787 = vunpack.c.h.b16 %v74
  %v788 = vunpack.c.l.b16 %v75
  %v789 = vunpack.c.h.b16 %v75
  %v790 = vunpack.c.l.b16 %v76
  %v791 = vunpack.c.h.b16 %v76
  %v792 = vunpack.c.l.b16 %v77
  %v793 = vunpack.c.h.b16 %v77
  %v794 = vunpack.c.l.b16 %v78
  %v795 = vunpack.c.h.b16 %v78
  %v796 = vunpack.c.l.b16 %v79
  %v797 = vunpack.c.h.b16 %v79
  %v798 = vunpack.c.l.b16 %v80
  %v799 = vunpack.c.h.b16 %v80
  %v800 = vunpack.c.l.b16 %v81
  %v801 = vunpack.c.h.b16 %v81
  %v802 = vunpack.c.l.b16 %v82
  %v803 = vunpack.c.h.b16 %v82
  %v804 = vunpack.c.l.b16 %v83
  %v805 = vunpack.c.h.b16 %v83
  %v806 = vunpack.c.l.b16 %v84
  %v807 = vunpack.c.h.b16 %v84
  %v808 = vunpack.c.l.b16 %v85
  %v809 = vunpack.c.h.b16 %v85
  %v810 = vunpack.c.l.b16 %v86
  %v811 = vunpack.c.h.b16 %v86
  %v812 = vunpack.c.l.b16 %v87
  %v813 = vunpack.c.h.b16 %v87
  %v814 = vunpack.c.l.b16 %v88
  %v815 = vunpack.c.h.b16 %v88
  %v816 = vunpack.c.l.b16 %v89
  %v817 = vunpack.c.h.b16 %v89
  %v818 = vunpack.c.l.b16 %v90
  %v819 = vunpack.c.h.b16 %v90
  %v820 = vunpack.c.l.b16 %v91
  %v821 = vunpack.c.h.b16 %v91
  %v822 = vunpack.c.l.b16 %v92
  %v823 = vunpack.c.h.b16 %v92
  %v824 = vunpack.c.l.b16 %v93
  %v825 = vunpack.c.h.b16 %v93
  %v826 = vunpack.c.l.b16 %v94
  %v827 = vunpack.c.h.b16 %v94
  %v828 = vunpack.c.l.b16 %v95
  %v829 = vunpack.c.h.b16 %v95
  %v830 = vunpack.c.l.b16 %v96
  %v831 = vunpack.c.h.b16 %v96
  %v832 = vunpack.c.l.b16 %v97
  %v833 = vunpack.c.h.b16 %v97
  %v834 = vunpack.c.l.b16 %v98
  %v835 = vunpack.c.h.b16 %v98
  %v836 = vunpack.c.l.b16 %v99
  %v837 = vunpack.c.h.b16 %v99
  %v838 = vunpack.c.l.b16 %v100
  %v839 = vunpack.c.h.b16 %v100
  %v840 = vunpack.c.l.b16 %v101
  %v841 = vunpack.c.h.b16 %v101
  %v842 = vunpack.c.l.b16 %v102
  %v843 = vunpack.c.h.b16 %v102
  %v844 = vunpack.c.l.b16 %v103
  %v845 = vunpack.c.h.b16 %v103
  %v846 = vunpack.c.l.b16 %v104
  %v847 = vunpack.c.h.b16 %v104
  %v848 = vunpack.c.l.b16 %v105
  %v849 = vunpack.c.h.b16 %v105
  %v850 = vunpack.c.l.b16 %v106
  %v851 = vunpack.c.h.b16 %v106
  %v852 = vunpack.c.l.b16 %v107
  %v853 = vunpack.c.h.b16 %v107
  %v854 = vunpack.c.l.b16 %v108
  %v855 = vunpack.c.h.b16 %v108
  %v856 = vunpack.c.l.b16 %v109
  %v857 = vunpack.c.h.b16 %v109
  %v858 = vunpack.c.l.b16 %v110
  %v859 = vunpack.c.h.b16 %v110
  %v860 = vunpack.c.l.b16 %v111
  %v861 = vunpack.c.h.b16 %v111
  %v862 = vunpack.c.l.b16 %v112
  %v863 = vunpack.c.h.b16 %v112
  %v864 = vunpack.c.l.b16 %v113
  %v865 = vunpack.c.h.b16 %v113
  %v866 = vunpack.c.l.b16 %v114
  %v867 = vunpack.c.h.b16 %v114
  %v868 = vunpack.c.l.b16 %v115
  %v869 = vunpack.c.h.b16 %v115
  %v870 = vunpack.c.l.b16 %v116
  %v871 = vunpack.c.h.b16 %v116
  %v872 = vunpack.c.l.b16 %v117
  %v873 = vunpack.c.h.b16 %v117
  %v874 = vunpack.c.l.b16 %v118
  %v875 = vunpack.c.h.b16 %v118
  %v876 = vunpack.c.l.b16 %v119
  %v877 = vunpack.c.h.b16 %v119
  %v878 = vunpack.c.l.b16 %v120
  %v879 = vunpack.c.h.b16 %v120
  %v880 = vunpack.c.l.b16 %v121
  %v881 = vunpack.c.h.b16 %v121
  %v882 = vunpack.c.l.b16 %v122
  %v883 = vunpack.c.h.b16 %v122
  %v884 = vunpack.c.l.b16 %v123
  %v885 = vunpack.c.h.b16 %v123
  %v886 = vunpack.c.l.b16 %v124
  %v887 = vunpack.c.h.b16 %v124
  %v888 = vunpack.c.l.b16 %v125
  %v889 = vunpack.c.h.b16 %v125
  %v890 = vunpack.c.l.b16 %v126
  %v891 = vunpack.c.h.b16 %v126
  %v892 = vunpack.c.l.b16 %v127
  %v893 = vunpack.c.h.b16 %v127
  %v894 = vunpack.c.l.b16 %v128
  %v895 = vunpack.c.h.b16 %v128
  %v896 = vunpack.c.l.b16 %v129
  %v897 = vunpack.c.h.b16 %v129
  %v898 = vunpack.c.l.b16 %v130
  %v899 = vunpack.c.h.b16 %v130
  %v900 = vunpack.c.l.b16 %v131
  %v901 = vunpack.c.h.b16 %v131
  %v902 = vunpack.c.l.b16 %v132
  %v903 = vunpack.c.h.b16 %v132
  %v904 = vunpack.c.l.b16 %v133
  %v905 = vunpack.c.h.b16 %v133
  %v906 = vunpack.c.l.b16 %v134
  %v907 = vunpack.c.h.b16 %v134
  %v908 = vunpack.c.l.b16 %v135
  %v909 = vunpack.c.h.b16 %v135
  %v910 = vunpack.c.l.b16 %v136
  %v911 = vunpack.c.h.b16 %v136
  %v912 = vunpack.c.l.b16 %v137
  %v913 = vunpack.c.h.b16 %v137
  %v914 = vunpack.c.l.b16 %v138
  %v915 = vunpack.c.h.b16 %v138
  %v916 = vunpack.c.l.b16 %v139
  %v917 = vunpack.c.h.b16 %v139
  %v918 = vunpack.c.l.b16 %v140
  %v919 = vunpack.c.h.b16 %v140
  %v920 = vunpack.c.l.b16 %v141
  %v921 = vunpack.c.h.b16 %v141
  %v922 = vunpack.c.l.b16 %v142
  %v923 = vunpack.c.h.b16 %v142
  %v924 = vunpack.c.l.b16 %v143
  %v925 = vunpack.c.h.b16 %v143
  %v926 = vunpack.c.l.b16 %v144
  %v927 = vunpack.c.h.b16 %v144
  %v928 = vunpack.c.l.b16 %v145
  %v929 = vunpack.c.h.b16 %v145
  %v930 = vunpack.c.l.b16 %v146
  %v931 = vunpack.c.h.b16 %v146
  %v932 = vunpack.c.l.b16 %v147
  %v933 = vunpack.c.h.b16 %v147
  %v934 = vunpack.c.l.b16 %v148
  %v935 = vunpack.c.h.b16 %v148
  %v936 = vunpack.c.l.b16 %v149
  %v937 = vunpack.c.h.b16 %v149
  %v938 = vunpack.c.l.b16 %v150
  %v939 = vunpack.c.h.b16 %v150
  %v940 = vunpack.c.l.b16 %v151
  %v941 = vunpack.c.h.b16 %v151
  %v942 = vunpack.c.l.b16 %v152
  %v943 = vunpack.c.h.b16 %v152
  %v944 = vunpack.c.l.b16 %v153
  %v945 = vunpack.c.h.b16 %v153
  %v946 = vunpack.c.l.b16 %v154
  %v947 = vunpack.c.h.b16 %v154
  %v948 = vunpack.c.l.b16 %v155
  %v949 = vunpack.c.h.b16 %v155
  %v950 = vunpack.c.l.b16 %v156
  %v951 = vunpack.c.h.b16 %v156
  %v952 = vunpack.c.l.b16 %v157
  %v953 = vunpack.c.h.b16 %v157
  %v954 = vunpack.c.l.b16 %v158
  %v955 = vunpack.c.h.b16 %v158
  %v956 = vunpack.c.l.b16 %v159
  %v957 = vunpack.c.h.b16 %v159
  %v958 = vunpack.c.l.b16 %v160
  %v959 = vunpack.c.h.b16 %v160
  %v960 = vunpack.c.l.b16 %v161
  %v961 = vunpack.c.h.b16 %v161
  %v962 = vunpack.c.l.b16 %v162
  %v963 = vunpack.c.h.b16 %v162
  %v964 = vunpack.c.l.b16 %v163
  %v965 = vunpack.c.h.b16 %v163
  %v966 = vunpack.c.l.b16 %v164
  %v967 = vunpack.c.h.b16 %v164
  %v968 = vunpack.c.l.b16 %v165
  %v969 = vunpack.c.h.b16 %v165
  %v970 = vunpack.c.l.b16 %v166
  %v971 = vunpack.c.h.b16 %v166
  %v972 = vunpack.c.l.b16 %v167
  %v973 = vunpack.c.h.b16 %v167
  %v974 = vunpack.c.l.b16 %v168
  %v975 = vunpack.c.h.b16 %v168
  %v976 = vunpack.c.l.b16 %v169
  %v977 = vunpack.c.h.b16 %v169
  %v978 = vunpack.c.l.b16 %v170
  %v979 = vunpack.c.h.b16 %v170
  %v980 = vunpack.c.l.b16 %v171
  %v981 = vunpack.c.h.b16 %v171
  %v982 = vunpack.c.l.b16 %v172
  %v983 = vunpack.c.h.b16 %v172
  %v984 = vunpack.c.l.b16 %v173
  %v985 = vunpack.c.h.b16 %v173
  %v986 = vunpack.c.l.b16 %v174
  %v987 = vunpack.c.h.b16 %v174
  %v988 = vunpack.c.l.b16 %v175
  %v989 = vunpack.c.h.b16 %v175
  %v990 = vunpack.c.l.b16 %v176
  %v991 = vunpack.c.h.b16 %v176
  %v992 = vunpack.c.l.b16 %v177
  %v993 = vunpack.c.h.b16 %v177
  %v994 = vunpack.c.l.b16 %v178
  %v995 = vunpack.c.h.b16 %v178
  %v996 = vunpack.c.l.b16 %v179
  %v997 = vunpack.c.h.b16 %v179
  %v998 = vunpack.c.l.b16 %v180
  %v999 = vunpack.c.h.b16 %v180
  %v1000 = vunpack.c.l.b16 %v181
  %v1001 = vunpack.c.h.b16 %v181
  %v1002 = vunpack.c.l.b16 %v182
  %v1003 = vunpack.c.h.b16 %v182
  %v1004 = vunpack.c.l.b16 %v183
  %v1005 = vunpack.c.h.b16 %v183
  %v1006 = vunpack.c.l.b16 %v184
  %v1007 = vunpack.c.h.b16 %v184
  %v1008 = vunpack.c.l.b16 %v185
  %v1009 = vunpack.c.h.b16 %v185
  %v1010 = vunpack.c.l.b16 %v186
  %v1011 = vunpack.c.h.b16 %v186
  %v1012 = vunpack.c.l.b16 %v187
  %v1013 = vunpack.c.h.b16 %v187
  %v1014 = vunpack.c.l.b16 %v188
  %v1015 = vunpack.c.h.b16 %v188
  %v1016 = vunpack.c.l.b16 %v189
  %v1017 = vunpack.c.h.b16 %v189
  %v1018 = vunpack.c.l.b16 %v190
  %v1019 = vunpack.c.h.b16 %v190
  %v1020 = vunpack.c.l.b16 %v191
  %v1021 = vunpack.c.h.b16 %v191
  %v1022 = vunpack.c.l.b16 %v192
  %v1023 = vunpack.c.h.b16 %v192
  %v1024 = vunpack.c.l.b16 %v193
  %v1025 = vunpack.c.h.b16 %v193
  %v1026 = vunpack.c.l.b16 %v194
  %v1027 = vunpack.c.h.b16 %v194
  %v1028 = vunpack.c.l.b16 %v195
  %v1029 = vunpack.c.h.b16 %v195
  %v1030 = vunpack.c.l.b16 %v196
  %v1031 = vunpack.c.h.b16 %v196
  %v1032 = vunpack.c.l.b16 %v197
  %v1033 = vunpack.c.h.b16 %v197
  %v1034 = vunpack.c.l.b16 %v198
  %v1035 = vunpack.c.h.b16 %v198
  %v1036 = vunpack.c.l.b16 %v199
  %v1037 = vunpack.c.h.b16 %v199
  %v1038 = vunpack.c.l.b16 %v200
  %v1039 = vunpack.c.h.b16 %v200
  %v1040 = vunpack.c.l.b16 %v201
  %v1041 = vunpack.c.h.b16 %v201
  %v1042 = vunpack.c.l.b16 %v202
  %v1043 = vunpack.c.h.b16 %v202
  %v1044 = vunpack.c.l.b16 %v203
  %v1045 = vunpack.c.h.b16 %v203
  %v1046 = vunpack.c.l.b16 %v204
  %v1047 = vunpack.c.h.b16 %v204
  %v1048 = vunpack.c.l.b16 %v205
  %v1049 = vunpack.c.h.b16 %v205
  %v1050 = vunpack.c.l.b16 %v206
  %v1051 = vunpack.c.h.b16 %v206
  %v1052 = vunpack.c.l.b16 %v207
  %v1053 = vunpack.c.h.b16 %v207
  %v1054 = vunpack.c.l.b16 %v208
  %v1055 = vunpack.c.h.b16 %v208
  %v1056 = vunpack.c.l.b16 %v209
  %v1057 = vunpack.c.h.b16 %v209
  %v1058 = vunpack.c.l.b16 %v210
  %v1059 = vunpack.c.h.b16 %v210
  %v1060 = vunpack.c.l.b16 %v211
  %v1061 = vunpack.c.h.b16 %v211
  %v1062 = vunpack.c.l.b16 %v212
  %v1063 = vunpack.c.h.b16 %v212
  %v1064 = vunpack.c.l.b16 %v213
  %v1065 = vunpack.c.h.b16 %v213
  %v1066 = vunpack.c.l.b16 %v214
  %v1067 = vunpack.c.h.b16 %v214
  %v1068 = vunpack.c.l.b16 %v215
  %v1069 = vunpack.c.h.b16 %v215
  %v1070 = vunpack.c.l.b16 %v216
  %v1071 = vunpack.c.h.b16 %v216
  %v1072 = vunpack.c.l.b16 %v217
  %v1073 = vunpack.c.h.b16 %v217
  %v1074 = vunpack.c.l.b16 %v218
  %v1075 = vunpack.c.h.b16 %v218
  %v1076 = vunpack.c.l.b16 %v219
  %v1077 = vunpack.c.h.b16 %v219
  %v1078 = vunpack.c.l.b16 %v220
  %v1079 = vunpack.c.h.b16 %v220
  %v1080 = vunpack.c.l.b16 %v221
  %v1081 = vunpack.c.h.b16 %v221
  %v1082 = vunpack.c.l.b16 %v222
  %v1083 = vunpack.c.h.b16 %v222
  %v1084 = vunpack.c.l.b16 %v223
  %v1085 = vunpack.c.h.b16 %v223
  %v1086 = vunpack.c.l.b16 %v224
  %v1087 = vunpack.c.h.b16 %v224
  %v1088 = vunpack.c.l.b16 %v225
  %v1089 = vunpack.c.h.b16 %v225
  %v1090 = vunpack.c.l.b16 %v226
  %v1091 = vunpack.c.h.b16 %v226
  %v1092 = vunpack.c.l.b16 %v227
  %v1093 = vunpack.c.h.b16 %v227
  %v1094 = vunpack.c.l.b16 %v228
  %v1095 = vunpack.c.h.b16 %v228
  %v1096 = vunpack.c.l.b16 %v229
  %v1097 = vunpack.c.h.b16 %v229
  %v1098 = vunpack.c.l.b16 %v230
  %v1099 = vunpack.c.h.b16 %v230
  %v1100 = vunpack.c.l.b16 %v231
  %v1101 = vunpack.c.h.b16 %v231
  %v1102 = vunpack.c.l.b16 %v232
  %v1103 = vunpack.c.h.b16 %v232
  %v1104 = vunpack.c.l.b16 %v233
  %v1105 = vunpack.c.h.b16 %v233
  %v1106 = vunpack.c.l.b16 %v234
  %v1107 = vunpack.c.h.b16 %v234
  %v1108 = vunpack.c.l.b16 %v235
  %v1109 = vunpack.c.h.b16 %v235
  %v1110 = vunpack.c.l.b16 %v236
  %v1111 = vunpack.c.h.b16 %v236
  %v1112 = vunpack.c.l.b16 %v237
  %v1113 = vunpack.c.h.b16 %v237
  %v1114 = vunpack.c.l.b16 %v238
  %v1115 = vunpack.c.h.b16 %v238
  %v1116 = vunpack.c.l.b16 %v239
  %v1117 = vunpack.c.h.b16 %v239
  %v1118 = vunpack.c.l.b16 %v240
  %v1119 = vunpack.c.h.b16 %v240
  %v1120 = vunpack.c.l.b16 %v241
  %v1121 = vunpack.c.h.b16 %v241
  %v1122 = vunpack.c.l.b16 %v242
  %v1123 = vunpack.c.h.b16 %v242
  %v1124 = vunpack.c.l.b16 %v243
  %v1125 = vunpack.c.h.b16 %v243
  %v1126 = vunpack.c.l.b16 %v244
  %v1127 = vunpack.c.h.b16 %v244
  %v1128 = vunpack.c.l.b16 %v245
  %v1129 = vunpack.c.h.b16 %v245
  %v1130 = vunpack.c.l.b16 %v246
  %v1131 = vunpack.c.h.b16 %v246
  %v1132 = vunpack.c.l.b16 %v247
  %v1133 = vunpack.c.h.b16 %v247
  %v1134 = vunpack.c.l.b16 %v248
  %v1135 = vunpack.c.h.b16 %v248
  %v1136 = vunpack.c.l.b16 %v249
  %v1137 = vunpack.c.h.b16 %v249
  %v1138 = vunpack.c.l.b16 %v250
  %v1139 = vunpack.c.h.b16 %v250
  %v1140 = vunpack.c.l.b16 %v251
  %v1141 = vunpack.c.h.b16 %v251
  %v1142 = vunpack.c.l.b16 %v252
  %v1143 = vunpack.c.h.b16 %v252
  %v1144 = vunpack.c.l.b16 %v253
  %v1145 = vunpack.c.h.b16 %v253
  %v1146 = vunpack.c.l.b16 %v254
  %v1147 = vunpack.c.h.b16 %v254
  %v1148 = vunpack.c.l.b16 %v255
  %v1149 = vunpack.c.h.b16 %v255
  %v1150 = vunpack.c.l.b16 %v256
  %v1151 = vunpack.c.h.b16 %v256
  %v1152 = vunpack.c.l.b16 %v257
  %v1153 = vunpack.c.h.b16 %v257
  %v1154 = vunpack.c.l.b16 %v258
  %v1155 = vunpack.c.h.b16 %v258
  %v1156 = vunpack.c.l.b16 %v259
  %v1157 = vunpack.c.h.b16 %v259
  %v1158 = vunpack.c.l.b16 %v260
  %v1159 = vunpack.c.h.b16 %v260
  %v1160 = vunpack.c.l.b16 %v261
  %v1161 = vunpack.c.h.b16 %v261
  %v1162 = vunpack.c.l.b16 %v262
  %v1163 = vunpack.c.h.b16 %v262
  %v1164 = vunpack.c.l.b16 %v263
  %v1165 = vunpack.c.h.b16 %v263
  %v1166 = vunpack.c.l.b16 %v264
  %v1167 = vunpack.c.h.b16 %v264
  %v1168 = vunpack.c.l.b16 %v265
  %v1169 = vunpack.c.h.b16 %v265
  %v1170 = vunpack.c.l.b16 %v266
  %v1171 = vunpack.c.h.b16 %v266
  %v1172 = vunpack.c.l.b16 %v267
  %v1173 = vunpack.c.h.b16 %v267
  %v1174 = vunpack.c.l.b16 %v268
  %v1175 = vunpack.c.h.b16 %v268
  %v1176 = vunpack.c.l.b16 %v269
  %v1177 = vunpack.c.h.b16 %v269
  %v1178 = vunpack.c.l.b16 %v270
  %v1179 = vunpack.c.h.b16 %v270
  %v1180 = vunpack.c.l.b16 %v271
  %v1181 = vunpack.c.h.b16 %v271
  %v1182 = vunpack.c.l.b16 %v272
  %v1183 = vunpack.c.h.b16 %v272
  %v1184 = vunpack.c.l.b16 %v273
  %v1185 = vunpack.c.h.b16 %v273
  %v1186 = vunpack.c.l.b16 %v274
  %v1187 = vunpack.c.h.b16 %v274
  %v1188 = vunpack.c.l.b16 %v275
  %v1189 = vunpack.c.h.b16 %v275
  %v1190 = vunpack.c.l.b16 %v276
  %v1191 = vunpack.c.h.b16 %v276
  %v1192 = vunpack.c.l.b16 %v277
  %v1193 = vunpack.c.h.b16 %v277
  %v1194 = vunpack.c.l.b16 %v278
  %v1195 = vunpack.c.h.b16 %v278
  %v1196 = vunpack.c.l.b16 %v279
  %v1197 = vunpack.c.h.b16 %v279
  %v1198 = vunpack.c.l.b16 %v280
  %v1199 = vunpack.c.h.b16 %v280
  %v1200 = vunpack.c.l.b16 %v281
  %v1201 = vunpack.c.h.b16 %v281
  %v1202 = vunpack.c.l.b16 %v282
  %v1203 = vunpack.c.h.b16 %v282
  %v1204 = vunpack.c.l.b16 %v283
  %v1205 = vunpack.c.h.b16 %v283
  %v1206 = vunpack.c.l.b16 %v284
  %v1207 = vunpack.c.h.b16 %v284
  %v1208 = vunpack.c.l.b16 %v285
  %v1209 = vunpack.c.h.b16 %v285
  %v1210 = vunpack.c.l.b16 %v286
  %v1211 = vunpack.c.h.b16 %v286
  %v1212 = vunpack.c.l.b16 %v287
  %v1213 = vunpack.c.h.b16 %v287
  %v1214 = vunpack.c.l.b16 %v288
  %v1215 = vunpack.c.h.b16 %v288
  %v1216 = vunpack.c.l.b16 %v289
  %v1217 = vunpack.c.h.b16 %v289
  %v1218 = vunpack.c.l.b16 %v290
  %v1219 = vunpack.c.h.b16 %v290
  %v1220 = vunpack.c.l.b16 %v291
  %v1221 = vunpack.c.h.b16 %v291
  %v1222 = vunpack.c.l.b16 %v292
  %v1223 = vunpack.c.h.b16 %v292
  %v1224 = vunpack.c.l.b16 %v293
  %v1225 = vunpack.c.h.b16 %v293
  %v1226 = vunpack.c.l.b16 %v294
  %v1227 = vunpack.c.h.b16 %v294
  %v1228 = vunpack.c.l.b16 %v295
  %v1229 = vunpack.c.h.b16 %v295
  %v1230 = vunpack.c.l.b16 %v296
  %v1231 = vunpack.c.h.b16 %v296
  %v1232 = vunpack.c.l.b16 %v297
  %v1233 = vunpack.c.h.b16 %v297
  %v1234 = vunpack.c.l.b16 %v298
  %v1235 = vunpack.c.h.b16 %v298
  %v1236 = vunpack.c.l.b16 %v299
  %v1237 = vunpack.c.h.b16 %v299
  %v1238 = vunpack.c.l.b16 %v300
  %v1239 = vunpack.c.h.b16 %v300
  %v1240 = vunpack.c.l.b16 %v301
  %v1241 = vunpack.c.h.b16 %v301
  %v1242 = vpack.c.b16 %v732, %v730
  %v1243 = vpack.c.b16 %v733, %v731
  %v1244 = vpack.c.b16 %v736, %v734
  %v1245 = vpack.c.b16 %v737, %v735
  %v1246 = vpack.c.b16 %v740, %v738
  %v1247 = vpack.c.b16 %v741, %v739
  %v1248 = vpack.c.b16 %v744, %v742
  %v1249 = vpack.c.b16 %v745, %v743
  %v1250 = vpack.c.b16 %v748, %v746
  %v1251 = vpack.c.b16 %v749, %v747
  %v1252 = vpack.c.b16 %v752, %v750
  %v1253 = vpack.c.b16 %v753, %v751
  %v1254 = vpack.c.b16 %v756, %v754
  %v1255 = vpack.c.b16 %v757, %v755
  %v1256 = vpack.c.b16 %v760, %v758
  %v1257 = vpack.c.b16 %v761, %v759
  %v1258 = vpack.c.b16 %v764, %v762
  %v1259 = vpack.c.b16 %v765, %v763
  %v1260 = vpack.c.b16 %v768, %v766
  %v1261 = vpack.c.b16 %v769, %v767
  %v1262 = vpack.c.b16 %v772, %v770
  %v1263 = vpack.c.b16 %v773, %v771
  %v1264 = vpack.c.b16 %v776, %v774
  %v1265 = vpack.c.b16 %v777, %v775
  %v1266 = vpack.c.b16 %v780, %v778
  %v1267 = vpack.c.b16 %v781, %v779
  %v1268 = vpack.c.b16 %v784, %v782
  %v1269 = vpack.c.b16 %v785, %v783
  %v1270 = vpack.c.b16 %v788, %v786
  %v1271 = vpack.c.b16 %v789, %v787
  %v1272 = vpack.c.b16 %v792, %v790
  %v1273 = vpack.c.b16 %v793, %v791
  %v1274 = vpack.c.b16 %v796, %v794
  %v1275 = vpack.c.b16 %v797, %v795
  %v1276 = vpack.c.b16 %v800, %v798
  %v1277 = vpack.c.b16 %v801, %v799
  %v1278 = vpack.c.b16 %v804, %v802
  %v1279 = vpack.c.b16 %v805, %v803
  %v1280 = vpack.c.b16 %v808, %v806
  %v1281 = vpack.c.b16 %v809, %v807
  %v1282 = vpack.c.b16 %v812, %v810
  %v1283 = vpack.c.b16 %v813, %v811
  %v1284 = vpack.c.b16 %v816, %v814
  %v1285 = vpack.c.b16 %v817, %v815
  %v1286 = vpack.c.b16 %v820, %v818
  %v1287 = vpack.c.b16 %v821, %v819
  %v1288 = vpack.c.b16 %v824, %v822
  %v1289 = vpack.c.b16 %v825, %v823
  %v1290 = vpack.c.b16 %v828, %v826
  %v1291 = vpack.c.b16 %v829, %v827
  %v1292 = vpack.c.b16 %v832, %v830
  %v1293 = vpack.c.b16 %v833, %v831
  %v1294 = vpack.c.b16 %v836, %v834
  %v1295 = vpack.c.b16 %v837, %v835
  %v1296 = vpack.c.b16 %v840, %v838
  %v1297 = vpack.c.b16 %v841, %v839
  %v1298 = vpack.c.b16 %v844, %v842
  %v1299 = vpack.c.b16 %v845, %v843
  %v1300 = vpack.c.b16 %v848, %v846
  %v1301 = vpack.c.b16 %v849, %v847
  %v1302 = vpack.c.b16 %v852, %v850
  %v1303 = vpack.c.b16 %v853, %v851
  %v1304 = vpack.c.b16 %v856, %v854
  %v1305 = vpack.c.b16 %v857, %v855
  %v1306 = vpack.c.b16 %v860, %v858
  %v1307 = vpack.c.b16 %v861, %v859
  %v1308 = vpack.c.b16 %v864, %v862
  %v1309 = vpack.c.b16 %v865, %v863
  %v1310 = vpack.c.b16 %v868, %v866
  %v1311 = vpack.c.b16 %v869, %v867
  %v1312 = vpack.c.b16 %v872, %v870
  %v1313 = vpack.c.b16 %v873, %v871
  %v1314 = vpack.c.b16 %v876, %v874
  %v1315 = vpack.c.b16 %v877, %v875
  %v1316 = vpack.c.b16 %v880, %v878
  %v1317 = vpack.c.b16 %v881, %v879
  %v1318 = vpack.c.b16 %v884, %v882
  %v1319 = vpack.c.b16 %v885, %v883
  %v1320 = vpack.c.b16 %v888, %v886
  %v1321 = vpack.c.b16 %v889, %v887
  %v1322 = vpack.c.b16 %v892, %v890
  %v1323 = vpack.c.b16 %v893, %v891
  %v1324 = vpack.c.b16 %v896, %v894
  %v1325 = vpack.c.b16 %v897, %v895
  %v1326 = vpack.c.b16 %v900, %v898
  %v1327 = vpack.c.b16 %v901, %v899
  %v1328 = vpack.c.b16 %v904, %v902
  %v1329 = vpack.c.b16 %v905, %v903
  %v1330 = vpack.c.b16 %v908, %v906
  %v1331 = vpack.c.b16 %v909, %v907
  %v1332 = vpack.c.b16 %v912, %v910
  %v1333 = vpack.c.b16 %v913, %v911
  %v1334 = vpack.c.b16 %v916, %v914
  %v1335 = vpack.c.b16 %v917, %v915
  %v1336 = vpack.c.b16 %v920, %v918
  %v1337 = vpack.c.b16 %v921, %v919
  %v1338 = vpack.c.b16 %v924, %v922
  %v1339 = vpack.c.b16 %v925, %v923
  %v1340 = vpack.c.b16 %v928, %v926
  %v1341 = vpack.c.b16 %v929, %v927
  %v1342 = vpack.c.b16 %v932, %v930
  %v1343 = vpack.c.b16 %v933, %v931
  %v1344 = vpack.c.b16 %v936, %v934
  %v1345 = vpack.c.b16 %v937, %v935
  %v1346 = vpack.c.b16 %v940, %v938
  %v1347 = vpack.c.b16 %v941, %v939
  %v1348 = vpack.c.b16 %v944, %v942
  %v1349 = vpack.c.b16 %v945, %v943
  %v1350 = vpack.c.b16 %v948, %v946
  %v1351 = vpack.c.b16 %v949, %v947
  %v1352 = vpack.c.b16 %v952, %v950
  %v1353 = vpack.c.b16 %v953, %v951
  %v1354 = vpack.c.b16 %v956, %v954
  %v1355 = vpack.c.b16 %v957, %v955
  %v1356 = vpack.c.b16 %v960, %v958
  %v1357 = vpack.c.b16 %v961, %v959
  %v1358 = vpack.c.b16 %v964, %v962
  %v1359 = vpack.c.b16 %v965, %v963
  %v1360 = vpack.c.b16 %v968, %v966
  %v1361 = vpack.c.b16 %v969, %v967
  %v1362 = vpack.c.b16 %v972, %v970
  %v1363 = vpack.c.b16 %v973, %v971
  %v1364 = vpack.c.b16 %v976, %v974
  %v1365 = vpack.c.b16 %v977, %v975
  %v1366 = vpack.c.b16 %v980, %v978
  %v1367 = vpack.c.b16 %v981, %v979
  %v1368 = vpack.c.b16 %v984, %v982
  %v1369 = vpack.c.b16 %v985, %v983
  %v1370 = vpack.c.b16 %v988, %v986
  %v1371 = vpack.c.b16 %v989, %v987
  %v1372 = vpack.c.b16 %v992, %v990
  %v1373 = vpack.c.b16 %v993, %v991
  %v1374 = vpack.c.b16 %v996, %v994
  %v1375 = vpack.c.b16 %v997, %v995
  %v1376 = vpack.c.b16 %v1000, %v998
  %v1377 = vpack.c.b16 %v1001, %v999
  %v1378 = vpack.c.b16 %v1004, %v1002
  %v1379 = vpack.c.b16 %v1005, %v1003
  %v1380 = vpack.c.b16 %v1008, %v1006
  %v1381 = vpack.c.b16 %v1009, %v1007
  %v1382 = vpack.c.b16 %v1012, %v1010
  %v1383 = vpack.c.b16 %v1013, %v1011
  %v1384 = vpack.c.b16 %v1016, %v1014
  %v1385 = vpack.c.b16 %v1017, %v1015
  %v1386 = vpack.c.b16 %v1020, %v1018
  %v1387 = vpack.c.b16 %v1021, %v1019
  %v1388 = vpack.c.b16 %v1024, %v1022
  %v1389 = vpack.c.b16 %v1025, %v1023
  %v1390 = vpack.c.b16 %v1028, %v1026
  %v1391 = vpack.c.b16 %v1029, %v1027
  %v1392 = vpack.c.b16 %v1032, %v1030
  %v1393 = vpack.c.b16 %v1033, %v1031
  %v1394 = vpack.c.b16 %v1036, %v1034
  %v1395 = vpack.c.b16 %v1037, %v1035
  %v1396 = vpack.c.b16 %v1040, %v1038
  %v1397 = vpack.c.b16 %v1041, %v1039
  %v1398 = vpack.c.b16 %v1044, %v1042
  %v1399 = vpack.c.b16 %v1045, %v1043
  %v1400 = vpack.c.b16 %v1048, %v1046
  %v1401 = vpack.c.b16 %v1049, %v1047
  %v1402 = vpack.c.b16 %v1052, %v1050
  %v1403 = vpack.c.b16 %v1053, %v1051
  %v1404 = vpack.c.b16 %v1056, %v1054
  %v1405 = vpack.c.b16 %v1057, %v1055
  %v1406 = vpack.c.b16 %v1060, %v1058
  %v1407 = vpack.c.b16 %v1061, %v1059
  %v1408 = vpack.c.b16 %v1064, %v1062
  %v1409 = vpack.c.b16 %v1065, %v1063
  %v1410 = vpack.c.b16 %v1068, %v1066
  %v1411 = vpack.c.b16 %v1069, %v1067
  %v1412 = vpack.c.b16 %v1072, %v1070
  %v1413 = vpack.c.b16 %v1073, %v1071
  %v1414 = vpack.c.b16 %v1076, %v1074
  %v1415 = vpack.c.b16 %v1077, %v1075
  %v1416 = vpack.c.b16 %v1080, %v1078
  %v1417 = vpack.c.b16 %v1081, %v1079
  %v1418 = vpack.c.b16 %v1084, %v1082
  %v1419 = vpack.c.b16 %v1085, %v1083
  %v1420 = vpack.c.b16 %v1088, %v1086
  %v1421 = vpack.c.b16 %v1089, %v1087
  %v1422 = vpack.c.b16 %v1092, %v1090
  %v1423 = vpack.c.b16 %v1093, %v1091
  %v1424 = vpack.c.b16 %v1096, %v1094
  %v1425 = vpack.c.b16 %v1097, %v1095
  %v1426 = vpack.c.b16 %v1100, %v1098
  %v1427 = vpack.c.b16 %v1101, %v1099
  %v1428 = vpack.c.b16 %v1104, %v1102
  %v1429 = vpack.c.b16 %v1105, %v1103
  %v1430 = vpack.c.b16 %v1108, %v1106
  %v1431 = vpack.c.b16 %v1109, %v1107
  %v1432 = vpack.c.b16 %v1112, %v1110
  %v1433 = vpack.c.b16 %v1113, %v1111
  %v1434 = vpack.c.b16 %v1116, %v1114
  %v1435 = vpack.c.b16 %v1117, %v1115
  %v1436 = vpack.c.b16 %v1120, %v1118
  %v1437 = vpack.c.b16 %v1121, %v1119
  %v1438 = vpack.c.b16 %v1124, %v1122
  %v1439 = vpack.c.b16 %v1125, %v1123
  %v1440 = vpack.c.b16 %v1128, %v1126
  %v1441 = vpack.c.b16 %v1129, %v1127
  %v1442 = vpack.c.b16 %v1132, %v1130
  %v1443 = vpack.c.b16 %v1133, %v1131
  %v1444 = vpack.c.b16 %v1136, %v1134
  %v1445 = vpack.c.b16 %v1137, %v1135
  %v1446 = vpack.c.b16 %v1140, %v1138
  %v1447 = vpack.c.b16 %v1141, %v1139
  %v1448 = vpack.c.b16 %v1144, %v1142
  %v1449 = vpack.c.b16 %v1145, %v1143
  %v1450 = vpack.c.b16 %v1148, %v1146
  %v1451 = vpack.c.b16 %v1149, %v1147
  %v1452 = vpack.c.b16 %v1152, %v1150
  %v1453 = vpack.c.b16 %v1153, %v1151
  %v1454 = vpack.c.b16 %v1156, %v1154
  %v1455 = vpack.c.b16 %v1157, %v1155
  %v1456 = vpack.c.b16 %v1160, %v1158
  %v1457 = vpack.c.b16 %v1161, %v1159
  %v1458 = vpack.c.b16 %v1164, %v1162
  %v1459 = vpack.c.b16 %v1165, %v1163
  %v1460 = vpack.c.b16 %v1168, %v1166
  %v1461 = vpack.c.b16 %v1169, %v1167
  %v1462 = vpack.c.b16 %v1172, %v1170
  %v1463 = vpack.c.b16 %v1173, %v1171
  %v1464 = vpack.c.b16 %v1176, %v1174
  %v1465 = vpack.c.b16 %v1177, %v1175
  %v1466 = vpack.c.b16 %v1180, %v1178
  %v1467 = vpack.c.b16 %v1181, %v1179
  %v1468 = vpack.c.b16 %v1184, %v1182
  %v1469 = vpack.c.b16 %v1185, %v1183
  %v1470 = vpack.c.b16 %v1188, %v1186
  %v1471 = vpack.c.b16 %v1189, %v1187
  %v1472 = vpack.c.b16 %v1192, %v1190
  %v1473 = vpack.c.b16 %v1193, %v1191
  %v1474 = vpack.c.b16 %v1196, %v1194
  %v1475 = vpack.c.b16 %v1197, %v1195
  %v1476 = vpack.c.b16 %v1200, %v1198
  %v1477 = vpack.c.b16 %v1201, %v1199
  %v1478 = vpack.c.b16 %v1204, %v1202
  %v1479 = vpack.c.b16 %v1205, %v1203
  %v1480 = vpack.c.b16 %v1208, %v1206
  %v1481 = vpack.c.b16 %v1209, %v1207
  %v1482 = vpack.c.b16 %v1212, %v1210
  %v1483 = vpack.c.b16 %v1213, %v1211
  %v1484 = vpack.c.b16 %v1216, %v1214
  %v1485 = vpack.c.b16 %v1217, %v1215
  %v1486 = vpack.c.b16 %v1220, %v1218
  %v1487 = vpack.c.b16 %v1221, %v1219
  %v1488 = vpack.c.b16 %v1224, %v1222
  %v1489 = vpack.c.b16 %v1225, %v1223
  %v1490 = vpack.c.b16 %v1228, %v1226
  %v1491 = vpack.c.b16 %v1229, %v1227
  %v1492 = vpack.c.b16 %v1232, %v1230
  %v1493 = vpack.c.b16 %v1233, %v1231
  %v1494 = vpack.c.b16 %v1236, %v1234
  %v1495 = vpack.c.b16 %v1237, %v1235
  %v1496 = vpack.c.b16 %v1240, %v1238
  %v1497 = vpack.c.b16 %v1241, %v1239
  %1754 = vmatprep.subr.bf16.mxu0 %v1257
  %1755 = vmatpush1.bf16.msra.mxu0 %v1256
  %1756 = vmatprep.subr.bf16.mxu0 %v1255
  %1757 = vmatpush1.bf16.msra.mxu0 %v1254
  %1758 = vmatprep.subr.bf16.mxu0 %v1253
  %1759 = vmatpush1.bf16.msra.mxu0 %v1252
  %1760 = vmatprep.subr.bf16.mxu0 %v1251
  %1761 = vmatpush1.bf16.msra.mxu0 %v1250
  %1762 = vmatprep.subr.bf16.mxu0 %v1249
  %1763 = vmatpush1.bf16.msra.mxu0 %v1248
  %1764 = vmatprep.subr.bf16.mxu0 %v1247
  %1765 = vmatpush1.bf16.msra.mxu0 %v1246
  %1766 = vmatprep.subr.bf16.mxu0 %v1245
  %1767 = vmatpush1.bf16.msra.mxu0 %v1244
  %1768 = vmatprep.subr.bf16.mxu0 %v1243
  %1769 = vmatpush1.bf16.msra.mxu0 %v1242
  %1770 = vmatprep.subr.bf16.mxu0 %v1273
  %1771 = vmatpush2.bf16.msra.mxu0 %v1272
  %1772 = vmatprep.subr.bf16.mxu0 %v1271
  %1773 = vmatpush2.bf16.msra.mxu0 %v1270
  %1774 = vmatprep.subr.bf16.mxu0 %v1269
  %1775 = vmatpush2.bf16.msra.mxu0 %v1268
  %1776 = vmatprep.subr.bf16.mxu0 %v1267
  %1777 = vmatpush2.bf16.msra.mxu0 %v1266
  %1778 = vmatprep.subr.bf16.mxu0 %v1265
  %1779 = vmatpush2.bf16.msra.mxu0 %v1264
  %1780 = vmatprep.subr.bf16.mxu0 %v1263
  %1781 = vmatpush2.bf16.msra.mxu0 %v1262
  %1782 = vmatprep.subr.bf16.mxu0 %v1261
  %1783 = vmatpush2.bf16.msra.mxu0 %v1260
  %1784 = vmatprep.subr.bf16.mxu0 %v1259
  %1785 = vmatpush2.bf16.msra.mxu0 %v1258
  %1786 = vmatprep.mubr.bf16.mxu0 %v411
  %1787 = vmatmul.mubr.bf16.gmra.mxu0 %v410
  %v1788 = vpop.f32.mrf.mxu0
  %v1789 = vadd.f32 %v307, %v1788
  %v1790 = vpop.f32.mrf.mxu0
  %v1791 = vadd.f32 %v311, %v1790
  %v1792 = vpop.f32.mrf.mxu0
  %v1793 = vadd.f32 %v307, %v1792
  %v1794 = vpop.f32.mrf.mxu0
  %v1795 = vadd.f32 %v311, %v1794
  %1796 = vmatprep.mubr.bf16.mxu0 %v427
  %1797 = vmatmul.mubr.bf16.gmra.mxu0 %v426
  %v1798 = vpop.f32.mrf.mxu0
  %v1799 = vadd.f32 %v307, %v1798
  %v1800 = vpop.f32.mrf.mxu0
  %v1801 = vadd.f32 %v311, %v1800
  %v1802 = vpop.f32.mrf.mxu0
  %v1803 = vadd.f32 %v307, %v1802
  %v1804 = vpop.f32.mrf.mxu0
  %v1805 = vadd.f32 %v311, %v1804
  %1806 = vdwg.mxu0
  %1807 = vmatprep.subr.bf16.mxu0 %v1289
  %1808 = vmatpush1.bf16.msra.mxu0 %v1288
  %1809 = vmatprep.subr.bf16.mxu0 %v1287
  %1810 = vmatpush1.bf16.msra.mxu0 %v1286
  %1811 = vmatprep.subr.bf16.mxu0 %v1285
  %1812 = vmatpush1.bf16.msra.mxu0 %v1284
  %1813 = vmatprep.subr.bf16.mxu0 %v1283
  %1814 = vmatpush1.bf16.msra.mxu0 %v1282
  %1815 = vmatprep.subr.bf16.mxu0 %v1281
  %1816 = vmatpush1.bf16.msra.mxu0 %v1280
  %1817 = vmatprep.subr.bf16.mxu0 %v1279
  %1818 = vmatpush1.bf16.msra.mxu0 %v1278
  %1819 = vmatprep.subr.bf16.mxu0 %v1277
  %1820 = vmatpush1.bf16.msra.mxu0 %v1276
  %1821 = vmatprep.subr.bf16.mxu0 %v1275
  %1822 = vmatpush1.bf16.msra.mxu0 %v1274
  %1823 = vmatprep.subr.bf16.mxu0 %v1305
  %1824 = vmatpush2.bf16.msra.mxu0 %v1304
  %1825 = vmatprep.subr.bf16.mxu0 %v1303
  %1826 = vmatpush2.bf16.msra.mxu0 %v1302
  %1827 = vmatprep.subr.bf16.mxu0 %v1301
  %1828 = vmatpush2.bf16.msra.mxu0 %v1300
  %1829 = vmatprep.subr.bf16.mxu0 %v1299
  %1830 = vmatpush2.bf16.msra.mxu0 %v1298
  %1831 = vmatprep.subr.bf16.mxu0 %v1297
  %1832 = vmatpush2.bf16.msra.mxu0 %v1296
  %1833 = vmatprep.subr.bf16.mxu0 %v1295
  %1834 = vmatpush2.bf16.msra.mxu0 %v1294
  %1835 = vmatprep.subr.bf16.mxu0 %v1293
  %1836 = vmatpush2.bf16.msra.mxu0 %v1292
  %1837 = vmatprep.subr.bf16.mxu0 %v1291
  %1838 = vmatpush2.bf16.msra.mxu0 %v1290
  %1839 = vmatprep.mubr.bf16.mxu0 %v413
  %1840 = vmatmul.mubr.bf16.gmra.mxu0 %v412
  %v1841 = vpop.f32.mrf.mxu0
  %v1842 = vadd.f32 %v1789, %v1841
  %v1843 = vpop.f32.mrf.mxu0
  %v1844 = vadd.f32 %v1791, %v1843
  %v1845 = vpop.f32.mrf.mxu0
  %v1846 = vadd.f32 %v1793, %v1845
  %v1847 = vpop.f32.mrf.mxu0
  %v1848 = vadd.f32 %v1795, %v1847
  %1849 = vmatprep.mubr.bf16.mxu0 %v429
  %1850 = vmatmul.mubr.bf16.gmra.mxu0 %v428
  %v1851 = vpop.f32.mrf.mxu0
  %v1852 = vadd.f32 %v1799, %v1851
  %v1853 = vpop.f32.mrf.mxu0
  %v1854 = vadd.f32 %v1801, %v1853
  %v1855 = vpop.f32.mrf.mxu0
  %v1856 = vadd.f32 %v1803, %v1855
  %v1857 = vpop.f32.mrf.mxu0
  %v1858 = vadd.f32 %v1805, %v1857
  %1859 = vdwg.mxu0
  %1860 = vmatprep.subr.bf16.mxu0 %v1321
  %1861 = vmatpush1.bf16.msra.mxu0 %v1320
  %1862 = vmatprep.subr.bf16.mxu0 %v1319
  %1863 = vmatpush1.bf16.msra.mxu0 %v1318
  %1864 = vmatprep.subr.bf16.mxu0 %v1317
  %1865 = vmatpush1.bf16.msra.mxu0 %v1316
  %1866 = vmatprep.subr.bf16.mxu0 %v1315
  %1867 = vmatpush1.bf16.msra.mxu0 %v1314
  %1868 = vmatprep.subr.bf16.mxu0 %v1313
  %1869 = vmatpush1.bf16.msra.mxu0 %v1312
  %1870 = vmatprep.subr.bf16.mxu0 %v1311
  %1871 = vmatpush1.bf16.msra.mxu0 %v1310
  %1872 = vmatprep.subr.bf16.mxu0 %v1309
  %1873 = vmatpush1.bf16.msra.mxu0 %v1308
  %1874 = vmatprep.subr.bf16.mxu0 %v1307
  %1875 = vmatpush1.bf16.msra.mxu0 %v1306
  %1876 = vmatprep.subr.bf16.mxu0 %v1337
  %1877 = vmatpush2.bf16.msra.mxu0 %v1336
  %1878 = vmatprep.subr.bf16.mxu0 %v1335
  %1879 = vmatpush2.bf16.msra.mxu0 %v1334
  %1880 = vmatprep.subr.bf16.mxu0 %v1333
  %1881 = vmatpush2.bf16.msra.mxu0 %v1332
  %1882 = vmatprep.subr.bf16.mxu0 %v1331
  %1883 = vmatpush2.bf16.msra.mxu0 %v1330
  %1884 = vmatprep.subr.bf16.mxu0 %v1329
  %1885 = vmatpush2.bf16.msra.mxu0 %v1328
  %1886 = vmatprep.subr.bf16.mxu0 %v1327
  %1887 = vmatpush2.bf16.msra.mxu0 %v1326
  %1888 = vmatprep.subr.bf16.mxu0 %v1325
  %1889 = vmatpush2.bf16.msra.mxu0 %v1324
  %1890 = vmatprep.subr.bf16.mxu0 %v1323
  %1891 = vmatpush2.bf16.msra.mxu0 %v1322
  %1892 = vmatprep.mubr.bf16.mxu0 %v415
  %1893 = vmatmul.mubr.bf16.gmra.mxu0 %v414
  %v1894 = vpop.f32.mrf.mxu0
  %v1895 = vadd.f32 %v1842, %v1894
  %v1896 = vpop.f32.mrf.mxu0
  %v1897 = vadd.f32 %v1844, %v1896
  %v1898 = vpop.f32.mrf.mxu0
  %v1899 = vadd.f32 %v1846, %v1898
  %v1900 = vpop.f32.mrf.mxu0
  %v1901 = vadd.f32 %v1848, %v1900
  %1902 = vmatprep.mubr.bf16.mxu0 %v431
  %1903 = vmatmul.mubr.bf16.gmra.mxu0 %v430
  %v1904 = vpop.f32.mrf.mxu0
  %v1905 = vadd.f32 %v1852, %v1904
  %v1906 = vpop.f32.mrf.mxu0
  %v1907 = vadd.f32 %v1854, %v1906
  %v1908 = vpop.f32.mrf.mxu0
  %v1909 = vadd.f32 %v1856, %v1908
  %v1910 = vpop.f32.mrf.mxu0
  %v1911 = vadd.f32 %v1858, %v1910
  %1912 = vdwg.mxu0
  %1913 = vmatprep.subr.bf16.mxu0 %v1353
  %1914 = vmatpush1.bf16.msra.mxu0 %v1352
  %1915 = vmatprep.subr.bf16.mxu0 %v1351
  %1916 = vmatpush1.bf16.msra.mxu0 %v1350
  %1917 = vmatprep.subr.bf16.mxu0 %v1349
  %1918 = vmatpush1.bf16.msra.mxu0 %v1348
  %1919 = vmatprep.subr.bf16.mxu0 %v1347
  %1920 = vmatpush1.bf16.msra.mxu0 %v1346
  %1921 = vmatprep.subr.bf16.mxu0 %v1345
  %1922 = vmatpush1.bf16.msra.mxu0 %v1344
  %1923 = vmatprep.subr.bf16.mxu0 %v1343
  %1924 = vmatpush1.bf16.msra.mxu0 %v1342
  %1925 = vmatprep.subr.bf16.mxu0 %v1341
  %1926 = vmatpush1.bf16.msra.mxu0 %v1340
  %1927 = vmatprep.subr.bf16.mxu0 %v1339
  %1928 = vmatpush1.bf16.msra.mxu0 %v1338
  %1929 = vmatprep.subr.bf16.mxu0 %v1369
  %1930 = vmatpush2.bf16.msra.mxu0 %v1368
  %1931 = vmatprep.subr.bf16.mxu0 %v1367
  %1932 = vmatpush2.bf16.msra.mxu0 %v1366
  %1933 = vmatprep.subr.bf16.mxu0 %v1365
  %1934 = vmatpush2.bf16.msra.mxu0 %v1364
  %1935 = vmatprep.subr.bf16.mxu0 %v1363
  %1936 = vmatpush2.bf16.msra.mxu0 %v1362
  %1937 = vmatprep.subr.bf16.mxu0 %v1361
  %1938 = vmatpush2.bf16.msra.mxu0 %v1360
  %1939 = vmatprep.subr.bf16.mxu0 %v1359
  %1940 = vmatpush2.bf16.msra.mxu0 %v1358
  %1941 = vmatprep.subr.bf16.mxu0 %v1357
  %1942 = vmatpush2.bf16.msra.mxu0 %v1356
  %1943 = vmatprep.subr.bf16.mxu0 %v1355
  %1944 = vmatpush2.bf16.msra.mxu0 %v1354
  %1945 = vmatprep.mubr.bf16.mxu0 %v417
  %1946 = vmatmul.mubr.bf16.gmra.mxu0 %v416
  %v1947 = vpop.f32.mrf.mxu0
  %v1948 = vadd.f32 %v1895, %v1947
  %v1949 = vpop.f32.mrf.mxu0
  %v1950 = vadd.f32 %v1897, %v1949
  %v1951 = vpop.f32.mrf.mxu0
  %v1952 = vadd.f32 %v1899, %v1951
  %v1953 = vpop.f32.mrf.mxu0
  %v1954 = vadd.f32 %v1901, %v1953
  %1955 = vmatprep.mubr.bf16.mxu0 %v433
  %1956 = vmatmul.mubr.bf16.gmra.mxu0 %v432
  %v1957 = vpop.f32.mrf.mxu0
  %v1958 = vadd.f32 %v1905, %v1957
  %v1959 = vpop.f32.mrf.mxu0
  %v1960 = vadd.f32 %v1907, %v1959
  %v1961 = vpop.f32.mrf.mxu0
  %v1962 = vadd.f32 %v1909, %v1961
  %v1963 = vpop.f32.mrf.mxu0
  %v1964 = vadd.f32 %v1911, %v1963
  %1965 = vdwg.mxu0
  %1966 = vmatprep.subr.bf16.mxu0 %v1385
  %1967 = vmatpush1.bf16.msra.mxu0 %v1384
  %1968 = vmatprep.subr.bf16.mxu0 %v1383
  %1969 = vmatpush1.bf16.msra.mxu0 %v1382
  %1970 = vmatprep.subr.bf16.mxu0 %v1381
  %1971 = vmatpush1.bf16.msra.mxu0 %v1380
  %1972 = vmatprep.subr.bf16.mxu0 %v1379
  %1973 = vmatpush1.bf16.msra.mxu0 %v1378
  %1974 = vmatprep.subr.bf16.mxu0 %v1377
  %1975 = vmatpush1.bf16.msra.mxu0 %v1376
  %1976 = vmatprep.subr.bf16.mxu0 %v1375
  %1977 = vmatpush1.bf16.msra.mxu0 %v1374
  %1978 = vmatprep.subr.bf16.mxu0 %v1373
  %1979 = vmatpush1.bf16.msra.mxu0 %v1372
  %1980 = vmatprep.subr.bf16.mxu0 %v1371
  %1981 = vmatpush1.bf16.msra.mxu0 %v1370
  %1982 = vmatprep.subr.bf16.mxu0 %v1401
  %1983 = vmatpush2.bf16.msra.mxu0 %v1400
  %1984 = vmatprep.subr.bf16.mxu0 %v1399
  %1985 = vmatpush2.bf16.msra.mxu0 %v1398
  %1986 = vmatprep.subr.bf16.mxu0 %v1397
  %1987 = vmatpush2.bf16.msra.mxu0 %v1396
  %1988 = vmatprep.subr.bf16.mxu0 %v1395
  %1989 = vmatpush2.bf16.msra.mxu0 %v1394
  %1990 = vmatprep.subr.bf16.mxu0 %v1393
  %1991 = vmatpush2.bf16.msra.mxu0 %v1392
  %1992 = vmatprep.subr.bf16.mxu0 %v1391
  %1993 = vmatpush2.bf16.msra.mxu0 %v1390
  %1994 = vmatprep.subr.bf16.mxu0 %v1389
  %1995 = vmatpush2.bf16.msra.mxu0 %v1388
  %1996 = vmatprep.subr.bf16.mxu0 %v1387
  %1997 = vmatpush2.bf16.msra.mxu0 %v1386
  %1998 = vmatprep.mubr.bf16.mxu0 %v419
  %1999 = vmatmul.mubr.bf16.gmra.mxu0 %v418
  %v2000 = vpop.f32.mrf.mxu0
  %v2001 = vadd.f32 %v1948, %v2000
  %v2002 = vpop.f32.mrf.mxu0
  %v2003 = vadd.f32 %v1950, %v2002
  %v2004 = vpop.f32.mrf.mxu0
  %v2005 = vadd.f32 %v1952, %v2004
  %v2006 = vpop.f32.mrf.mxu0
  %v2007 = vadd.f32 %v1954, %v2006
  %2008 = vmatprep.mubr.bf16.mxu0 %v435
  %2009 = vmatmul.mubr.bf16.gmra.mxu0 %v434
  %v2010 = vpop.f32.mrf.mxu0
  %v2011 = vadd.f32 %v1958, %v2010
  %v2012 = vpop.f32.mrf.mxu0
  %v2013 = vadd.f32 %v1960, %v2012
  %v2014 = vpop.f32.mrf.mxu0
  %v2015 = vadd.f32 %v1962, %v2014
  %v2016 = vpop.f32.mrf.mxu0
  %v2017 = vadd.f32 %v1964, %v2016
  %2018 = vdwg.mxu0
  %2019 = vmatprep.subr.bf16.mxu0 %v1417
  %2020 = vmatpush1.bf16.msra.mxu0 %v1416
  %2021 = vmatprep.subr.bf16.mxu0 %v1415
  %2022 = vmatpush1.bf16.msra.mxu0 %v1414
  %2023 = vmatprep.subr.bf16.mxu0 %v1413
  %2024 = vmatpush1.bf16.msra.mxu0 %v1412
  %2025 = vmatprep.subr.bf16.mxu0 %v1411
  %2026 = vmatpush1.bf16.msra.mxu0 %v1410
  %2027 = vmatprep.subr.bf16.mxu0 %v1409
  %2028 = vmatpush1.bf16.msra.mxu0 %v1408
  %2029 = vmatprep.subr.bf16.mxu0 %v1407
  %2030 = vmatpush1.bf16.msra.mxu0 %v1406
  %2031 = vmatprep.subr.bf16.mxu0 %v1405
  %2032 = vmatpush1.bf16.msra.mxu0 %v1404
  %2033 = vmatprep.subr.bf16.mxu0 %v1403
  %2034 = vmatpush1.bf16.msra.mxu0 %v1402
  %2035 = vmatprep.subr.bf16.mxu0 %v1433
  %2036 = vmatpush2.bf16.msra.mxu0 %v1432
  %2037 = vmatprep.subr.bf16.mxu0 %v1431
  %2038 = vmatpush2.bf16.msra.mxu0 %v1430
  %2039 = vmatprep.subr.bf16.mxu0 %v1429
  %2040 = vmatpush2.bf16.msra.mxu0 %v1428
  %2041 = vmatprep.subr.bf16.mxu0 %v1427
  %2042 = vmatpush2.bf16.msra.mxu0 %v1426
  %2043 = vmatprep.subr.bf16.mxu0 %v1425
  %2044 = vmatpush2.bf16.msra.mxu0 %v1424
  %2045 = vmatprep.subr.bf16.mxu0 %v1423
  %2046 = vmatpush2.bf16.msra.mxu0 %v1422
  %2047 = vmatprep.subr.bf16.mxu0 %v1421
  %2048 = vmatpush2.bf16.msra.mxu0 %v1420
  %2049 = vmatprep.subr.bf16.mxu0 %v1419
  %2050 = vmatpush2.bf16.msra.mxu0 %v1418
  %2051 = vmatprep.mubr.bf16.mxu0 %v421
  %2052 = vmatmul.mubr.bf16.gmra.mxu0 %v420
  %v2053 = vpop.f32.mrf.mxu0
  %v2054 = vadd.f32 %v2001, %v2053
  %v2055 = vpop.f32.mrf.mxu0
  %v2056 = vadd.f32 %v2003, %v2055
  %v2057 = vpop.f32.mrf.mxu0
  %v2058 = vadd.f32 %v2005, %v2057
  %v2059 = vpop.f32.mrf.mxu0
  %v2060 = vadd.f32 %v2007, %v2059
  %2061 = vmatprep.mubr.bf16.mxu0 %v437
  %2062 = vmatmul.mubr.bf16.gmra.mxu0 %v436
  %v2063 = vpop.f32.mrf.mxu0
  %v2064 = vadd.f32 %v2011, %v2063
  %v2065 = vpop.f32.mrf.mxu0
  %v2066 = vadd.f32 %v2013, %v2065
  %v2067 = vpop.f32.mrf.mxu0
  %v2068 = vadd.f32 %v2015, %v2067
  %v2069 = vpop.f32.mrf.mxu0
  %v2070 = vadd.f32 %v2017, %v2069
  %2071 = vdwg.mxu0
  %2072 = vmatprep.subr.bf16.mxu0 %v1449
  %2073 = vmatpush1.bf16.msra.mxu0 %v1448
  %2074 = vmatprep.subr.bf16.mxu0 %v1447
  %2075 = vmatpush1.bf16.msra.mxu0 %v1446
  %2076 = vmatprep.subr.bf16.mxu0 %v1445
  %2077 = vmatpush1.bf16.msra.mxu0 %v1444
  %2078 = vmatprep.subr.bf16.mxu0 %v1443
  %2079 = vmatpush1.bf16.msra.mxu0 %v1442
  %2080 = vmatprep.subr.bf16.mxu0 %v1441
  %2081 = vmatpush1.bf16.msra.mxu0 %v1440
  %2082 = vmatprep.subr.bf16.mxu0 %v1439
  %2083 = vmatpush1.bf16.msra.mxu0 %v1438
  %2084 = vmatprep.subr.bf16.mxu0 %v1437
  %2085 = vmatpush1.bf16.msra.mxu0 %v1436
  %2086 = vmatprep.subr.bf16.mxu0 %v1435
  %2087 = vmatpush1.bf16.msra.mxu0 %v1434
  %2088 = vmatprep.subr.bf16.mxu0 %v1465
  %2089 = vmatpush2.bf16.msra.mxu0 %v1464
  %2090 = vmatprep.subr.bf16.mxu0 %v1463
  %2091 = vmatpush2.bf16.msra.mxu0 %v1462
  %2092 = vmatprep.subr.bf16.mxu0 %v1461
  %2093 = vmatpush2.bf16.msra.mxu0 %v1460
  %2094 = vmatprep.subr.bf16.mxu0 %v1459
  %2095 = vmatpush2.bf16.msra.mxu0 %v1458
  %2096 = vmatprep.subr.bf16.mxu0 %v1457
  %2097 = vmatpush2.bf16.msra.mxu0 %v1456
  %2098 = vmatprep.subr.bf16.mxu0 %v1455
  %2099 = vmatpush2.bf16.msra.mxu0 %v1454
  %2100 = vmatprep.subr.bf16.mxu0 %v1453
  %2101 = vmatpush2.bf16.msra.mxu0 %v1452
  %2102 = vmatprep.subr.bf16.mxu0 %v1451
  %2103 = vmatpush2.bf16.msra.mxu0 %v1450
  %2104 = vmatprep.mubr.bf16.mxu0 %v423
  %2105 = vmatmul.mubr.bf16.gmra.mxu0 %v422
  %v2106 = vpop.f32.mrf.mxu0
  %v2107 = vadd.f32 %v2054, %v2106
  %v2108 = vpop.f32.mrf.mxu0
  %v2109 = vadd.f32 %v2056, %v2108
  %v2110 = vpop.f32.mrf.mxu0
  %v2111 = vadd.f32 %v2058, %v2110
  %v2112 = vpop.f32.mrf.mxu0
  %v2113 = vadd.f32 %v2060, %v2112
  %2114 = vmatprep.mubr.bf16.mxu0 %v439
  %2115 = vmatmul.mubr.bf16.gmra.mxu0 %v438
  %v2116 = vpop.f32.mrf.mxu0
  %v2117 = vadd.f32 %v2064, %v2116
  %v2118 = vpop.f32.mrf.mxu0
  %v2119 = vadd.f32 %v2066, %v2118
  %v2120 = vpop.f32.mrf.mxu0
  %v2121 = vadd.f32 %v2068, %v2120
  %v2122 = vpop.f32.mrf.mxu0
  %v2123 = vadd.f32 %v2070, %v2122
  %2124 = vdwg.mxu0
  %2125 = vmatprep.subr.bf16.mxu0 %v1481
  %2126 = vmatpush1.bf16.msra.mxu0 %v1480
  %2127 = vmatprep.subr.bf16.mxu0 %v1479
  %2128 = vmatpush1.bf16.msra.mxu0 %v1478
  %2129 = vmatprep.subr.bf16.mxu0 %v1477
  %2130 = vmatpush1.bf16.msra.mxu0 %v1476
  %2131 = vmatprep.subr.bf16.mxu0 %v1475
  %2132 = vmatpush1.bf16.msra.mxu0 %v1474
  %2133 = vmatprep.subr.bf16.mxu0 %v1473
  %2134 = vmatpush1.bf16.msra.mxu0 %v1472
  %2135 = vmatprep.subr.bf16.mxu0 %v1471
  %2136 = vmatpush1.bf16.msra.mxu0 %v1470
  %2137 = vmatprep.subr.bf16.mxu0 %v1469
  %2138 = vmatpush1.bf16.msra.mxu0 %v1468
  %2139 = vmatprep.subr.bf16.mxu0 %v1467
  %2140 = vmatpush1.bf16.msra.mxu0 %v1466
  %2141 = vmatprep.subr.bf16.mxu0 %v1497
  %2142 = vmatpush2.bf16.msra.mxu0 %v1496
  %2143 = vmatprep.subr.bf16.mxu0 %v1495
  %2144 = vmatpush2.bf16.msra.mxu0 %v1494
  %2145 = vmatprep.subr.bf16.mxu0 %v1493
  %2146 = vmatpush2.bf16.msra.mxu0 %v1492
  %2147 = vmatprep.subr.bf16.mxu0 %v1491
  %2148 = vmatpush2.bf16.msra.mxu0 %v1490
  %2149 = vmatprep.subr.bf16.mxu0 %v1489
  %2150 = vmatpush2.bf16.msra.mxu0 %v1488
  %2151 = vmatprep.subr.bf16.mxu0 %v1487
  %2152 = vmatpush2.bf16.msra.mxu0 %v1486
  %2153 = vmatprep.subr.bf16.mxu0 %v1485
  %2154 = vmatpush2.bf16.msra.mxu0 %v1484
  %2155 = vmatprep.subr.bf16.mxu0 %v1483
  %2156 = vmatpush2.bf16.msra.mxu0 %v1482
  %2157 = vmatprep.mubr.bf16.mxu0 %v425
  %2158 = vmatmul.mubr.bf16.gmra.mxu0 %v424
  %v2159 = vpop.f32.mrf.mxu0
  %v2160 = vadd.f32 %v2107, %v2159
  %v2161 = vpop.f32.mrf.mxu0
  %v2162 = vadd.f32 %v2109, %v2161
  %v2163 = vpop.f32.mrf.mxu0
  %v2164 = vadd.f32 %v2111, %v2163
  %v2165 = vpop.f32.mrf.mxu0
  %v2166 = vadd.f32 %v2113, %v2165
  %2167 = vmatprep.mubr.bf16.mxu0 %v441
  %2168 = vmatmul.mubr.bf16.gmra.mxu0 %v440
  %v2169 = vpop.f32.mrf.mxu0
  %v2170 = vadd.f32 %v2117, %v2169
  %v2171 = vpop.f32.mrf.mxu0
  %v2172 = vadd.f32 %v2119, %v2171
  %v2173 = vpop.f32.mrf.mxu0
  %v2174 = vadd.f32 %v2121, %v2173
  %v2175 = vpop.f32.mrf.mxu0
  %v2176 = vadd.f32 %v2123, %v2175
  %2177 = vdwg.mxu0
  %vm2178 = vcmp.ge.f32.partialorder %v2160, 0.0
  %vm2179 = vcmp.ge.f32.partialorder %v2162, 0.0
  %vm2180 = vcmp.ge.f32.partialorder %v2164, 0.0
  %vm2181 = vcmp.ge.f32.partialorder %v2166, 0.0
  %vm2182 = vcmp.ge.f32.partialorder %v2170, 0.0
  %vm2183 = vcmp.ge.f32.partialorder %v2172, 0.0
  %vm2184 = vcmp.ge.f32.partialorder %v2174, 0.0
  %vm2185 = vcmp.ge.f32.partialorder %v2176, 0.0
  %v2186 = vmul.f32 %v2160, 0.2
  %v2187 = vmul.f32 %v2162, 0.2
  %v2188 = vmul.f32 %v2164, 0.2
  %v2189 = vmul.f32 %v2166, 0.2
  %v2190 = vmul.f32 %v2170, 0.2
  %v2191 = vmul.f32 %v2172, 0.2
  %v2192 = vmul.f32 %v2174, 0.2
  %v2193 = vmul.f32 %v2176, 0.2
  %v2194 = vsel %vm2178, %v2160, %v2186
  %v2195 = vsel %vm2179, %v2162, %v2187
  %v2196 = vsel %vm2180, %v2164, %v2188
  %v2197 = vsel %vm2181, %v2166, %v2189
  %v2198 = vsel %vm2182, %v2170, %v2190
  %v2199 = vsel %vm2183, %v2172, %v2191
  %v2200 = vsel %vm2184, %v2174, %v2192
  %v2201 = vsel %vm2185, %v2176, %v2193
  %v2202 = vpack.c.bf16 %v2196, %v2194
  %v2203 = vpack.c.bf16 %v2197, %v2195
  %v2204 = vpack.c.bf16 %v2200, %v2198
  %v2205 = vpack.c.bf16 %v2201, %v2199
  %v2210 = vunpack.c.l.b16 %v2202
  %v2211 = vunpack.c.l.b16 %v2203
  %v2212 = vunpack.c.h.b16 %v2202
  %v2213 = vunpack.c.h.b16 %v2203
  %v2214 = vunpack.c.l.b16 %v2204
  %v2215 = vunpack.c.l.b16 %v2205
  %v2216 = vunpack.c.h.b16 %v2204
  %v2217 = vunpack.c.h.b16 %v2205
  %v2218 = vpack.c.b16 %v2211, %v2210
  %v2219 = vpack.c.b16 %v2213, %v2212
  %v2220 = vpack.c.b16 %v2215, %v2214
  %v2221 = vpack.c.b16 %v2217, %v2216
  %2226 = vst [vmem:[%s3] sm:$0xff] %v2218
  %2227 = vst [vmem:[%s3 + $0x8] sm:$0xff] %v2219
  %2228 = vst [vmem:[%s3 + $0x10] sm:$0xff] %v2220
  %2229 = vst [vmem:[%s3 + $0x18] sm:$0xff] %v2221
  // Predicated region
  $region14: #{discriminator_forward.7} parent=0 // pred_check
    _
  $region15: #{discriminator_forward.7} parent=0 // pred_check_branch
    %2231 = sbr.rel (0) target = $region17
  $region16: #{discriminator_forward.7} parent=0 // pred_region
    _
  $region17: #{discriminator_forward.7} parent=0 // pred_fallthru
    _
  // Predicated region
  $region18: #{discriminator_forward.7} parent=0 // pred_check
    _
  $region19: #{discriminator_forward.7} parent=0 // pred_check_branch
    %2233 = sbr.rel (0) target = $region21
  $region20: #{discriminator_forward.7} parent=0 // pred_region
    _
  $region21: #{discriminator_forward.7} parent=0 // pred_fallthru
    _

// kernel: discriminator_forward.8
$region0: #{discriminator_forward.8}
  #allocation0 [shape = 'u32[]', space=smem, size = 0x4, offset = 0x4, fixed_abs, tag = 'smem constant byte address 0x4 - core index']
  #allocation1 [shape = 'u32[144,128]{1,0:T(1,128)}', space=vmem, size = 0x12000, scoped, tag = 'internal scratch']
  #allocation2 [shape = 'f32[8,512]{1,0:T(8,128)}', space=vmem, size = 0x4000, scoped, tag = 'scratch operand']
  %s0 = inlined_call_operand.vmem [shape: bf16[8,4096], index: 0, kind: input, shape index: {}]
  %s1 = inlined_call_operand.vmem [shape: bf16[4096,512], index: 1, kind: input, shape index: {}]
  %s2 = inlined_call_operand.vmem [shape: f32[1,512], index: 2, kind: input, shape index: {}]
  %s3 = inlined_call_operand.vmem [shape: bf16[8,512], index: 3, kind: output, shape index: {}]
  %s4 = sld [smem:[#allocation0]]
  $region53: #{discriminator_forward.8} parent=0
    _
  %s6 = ssub.s32 1, %s4
  %s7 = scalar_select 0, %s6, %s4
  loop: start=0, step=1, limit=4
  $region2: #{discriminator_forward.8} parent=0 // loop_pre_header
    _
  $region3: #{discriminator_forward.8} parent=0 // loop_header
    %s9 = sphi 0, %s13
    %p10 = scmp.ge.s32.totalorder %s9, 4
    %s16 = sphi 0, %s28
    %s17 = sphi 0, %s24
    %s18 = sphi 0, %s16
    %s19 = sphi 0, %s17
    %s20 = sphi 0, %s18
    %s21 = sphi 0, %s19
    %s33 = sphi 0, %s35
    %s36 = sphi 0, %s33
    %s37 = sphi 0, %s36
    %s53 = sphi 0, %s37
    %s59 = sphi 0, %s61
    %s62 = sphi 0, %s59
    %s63 = sphi 0, %s62
    %s79 = sphi 0, %s63
    %s83 = sphi 0, %s83
    %s85 = sphi 0, %s83
    %s86 = sphi 0, %s85
    %s100 = sphi 0, %s86
    %s106 = sphi 0, %s108
    %s109 = sphi 0, %s106
    %s110 = sphi 0, %s109
    %s126 = sphi 0, %s110
  $region4: #{discriminator_forward.8} parent=0 // loop_header_branch
    %12 = sbr.rel (%p10) target = $region8
  $region5: #{discriminator_forward.8} parent=0 // loop_body
    %s14 = ssub.s32 %s9, 1
    %s15 = ssub.s32 %s9, 2
    %s22 = sadd.s32 1, %s17
    %p23 = scmp.ge.s32.totalorder %s22, 2
    %s24 = scalar_select %p23, 0, %s22
    %s25 = sadd.s32 1, %s16
    %s26 = scalar_select %p23, %s25, %s16
    %p27 = scmp.ge.s32.totalorder %s26, 1
    %s28 = scalar_select %p27, 0, %s26
    %s29 = ssub.s32 %s16, %s28
    %s30 = ssub.s32 %s17, %s24
    %s31 = sor.u32 %s29, %s30
    %p32 = scmp.eq.s32.totalorder %s31, 0
    %s34 = sadd.s32 %s33, 1
    %s35 = scalar_select %p32, %s33, %s34
    %p38 = pneg %p32
    %p39 = scmp.eq.s32.totalorder %s9, 1
    %p40 = por %p38, %p39
    %p41 = scmp.ne.s32.totalorder %s33, %s36
    %p42 = scmp.eq.s32.totalorder %s9, 0
    %p43 = por %p41, %p42
    %p44 = scmp.ne.s32.totalorder %s33, %s36
    %p45 = scmp.eq.s32.totalorder %s14, 1
    %p46 = por %p44, %p45
    %p47 = scmp.ne.s32.totalorder %s36, %s37
    %p48 = scmp.eq.s32.totalorder %s14, 0
    %p49 = por %p47, %p48
    %p50 = scmp.ne.s32.totalorder %s36, %s37
    %p51 = scmp.eq.s32.totalorder %s15, 1
    %p52 = por %p50, %p51
    %p54 = scmp.ne.s32.totalorder %s37, %s53
    %p55 = scmp.eq.s32.totalorder %s15, 0
    %p56 = por %p54, %p55
    %s57 = ssub.s32 %s17, %s24
    %p58 = scmp.eq.s32.totalorder %s57, 0
    %s60 = sadd.s32 %s59, 1
    %s61 = scalar_select %p58, %s59, %s60
    %p64 = pneg %p58
    %p65 = scmp.eq.s32.totalorder %s9, 1
    %p66 = por %p64, %p65
    %p67 = scmp.ne.s32.totalorder %s59, %s62
    %p68 = scmp.eq.s32.totalorder %s9, 0
    %p69 = por %p67, %p68
    %p70 = scmp.ne.s32.totalorder %s59, %s62
    %p71 = scmp.eq.s32.totalorder %s14, 1
    %p72 = por %p70, %p71
    %p73 = scmp.ne.s32.totalorder %s62, %s63
    %p74 = scmp.eq.s32.totalorder %s14, 0
    %p75 = por %p73, %p74
    %p76 = scmp.ne.s32.totalorder %s62, %s63
    %p77 = scmp.eq.s32.totalorder %s15, 1
    %p78 = por %p76, %p77
    %p80 = scmp.ne.s32.totalorder %s63, %s79
    %p81 = scmp.eq.s32.totalorder %s15, 0
    %p82 = por %p80, %p81
    %s84 = sadd.s32 %s83, 1
    %p87 = scmp.eq.s32.totalorder %s9, 1
    %p88 = scmp.ne.s32.totalorder %s83, %s85
    %p89 = scmp.eq.s32.totalorder %s9, 0
    %p90 = por %p88, %p89
    %p91 = scmp.ne.s32.totalorder %s83, %s85
    %p92 = scmp.eq.s32.totalorder %s14, 1
    %p93 = por %p91, %p92
    %p94 = scmp.ne.s32.totalorder %s85, %s86
    %p95 = scmp.eq.s32.totalorder %s14, 0
    %p96 = por %p94, %p95
    %p97 = scmp.ne.s32.totalorder %s85, %s86
    %p98 = scmp.eq.s32.totalorder %s15, 1
    %p99 = por %p97, %p98
    %p101 = scmp.ne.s32.totalorder %s86, %s100
    %p102 = scmp.eq.s32.totalorder %s15, 0
    %p103 = por %p101, %p102
    %s104 = ssub.s32 %s16, %s28
    %p105 = scmp.eq.s32.totalorder %s104, 0
    %s107 = sadd.s32 %s106, 1
    %s108 = scalar_select %p105, %s106, %s107
    %p111 = pneg %p105
    %p112 = scmp.eq.s32.totalorder %s9, 1
    %p113 = por %p111, %p112
    %p114 = scmp.ne.s32.totalorder %s106, %s109
    %p115 = scmp.eq.s32.totalorder %s9, 0
    %p116 = por %p114, %p115
    %p117 = scmp.ne.s32.totalorder %s106, %s109
    %p118 = scmp.eq.s32.totalorder %s14, 1
    %p119 = por %p117, %p118
    %p120 = scmp.ne.s32.totalorder %s109, %s110
    %p121 = scmp.eq.s32.totalorder %s14, 0
    %p122 = por %p120, %p121
    %p123 = scmp.ne.s32.totalorder %s109, %s110
    %p124 = scmp.eq.s32.totalorder %s15, 1
    %p125 = por %p123, %p124
    %p127 = scmp.ne.s32.totalorder %s110, %s126
    %p128 = scmp.eq.s32.totalorder %s15, 0
    %p129 = por %p127, %p128
    %p130 = scmp.le.s32.totalorder 1, %s9
    %p131 = scmp.lt.s32.totalorder %s9, 3
    %p132 = pnand %p130, %p131
    %p133 = pneg %p132
    // Predicated region
    $region9: #{discriminator_forward.8} parent=5 // pred_check
      _
    $region10: #{discriminator_forward.8} parent=5 // pred_check_branch
      %135 = sbr.rel (%p132) target = $region12
    $region11: #{discriminator_forward.8} parent=5 // pred_region
      %s136 = ssub.s32 %s9, 1
      // Predicated region
      $region13: #{discriminator_forward.8} parent=11 // pred_check
        %p137 = pneg %p96
      $region14: #{discriminator_forward.8} parent=11 // pred_check_branch
        %139 = sbr.rel (%p137) target = $region16
      $region15: #{discriminator_forward.8} parent=11 // pred_region
        _
      $region16: #{discriminator_forward.8} parent=11 // pred_fallthru
        _
    $region12: #{discriminator_forward.8} parent=5 // pred_fallthru
      _
    %p140 = scmp.lt.s32.totalorder %s9, 2
    // Predicated region
    $region17: #{discriminator_forward.8} parent=5 // pred_check
      %p141 = pneg %p140
    $region18: #{discriminator_forward.8} parent=5 // pred_check_branch
      %143 = sbr.rel (%p141) target = $region20
    $region19: #{discriminator_forward.8} parent=5 // pred_region
      // Predicated region
      $region21: #{discriminator_forward.8} parent=19 // pred_check
        %p144 = pneg %p43
      $region22: #{discriminator_forward.8} parent=19 // pred_check_branch
        %146 = sbr.rel (%p144) target = $region24
      $region23: #{discriminator_forward.8} parent=19 // pred_region
        %s147 = smul.u32 16, %s17
        %p148 = scmp.lt.s32.totalorder %s16, 0
        %s149 = scalar_select %p148, %s16, 0
        %p150 = scmp.lt.s32.totalorder %s147, 31
        %s151 = scalar_select %p150, %s147, 31
        %s152 = smul.addr %s149, 32
        %s153 = sadd.s32 %s151, %s152
        %s154 = smul.addr %s153, 4
        %s155 = scalar_lea.vmem %s0, %s154
        %s156 = smul.u32 16, %s17
      $region24: #{discriminator_forward.8} parent=19 // pred_fallthru
        _
      // Predicated region
      $region25: #{discriminator_forward.8} parent=19 // pred_check
        %p157 = pneg %p69
      $region26: #{discriminator_forward.8} parent=19 // pred_check_branch
        %159 = sbr.rel (%p157) target = $region28
      $region27: #{discriminator_forward.8} parent=19 // pred_region
        %s160 = smul.u32 256, %s17
        %p161 = scmp.lt.s32.totalorder %s160, 511
        %s162 = scalar_select %p161, %s160, 511
        %s163 = smul.addr %s162, 4
        %s164 = smul.addr %s163, 4
        %s165 = scalar_lea.vmem %s1, %s164
        %s166 = smul.u32 256, %s17
      $region28: #{discriminator_forward.8} parent=19 // pred_fallthru
        _
    $region20: #{discriminator_forward.8} parent=5 // pred_fallthru
      _
    %p167 = scmp.le.s32.totalorder 1, %s9
    %p168 = scmp.lt.s32.totalorder %s9, 3
    %p169 = pnand %p167, %p168
    %p170 = pneg %p169
    // Predicated region
    $region29: #{discriminator_forward.8} parent=5 // pred_check
      _
    $region30: #{discriminator_forward.8} parent=5 // pred_check_branch
      %172 = sbr.rel (%p169) target = $region32
    $region31: #{discriminator_forward.8} parent=5 // pred_region
      %s173 = ssub.s32 %s9, 1
      %s174 = smul.u32 16, %s19
      %p175 = scmp.lt.s32.totalorder %s18, 0
      %s176 = scalar_select %p175, %s18, 0
      %p177 = scmp.lt.s32.totalorder %s174, 31
      %s178 = scalar_select %p177, %s174, 31
      %s179 = smul.addr %s176, 32
      %s180 = sadd.s32 %s178, %s179
      %s181 = smul.addr %s180, 4
      %s182 = scalar_lea.vmem %s0, %s181
      %p183 = pneg %p49
      %p184 = pneg %p46
      %s185 = smul.u32 256, %s19
      %p186 = scmp.lt.s32.totalorder %s185, 511
      %s187 = scalar_select %p186, %s185, 511
      %s188 = smul.addr %s187, 4
      %s189 = smul.addr %s188, 4
      %s190 = scalar_lea.vmem %s1, %s189
      %p191 = pneg %p75
      %p192 = pneg %p72
      %p193 = pneg %p96
      %p194 = pneg %p93
      %p195 = pneg %p122
      %p196 = pneg %p119
      %p197 = scmp.lt.s32.totalorder %s18, 0
      %s198 = scalar_select %p197, %s18, 0
      %s199 = smul.addr %s198, 4
      %s200 = smul.addr %s199, 4
      %s201 = scalar_lea.vmem %s3, %s200
      %s202 = smul.u32 16, %s19
      %p203 = scmp.lt.s32.totalorder %s18, 0
      %s204 = scalar_select %p203, %s18, 0
      %p205 = scmp.lt.s32.totalorder %s202, 31
      %s206 = scalar_select %p205, %s202, 31
      %s207 = smul.addr %s204, 32
      %s208 = sadd.s32 %s206, %s207
      %s209 = smul.addr %s208, 4
      %s210 = scalar_lea.vmem %s0, %s209
      %s211 = smul.u32 16, %s19
      %s212 = smul.u32 256, %s19
      %p213 = scmp.lt.s32.totalorder %s212, 511
      %s214 = scalar_select %p213, %s212, 511
      %s215 = smul.addr %s214, 4
      %s216 = smul.addr %s215, 4
      %s217 = scalar_lea.vmem %s1, %s216
      %s218 = smul.u32 256, %s19
      %p219 = scmp.lt.s32.totalorder %s18, 0
      %s220 = scalar_select %p219, %s18, 0
      %s221 = smul.addr %s220, 4
      %s222 = smul.addr %s221, 4
      %s223 = scalar_lea.vmem %s3, %s222
      %p224 = scmp.eq.s32.totalorder %s19, 0
      // Predicated region
      $region33: #{discriminator_forward.8} parent=31 // pred_check
        %p225 = pneg %p224
      $region34: #{discriminator_forward.8} parent=31 // pred_check_branch
        %227 = sbr.rel (%p225) target = $region36
      $region35: #{discriminator_forward.8} parent=31 // pred_region
        %228 = vst [vmem:[#allocation2] sm:$0xff] 0.0
        %229 = vst [vmem:[#allocation2 + $0x8] sm:$0xff] 0.0
        %230 = vst [vmem:[#allocation2 + $0x10] sm:$0xff] 0.0
        %231 = vst [vmem:[#allocation2 + $0x18] sm:$0xff] 0.0
      $region36: #{discriminator_forward.8} parent=31 // pred_fallthru
        _
      %v232 = vld [vmem:[#allocation2] sm:$0xff]
      %v233 = vld [vmem:[#allocation2 + $0x8] sm:$0xff]
      %v234 = vld [vmem:[#allocation2 + $0x10] sm:$0xff]
      %v235 = vld [vmem:[#allocation2 + $0x18] sm:$0xff]
      %v236 = vld [vmem:[%s210] sm:$0xff]
      %v237 = vld [vmem:[%s210 + $0x8] sm:$0xff]
      %v238 = vld [vmem:[%s210 + $0x10] sm:$0xff]
      %v239 = vld [vmem:[%s210 + $0x18] sm:$0xff]
      %v240 = vld [vmem:[%s210 + $0x20] sm:$0xff]
      %v241 = vld [vmem:[%s210 + $0x28] sm:$0xff]
      %v242 = vld [vmem:[%s210 + $0x30] sm:$0xff]
      %v243 = vld [vmem:[%s210 + $0x38] sm:$0xff]
      %v244 = vld [vmem:[%s217] sm:$0xff]
      %v245 = vld [vmem:[%s217 + $0x8] sm:$0xff]
      %v246 = vld [vmem:[%s217 + $0x10] sm:$0xff]
      %v247 = vld [vmem:[%s217 + $0x18] sm:$0xff]
      %v248 = vld [vmem:[%s217 + $0x20] sm:$0xff]
      %v249 = vld [vmem:[%s217 + $0x28] sm:$0xff]
      %v250 = vld [vmem:[%s217 + $0x30] sm:$0xff]
      %v251 = vld [vmem:[%s217 + $0x38] sm:$0xff]
      %v252 = vld [vmem:[%s217 + $0x40] sm:$0xff]
      %v253 = vld [vmem:[%s217 + $0x48] sm:$0xff]
      %v254 = vld [vmem:[%s217 + $0x50] sm:$0xff]
      %v255 = vld [vmem:[%s217 + $0x58] sm:$0xff]
      %v256 = vld [vmem:[%s217 + $0x60] sm:$0xff]
      %v257 = vld [vmem:[%s217 + $0x68] sm:$0xff]
      %v258 = vld [vmem:[%s217 + $0x70] sm:$0xff]
      %v259 = vld [vmem:[%s217 + $0x78] sm:$0xff]
      %v260 = vld [vmem:[%s217 + $0x80] sm:$0xff]
      %v261 = vld [vmem:[%s217 + $0x88] sm:$0xff]
      %v262 = vld [vmem:[%s217 + $0x90] sm:$0xff]
      %v263 = vld [vmem:[%s217 + $0x98] sm:$0xff]
      %v264 = vld [vmem:[%s217 + $0xa0] sm:$0xff]
      %v265 = vld [vmem:[%s217 + $0xa8] sm:$0xff]
      %v266 = vld [vmem:[%s217 + $0xb0] sm:$0xff]
      %v267 = vld [vmem:[%s217 + $0xb8] sm:$0xff]
      %v268 = vld [vmem:[%s217 + $0xc0] sm:$0xff]
      %v269 = vld [vmem:[%s217 + $0xc8] sm:$0xff]
      %v270 = vld [vmem:[%s217 + $0xd0] sm:$0xff]
      %v271 = vld [vmem:[%s217 + $0xd8] sm:$0xff]
      %v272 = vld [vmem:[%s217 + $0xe0] sm:$0xff]
      %v273 = vld [vmem:[%s217 + $0xe8] sm:$0xff]
      %v274 = vld [vmem:[%s217 + $0xf0] sm:$0xff]
      %v275 = vld [vmem:[%s217 + $0xf8] sm:$0xff]
      %v276 = vld [vmem:[%s217 + $0x100] sm:$0xff]
      %v277 = vld [vmem:[%s217 + $0x108] sm:$0xff]
      %v278 = vld [vmem:[%s217 + $0x110] sm:$0xff]
      %v279 = vld [vmem:[%s217 + $0x118] sm:$0xff]
      %v280 = vld [vmem:[%s217 + $0x120] sm:$0xff]
      %v281 = vld [vmem:[%s217 + $0x128] sm:$0xff]
      %v282 = vld [vmem:[%s217 + $0x130] sm:$0xff]
      %v283 = vld [vmem:[%s217 + $0x138] sm:$0xff]
      %v284 = vld [vmem:[%s217 + $0x140] sm:$0xff]
      %v285 = vld [vmem:[%s217 + $0x148] sm:$0xff]
      %v286 = vld [vmem:[%s217 + $0x150] sm:$0xff]
      %v287 = vld [vmem:[%s217 + $0x158] sm:$0xff]
      %v288 = vld [vmem:[%s217 + $0x160] sm:$0xff]
      %v289 = vld [vmem:[%s217 + $0x168] sm:$0xff]
      %v290 = vld [vmem:[%s217 + $0x170] sm:$0xff]
      %v291 = vld [vmem:[%s217 + $0x178] sm:$0xff]
      %v292 = vld [vmem:[%s217 + $0x180] sm:$0xff]
      %v293 = vld [vmem:[%s217 + $0x188] sm:$0xff]
      %v294 = vld [vmem:[%s217 + $0x190] sm:$0xff]
      %v295 = vld [vmem:[%s217 + $0x198] sm:$0xff]
      %v296 = vld [vmem:[%s217 + $0x1a0] sm:$0xff]
      %v297 = vld [vmem:[%s217 + $0x1a8] sm:$0xff]
      %v298 = vld [vmem:[%s217 + $0x1b0] sm:$0xff]
      %v299 = vld [vmem:[%s217 + $0x1b8] sm:$0xff]
      %v300 = vld [vmem:[%s217 + $0x1c0] sm:$0xff]
      %v301 = vld [vmem:[%s217 + $0x1c8] sm:$0xff]
      %v302 = vld [vmem:[%s217 + $0x1d0] sm:$0xff]
      %v303 = vld [vmem:[%s217 + $0x1d8] sm:$0xff]
      %v304 = vld [vmem:[%s217 + $0x1e0] sm:$0xff]
      %v305 = vld [vmem:[%s217 + $0x1e8] sm:$0xff]
      %v306 = vld [vmem:[%s217 + $0x1f0] sm:$0xff]
      %v307 = vld [vmem:[%s217 + $0x1f8] sm:$0xff]
      %v308 = vld [vmem:[%s217 + $0x200] sm:$0xff]
      %v309 = vld [vmem:[%s217 + $0x208] sm:$0xff]
      %v310 = vld [vmem:[%s217 + $0x210] sm:$0xff]
      %v311 = vld [vmem:[%s217 + $0x218] sm:$0xff]
      %v312 = vld [vmem:[%s217 + $0x220] sm:$0xff]
      %v313 = vld [vmem:[%s217 + $0x228] sm:$0xff]
      %v314 = vld [vmem:[%s217 + $0x230] sm:$0xff]
      %v315 = vld [vmem:[%s217 + $0x238] sm:$0xff]
      %v316 = vld [vmem:[%s217 + $0x240] sm:$0xff]
      %v317 = vld [vmem:[%s217 + $0x248] sm:$0xff]
      %v318 = vld [vmem:[%s217 + $0x250] sm:$0xff]
      %v319 = vld [vmem:[%s217 + $0x258] sm:$0xff]
      %v320 = vld [vmem:[%s217 + $0x260] sm:$0xff]
      %v321 = vld [vmem:[%s217 + $0x268] sm:$0xff]
      %v322 = vld [vmem:[%s217 + $0x270] sm:$0xff]
      %v323 = vld [vmem:[%s217 + $0x278] sm:$0xff]
      %v324 = vld [vmem:[%s217 + $0x280] sm:$0xff]
      %v325 = vld [vmem:[%s217 + $0x288] sm:$0xff]
      %v326 = vld [vmem:[%s217 + $0x290] sm:$0xff]
      %v327 = vld [vmem:[%s217 + $0x298] sm:$0xff]
      %v328 = vld [vmem:[%s217 + $0x2a0] sm:$0xff]
      %v329 = vld [vmem:[%s217 + $0x2a8] sm:$0xff]
      %v330 = vld [vmem:[%s217 + $0x2b0] sm:$0xff]
      %v331 = vld [vmem:[%s217 + $0x2b8] sm:$0xff]
      %v332 = vld [vmem:[%s217 + $0x2c0] sm:$0xff]
      %v333 = vld [vmem:[%s217 + $0x2c8] sm:$0xff]
      %v334 = vld [vmem:[%s217 + $0x2d0] sm:$0xff]
      %v335 = vld [vmem:[%s217 + $0x2d8] sm:$0xff]
      %v336 = vld [vmem:[%s217 + $0x2e0] sm:$0xff]
      %v337 = vld [vmem:[%s217 + $0x2e8] sm:$0xff]
      %v338 = vld [vmem:[%s217 + $0x2f0] sm:$0xff]
      %v339 = vld [vmem:[%s217 + $0x2f8] sm:$0xff]
      %v340 = vld [vmem:[%s217 + $0x300] sm:$0xff]
      %v341 = vld [vmem:[%s217 + $0x308] sm:$0xff]
      %v342 = vld [vmem:[%s217 + $0x310] sm:$0xff]
      %v343 = vld [vmem:[%s217 + $0x318] sm:$0xff]
      %v344 = vld [vmem:[%s217 + $0x320] sm:$0xff]
      %v345 = vld [vmem:[%s217 + $0x328] sm:$0xff]
      %v346 = vld [vmem:[%s217 + $0x330] sm:$0xff]
      %v347 = vld [vmem:[%s217 + $0x338] sm:$0xff]
      %v348 = vld [vmem:[%s217 + $0x340] sm:$0xff]
      %v349 = vld [vmem:[%s217 + $0x348] sm:$0xff]
      %v350 = vld [vmem:[%s217 + $0x350] sm:$0xff]
      %v351 = vld [vmem:[%s217 + $0x358] sm:$0xff]
      %v352 = vld [vmem:[%s217 + $0x360] sm:$0xff]
      %v353 = vld [vmem:[%s217 + $0x368] sm:$0xff]
      %v354 = vld [vmem:[%s217 + $0x370] sm:$0xff]
      %v355 = vld [vmem:[%s217 + $0x378] sm:$0xff]
      %v356 = vld [vmem:[%s217 + $0x380] sm:$0xff]
      %v357 = vld [vmem:[%s217 + $0x388] sm:$0xff]
      %v358 = vld [vmem:[%s217 + $0x390] sm:$0xff]
      %v359 = vld [vmem:[%s217 + $0x398] sm:$0xff]
      %v360 = vld [vmem:[%s217 + $0x3a0] sm:$0xff]
      %v361 = vld [vmem:[%s217 + $0x3a8] sm:$0xff]
      %v362 = vld [vmem:[%s217 + $0x3b0] sm:$0xff]
      %v363 = vld [vmem:[%s217 + $0x3b8] sm:$0xff]
      %v364 = vld [vmem:[%s217 + $0x3c0] sm:$0xff]
      %v365 = vld [vmem:[%s217 + $0x3c8] sm:$0xff]
      %v366 = vld [vmem:[%s217 + $0x3d0] sm:$0xff]
      %v367 = vld [vmem:[%s217 + $0x3d8] sm:$0xff]
      %v368 = vld [vmem:[%s217 + $0x3e0] sm:$0xff]
      %v369 = vld [vmem:[%s217 + $0x3e8] sm:$0xff]
      %v370 = vld [vmem:[%s217 + $0x3f0] sm:$0xff]
      %v371 = vld [vmem:[%s217 + $0x3f8] sm:$0xff]
      %v372 = vld [vmem:[%s217 + $0x400] sm:$0xff]
      %v373 = vld [vmem:[%s217 + $0x408] sm:$0xff]
      %v374 = vld [vmem:[%s217 + $0x410] sm:$0xff]
      %v375 = vld [vmem:[%s217 + $0x418] sm:$0xff]
      %v376 = vld [vmem:[%s217 + $0x420] sm:$0xff]
      %v377 = vld [vmem:[%s217 + $0x428] sm:$0xff]
      %v378 = vld [vmem:[%s217 + $0x430] sm:$0xff]
      %v379 = vld [vmem:[%s217 + $0x438] sm:$0xff]
      %v380 = vld [vmem:[%s217 + $0x440] sm:$0xff]
      %v381 = vld [vmem:[%s217 + $0x448] sm:$0xff]
      %v382 = vld [vmem:[%s217 + $0x450] sm:$0xff]
      %v383 = vld [vmem:[%s217 + $0x458] sm:$0xff]
      %v384 = vld [vmem:[%s217 + $0x460] sm:$0xff]
      %v385 = vld [vmem:[%s217 + $0x468] sm:$0xff]
      %v386 = vld [vmem:[%s217 + $0x470] sm:$0xff]
      %v387 = vld [vmem:[%s217 + $0x478] sm:$0xff]
      %v388 = vld [vmem:[%s217 + $0x480] sm:$0xff]
      %v389 = vld [vmem:[%s217 + $0x488] sm:$0xff]
      %v390 = vld [vmem:[%s217 + $0x490] sm:$0xff]
      %v391 = vld [vmem:[%s217 + $0x498] sm:$0xff]
      %v392 = vld [vmem:[%s217 + $0x4a0] sm:$0xff]
      %v393 = vld [vmem:[%s217 + $0x4a8] sm:$0xff]
      %v394 = vld [vmem:[%s217 + $0x4b0] sm:$0xff]
      %v395 = vld [vmem:[%s217 + $0x4b8] sm:$0xff]
      %v396 = vld [vmem:[%s217 + $0x4c0] sm:$0xff]
      %v397 = vld [vmem:[%s217 + $0x4c8] sm:$0xff]
      %v398 = vld [vmem:[%s217 + $0x4d0] sm:$0xff]
      %v399 = vld [vmem:[%s217 + $0x4d8] sm:$0xff]
      %v400 = vld [vmem:[%s217 + $0x4e0] sm:$0xff]
      %v401 = vld [vmem:[%s217 + $0x4e8] sm:$0xff]
      %v402 = vld [vmem:[%s217 + $0x4f0] sm:$0xff]
      %v403 = vld [vmem:[%s217 + $0x4f8] sm:$0xff]
      %v404 = vld [vmem:[%s217 + $0x500] sm:$0xff]
      %v405 = vld [vmem:[%s217 + $0x508] sm:$0xff]
      %v406 = vld [vmem:[%s217 + $0x510] sm:$0xff]
      %v407 = vld [vmem:[%s217 + $0x518] sm:$0xff]
      %v408 = vld [vmem:[%s217 + $0x520] sm:$0xff]
      %v409 = vld [vmem:[%s217 + $0x528] sm:$0xff]
      %v410 = vld [vmem:[%s217 + $0x530] sm:$0xff]
      %v411 = vld [vmem:[%s217 + $0x538] sm:$0xff]
      %v412 = vld [vmem:[%s217 + $0x540] sm:$0xff]
      %v413 = vld [vmem:[%s217 + $0x548] sm:$0xff]
      %v414 = vld [vmem:[%s217 + $0x550] sm:$0xff]
      %v415 = vld [vmem:[%s217 + $0x558] sm:$0xff]
      %v416 = vld [vmem:[%s217 + $0x560] sm:$0xff]
      %v417 = vld [vmem:[%s217 + $0x568] sm:$0xff]
      %v418 = vld [vmem:[%s217 + $0x570] sm:$0xff]
      %v419 = vld [vmem:[%s217 + $0x578] sm:$0xff]
      %v420 = vld [vmem:[%s217 + $0x580] sm:$0xff]
      %v421 = vld [vmem:[%s217 + $0x588] sm:$0xff]
      %v422 = vld [vmem:[%s217 + $0x590] sm:$0xff]
      %v423 = vld [vmem:[%s217 + $0x598] sm:$0xff]
      %v424 = vld [vmem:[%s217 + $0x5a0] sm:$0xff]
      %v425 = vld [vmem:[%s217 + $0x5a8] sm:$0xff]
      %v426 = vld [vmem:[%s217 + $0x5b0] sm:$0xff]
      %v427 = vld [vmem:[%s217 + $0x5b8] sm:$0xff]
      %v428 = vld [vmem:[%s217 + $0x5c0] sm:$0xff]
      %v429 = vld [vmem:[%s217 + $0x5c8] sm:$0xff]
      %v430 = vld [vmem:[%s217 + $0x5d0] sm:$0xff]
      %v431 = vld [vmem:[%s217 + $0x5d8] sm:$0xff]
      %v432 = vld [vmem:[%s217 + $0x5e0] sm:$0xff]
      %v433 = vld [vmem:[%s217 + $0x5e8] sm:$0xff]
      %v434 = vld [vmem:[%s217 + $0x5f0] sm:$0xff]
      %v435 = vld [vmem:[%s217 + $0x5f8] sm:$0xff]
      %v436 = vld [vmem:[%s217 + $0x600] sm:$0xff]
      %v437 = vld [vmem:[%s217 + $0x608] sm:$0xff]
      %v438 = vld [vmem:[%s217 + $0x610] sm:$0xff]
      %v439 = vld [vmem:[%s217 + $0x618] sm:$0xff]
      %v440 = vld [vmem:[%s217 + $0x620] sm:$0xff]
      %v441 = vld [vmem:[%s217 + $0x628] sm:$0xff]
      %v442 = vld [vmem:[%s217 + $0x630] sm:$0xff]
      %v443 = vld [vmem:[%s217 + $0x638] sm:$0xff]
      %v444 = vld [vmem:[%s217 + $0x640] sm:$0xff]
      %v445 = vld [vmem:[%s217 + $0x648] sm:$0xff]
      %v446 = vld [vmem:[%s217 + $0x650] sm:$0xff]
      %v447 = vld [vmem:[%s217 + $0x658] sm:$0xff]
      %v448 = vld [vmem:[%s217 + $0x660] sm:$0xff]
      %v449 = vld [vmem:[%s217 + $0x668] sm:$0xff]
      %v450 = vld [vmem:[%s217 + $0x670] sm:$0xff]
      %v451 = vld [vmem:[%s217 + $0x678] sm:$0xff]
      %v452 = vld [vmem:[%s217 + $0x680] sm:$0xff]
      %v453 = vld [vmem:[%s217 + $0x688] sm:$0xff]
      %v454 = vld [vmem:[%s217 + $0x690] sm:$0xff]
      %v455 = vld [vmem:[%s217 + $0x698] sm:$0xff]
      %v456 = vld [vmem:[%s217 + $0x6a0] sm:$0xff]
      %v457 = vld [vmem:[%s217 + $0x6a8] sm:$0xff]
      %v458 = vld [vmem:[%s217 + $0x6b0] sm:$0xff]
      %v459 = vld [vmem:[%s217 + $0x6b8] sm:$0xff]
      %v460 = vld [vmem:[%s217 + $0x6c0] sm:$0xff]
      %v461 = vld [vmem:[%s217 + $0x6c8] sm:$0xff]
      %v462 = vld [vmem:[%s217 + $0x6d0] sm:$0xff]
      %v463 = vld [vmem:[%s217 + $0x6d8] sm:$0xff]
      %v464 = vld [vmem:[%s217 + $0x6e0] sm:$0xff]
      %v465 = vld [vmem:[%s217 + $0x6e8] sm:$0xff]
      %v466 = vld [vmem:[%s217 + $0x6f0] sm:$0xff]
      %v467 = vld [vmem:[%s217 + $0x6f8] sm:$0xff]
      %v468 = vld [vmem:[%s217 + $0x700] sm:$0xff]
      %v469 = vld [vmem:[%s217 + $0x708] sm:$0xff]
      %v470 = vld [vmem:[%s217 + $0x710] sm:$0xff]
      %v471 = vld [vmem:[%s217 + $0x718] sm:$0xff]
      %v472 = vld [vmem:[%s217 + $0x720] sm:$0xff]
      %v473 = vld [vmem:[%s217 + $0x728] sm:$0xff]
      %v474 = vld [vmem:[%s217 + $0x730] sm:$0xff]
      %v475 = vld [vmem:[%s217 + $0x738] sm:$0xff]
      %v476 = vld [vmem:[%s217 + $0x740] sm:$0xff]
      %v477 = vld [vmem:[%s217 + $0x748] sm:$0xff]
      %v478 = vld [vmem:[%s217 + $0x750] sm:$0xff]
      %v479 = vld [vmem:[%s217 + $0x758] sm:$0xff]
      %v480 = vld [vmem:[%s217 + $0x760] sm:$0xff]
      %v481 = vld [vmem:[%s217 + $0x768] sm:$0xff]
      %v482 = vld [vmem:[%s217 + $0x770] sm:$0xff]
      %v483 = vld [vmem:[%s217 + $0x778] sm:$0xff]
      %v484 = vld [vmem:[%s217 + $0x780] sm:$0xff]
      %v485 = vld [vmem:[%s217 + $0x788] sm:$0xff]
      %v486 = vld [vmem:[%s217 + $0x790] sm:$0xff]
      %v487 = vld [vmem:[%s217 + $0x798] sm:$0xff]
      %v488 = vld [vmem:[%s217 + $0x7a0] sm:$0xff]
      %v489 = vld [vmem:[%s217 + $0x7a8] sm:$0xff]
      %v490 = vld [vmem:[%s217 + $0x7b0] sm:$0xff]
      %v491 = vld [vmem:[%s217 + $0x7b8] sm:$0xff]
      %v492 = vld [vmem:[%s217 + $0x7c0] sm:$0xff]
      %v493 = vld [vmem:[%s217 + $0x7c8] sm:$0xff]
      %v494 = vld [vmem:[%s217 + $0x7d0] sm:$0xff]
      %v495 = vld [vmem:[%s217 + $0x7d8] sm:$0xff]
      %v496 = vld [vmem:[%s217 + $0x7e0] sm:$0xff]
      %v497 = vld [vmem:[%s217 + $0x7e8] sm:$0xff]
      %v498 = vld [vmem:[%s217 + $0x7f0] sm:$0xff]
      %v499 = vld [vmem:[%s217 + $0x7f8] sm:$0xff]
      %v500 = vld [vmem:[%s217 + $0x800] sm:$0xff]
      %v501 = vld [vmem:[%s217 + $0x808] sm:$0xff]
      %v502 = vld [vmem:[%s217 + $0x810] sm:$0xff]
      %v503 = vld [vmem:[%s217 + $0x818] sm:$0xff]
      %v504 = vld [vmem:[%s217 + $0x820] sm:$0xff]
      %v505 = vld [vmem:[%s217 + $0x828] sm:$0xff]
      %v506 = vld [vmem:[%s217 + $0x830] sm:$0xff]
      %v507 = vld [vmem:[%s217 + $0x838] sm:$0xff]
      %v508 = vld [vmem:[%s217 + $0x840] sm:$0xff]
      %v509 = vld [vmem:[%s217 + $0x848] sm:$0xff]
      %v510 = vld [vmem:[%s217 + $0x850] sm:$0xff]
      %v511 = vld [vmem:[%s217 + $0x858] sm:$0xff]
      %v512 = vld [vmem:[%s217 + $0x860] sm:$0xff]
      %v513 = vld [vmem:[%s217 + $0x868] sm:$0xff]
      %v514 = vld [vmem:[%s217 + $0x870] sm:$0xff]
      %v515 = vld [vmem:[%s217 + $0x878] sm:$0xff]
      %v516 = vld [vmem:[%s217 + $0x880] sm:$0xff]
      %v517 = vld [vmem:[%s217 + $0x888] sm:$0xff]
      %v518 = vld [vmem:[%s217 + $0x890] sm:$0xff]
      %v519 = vld [vmem:[%s217 + $0x898] sm:$0xff]
      %v520 = vld [vmem:[%s217 + $0x8a0] sm:$0xff]
      %v521 = vld [vmem:[%s217 + $0x8a8] sm:$0xff]
      %v522 = vld [vmem:[%s217 + $0x8b0] sm:$0xff]
      %v523 = vld [vmem:[%s217 + $0x8b8] sm:$0xff]
      %v524 = vld [vmem:[%s217 + $0x8c0] sm:$0xff]
      %v525 = vld [vmem:[%s217 + $0x8c8] sm:$0xff]
      %v526 = vld [vmem:[%s217 + $0x8d0] sm:$0xff]
      %v527 = vld [vmem:[%s217 + $0x8d8] sm:$0xff]
      %v528 = vld [vmem:[%s217 + $0x8e0] sm:$0xff]
      %v529 = vld [vmem:[%s217 + $0x8e8] sm:$0xff]
      %v530 = vld [vmem:[%s217 + $0x8f0] sm:$0xff]
      %v531 = vld [vmem:[%s217 + $0x8f8] sm:$0xff]
      %v532 = vld [vmem:[%s217 + $0x900] sm:$0xff]
      %v533 = vld [vmem:[%s217 + $0x908] sm:$0xff]
      %v534 = vld [vmem:[%s217 + $0x910] sm:$0xff]
      %v535 = vld [vmem:[%s217 + $0x918] sm:$0xff]
      %v536 = vld [vmem:[%s217 + $0x920] sm:$0xff]
      %v537 = vld [vmem:[%s217 + $0x928] sm:$0xff]
      %v538 = vld [vmem:[%s217 + $0x930] sm:$0xff]
      %v539 = vld [vmem:[%s217 + $0x938] sm:$0xff]
      %v540 = vld [vmem:[%s217 + $0x940] sm:$0xff]
      %v541 = vld [vmem:[%s217 + $0x948] sm:$0xff]
      %v542 = vld [vmem:[%s217 + $0x950] sm:$0xff]
      %v543 = vld [vmem:[%s217 + $0x958] sm:$0xff]
      %v544 = vld [vmem:[%s217 + $0x960] sm:$0xff]
      %v545 = vld [vmem:[%s217 + $0x968] sm:$0xff]
      %v546 = vld [vmem:[%s217 + $0x970] sm:$0xff]
      %v547 = vld [vmem:[%s217 + $0x978] sm:$0xff]
      %v548 = vld [vmem:[%s217 + $0x980] sm:$0xff]
      %v549 = vld [vmem:[%s217 + $0x988] sm:$0xff]
      %v550 = vld [vmem:[%s217 + $0x990] sm:$0xff]
      %v551 = vld [vmem:[%s217 + $0x998] sm:$0xff]
      %v552 = vld [vmem:[%s217 + $0x9a0] sm:$0xff]
      %v553 = vld [vmem:[%s217 + $0x9a8] sm:$0xff]
      %v554 = vld [vmem:[%s217 + $0x9b0] sm:$0xff]
      %v555 = vld [vmem:[%s217 + $0x9b8] sm:$0xff]
      %v556 = vld [vmem:[%s217 + $0x9c0] sm:$0xff]
      %v557 = vld [vmem:[%s217 + $0x9c8] sm:$0xff]
      %v558 = vld [vmem:[%s217 + $0x9d0] sm:$0xff]
      %v559 = vld [vmem:[%s217 + $0x9d8] sm:$0xff]
      %v560 = vld [vmem:[%s217 + $0x9e0] sm:$0xff]
      %v561 = vld [vmem:[%s217 + $0x9e8] sm:$0xff]
      %v562 = vld [vmem:[%s217 + $0x9f0] sm:$0xff]
      %v563 = vld [vmem:[%s217 + $0x9f8] sm:$0xff]
      %v564 = vld [vmem:[%s217 + $0xa00] sm:$0xff]
      %v565 = vld [vmem:[%s217 + $0xa08] sm:$0xff]
      %v566 = vld [vmem:[%s217 + $0xa10] sm:$0xff]
      %v567 = vld [vmem:[%s217 + $0xa18] sm:$0xff]
      %v568 = vld [vmem:[%s217 + $0xa20] sm:$0xff]
      %v569 = vld [vmem:[%s217 + $0xa28] sm:$0xff]
      %v570 = vld [vmem:[%s217 + $0xa30] sm:$0xff]
      %v571 = vld [vmem:[%s217 + $0xa38] sm:$0xff]
      %v572 = vld [vmem:[%s217 + $0xa40] sm:$0xff]
      %v573 = vld [vmem:[%s217 + $0xa48] sm:$0xff]
      %v574 = vld [vmem:[%s217 + $0xa50] sm:$0xff]
      %v575 = vld [vmem:[%s217 + $0xa58] sm:$0xff]
      %v576 = vld [vmem:[%s217 + $0xa60] sm:$0xff]
      %v577 = vld [vmem:[%s217 + $0xa68] sm:$0xff]
      %v578 = vld [vmem:[%s217 + $0xa70] sm:$0xff]
      %v579 = vld [vmem:[%s217 + $0xa78] sm:$0xff]
      %v580 = vld [vmem:[%s217 + $0xa80] sm:$0xff]
      %v581 = vld [vmem:[%s217 + $0xa88] sm:$0xff]
      %v582 = vld [vmem:[%s217 + $0xa90] sm:$0xff]
      %v583 = vld [vmem:[%s217 + $0xa98] sm:$0xff]
      %v584 = vld [vmem:[%s217 + $0xaa0] sm:$0xff]
      %v585 = vld [vmem:[%s217 + $0xaa8] sm:$0xff]
      %v586 = vld [vmem:[%s217 + $0xab0] sm:$0xff]
      %v587 = vld [vmem:[%s217 + $0xab8] sm:$0xff]
      %v588 = vld [vmem:[%s217 + $0xac0] sm:$0xff]
      %v589 = vld [vmem:[%s217 + $0xac8] sm:$0xff]
      %v590 = vld [vmem:[%s217 + $0xad0] sm:$0xff]
      %v591 = vld [vmem:[%s217 + $0xad8] sm:$0xff]
      %v592 = vld [vmem:[%s217 + $0xae0] sm:$0xff]
      %v593 = vld [vmem:[%s217 + $0xae8] sm:$0xff]
      %v594 = vld [vmem:[%s217 + $0xaf0] sm:$0xff]
      %v595 = vld [vmem:[%s217 + $0xaf8] sm:$0xff]
      %v596 = vld [vmem:[%s217 + $0xb00] sm:$0xff]
      %v597 = vld [vmem:[%s217 + $0xb08] sm:$0xff]
      %v598 = vld [vmem:[%s217 + $0xb10] sm:$0xff]
      %v599 = vld [vmem:[%s217 + $0xb18] sm:$0xff]
      %v600 = vld [vmem:[%s217 + $0xb20] sm:$0xff]
      %v601 = vld [vmem:[%s217 + $0xb28] sm:$0xff]
      %v602 = vld [vmem:[%s217 + $0xb30] sm:$0xff]
      %v603 = vld [vmem:[%s217 + $0xb38] sm:$0xff]
      %v604 = vld [vmem:[%s217 + $0xb40] sm:$0xff]
      %v605 = vld [vmem:[%s217 + $0xb48] sm:$0xff]
      %v606 = vld [vmem:[%s217 + $0xb50] sm:$0xff]
      %v607 = vld [vmem:[%s217 + $0xb58] sm:$0xff]
      %v608 = vld [vmem:[%s217 + $0xb60] sm:$0xff]
      %v609 = vld [vmem:[%s217 + $0xb68] sm:$0xff]
      %v610 = vld [vmem:[%s217 + $0xb70] sm:$0xff]
      %v611 = vld [vmem:[%s217 + $0xb78] sm:$0xff]
      %v612 = vld [vmem:[%s217 + $0xb80] sm:$0xff]
      %v613 = vld [vmem:[%s217 + $0xb88] sm:$0xff]
      %v614 = vld [vmem:[%s217 + $0xb90] sm:$0xff]
      %v615 = vld [vmem:[%s217 + $0xb98] sm:$0xff]
      %v616 = vld [vmem:[%s217 + $0xba0] sm:$0xff]
      %v617 = vld [vmem:[%s217 + $0xba8] sm:$0xff]
      %v618 = vld [vmem:[%s217 + $0xbb0] sm:$0xff]
      %v619 = vld [vmem:[%s217 + $0xbb8] sm:$0xff]
      %v620 = vld [vmem:[%s217 + $0xbc0] sm:$0xff]
      %v621 = vld [vmem:[%s217 + $0xbc8] sm:$0xff]
      %v622 = vld [vmem:[%s217 + $0xbd0] sm:$0xff]
      %v623 = vld [vmem:[%s217 + $0xbd8] sm:$0xff]
      %v624 = vld [vmem:[%s217 + $0xbe0] sm:$0xff]
      %v625 = vld [vmem:[%s217 + $0xbe8] sm:$0xff]
      %v626 = vld [vmem:[%s217 + $0xbf0] sm:$0xff]
      %v627 = vld [vmem:[%s217 + $0xbf8] sm:$0xff]
      %v628 = vld [vmem:[%s217 + $0xc00] sm:$0xff]
      %v629 = vld [vmem:[%s217 + $0xc08] sm:$0xff]
      %v630 = vld [vmem:[%s217 + $0xc10] sm:$0xff]
      %v631 = vld [vmem:[%s217 + $0xc18] sm:$0xff]
      %v632 = vld [vmem:[%s217 + $0xc20] sm:$0xff]
      %v633 = vld [vmem:[%s217 + $0xc28] sm:$0xff]
      %v634 = vld [vmem:[%s217 + $0xc30] sm:$0xff]
      %v635 = vld [vmem:[%s217 + $0xc38] sm:$0xff]
      %v636 = vld [vmem:[%s217 + $0xc40] sm:$0xff]
      %v637 = vld [vmem:[%s217 + $0xc48] sm:$0xff]
      %v638 = vld [vmem:[%s217 + $0xc50] sm:$0xff]
      %v639 = vld [vmem:[%s217 + $0xc58] sm:$0xff]
      %v640 = vld [vmem:[%s217 + $0xc60] sm:$0xff]
      %v641 = vld [vmem:[%s217 + $0xc68] sm:$0xff]
      %v642 = vld [vmem:[%s217 + $0xc70] sm:$0xff]
      %v643 = vld [vmem:[%s217 + $0xc78] sm:$0xff]
      %v644 = vld [vmem:[%s217 + $0xc80] sm:$0xff]
      %v645 = vld [vmem:[%s217 + $0xc88] sm:$0xff]
      %v646 = vld [vmem:[%s217 + $0xc90] sm:$0xff]
      %v647 = vld [vmem:[%s217 + $0xc98] sm:$0xff]
      %v648 = vld [vmem:[%s217 + $0xca0] sm:$0xff]
      %v649 = vld [vmem:[%s217 + $0xca8] sm:$0xff]
      %v650 = vld [vmem:[%s217 + $0xcb0] sm:$0xff]
      %v651 = vld [vmem:[%s217 + $0xcb8] sm:$0xff]
      %v652 = vld [vmem:[%s217 + $0xcc0] sm:$0xff]
      %v653 = vld [vmem:[%s217 + $0xcc8] sm:$0xff]
      %v654 = vld [vmem:[%s217 + $0xcd0] sm:$0xff]
      %v655 = vld [vmem:[%s217 + $0xcd8] sm:$0xff]
      %v656 = vld [vmem:[%s217 + $0xce0] sm:$0xff]
      %v657 = vld [vmem:[%s217 + $0xce8] sm:$0xff]
      %v658 = vld [vmem:[%s217 + $0xcf0] sm:$0xff]
      %v659 = vld [vmem:[%s217 + $0xcf8] sm:$0xff]
      %v660 = vld [vmem:[%s217 + $0xd00] sm:$0xff]
      %v661 = vld [vmem:[%s217 + $0xd08] sm:$0xff]
      %v662 = vld [vmem:[%s217 + $0xd10] sm:$0xff]
      %v663 = vld [vmem:[%s217 + $0xd18] sm:$0xff]
      %v664 = vld [vmem:[%s217 + $0xd20] sm:$0xff]
      %v665 = vld [vmem:[%s217 + $0xd28] sm:$0xff]
      %v666 = vld [vmem:[%s217 + $0xd30] sm:$0xff]
      %v667 = vld [vmem:[%s217 + $0xd38] sm:$0xff]
      %v668 = vld [vmem:[%s217 + $0xd40] sm:$0xff]
      %v669 = vld [vmem:[%s217 + $0xd48] sm:$0xff]
      %v670 = vld [vmem:[%s217 + $0xd50] sm:$0xff]
      %v671 = vld [vmem:[%s217 + $0xd58] sm:$0xff]
      %v672 = vld [vmem:[%s217 + $0xd60] sm:$0xff]
      %v673 = vld [vmem:[%s217 + $0xd68] sm:$0xff]
      %v674 = vld [vmem:[%s217 + $0xd70] sm:$0xff]
      %v675 = vld [vmem:[%s217 + $0xd78] sm:$0xff]
      %v676 = vld [vmem:[%s217 + $0xd80] sm:$0xff]
      %v677 = vld [vmem:[%s217 + $0xd88] sm:$0xff]
      %v678 = vld [vmem:[%s217 + $0xd90] sm:$0xff]
      %v679 = vld [vmem:[%s217 + $0xd98] sm:$0xff]
      %v680 = vld [vmem:[%s217 + $0xda0] sm:$0xff]
      %v681 = vld [vmem:[%s217 + $0xda8] sm:$0xff]
      %v682 = vld [vmem:[%s217 + $0xdb0] sm:$0xff]
      %v683 = vld [vmem:[%s217 + $0xdb8] sm:$0xff]
      %v684 = vld [vmem:[%s217 + $0xdc0] sm:$0xff]
      %v685 = vld [vmem:[%s217 + $0xdc8] sm:$0xff]
      %v686 = vld [vmem:[%s217 + $0xdd0] sm:$0xff]
      %v687 = vld [vmem:[%s217 + $0xdd8] sm:$0xff]
      %v688 = vld [vmem:[%s217 + $0xde0] sm:$0xff]
      %v689 = vld [vmem:[%s217 + $0xde8] sm:$0xff]
      %v690 = vld [vmem:[%s217 + $0xdf0] sm:$0xff]
      %v691 = vld [vmem:[%s217 + $0xdf8] sm:$0xff]
      %v692 = vld [vmem:[%s217 + $0xe00] sm:$0xff]
      %v693 = vld [vmem:[%s217 + $0xe08] sm:$0xff]
      %v694 = vld [vmem:[%s217 + $0xe10] sm:$0xff]
      %v695 = vld [vmem:[%s217 + $0xe18] sm:$0xff]
      %v696 = vld [vmem:[%s217 + $0xe20] sm:$0xff]
      %v697 = vld [vmem:[%s217 + $0xe28] sm:$0xff]
      %v698 = vld [vmem:[%s217 + $0xe30] sm:$0xff]
      %v699 = vld [vmem:[%s217 + $0xe38] sm:$0xff]
      %v700 = vld [vmem:[%s217 + $0xe40] sm:$0xff]
      %v701 = vld [vmem:[%s217 + $0xe48] sm:$0xff]
      %v702 = vld [vmem:[%s217 + $0xe50] sm:$0xff]
      %v703 = vld [vmem:[%s217 + $0xe58] sm:$0xff]
      %v704 = vld [vmem:[%s217 + $0xe60] sm:$0xff]
      %v705 = vld [vmem:[%s217 + $0xe68] sm:$0xff]
      %v706 = vld [vmem:[%s217 + $0xe70] sm:$0xff]
      %v707 = vld [vmem:[%s217 + $0xe78] sm:$0xff]
      %v708 = vld [vmem:[%s217 + $0xe80] sm:$0xff]
      %v709 = vld [vmem:[%s217 + $0xe88] sm:$0xff]
      %v710 = vld [vmem:[%s217 + $0xe90] sm:$0xff]
      %v711 = vld [vmem:[%s217 + $0xe98] sm:$0xff]
      %v712 = vld [vmem:[%s217 + $0xea0] sm:$0xff]
      %v713 = vld [vmem:[%s217 + $0xea8] sm:$0xff]
      %v714 = vld [vmem:[%s217 + $0xeb0] sm:$0xff]
      %v715 = vld [vmem:[%s217 + $0xeb8] sm:$0xff]
      %v716 = vld [vmem:[%s217 + $0xec0] sm:$0xff]
      %v717 = vld [vmem:[%s217 + $0xec8] sm:$0xff]
      %v718 = vld [vmem:[%s217 + $0xed0] sm:$0xff]
      %v719 = vld [vmem:[%s217 + $0xed8] sm:$0xff]
      %v720 = vld [vmem:[%s217 + $0xee0] sm:$0xff]
      %v721 = vld [vmem:[%s217 + $0xee8] sm:$0xff]
      %v722 = vld [vmem:[%s217 + $0xef0] sm:$0xff]
      %v723 = vld [vmem:[%s217 + $0xef8] sm:$0xff]
      %v724 = vld [vmem:[%s217 + $0xf00] sm:$0xff]
      %v725 = vld [vmem:[%s217 + $0xf08] sm:$0xff]
      %v726 = vld [vmem:[%s217 + $0xf10] sm:$0xff]
      %v727 = vld [vmem:[%s217 + $0xf18] sm:$0xff]
      %v728 = vld [vmem:[%s217 + $0xf20] sm:$0xff]
      %v729 = vld [vmem:[%s217 + $0xf28] sm:$0xff]
      %v730 = vld [vmem:[%s217 + $0xf30] sm:$0xff]
      %v731 = vld [vmem:[%s217 + $0xf38] sm:$0xff]
      %v732 = vld [vmem:[%s217 + $0xf40] sm:$0xff]
      %v733 = vld [vmem:[%s217 + $0xf48] sm:$0xff]
      %v734 = vld [vmem:[%s217 + $0xf50] sm:$0xff]
      %v735 = vld [vmem:[%s217 + $0xf58] sm:$0xff]
      %v736 = vld [vmem:[%s217 + $0xf60] sm:$0xff]
      %v737 = vld [vmem:[%s217 + $0xf68] sm:$0xff]
      %v738 = vld [vmem:[%s217 + $0xf70] sm:$0xff]
      %v739 = vld [vmem:[%s217 + $0xf78] sm:$0xff]
      %v740 = vld [vmem:[%s217 + $0xf80] sm:$0xff]
      %v741 = vld [vmem:[%s217 + $0xf88] sm:$0xff]
      %v742 = vld [vmem:[%s217 + $0xf90] sm:$0xff]
      %v743 = vld [vmem:[%s217 + $0xf98] sm:$0xff]
      %v744 = vld [vmem:[%s217 + $0xfa0] sm:$0xff]
      %v745 = vld [vmem:[%s217 + $0xfa8] sm:$0xff]
      %v746 = vld [vmem:[%s217 + $0xfb0] sm:$0xff]
      %v747 = vld [vmem:[%s217 + $0xfb8] sm:$0xff]
      %v748 = vld [vmem:[%s217 + $0xfc0] sm:$0xff]
      %v749 = vld [vmem:[%s217 + $0xfc8] sm:$0xff]
      %v750 = vld [vmem:[%s217 + $0xfd0] sm:$0xff]
      %v751 = vld [vmem:[%s217 + $0xfd8] sm:$0xff]
      %v752 = vld [vmem:[%s217 + $0xfe0] sm:$0xff]
      %v753 = vld [vmem:[%s217 + $0xfe8] sm:$0xff]
      %v754 = vld [vmem:[%s217 + $0xff0] sm:$0xff]
      %v755 = vld [vmem:[%s217 + $0xff8] sm:$0xff]
      %v764 = vunpack.c.l.b16 %v236
      %v765 = vunpack.c.h.b16 %v236
      %v766 = vunpack.c.l.b16 %v237
      %v767 = vunpack.c.h.b16 %v237
      %v768 = vunpack.c.l.b16 %v238
      %v769 = vunpack.c.h.b16 %v238
      %v770 = vunpack.c.l.b16 %v239
      %v771 = vunpack.c.h.b16 %v239
      %v772 = vunpack.c.l.b16 %v240
      %v773 = vunpack.c.h.b16 %v240
      %v774 = vunpack.c.l.b16 %v241
      %v775 = vunpack.c.h.b16 %v241
      %v776 = vunpack.c.l.b16 %v242
      %v777 = vunpack.c.h.b16 %v242
      %v778 = vunpack.c.l.b16 %v243
      %v779 = vunpack.c.h.b16 %v243
      %v780 = vpack.c.b16 %v764, %v764
      %v781 = vpack.c.b16 %v765, %v765
      %v782 = vpack.c.b16 %v766, %v766
      %v783 = vpack.c.b16 %v767, %v767
      %v784 = vpack.c.b16 %v768, %v768
      %v785 = vpack.c.b16 %v769, %v769
      %v786 = vpack.c.b16 %v770, %v770
      %v787 = vpack.c.b16 %v771, %v771
      %v788 = vpack.c.b16 %v772, %v772
      %v789 = vpack.c.b16 %v773, %v773
      %v790 = vpack.c.b16 %v774, %v774
      %v791 = vpack.c.b16 %v775, %v775
      %v792 = vpack.c.b16 %v776, %v776
      %v793 = vpack.c.b16 %v777, %v777
      %v794 = vpack.c.b16 %v778, %v778
      %v795 = vpack.c.b16 %v779, %v779
      %v1324 = vunpack.c.l.b16 %v244
      %v1325 = vunpack.c.h.b16 %v244
      %v1326 = vunpack.c.l.b16 %v245
      %v1327 = vunpack.c.h.b16 %v245
      %v1328 = vunpack.c.l.b16 %v246
      %v1329 = vunpack.c.h.b16 %v246
      %v1330 = vunpack.c.l.b16 %v247
      %v1331 = vunpack.c.h.b16 %v247
      %v1332 = vunpack.c.l.b16 %v248
      %v1333 = vunpack.c.h.b16 %v248
      %v1334 = vunpack.c.l.b16 %v249
      %v1335 = vunpack.c.h.b16 %v249
      %v1336 = vunpack.c.l.b16 %v250
      %v1337 = vunpack.c.h.b16 %v250
      %v1338 = vunpack.c.l.b16 %v251
      %v1339 = vunpack.c.h.b16 %v251
      %v1340 = vunpack.c.l.b16 %v252
      %v1341 = vunpack.c.h.b16 %v252
      %v1342 = vunpack.c.l.b16 %v253
      %v1343 = vunpack.c.h.b16 %v253
      %v1344 = vunpack.c.l.b16 %v254
      %v1345 = vunpack.c.h.b16 %v254
      %v1346 = vunpack.c.l.b16 %v255
      %v1347 = vunpack.c.h.b16 %v255
      %v1348 = vunpack.c.l.b16 %v256
      %v1349 = vunpack.c.h.b16 %v256
      %v1350 = vunpack.c.l.b16 %v257
      %v1351 = vunpack.c.h.b16 %v257
      %v1352 = vunpack.c.l.b16 %v258
      %v1353 = vunpack.c.h.b16 %v258
      %v1354 = vunpack.c.l.b16 %v259
      %v1355 = vunpack.c.h.b16 %v259
      %v1356 = vunpack.c.l.b16 %v260
      %v1357 = vunpack.c.h.b16 %v260
      %v1358 = vunpack.c.l.b16 %v261
      %v1359 = vunpack.c.h.b16 %v261
      %v1360 = vunpack.c.l.b16 %v262
      %v1361 = vunpack.c.h.b16 %v262
      %v1362 = vunpack.c.l.b16 %v263
      %v1363 = vunpack.c.h.b16 %v263
      %v1364 = vunpack.c.l.b16 %v264
      %v1365 = vunpack.c.h.b16 %v264
      %v1366 = vunpack.c.l.b16 %v265
      %v1367 = vunpack.c.h.b16 %v265
      %v1368 = vunpack.c.l.b16 %v266
      %v1369 = vunpack.c.h.b16 %v266
      %v1370 = vunpack.c.l.b16 %v267
      %v1371 = vunpack.c.h.b16 %v267
      %v1372 = vunpack.c.l.b16 %v268
      %v1373 = vunpack.c.h.b16 %v268
      %v1374 = vunpack.c.l.b16 %v269
      %v1375 = vunpack.c.h.b16 %v269
      %v1376 = vunpack.c.l.b16 %v270
      %v1377 = vunpack.c.h.b16 %v270
      %v1378 = vunpack.c.l.b16 %v271
      %v1379 = vunpack.c.h.b16 %v271
      %v1380 = vunpack.c.l.b16 %v272
      %v1381 = vunpack.c.h.b16 %v272
      %v1382 = vunpack.c.l.b16 %v273
      %v1383 = vunpack.c.h.b16 %v273
      %v1384 = vunpack.c.l.b16 %v274
      %v1385 = vunpack.c.h.b16 %v274
      %v1386 = vunpack.c.l.b16 %v275
      %v1387 = vunpack.c.h.b16 %v275
      %v1388 = vunpack.c.l.b16 %v276
      %v1389 = vunpack.c.h.b16 %v276
      %v1390 = vunpack.c.l.b16 %v277
      %v1391 = vunpack.c.h.b16 %v277
      %v1392 = vunpack.c.l.b16 %v278
      %v1393 = vunpack.c.h.b16 %v278
      %v1394 = vunpack.c.l.b16 %v279
      %v1395 = vunpack.c.h.b16 %v279
      %v1396 = vunpack.c.l.b16 %v280
      %v1397 = vunpack.c.h.b16 %v280
      %v1398 = vunpack.c.l.b16 %v281
      %v1399 = vunpack.c.h.b16 %v281
      %v1400 = vunpack.c.l.b16 %v282
      %v1401 = vunpack.c.h.b16 %v282
      %v1402 = vunpack.c.l.b16 %v283
      %v1403 = vunpack.c.h.b16 %v283
      %v1404 = vunpack.c.l.b16 %v284
      %v1405 = vunpack.c.h.b16 %v284
      %v1406 = vunpack.c.l.b16 %v285
      %v1407 = vunpack.c.h.b16 %v285
      %v1408 = vunpack.c.l.b16 %v286
      %v1409 = vunpack.c.h.b16 %v286
      %v1410 = vunpack.c.l.b16 %v287
      %v1411 = vunpack.c.h.b16 %v287
      %v1412 = vunpack.c.l.b16 %v288
      %v1413 = vunpack.c.h.b16 %v288
      %v1414 = vunpack.c.l.b16 %v289
      %v1415 = vunpack.c.h.b16 %v289
      %v1416 = vunpack.c.l.b16 %v290
      %v1417 = vunpack.c.h.b16 %v290
      %v1418 = vunpack.c.l.b16 %v291
      %v1419 = vunpack.c.h.b16 %v291
      %v1420 = vunpack.c.l.b16 %v292
      %v1421 = vunpack.c.h.b16 %v292
      %v1422 = vunpack.c.l.b16 %v293
      %v1423 = vunpack.c.h.b16 %v293
      %v1424 = vunpack.c.l.b16 %v294
      %v1425 = vunpack.c.h.b16 %v294
      %v1426 = vunpack.c.l.b16 %v295
      %v1427 = vunpack.c.h.b16 %v295
      %v1428 = vunpack.c.l.b16 %v296
      %v1429 = vunpack.c.h.b16 %v296
      %v1430 = vunpack.c.l.b16 %v297
      %v1431 = vunpack.c.h.b16 %v297
      %v1432 = vunpack.c.l.b16 %v298
      %v1433 = vunpack.c.h.b16 %v298
      %v1434 = vunpack.c.l.b16 %v299
      %v1435 = vunpack.c.h.b16 %v299
      %v1436 = vunpack.c.l.b16 %v300
      %v1437 = vunpack.c.h.b16 %v300
      %v1438 = vunpack.c.l.b16 %v301
      %v1439 = vunpack.c.h.b16 %v301
      %v1440 = vunpack.c.l.b16 %v302
      %v1441 = vunpack.c.h.b16 %v302
      %v1442 = vunpack.c.l.b16 %v303
      %v1443 = vunpack.c.h.b16 %v303
      %v1444 = vunpack.c.l.b16 %v304
      %v1445 = vunpack.c.h.b16 %v304
      %v1446 = vunpack.c.l.b16 %v305
      %v1447 = vunpack.c.h.b16 %v305
      %v1448 = vunpack.c.l.b16 %v306
      %v1449 = vunpack.c.h.b16 %v306
      %v1450 = vunpack.c.l.b16 %v307
      %v1451 = vunpack.c.h.b16 %v307
      %v1452 = vunpack.c.l.b16 %v308
      %v1453 = vunpack.c.h.b16 %v308
      %v1454 = vunpack.c.l.b16 %v309
      %v1455 = vunpack.c.h.b16 %v309
      %v1456 = vunpack.c.l.b16 %v310
      %v1457 = vunpack.c.h.b16 %v310
      %v1458 = vunpack.c.l.b16 %v311
      %v1459 = vunpack.c.h.b16 %v311
      %v1460 = vunpack.c.l.b16 %v312
      %v1461 = vunpack.c.h.b16 %v312
      %v1462 = vunpack.c.l.b16 %v313
      %v1463 = vunpack.c.h.b16 %v313
      %v1464 = vunpack.c.l.b16 %v314
      %v1465 = vunpack.c.h.b16 %v314
      %v1466 = vunpack.c.l.b16 %v315
      %v1467 = vunpack.c.h.b16 %v315
      %v1468 = vunpack.c.l.b16 %v316
      %v1469 = vunpack.c.h.b16 %v316
      %v1470 = vunpack.c.l.b16 %v317
      %v1471 = vunpack.c.h.b16 %v317
      %v1472 = vunpack.c.l.b16 %v318
      %v1473 = vunpack.c.h.b16 %v318
      %v1474 = vunpack.c.l.b16 %v319
      %v1475 = vunpack.c.h.b16 %v319
      %v1476 = vunpack.c.l.b16 %v320
      %v1477 = vunpack.c.h.b16 %v320
      %v1478 = vunpack.c.l.b16 %v321
      %v1479 = vunpack.c.h.b16 %v321
      %v1480 = vunpack.c.l.b16 %v322
      %v1481 = vunpack.c.h.b16 %v322
      %v1482 = vunpack.c.l.b16 %v323
      %v1483 = vunpack.c.h.b16 %v323
      %v1484 = vunpack.c.l.b16 %v324
      %v1485 = vunpack.c.h.b16 %v324
      %v1486 = vunpack.c.l.b16 %v325
      %v1487 = vunpack.c.h.b16 %v325
      %v1488 = vunpack.c.l.b16 %v326
      %v1489 = vunpack.c.h.b16 %v326
      %v1490 = vunpack.c.l.b16 %v327
      %v1491 = vunpack.c.h.b16 %v327
      %v1492 = vunpack.c.l.b16 %v328
      %v1493 = vunpack.c.h.b16 %v328
      %v1494 = vunpack.c.l.b16 %v329
      %v1495 = vunpack.c.h.b16 %v329
      %v1496 = vunpack.c.l.b16 %v330
      %v1497 = vunpack.c.h.b16 %v330
      %v1498 = vunpack.c.l.b16 %v331
      %v1499 = vunpack.c.h.b16 %v331
      %v1500 = vunpack.c.l.b16 %v332
      %v1501 = vunpack.c.h.b16 %v332
      %v1502 = vunpack.c.l.b16 %v333
      %v1503 = vunpack.c.h.b16 %v333
      %v1504 = vunpack.c.l.b16 %v334
      %v1505 = vunpack.c.h.b16 %v334
      %v1506 = vunpack.c.l.b16 %v335
      %v1507 = vunpack.c.h.b16 %v335
      %v1508 = vunpack.c.l.b16 %v336
      %v1509 = vunpack.c.h.b16 %v336
      %v1510 = vunpack.c.l.b16 %v337
      %v1511 = vunpack.c.h.b16 %v337
      %v1512 = vunpack.c.l.b16 %v338
      %v1513 = vunpack.c.h.b16 %v338
      %v1514 = vunpack.c.l.b16 %v339
      %v1515 = vunpack.c.h.b16 %v339
      %v1516 = vunpack.c.l.b16 %v340
      %v1517 = vunpack.c.h.b16 %v340
      %v1518 = vunpack.c.l.b16 %v341
      %v1519 = vunpack.c.h.b16 %v341
      %v1520 = vunpack.c.l.b16 %v342
      %v1521 = vunpack.c.h.b16 %v342
      %v1522 = vunpack.c.l.b16 %v343
      %v1523 = vunpack.c.h.b16 %v343
      %v1524 = vunpack.c.l.b16 %v344
      %v1525 = vunpack.c.h.b16 %v344
      %v1526 = vunpack.c.l.b16 %v345
      %v1527 = vunpack.c.h.b16 %v345
      %v1528 = vunpack.c.l.b16 %v346
      %v1529 = vunpack.c.h.b16 %v346
      %v1530 = vunpack.c.l.b16 %v347
      %v1531 = vunpack.c.h.b16 %v347
      %v1532 = vunpack.c.l.b16 %v348
      %v1533 = vunpack.c.h.b16 %v348
      %v1534 = vunpack.c.l.b16 %v349
      %v1535 = vunpack.c.h.b16 %v349
      %v1536 = vunpack.c.l.b16 %v350
      %v1537 = vunpack.c.h.b16 %v350
      %v1538 = vunpack.c.l.b16 %v351
      %v1539 = vunpack.c.h.b16 %v351
      %v1540 = vunpack.c.l.b16 %v352
      %v1541 = vunpack.c.h.b16 %v352
      %v1542 = vunpack.c.l.b16 %v353
      %v1543 = vunpack.c.h.b16 %v353
      %v1544 = vunpack.c.l.b16 %v354
      %v1545 = vunpack.c.h.b16 %v354
      %v1546 = vunpack.c.l.b16 %v355
      %v1547 = vunpack.c.h.b16 %v355
      %v1548 = vunpack.c.l.b16 %v356
      %v1549 = vunpack.c.h.b16 %v356
      %v1550 = vunpack.c.l.b16 %v357
      %v1551 = vunpack.c.h.b16 %v357
      %v1552 = vunpack.c.l.b16 %v358
      %v1553 = vunpack.c.h.b16 %v358
      %v1554 = vunpack.c.l.b16 %v359
      %v1555 = vunpack.c.h.b16 %v359
      %v1556 = vunpack.c.l.b16 %v360
      %v1557 = vunpack.c.h.b16 %v360
      %v1558 = vunpack.c.l.b16 %v361
      %v1559 = vunpack.c.h.b16 %v361
      %v1560 = vunpack.c.l.b16 %v362
      %v1561 = vunpack.c.h.b16 %v362
      %v1562 = vunpack.c.l.b16 %v363
      %v1563 = vunpack.c.h.b16 %v363
      %v1564 = vunpack.c.l.b16 %v364
      %v1565 = vunpack.c.h.b16 %v364
      %v1566 = vunpack.c.l.b16 %v365
      %v1567 = vunpack.c.h.b16 %v365
      %v1568 = vunpack.c.l.b16 %v366
      %v1569 = vunpack.c.h.b16 %v366
      %v1570 = vunpack.c.l.b16 %v367
      %v1571 = vunpack.c.h.b16 %v367
      %v1572 = vunpack.c.l.b16 %v368
      %v1573 = vunpack.c.h.b16 %v368
      %v1574 = vunpack.c.l.b16 %v369
      %v1575 = vunpack.c.h.b16 %v369
      %v1576 = vunpack.c.l.b16 %v370
      %v1577 = vunpack.c.h.b16 %v370
      %v1578 = vunpack.c.l.b16 %v371
      %v1579 = vunpack.c.h.b16 %v371
      %v1580 = vunpack.c.l.b16 %v372
      %v1581 = vunpack.c.h.b16 %v372
      %v1582 = vunpack.c.l.b16 %v373
      %v1583 = vunpack.c.h.b16 %v373
      %v1584 = vunpack.c.l.b16 %v374
      %v1585 = vunpack.c.h.b16 %v374
      %v1586 = vunpack.c.l.b16 %v375
      %v1587 = vunpack.c.h.b16 %v375
      %v1588 = vunpack.c.l.b16 %v376
      %v1589 = vunpack.c.h.b16 %v376
      %v1590 = vunpack.c.l.b16 %v377
      %v1591 = vunpack.c.h.b16 %v377
      %v1592 = vunpack.c.l.b16 %v378
      %v1593 = vunpack.c.h.b16 %v378
      %v1594 = vunpack.c.l.b16 %v379
      %v1595 = vunpack.c.h.b16 %v379
      %v1596 = vunpack.c.l.b16 %v380
      %v1597 = vunpack.c.h.b16 %v380
      %v1598 = vunpack.c.l.b16 %v381
      %v1599 = vunpack.c.h.b16 %v381
      %v1600 = vunpack.c.l.b16 %v382
      %v1601 = vunpack.c.h.b16 %v382
      %v1602 = vunpack.c.l.b16 %v383
      %v1603 = vunpack.c.h.b16 %v383
      %v1604 = vunpack.c.l.b16 %v384
      %v1605 = vunpack.c.h.b16 %v384
      %v1606 = vunpack.c.l.b16 %v385
      %v1607 = vunpack.c.h.b16 %v385
      %v1608 = vunpack.c.l.b16 %v386
      %v1609 = vunpack.c.h.b16 %v386
      %v1610 = vunpack.c.l.b16 %v387
      %v1611 = vunpack.c.h.b16 %v387
      %v1612 = vunpack.c.l.b16 %v388
      %v1613 = vunpack.c.h.b16 %v388
      %v1614 = vunpack.c.l.b16 %v389
      %v1615 = vunpack.c.h.b16 %v389
      %v1616 = vunpack.c.l.b16 %v390
      %v1617 = vunpack.c.h.b16 %v390
      %v1618 = vunpack.c.l.b16 %v391
      %v1619 = vunpack.c.h.b16 %v391
      %v1620 = vunpack.c.l.b16 %v392
      %v1621 = vunpack.c.h.b16 %v392
      %v1622 = vunpack.c.l.b16 %v393
      %v1623 = vunpack.c.h.b16 %v393
      %v1624 = vunpack.c.l.b16 %v394
      %v1625 = vunpack.c.h.b16 %v394
      %v1626 = vunpack.c.l.b16 %v395
      %v1627 = vunpack.c.h.b16 %v395
      %v1628 = vunpack.c.l.b16 %v396
      %v1629 = vunpack.c.h.b16 %v396
      %v1630 = vunpack.c.l.b16 %v397
      %v1631 = vunpack.c.h.b16 %v397
      %v1632 = vunpack.c.l.b16 %v398
      %v1633 = vunpack.c.h.b16 %v398
      %v1634 = vunpack.c.l.b16 %v399
      %v1635 = vunpack.c.h.b16 %v399
      %v1636 = vunpack.c.l.b16 %v400
      %v1637 = vunpack.c.h.b16 %v400
      %v1638 = vunpack.c.l.b16 %v401
      %v1639 = vunpack.c.h.b16 %v401
      %v1640 = vunpack.c.l.b16 %v402
      %v1641 = vunpack.c.h.b16 %v402
      %v1642 = vunpack.c.l.b16 %v403
      %v1643 = vunpack.c.h.b16 %v403
      %v1644 = vunpack.c.l.b16 %v404
      %v1645 = vunpack.c.h.b16 %v404
      %v1646 = vunpack.c.l.b16 %v405
      %v1647 = vunpack.c.h.b16 %v405
      %v1648 = vunpack.c.l.b16 %v406
      %v1649 = vunpack.c.h.b16 %v406
      %v1650 = vunpack.c.l.b16 %v407
      %v1651 = vunpack.c.h.b16 %v407
      %v1652 = vunpack.c.l.b16 %v408
      %v1653 = vunpack.c.h.b16 %v408
      %v1654 = vunpack.c.l.b16 %v409
      %v1655 = vunpack.c.h.b16 %v409
      %v1656 = vunpack.c.l.b16 %v410
      %v1657 = vunpack.c.h.b16 %v410
      %v1658 = vunpack.c.l.b16 %v411
      %v1659 = vunpack.c.h.b16 %v411
      %v1660 = vunpack.c.l.b16 %v412
      %v1661 = vunpack.c.h.b16 %v412
      %v1662 = vunpack.c.l.b16 %v413
      %v1663 = vunpack.c.h.b16 %v413
      %v1664 = vunpack.c.l.b16 %v414
      %v1665 = vunpack.c.h.b16 %v414
      %v1666 = vunpack.c.l.b16 %v415
      %v1667 = vunpack.c.h.b16 %v415
      %v1668 = vunpack.c.l.b16 %v416
      %v1669 = vunpack.c.h.b16 %v416
      %v1670 = vunpack.c.l.b16 %v417
      %v1671 = vunpack.c.h.b16 %v417
      %v1672 = vunpack.c.l.b16 %v418
      %v1673 = vunpack.c.h.b16 %v418
      %v1674 = vunpack.c.l.b16 %v419
      %v1675 = vunpack.c.h.b16 %v419
      %v1676 = vunpack.c.l.b16 %v420
      %v1677 = vunpack.c.h.b16 %v420
      %v1678 = vunpack.c.l.b16 %v421
      %v1679 = vunpack.c.h.b16 %v421
      %v1680 = vunpack.c.l.b16 %v422
      %v1681 = vunpack.c.h.b16 %v422
      %v1682 = vunpack.c.l.b16 %v423
      %v1683 = vunpack.c.h.b16 %v423
      %v1684 = vunpack.c.l.b16 %v424
      %v1685 = vunpack.c.h.b16 %v424
      %v1686 = vunpack.c.l.b16 %v425
      %v1687 = vunpack.c.h.b16 %v425
      %v1688 = vunpack.c.l.b16 %v426
      %v1689 = vunpack.c.h.b16 %v426
      %v1690 = vunpack.c.l.b16 %v427
      %v1691 = vunpack.c.h.b16 %v427
      %v1692 = vunpack.c.l.b16 %v428
      %v1693 = vunpack.c.h.b16 %v428
      %v1694 = vunpack.c.l.b16 %v429
      %v1695 = vunpack.c.h.b16 %v429
      %v1696 = vunpack.c.l.b16 %v430
      %v1697 = vunpack.c.h.b16 %v430
      %v1698 = vunpack.c.l.b16 %v431
      %v1699 = vunpack.c.h.b16 %v431
      %v1700 = vunpack.c.l.b16 %v432
      %v1701 = vunpack.c.h.b16 %v432
      %v1702 = vunpack.c.l.b16 %v433
      %v1703 = vunpack.c.h.b16 %v433
      %v1704 = vunpack.c.l.b16 %v434
      %v1705 = vunpack.c.h.b16 %v434
      %v1706 = vunpack.c.l.b16 %v435
      %v1707 = vunpack.c.h.b16 %v435
      %v1708 = vunpack.c.l.b16 %v436
      %v1709 = vunpack.c.h.b16 %v436
      %v1710 = vunpack.c.l.b16 %v437
      %v1711 = vunpack.c.h.b16 %v437
      %v1712 = vunpack.c.l.b16 %v438
      %v1713 = vunpack.c.h.b16 %v438
      %v1714 = vunpack.c.l.b16 %v439
      %v1715 = vunpack.c.h.b16 %v439
      %v1716 = vunpack.c.l.b16 %v440
      %v1717 = vunpack.c.h.b16 %v440
      %v1718 = vunpack.c.l.b16 %v441
      %v1719 = vunpack.c.h.b16 %v441
      %v1720 = vunpack.c.l.b16 %v442
      %v1721 = vunpack.c.h.b16 %v442
      %v1722 = vunpack.c.l.b16 %v443
      %v1723 = vunpack.c.h.b16 %v443
      %v1724 = vunpack.c.l.b16 %v444
      %v1725 = vunpack.c.h.b16 %v444
      %v1726 = vunpack.c.l.b16 %v445
      %v1727 = vunpack.c.h.b16 %v445
      %v1728 = vunpack.c.l.b16 %v446
      %v1729 = vunpack.c.h.b16 %v446
      %v1730 = vunpack.c.l.b16 %v447
      %v1731 = vunpack.c.h.b16 %v447
      %v1732 = vunpack.c.l.b16 %v448
      %v1733 = vunpack.c.h.b16 %v448
      %v1734 = vunpack.c.l.b16 %v449
      %v1735 = vunpack.c.h.b16 %v449
      %v1736 = vunpack.c.l.b16 %v450
      %v1737 = vunpack.c.h.b16 %v450
      %v1738 = vunpack.c.l.b16 %v451
      %v1739 = vunpack.c.h.b16 %v451
      %v1740 = vunpack.c.l.b16 %v452
      %v1741 = vunpack.c.h.b16 %v452
      %v1742 = vunpack.c.l.b16 %v453
      %v1743 = vunpack.c.h.b16 %v453
      %v1744 = vunpack.c.l.b16 %v454
      %v1745 = vunpack.c.h.b16 %v454
      %v1746 = vunpack.c.l.b16 %v455
      %v1747 = vunpack.c.h.b16 %v455
      %v1748 = vunpack.c.l.b16 %v456
      %v1749 = vunpack.c.h.b16 %v456
      %v1750 = vunpack.c.l.b16 %v457
      %v1751 = vunpack.c.h.b16 %v457
      %v1752 = vunpack.c.l.b16 %v458
      %v1753 = vunpack.c.h.b16 %v458
      %v1754 = vunpack.c.l.b16 %v459
      %v1755 = vunpack.c.h.b16 %v459
      %v1756 = vunpack.c.l.b16 %v460
      %v1757 = vunpack.c.h.b16 %v460
      %v1758 = vunpack.c.l.b16 %v461
      %v1759 = vunpack.c.h.b16 %v461
      %v1760 = vunpack.c.l.b16 %v462
      %v1761 = vunpack.c.h.b16 %v462
      %v1762 = vunpack.c.l.b16 %v463
      %v1763 = vunpack.c.h.b16 %v463
      %v1764 = vunpack.c.l.b16 %v464
      %v1765 = vunpack.c.h.b16 %v464
      %v1766 = vunpack.c.l.b16 %v465
      %v1767 = vunpack.c.h.b16 %v465
      %v1768 = vunpack.c.l.b16 %v466
      %v1769 = vunpack.c.h.b16 %v466
      %v1770 = vunpack.c.l.b16 %v467
      %v1771 = vunpack.c.h.b16 %v467
      %v1772 = vunpack.c.l.b16 %v468
      %v1773 = vunpack.c.h.b16 %v468
      %v1774 = vunpack.c.l.b16 %v469
      %v1775 = vunpack.c.h.b16 %v469
      %v1776 = vunpack.c.l.b16 %v470
      %v1777 = vunpack.c.h.b16 %v470
      %v1778 = vunpack.c.l.b16 %v471
      %v1779 = vunpack.c.h.b16 %v471
      %v1780 = vunpack.c.l.b16 %v472
      %v1781 = vunpack.c.h.b16 %v472
      %v1782 = vunpack.c.l.b16 %v473
      %v1783 = vunpack.c.h.b16 %v473
      %v1784 = vunpack.c.l.b16 %v474
      %v1785 = vunpack.c.h.b16 %v474
      %v1786 = vunpack.c.l.b16 %v475
      %v1787 = vunpack.c.h.b16 %v475
      %v1788 = vunpack.c.l.b16 %v476
      %v1789 = vunpack.c.h.b16 %v476
      %v1790 = vunpack.c.l.b16 %v477
      %v1791 = vunpack.c.h.b16 %v477
      %v1792 = vunpack.c.l.b16 %v478
      %v1793 = vunpack.c.h.b16 %v478
      %v1794 = vunpack.c.l.b16 %v479
      %v1795 = vunpack.c.h.b16 %v479
      %v1796 = vunpack.c.l.b16 %v480
      %v1797 = vunpack.c.h.b16 %v480
      %v1798 = vunpack.c.l.b16 %v481
      %v1799 = vunpack.c.h.b16 %v481
      %v1800 = vunpack.c.l.b16 %v482
      %v1801 = vunpack.c.h.b16 %v482
      %v1802 = vunpack.c.l.b16 %v483
      %v1803 = vunpack.c.h.b16 %v483
      %v1804 = vunpack.c.l.b16 %v484
      %v1805 = vunpack.c.h.b16 %v484
      %v1806 = vunpack.c.l.b16 %v485
      %v1807 = vunpack.c.h.b16 %v485
      %v1808 = vunpack.c.l.b16 %v486
      %v1809 = vunpack.c.h.b16 %v486
      %v1810 = vunpack.c.l.b16 %v487
      %v1811 = vunpack.c.h.b16 %v487
      %v1812 = vunpack.c.l.b16 %v488
      %v1813 = vunpack.c.h.b16 %v488
      %v1814 = vunpack.c.l.b16 %v489
      %v1815 = vunpack.c.h.b16 %v489
      %v1816 = vunpack.c.l.b16 %v490
      %v1817 = vunpack.c.h.b16 %v490
      %v1818 = vunpack.c.l.b16 %v491
      %v1819 = vunpack.c.h.b16 %v491
      %v1820 = vunpack.c.l.b16 %v492
      %v1821 = vunpack.c.h.b16 %v492
      %v1822 = vunpack.c.l.b16 %v493
      %v1823 = vunpack.c.h.b16 %v493
      %v1824 = vunpack.c.l.b16 %v494
      %v1825 = vunpack.c.h.b16 %v494
      %v1826 = vunpack.c.l.b16 %v495
      %v1827 = vunpack.c.h.b16 %v495
      %v1828 = vunpack.c.l.b16 %v496
      %v1829 = vunpack.c.h.b16 %v496
      %v1830 = vunpack.c.l.b16 %v497
      %v1831 = vunpack.c.h.b16 %v497
      %v1832 = vunpack.c.l.b16 %v498
      %v1833 = vunpack.c.h.b16 %v498
      %v1834 = vunpack.c.l.b16 %v499
      %v1835 = vunpack.c.h.b16 %v499
      %v1836 = vunpack.c.l.b16 %v500
      %v1837 = vunpack.c.h.b16 %v500
      %v1838 = vunpack.c.l.b16 %v501
      %v1839 = vunpack.c.h.b16 %v501
      %v1840 = vunpack.c.l.b16 %v502
      %v1841 = vunpack.c.h.b16 %v502
      %v1842 = vunpack.c.l.b16 %v503
      %v1843 = vunpack.c.h.b16 %v503
      %v1844 = vunpack.c.l.b16 %v504
      %v1845 = vunpack.c.h.b16 %v504
      %v1846 = vunpack.c.l.b16 %v505
      %v1847 = vunpack.c.h.b16 %v505
      %v1848 = vunpack.c.l.b16 %v506
      %v1849 = vunpack.c.h.b16 %v506
      %v1850 = vunpack.c.l.b16 %v507
      %v1851 = vunpack.c.h.b16 %v507
      %v1852 = vunpack.c.l.b16 %v508
      %v1853 = vunpack.c.h.b16 %v508
      %v1854 = vunpack.c.l.b16 %v509
      %v1855 = vunpack.c.h.b16 %v509
      %v1856 = vunpack.c.l.b16 %v510
      %v1857 = vunpack.c.h.b16 %v510
      %v1858 = vunpack.c.l.b16 %v511
      %v1859 = vunpack.c.h.b16 %v511
      %v1860 = vunpack.c.l.b16 %v512
      %v1861 = vunpack.c.h.b16 %v512
      %v1862 = vunpack.c.l.b16 %v513
      %v1863 = vunpack.c.h.b16 %v513
      %v1864 = vunpack.c.l.b16 %v514
      %v1865 = vunpack.c.h.b16 %v514
      %v1866 = vunpack.c.l.b16 %v515
      %v1867 = vunpack.c.h.b16 %v515
      %v1868 = vunpack.c.l.b16 %v516
      %v1869 = vunpack.c.h.b16 %v516
      %v1870 = vunpack.c.l.b16 %v517
      %v1871 = vunpack.c.h.b16 %v517
      %v1872 = vunpack.c.l.b16 %v518
      %v1873 = vunpack.c.h.b16 %v518
      %v1874 = vunpack.c.l.b16 %v519
      %v1875 = vunpack.c.h.b16 %v519
      %v1876 = vunpack.c.l.b16 %v520
      %v1877 = vunpack.c.h.b16 %v520
      %v1878 = vunpack.c.l.b16 %v521
      %v1879 = vunpack.c.h.b16 %v521
      %v1880 = vunpack.c.l.b16 %v522
      %v1881 = vunpack.c.h.b16 %v522
      %v1882 = vunpack.c.l.b16 %v523
      %v1883 = vunpack.c.h.b16 %v523
      %v1884 = vunpack.c.l.b16 %v524
      %v1885 = vunpack.c.h.b16 %v524
      %v1886 = vunpack.c.l.b16 %v525
      %v1887 = vunpack.c.h.b16 %v525
      %v1888 = vunpack.c.l.b16 %v526
      %v1889 = vunpack.c.h.b16 %v526
      %v1890 = vunpack.c.l.b16 %v527
      %v1891 = vunpack.c.h.b16 %v527
      %v1892 = vunpack.c.l.b16 %v528
      %v1893 = vunpack.c.h.b16 %v528
      %v1894 = vunpack.c.l.b16 %v529
      %v1895 = vunpack.c.h.b16 %v529
      %v1896 = vunpack.c.l.b16 %v530
      %v1897 = vunpack.c.h.b16 %v530
      %v1898 = vunpack.c.l.b16 %v531
      %v1899 = vunpack.c.h.b16 %v531
      %v1900 = vunpack.c.l.b16 %v532
      %v1901 = vunpack.c.h.b16 %v532
      %v1902 = vunpack.c.l.b16 %v533
      %v1903 = vunpack.c.h.b16 %v533
      %v1904 = vunpack.c.l.b16 %v534
      %v1905 = vunpack.c.h.b16 %v534
      %v1906 = vunpack.c.l.b16 %v535
      %v1907 = vunpack.c.h.b16 %v535
      %v1908 = vunpack.c.l.b16 %v536
      %v1909 = vunpack.c.h.b16 %v536
      %v1910 = vunpack.c.l.b16 %v537
      %v1911 = vunpack.c.h.b16 %v537
      %v1912 = vunpack.c.l.b16 %v538
      %v1913 = vunpack.c.h.b16 %v538
      %v1914 = vunpack.c.l.b16 %v539
      %v1915 = vunpack.c.h.b16 %v539
      %v1916 = vunpack.c.l.b16 %v540
      %v1917 = vunpack.c.h.b16 %v540
      %v1918 = vunpack.c.l.b16 %v541
      %v1919 = vunpack.c.h.b16 %v541
      %v1920 = vunpack.c.l.b16 %v542
      %v1921 = vunpack.c.h.b16 %v542
      %v1922 = vunpack.c.l.b16 %v543
      %v1923 = vunpack.c.h.b16 %v543
      %v1924 = vunpack.c.l.b16 %v544
      %v1925 = vunpack.c.h.b16 %v544
      %v1926 = vunpack.c.l.b16 %v545
      %v1927 = vunpack.c.h.b16 %v545
      %v1928 = vunpack.c.l.b16 %v546
      %v1929 = vunpack.c.h.b16 %v546
      %v1930 = vunpack.c.l.b16 %v547
      %v1931 = vunpack.c.h.b16 %v547
      %v1932 = vunpack.c.l.b16 %v548
      %v1933 = vunpack.c.h.b16 %v548
      %v1934 = vunpack.c.l.b16 %v549
      %v1935 = vunpack.c.h.b16 %v549
      %v1936 = vunpack.c.l.b16 %v550
      %v1937 = vunpack.c.h.b16 %v550
      %v1938 = vunpack.c.l.b16 %v551
      %v1939 = vunpack.c.h.b16 %v551
      %v1940 = vunpack.c.l.b16 %v552
      %v1941 = vunpack.c.h.b16 %v552
      %v1942 = vunpack.c.l.b16 %v553
      %v1943 = vunpack.c.h.b16 %v553
      %v1944 = vunpack.c.l.b16 %v554
      %v1945 = vunpack.c.h.b16 %v554
      %v1946 = vunpack.c.l.b16 %v555
      %v1947 = vunpack.c.h.b16 %v555
      %v1948 = vunpack.c.l.b16 %v556
      %v1949 = vunpack.c.h.b16 %v556
      %v1950 = vunpack.c.l.b16 %v557
      %v1951 = vunpack.c.h.b16 %v557
      %v1952 = vunpack.c.l.b16 %v558
      %v1953 = vunpack.c.h.b16 %v558
      %v1954 = vunpack.c.l.b16 %v559
      %v1955 = vunpack.c.h.b16 %v559
      %v1956 = vunpack.c.l.b16 %v560
      %v1957 = vunpack.c.h.b16 %v560
      %v1958 = vunpack.c.l.b16 %v561
      %v1959 = vunpack.c.h.b16 %v561
      %v1960 = vunpack.c.l.b16 %v562
      %v1961 = vunpack.c.h.b16 %v562
      %v1962 = vunpack.c.l.b16 %v563
      %v1963 = vunpack.c.h.b16 %v563
      %v1964 = vunpack.c.l.b16 %v564
      %v1965 = vunpack.c.h.b16 %v564
      %v1966 = vunpack.c.l.b16 %v565
      %v1967 = vunpack.c.h.b16 %v565
      %v1968 = vunpack.c.l.b16 %v566
      %v1969 = vunpack.c.h.b16 %v566
      %v1970 = vunpack.c.l.b16 %v567
      %v1971 = vunpack.c.h.b16 %v567
      %v1972 = vunpack.c.l.b16 %v568
      %v1973 = vunpack.c.h.b16 %v568
      %v1974 = vunpack.c.l.b16 %v569
      %v1975 = vunpack.c.h.b16 %v569
      %v1976 = vunpack.c.l.b16 %v570
      %v1977 = vunpack.c.h.b16 %v570
      %v1978 = vunpack.c.l.b16 %v571
      %v1979 = vunpack.c.h.b16 %v571
      %v1980 = vunpack.c.l.b16 %v572
      %v1981 = vunpack.c.h.b16 %v572
      %v1982 = vunpack.c.l.b16 %v573
      %v1983 = vunpack.c.h.b16 %v573
      %v1984 = vunpack.c.l.b16 %v574
      %v1985 = vunpack.c.h.b16 %v574
      %v1986 = vunpack.c.l.b16 %v575
      %v1987 = vunpack.c.h.b16 %v575
      %v1988 = vunpack.c.l.b16 %v576
      %v1989 = vunpack.c.h.b16 %v576
      %v1990 = vunpack.c.l.b16 %v577
      %v1991 = vunpack.c.h.b16 %v577
      %v1992 = vunpack.c.l.b16 %v578
      %v1993 = vunpack.c.h.b16 %v578
      %v1994 = vunpack.c.l.b16 %v579
      %v1995 = vunpack.c.h.b16 %v579
      %v1996 = vunpack.c.l.b16 %v580
      %v1997 = vunpack.c.h.b16 %v580
      %v1998 = vunpack.c.l.b16 %v581
      %v1999 = vunpack.c.h.b16 %v581
      %v2000 = vunpack.c.l.b16 %v582
      %v2001 = vunpack.c.h.b16 %v582
      %v2002 = vunpack.c.l.b16 %v583
      %v2003 = vunpack.c.h.b16 %v583
      %v2004 = vunpack.c.l.b16 %v584
      %v2005 = vunpack.c.h.b16 %v584
      %v2006 = vunpack.c.l.b16 %v585
      %v2007 = vunpack.c.h.b16 %v585
      %v2008 = vunpack.c.l.b16 %v586
      %v2009 = vunpack.c.h.b16 %v586
      %v2010 = vunpack.c.l.b16 %v587
      %v2011 = vunpack.c.h.b16 %v587
      %v2012 = vunpack.c.l.b16 %v588
      %v2013 = vunpack.c.h.b16 %v588
      %v2014 = vunpack.c.l.b16 %v589
      %v2015 = vunpack.c.h.b16 %v589
      %v2016 = vunpack.c.l.b16 %v590
      %v2017 = vunpack.c.h.b16 %v590
      %v2018 = vunpack.c.l.b16 %v591
      %v2019 = vunpack.c.h.b16 %v591
      %v2020 = vunpack.c.l.b16 %v592
      %v2021 = vunpack.c.h.b16 %v592
      %v2022 = vunpack.c.l.b16 %v593
      %v2023 = vunpack.c.h.b16 %v593
      %v2024 = vunpack.c.l.b16 %v594
      %v2025 = vunpack.c.h.b16 %v594
      %v2026 = vunpack.c.l.b16 %v595
      %v2027 = vunpack.c.h.b16 %v595
      %v2028 = vunpack.c.l.b16 %v596
      %v2029 = vunpack.c.h.b16 %v596
      %v2030 = vunpack.c.l.b16 %v597
      %v2031 = vunpack.c.h.b16 %v597
      %v2032 = vunpack.c.l.b16 %v598
      %v2033 = vunpack.c.h.b16 %v598
      %v2034 = vunpack.c.l.b16 %v599
      %v2035 = vunpack.c.h.b16 %v599
      %v2036 = vunpack.c.l.b16 %v600
      %v2037 = vunpack.c.h.b16 %v600
      %v2038 = vunpack.c.l.b16 %v601
      %v2039 = vunpack.c.h.b16 %v601
      %v2040 = vunpack.c.l.b16 %v602
      %v2041 = vunpack.c.h.b16 %v602
      %v2042 = vunpack.c.l.b16 %v603
      %v2043 = vunpack.c.h.b16 %v603
      %v2044 = vunpack.c.l.b16 %v604
      %v2045 = vunpack.c.h.b16 %v604
      %v2046 = vunpack.c.l.b16 %v605
      %v2047 = vunpack.c.h.b16 %v605
      %v2048 = vunpack.c.l.b16 %v606
      %v2049 = vunpack.c.h.b16 %v606
      %v2050 = vunpack.c.l.b16 %v607
      %v2051 = vunpack.c.h.b16 %v607
      %v2052 = vunpack.c.l.b16 %v608
      %v2053 = vunpack.c.h.b16 %v608
      %v2054 = vunpack.c.l.b16 %v609
      %v2055 = vunpack.c.h.b16 %v609
      %v2056 = vunpack.c.l.b16 %v610
      %v2057 = vunpack.c.h.b16 %v610
      %v2058 = vunpack.c.l.b16 %v611
      %v2059 = vunpack.c.h.b16 %v611
      %v2060 = vunpack.c.l.b16 %v612
      %v2061 = vunpack.c.h.b16 %v612
      %v2062 = vunpack.c.l.b16 %v613
      %v2063 = vunpack.c.h.b16 %v613
      %v2064 = vunpack.c.l.b16 %v614
      %v2065 = vunpack.c.h.b16 %v614
      %v2066 = vunpack.c.l.b16 %v615
      %v2067 = vunpack.c.h.b16 %v615
      %v2068 = vunpack.c.l.b16 %v616
      %v2069 = vunpack.c.h.b16 %v616
      %v2070 = vunpack.c.l.b16 %v617
      %v2071 = vunpack.c.h.b16 %v617
      %v2072 = vunpack.c.l.b16 %v618
      %v2073 = vunpack.c.h.b16 %v618
      %v2074 = vunpack.c.l.b16 %v619
      %v2075 = vunpack.c.h.b16 %v619
      %v2076 = vunpack.c.l.b16 %v620
      %v2077 = vunpack.c.h.b16 %v620
      %v2078 = vunpack.c.l.b16 %v621
      %v2079 = vunpack.c.h.b16 %v621
      %v2080 = vunpack.c.l.b16 %v622
      %v2081 = vunpack.c.h.b16 %v622
      %v2082 = vunpack.c.l.b16 %v623
      %v2083 = vunpack.c.h.b16 %v623
      %v2084 = vunpack.c.l.b16 %v624
      %v2085 = vunpack.c.h.b16 %v624
      %v2086 = vunpack.c.l.b16 %v625
      %v2087 = vunpack.c.h.b16 %v625
      %v2088 = vunpack.c.l.b16 %v626
      %v2089 = vunpack.c.h.b16 %v626
      %v2090 = vunpack.c.l.b16 %v627
      %v2091 = vunpack.c.h.b16 %v627
      %v2092 = vunpack.c.l.b16 %v628
      %v2093 = vunpack.c.h.b16 %v628
      %v2094 = vunpack.c.l.b16 %v629
      %v2095 = vunpack.c.h.b16 %v629
      %v2096 = vunpack.c.l.b16 %v630
      %v2097 = vunpack.c.h.b16 %v630
      %v2098 = vunpack.c.l.b16 %v631
      %v2099 = vunpack.c.h.b16 %v631
      %v2100 = vunpack.c.l.b16 %v632
      %v2101 = vunpack.c.h.b16 %v632
      %v2102 = vunpack.c.l.b16 %v633
      %v2103 = vunpack.c.h.b16 %v633
      %v2104 = vunpack.c.l.b16 %v634
      %v2105 = vunpack.c.h.b16 %v634
      %v2106 = vunpack.c.l.b16 %v635
      %v2107 = vunpack.c.h.b16 %v635
      %v2108 = vunpack.c.l.b16 %v636
      %v2109 = vunpack.c.h.b16 %v636
      %v2110 = vunpack.c.l.b16 %v637
      %v2111 = vunpack.c.h.b16 %v637
      %v2112 = vunpack.c.l.b16 %v638
      %v2113 = vunpack.c.h.b16 %v638
      %v2114 = vunpack.c.l.b16 %v639
      %v2115 = vunpack.c.h.b16 %v639
      %v2116 = vunpack.c.l.b16 %v640
      %v2117 = vunpack.c.h.b16 %v640
      %v2118 = vunpack.c.l.b16 %v641
      %v2119 = vunpack.c.h.b16 %v641
      %v2120 = vunpack.c.l.b16 %v642
      %v2121 = vunpack.c.h.b16 %v642
      %v2122 = vunpack.c.l.b16 %v643
      %v2123 = vunpack.c.h.b16 %v643
      %v2124 = vunpack.c.l.b16 %v644
      %v2125 = vunpack.c.h.b16 %v644
      %v2126 = vunpack.c.l.b16 %v645
      %v2127 = vunpack.c.h.b16 %v645
      %v2128 = vunpack.c.l.b16 %v646
      %v2129 = vunpack.c.h.b16 %v646
      %v2130 = vunpack.c.l.b16 %v647
      %v2131 = vunpack.c.h.b16 %v647
      %v2132 = vunpack.c.l.b16 %v648
      %v2133 = vunpack.c.h.b16 %v648
      %v2134 = vunpack.c.l.b16 %v649
      %v2135 = vunpack.c.h.b16 %v649
      %v2136 = vunpack.c.l.b16 %v650
      %v2137 = vunpack.c.h.b16 %v650
      %v2138 = vunpack.c.l.b16 %v651
      %v2139 = vunpack.c.h.b16 %v651
      %v2140 = vunpack.c.l.b16 %v652
      %v2141 = vunpack.c.h.b16 %v652
      %v2142 = vunpack.c.l.b16 %v653
      %v2143 = vunpack.c.h.b16 %v653
      %v2144 = vunpack.c.l.b16 %v654
      %v2145 = vunpack.c.h.b16 %v654
      %v2146 = vunpack.c.l.b16 %v655
      %v2147 = vunpack.c.h.b16 %v655
      %v2148 = vunpack.c.l.b16 %v656
      %v2149 = vunpack.c.h.b16 %v656
      %v2150 = vunpack.c.l.b16 %v657
      %v2151 = vunpack.c.h.b16 %v657
      %v2152 = vunpack.c.l.b16 %v658
      %v2153 = vunpack.c.h.b16 %v658
      %v2154 = vunpack.c.l.b16 %v659
      %v2155 = vunpack.c.h.b16 %v659
      %v2156 = vunpack.c.l.b16 %v660
      %v2157 = vunpack.c.h.b16 %v660
      %v2158 = vunpack.c.l.b16 %v661
      %v2159 = vunpack.c.h.b16 %v661
      %v2160 = vunpack.c.l.b16 %v662
      %v2161 = vunpack.c.h.b16 %v662
      %v2162 = vunpack.c.l.b16 %v663
      %v2163 = vunpack.c.h.b16 %v663
      %v2164 = vunpack.c.l.b16 %v664
      %v2165 = vunpack.c.h.b16 %v664
      %v2166 = vunpack.c.l.b16 %v665
      %v2167 = vunpack.c.h.b16 %v665
      %v2168 = vunpack.c.l.b16 %v666
      %v2169 = vunpack.c.h.b16 %v666
      %v2170 = vunpack.c.l.b16 %v667
      %v2171 = vunpack.c.h.b16 %v667
      %v2172 = vunpack.c.l.b16 %v668
      %v2173 = vunpack.c.h.b16 %v668
      %v2174 = vunpack.c.l.b16 %v669
      %v2175 = vunpack.c.h.b16 %v669
      %v2176 = vunpack.c.l.b16 %v670
      %v2177 = vunpack.c.h.b16 %v670
      %v2178 = vunpack.c.l.b16 %v671
      %v2179 = vunpack.c.h.b16 %v671
      %v2180 = vunpack.c.l.b16 %v672
      %v2181 = vunpack.c.h.b16 %v672
      %v2182 = vunpack.c.l.b16 %v673
      %v2183 = vunpack.c.h.b16 %v673
      %v2184 = vunpack.c.l.b16 %v674
      %v2185 = vunpack.c.h.b16 %v674
      %v2186 = vunpack.c.l.b16 %v675
      %v2187 = vunpack.c.h.b16 %v675
      %v2188 = vunpack.c.l.b16 %v676
      %v2189 = vunpack.c.h.b16 %v676
      %v2190 = vunpack.c.l.b16 %v677
      %v2191 = vunpack.c.h.b16 %v677
      %v2192 = vunpack.c.l.b16 %v678
      %v2193 = vunpack.c.h.b16 %v678
      %v2194 = vunpack.c.l.b16 %v679
      %v2195 = vunpack.c.h.b16 %v679
      %v2196 = vunpack.c.l.b16 %v680
      %v2197 = vunpack.c.h.b16 %v680
      %v2198 = vunpack.c.l.b16 %v681
      %v2199 = vunpack.c.h.b16 %v681
      %v2200 = vunpack.c.l.b16 %v682
      %v2201 = vunpack.c.h.b16 %v682
      %v2202 = vunpack.c.l.b16 %v683
      %v2203 = vunpack.c.h.b16 %v683
      %v2204 = vunpack.c.l.b16 %v684
      %v2205 = vunpack.c.h.b16 %v684
      %v2206 = vunpack.c.l.b16 %v685
      %v2207 = vunpack.c.h.b16 %v685
      %v2208 = vunpack.c.l.b16 %v686
      %v2209 = vunpack.c.h.b16 %v686
      %v2210 = vunpack.c.l.b16 %v687
      %v2211 = vunpack.c.h.b16 %v687
      %v2212 = vunpack.c.l.b16 %v688
      %v2213 = vunpack.c.h.b16 %v688
      %v2214 = vunpack.c.l.b16 %v689
      %v2215 = vunpack.c.h.b16 %v689
      %v2216 = vunpack.c.l.b16 %v690
      %v2217 = vunpack.c.h.b16 %v690
      %v2218 = vunpack.c.l.b16 %v691
      %v2219 = vunpack.c.h.b16 %v691
      %v2220 = vunpack.c.l.b16 %v692
      %v2221 = vunpack.c.h.b16 %v692
      %v2222 = vunpack.c.l.b16 %v693
      %v2223 = vunpack.c.h.b16 %v693
      %v2224 = vunpack.c.l.b16 %v694
      %v2225 = vunpack.c.h.b16 %v694
      %v2226 = vunpack.c.l.b16 %v695
      %v2227 = vunpack.c.h.b16 %v695
      %v2228 = vunpack.c.l.b16 %v696
      %v2229 = vunpack.c.h.b16 %v696
      %v2230 = vunpack.c.l.b16 %v697
      %v2231 = vunpack.c.h.b16 %v697
      %v2232 = vunpack.c.l.b16 %v698
      %v2233 = vunpack.c.h.b16 %v698
      %v2234 = vunpack.c.l.b16 %v699
      %v2235 = vunpack.c.h.b16 %v699
      %v2236 = vunpack.c.l.b16 %v700
      %v2237 = vunpack.c.h.b16 %v700
      %v2238 = vunpack.c.l.b16 %v701
      %v2239 = vunpack.c.h.b16 %v701
      %v2240 = vunpack.c.l.b16 %v702
      %v2241 = vunpack.c.h.b16 %v702
      %v2242 = vunpack.c.l.b16 %v703
      %v2243 = vunpack.c.h.b16 %v703
      %v2244 = vunpack.c.l.b16 %v704
      %v2245 = vunpack.c.h.b16 %v704
      %v2246 = vunpack.c.l.b16 %v705
      %v2247 = vunpack.c.h.b16 %v705
      %v2248 = vunpack.c.l.b16 %v706
      %v2249 = vunpack.c.h.b16 %v706
      %v2250 = vunpack.c.l.b16 %v707
      %v2251 = vunpack.c.h.b16 %v707
      %v2252 = vunpack.c.l.b16 %v708
      %v2253 = vunpack.c.h.b16 %v708
      %v2254 = vunpack.c.l.b16 %v709
      %v2255 = vunpack.c.h.b16 %v709
      %v2256 = vunpack.c.l.b16 %v710
      %v2257 = vunpack.c.h.b16 %v710
      %v2258 = vunpack.c.l.b16 %v711
      %v2259 = vunpack.c.h.b16 %v711
      %v2260 = vunpack.c.l.b16 %v712
      %v2261 = vunpack.c.h.b16 %v712
      %v2262 = vunpack.c.l.b16 %v713
      %v2263 = vunpack.c.h.b16 %v713
      %v2264 = vunpack.c.l.b16 %v714
      %v2265 = vunpack.c.h.b16 %v714
      %v2266 = vunpack.c.l.b16 %v715
      %v2267 = vunpack.c.h.b16 %v715
      %v2268 = vunpack.c.l.b16 %v716
      %v2269 = vunpack.c.h.b16 %v716
      %v2270 = vunpack.c.l.b16 %v717
      %v2271 = vunpack.c.h.b16 %v717
      %v2272 = vunpack.c.l.b16 %v718
      %v2273 = vunpack.c.h.b16 %v718
      %v2274 = vunpack.c.l.b16 %v719
      %v2275 = vunpack.c.h.b16 %v719
      %v2276 = vunpack.c.l.b16 %v720
      %v2277 = vunpack.c.h.b16 %v720
      %v2278 = vunpack.c.l.b16 %v721
      %v2279 = vunpack.c.h.b16 %v721
      %v2280 = vunpack.c.l.b16 %v722
      %v2281 = vunpack.c.h.b16 %v722
      %v2282 = vunpack.c.l.b16 %v723
      %v2283 = vunpack.c.h.b16 %v723
      %v2284 = vunpack.c.l.b16 %v724
      %v2285 = vunpack.c.h.b16 %v724
      %v2286 = vunpack.c.l.b16 %v725
      %v2287 = vunpack.c.h.b16 %v725
      %v2288 = vunpack.c.l.b16 %v726
      %v2289 = vunpack.c.h.b16 %v726
      %v2290 = vunpack.c.l.b16 %v727
      %v2291 = vunpack.c.h.b16 %v727
      %v2292 = vunpack.c.l.b16 %v728
      %v2293 = vunpack.c.h.b16 %v728
      %v2294 = vunpack.c.l.b16 %v729
      %v2295 = vunpack.c.h.b16 %v729
      %v2296 = vunpack.c.l.b16 %v730
      %v2297 = vunpack.c.h.b16 %v730
      %v2298 = vunpack.c.l.b16 %v731
      %v2299 = vunpack.c.h.b16 %v731
      %v2300 = vunpack.c.l.b16 %v732
      %v2301 = vunpack.c.h.b16 %v732
      %v2302 = vunpack.c.l.b16 %v733
      %v2303 = vunpack.c.h.b16 %v733
      %v2304 = vunpack.c.l.b16 %v734
      %v2305 = vunpack.c.h.b16 %v734
      %v2306 = vunpack.c.l.b16 %v735
      %v2307 = vunpack.c.h.b16 %v735
      %v2308 = vunpack.c.l.b16 %v736
      %v2309 = vunpack.c.h.b16 %v736
      %v2310 = vunpack.c.l.b16 %v737
      %v2311 = vunpack.c.h.b16 %v737
      %v2312 = vunpack.c.l.b16 %v738
      %v2313 = vunpack.c.h.b16 %v738
      %v2314 = vunpack.c.l.b16 %v739
      %v2315 = vunpack.c.h.b16 %v739
      %v2316 = vunpack.c.l.b16 %v740
      %v2317 = vunpack.c.h.b16 %v740
      %v2318 = vunpack.c.l.b16 %v741
      %v2319 = vunpack.c.h.b16 %v741
      %v2320 = vunpack.c.l.b16 %v742
      %v2321 = vunpack.c.h.b16 %v742
      %v2322 = vunpack.c.l.b16 %v743
      %v2323 = vunpack.c.h.b16 %v743
      %v2324 = vunpack.c.l.b16 %v744
      %v2325 = vunpack.c.h.b16 %v744
      %v2326 = vunpack.c.l.b16 %v745
      %v2327 = vunpack.c.h.b16 %v745
      %v2328 = vunpack.c.l.b16 %v746
      %v2329 = vunpack.c.h.b16 %v746
      %v2330 = vunpack.c.l.b16 %v747
      %v2331 = vunpack.c.h.b16 %v747
      %v2332 = vunpack.c.l.b16 %v748
      %v2333 = vunpack.c.h.b16 %v748
      %v2334 = vunpack.c.l.b16 %v749
      %v2335 = vunpack.c.h.b16 %v749
      %v2336 = vunpack.c.l.b16 %v750
      %v2337 = vunpack.c.h.b16 %v750
      %v2338 = vunpack.c.l.b16 %v751
      %v2339 = vunpack.c.h.b16 %v751
      %v2340 = vunpack.c.l.b16 %v752
      %v2341 = vunpack.c.h.b16 %v752
      %v2342 = vunpack.c.l.b16 %v753
      %v2343 = vunpack.c.h.b16 %v753
      %v2344 = vunpack.c.l.b16 %v754
      %v2345 = vunpack.c.h.b16 %v754
      %v2346 = vunpack.c.l.b16 %v755
      %v2347 = vunpack.c.h.b16 %v755
      %v2348 = vpack.c.b16 %v1328, %v1324
      %v2349 = vpack.c.b16 %v1329, %v1325
      %v2350 = vpack.c.b16 %v1330, %v1326
      %v2351 = vpack.c.b16 %v1331, %v1327
      %v2352 = vpack.c.b16 %v1336, %v1332
      %v2353 = vpack.c.b16 %v1337, %v1333
      %v2354 = vpack.c.b16 %v1338, %v1334
      %v2355 = vpack.c.b16 %v1339, %v1335
      %v2356 = vpack.c.b16 %v1344, %v1340
      %v2357 = vpack.c.b16 %v1345, %v1341
      %v2358 = vpack.c.b16 %v1346, %v1342
      %v2359 = vpack.c.b16 %v1347, %v1343
      %v2360 = vpack.c.b16 %v1352, %v1348
      %v2361 = vpack.c.b16 %v1353, %v1349
      %v2362 = vpack.c.b16 %v1354, %v1350
      %v2363 = vpack.c.b16 %v1355, %v1351
      %v2364 = vpack.c.b16 %v1360, %v1356
      %v2365 = vpack.c.b16 %v1361, %v1357
      %v2366 = vpack.c.b16 %v1362, %v1358
      %v2367 = vpack.c.b16 %v1363, %v1359
      %v2368 = vpack.c.b16 %v1368, %v1364
      %v2369 = vpack.c.b16 %v1369, %v1365
      %v2370 = vpack.c.b16 %v1370, %v1366
      %v2371 = vpack.c.b16 %v1371, %v1367
      %v2372 = vpack.c.b16 %v1376, %v1372
      %v2373 = vpack.c.b16 %v1377, %v1373
      %v2374 = vpack.c.b16 %v1378, %v1374
      %v2375 = vpack.c.b16 %v1379, %v1375
      %v2376 = vpack.c.b16 %v1384, %v1380
      %v2377 = vpack.c.b16 %v1385, %v1381
      %v2378 = vpack.c.b16 %v1386, %v1382
      %v2379 = vpack.c.b16 %v1387, %v1383
      %v2380 = vpack.c.b16 %v1392, %v1388
      %v2381 = vpack.c.b16 %v1393, %v1389
      %v2382 = vpack.c.b16 %v1394, %v1390
      %v2383 = vpack.c.b16 %v1395, %v1391
      %v2384 = vpack.c.b16 %v1400, %v1396
      %v2385 = vpack.c.b16 %v1401, %v1397
      %v2386 = vpack.c.b16 %v1402, %v1398
      %v2387 = vpack.c.b16 %v1403, %v1399
      %v2388 = vpack.c.b16 %v1408, %v1404
      %v2389 = vpack.c.b16 %v1409, %v1405
      %v2390 = vpack.c.b16 %v1410, %v1406
      %v2391 = vpack.c.b16 %v1411, %v1407
      %v2392 = vpack.c.b16 %v1416, %v1412
      %v2393 = vpack.c.b16 %v1417, %v1413
      %v2394 = vpack.c.b16 %v1418, %v1414
      %v2395 = vpack.c.b16 %v1419, %v1415
      %v2396 = vpack.c.b16 %v1424, %v1420
      %v2397 = vpack.c.b16 %v1425, %v1421
      %v2398 = vpack.c.b16 %v1426, %v1422
      %v2399 = vpack.c.b16 %v1427, %v1423
      %v2400 = vpack.c.b16 %v1432, %v1428
      %v2401 = vpack.c.b16 %v1433, %v1429
      %v2402 = vpack.c.b16 %v1434, %v1430
      %v2403 = vpack.c.b16 %v1435, %v1431
      %v2404 = vpack.c.b16 %v1440, %v1436
      %v2405 = vpack.c.b16 %v1441, %v1437
      %v2406 = vpack.c.b16 %v1442, %v1438
      %v2407 = vpack.c.b16 %v1443, %v1439
      %v2408 = vpack.c.b16 %v1448, %v1444
      %v2409 = vpack.c.b16 %v1449, %v1445
      %v2410 = vpack.c.b16 %v1450, %v1446
      %v2411 = vpack.c.b16 %v1451, %v1447
      %v2412 = vpack.c.b16 %v1456, %v1452
      %v2413 = vpack.c.b16 %v1457, %v1453
      %v2414 = vpack.c.b16 %v1458, %v1454
      %v2415 = vpack.c.b16 %v1459, %v1455
      %v2416 = vpack.c.b16 %v1464, %v1460
      %v2417 = vpack.c.b16 %v1465, %v1461
      %v2418 = vpack.c.b16 %v1466, %v1462
      %v2419 = vpack.c.b16 %v1467, %v1463
      %v2420 = vpack.c.b16 %v1472, %v1468
      %v2421 = vpack.c.b16 %v1473, %v1469
      %v2422 = vpack.c.b16 %v1474, %v1470
      %v2423 = vpack.c.b16 %v1475, %v1471
      %v2424 = vpack.c.b16 %v1480, %v1476
      %v2425 = vpack.c.b16 %v1481, %v1477
      %v2426 = vpack.c.b16 %v1482, %v1478
      %v2427 = vpack.c.b16 %v1483, %v1479
      %v2428 = vpack.c.b16 %v1488, %v1484
      %v2429 = vpack.c.b16 %v1489, %v1485
      %v2430 = vpack.c.b16 %v1490, %v1486
      %v2431 = vpack.c.b16 %v1491, %v1487
      %v2432 = vpack.c.b16 %v1496, %v1492
      %v2433 = vpack.c.b16 %v1497, %v1493
      %v2434 = vpack.c.b16 %v1498, %v1494
      %v2435 = vpack.c.b16 %v1499, %v1495
      %v2436 = vpack.c.b16 %v1504, %v1500
      %v2437 = vpack.c.b16 %v1505, %v1501
      %v2438 = vpack.c.b16 %v1506, %v1502
      %v2439 = vpack.c.b16 %v1507, %v1503
      %v2440 = vpack.c.b16 %v1512, %v1508
      %v2441 = vpack.c.b16 %v1513, %v1509
      %v2442 = vpack.c.b16 %v1514, %v1510
      %v2443 = vpack.c.b16 %v1515, %v1511
      %v2444 = vpack.c.b16 %v1520, %v1516
      %v2445 = vpack.c.b16 %v1521, %v1517
      %v2446 = vpack.c.b16 %v1522, %v1518
      %v2447 = vpack.c.b16 %v1523, %v1519
      %v2448 = vpack.c.b16 %v1528, %v1524
      %v2449 = vpack.c.b16 %v1529, %v1525
      %v2450 = vpack.c.b16 %v1530, %v1526
      %v2451 = vpack.c.b16 %v1531, %v1527
      %v2452 = vpack.c.b16 %v1536, %v1532
      %v2453 = vpack.c.b16 %v1537, %v1533
      %v2454 = vpack.c.b16 %v1538, %v1534
      %v2455 = vpack.c.b16 %v1539, %v1535
      %v2456 = vpack.c.b16 %v1544, %v1540
      %v2457 = vpack.c.b16 %v1545, %v1541
      %v2458 = vpack.c.b16 %v1546, %v1542
      %v2459 = vpack.c.b16 %v1547, %v1543
      %v2460 = vpack.c.b16 %v1552, %v1548
      %v2461 = vpack.c.b16 %v1553, %v1549
      %v2462 = vpack.c.b16 %v1554, %v1550
      %v2463 = vpack.c.b16 %v1555, %v1551
      %v2464 = vpack.c.b16 %v1560, %v1556
      %v2465 = vpack.c.b16 %v1561, %v1557
      %v2466 = vpack.c.b16 %v1562, %v1558
      %v2467 = vpack.c.b16 %v1563, %v1559
      %v2468 = vpack.c.b16 %v1568, %v1564
      %v2469 = vpack.c.b16 %v1569, %v1565
      %v2470 = vpack.c.b16 %v1570, %v1566
      %v2471 = vpack.c.b16 %v1571, %v1567
      %v2472 = vpack.c.b16 %v1576, %v1572
      %v2473 = vpack.c.b16 %v1577, %v1573
      %v2474 = vpack.c.b16 %v1578, %v1574
      %v2475 = vpack.c.b16 %v1579, %v1575
      %v2476 = vpack.c.b16 %v1584, %v1580
      %v2477 = vpack.c.b16 %v1585, %v1581
      %v2478 = vpack.c.b16 %v1586, %v1582
      %v2479 = vpack.c.b16 %v1587, %v1583
      %v2480 = vpack.c.b16 %v1592, %v1588
      %v2481 = vpack.c.b16 %v1593, %v1589
      %v2482 = vpack.c.b16 %v1594, %v1590
      %v2483 = vpack.c.b16 %v1595, %v1591
      %v2484 = vpack.c.b16 %v1600, %v1596
      %v2485 = vpack.c.b16 %v1601, %v1597
      %v2486 = vpack.c.b16 %v1602, %v1598
      %v2487 = vpack.c.b16 %v1603, %v1599
      %v2488 = vpack.c.b16 %v1608, %v1604
      %v2489 = vpack.c.b16 %v1609, %v1605
      %v2490 = vpack.c.b16 %v1610, %v1606
      %v2491 = vpack.c.b16 %v1611, %v1607
      %v2492 = vpack.c.b16 %v1616, %v1612
      %v2493 = vpack.c.b16 %v1617, %v1613
      %v2494 = vpack.c.b16 %v1618, %v1614
      %v2495 = vpack.c.b16 %v1619, %v1615
      %v2496 = vpack.c.b16 %v1624, %v1620
      %v2497 = vpack.c.b16 %v1625, %v1621
      %v2498 = vpack.c.b16 %v1626, %v1622
      %v2499 = vpack.c.b16 %v1627, %v1623
      %v2500 = vpack.c.b16 %v1632, %v1628
      %v2501 = vpack.c.b16 %v1633, %v1629
      %v2502 = vpack.c.b16 %v1634, %v1630
      %v2503 = vpack.c.b16 %v1635, %v1631
      %v2504 = vpack.c.b16 %v1640, %v1636
      %v2505 = vpack.c.b16 %v1641, %v1637
      %v2506 = vpack.c.b16 %v1642, %v1638
      %v2507 = vpack.c.b16 %v1643, %v1639
      %v2508 = vpack.c.b16 %v1648, %v1644
      %v2509 = vpack.c.b16 %v1649, %v1645
      %v2510 = vpack.c.b16 %v1650, %v1646
      %v2511 = vpack.c.b16 %v1651, %v1647
      %v2512 = vpack.c.b16 %v1656, %v1652
      %v2513 = vpack.c.b16 %v1657, %v1653
      %v2514 = vpack.c.b16 %v1658, %v1654
      %v2515 = vpack.c.b16 %v1659, %v1655
      %v2516 = vpack.c.b16 %v1664, %v1660
      %v2517 = vpack.c.b16 %v1665, %v1661
      %v2518 = vpack.c.b16 %v1666, %v1662
      %v2519 = vpack.c.b16 %v1667, %v1663
      %v2520 = vpack.c.b16 %v1672, %v1668
      %v2521 = vpack.c.b16 %v1673, %v1669
      %v2522 = vpack.c.b16 %v1674, %v1670
      %v2523 = vpack.c.b16 %v1675, %v1671
      %v2524 = vpack.c.b16 %v1680, %v1676
      %v2525 = vpack.c.b16 %v1681, %v1677
      %v2526 = vpack.c.b16 %v1682, %v1678
      %v2527 = vpack.c.b16 %v1683, %v1679
      %v2528 = vpack.c.b16 %v1688, %v1684
      %v2529 = vpack.c.b16 %v1689, %v1685
      %v2530 = vpack.c.b16 %v1690, %v1686
      %v2531 = vpack.c.b16 %v1691, %v1687
      %v2532 = vpack.c.b16 %v1696, %v1692
      %v2533 = vpack.c.b16 %v1697, %v1693
      %v2534 = vpack.c.b16 %v1698, %v1694
      %v2535 = vpack.c.b16 %v1699, %v1695
      %v2536 = vpack.c.b16 %v1704, %v1700
      %v2537 = vpack.c.b16 %v1705, %v1701
      %v2538 = vpack.c.b16 %v1706, %v1702
      %v2539 = vpack.c.b16 %v1707, %v1703
      %v2540 = vpack.c.b16 %v1712, %v1708
      %v2541 = vpack.c.b16 %v1713, %v1709
      %v2542 = vpack.c.b16 %v1714, %v1710
      %v2543 = vpack.c.b16 %v1715, %v1711
      %v2544 = vpack.c.b16 %v1720, %v1716
      %v2545 = vpack.c.b16 %v1721, %v1717
      %v2546 = vpack.c.b16 %v1722, %v1718
      %v2547 = vpack.c.b16 %v1723, %v1719
      %v2548 = vpack.c.b16 %v1728, %v1724
      %v2549 = vpack.c.b16 %v1729, %v1725
      %v2550 = vpack.c.b16 %v1730, %v1726
      %v2551 = vpack.c.b16 %v1731, %v1727
      %v2552 = vpack.c.b16 %v1736, %v1732
      %v2553 = vpack.c.b16 %v1737, %v1733
      %v2554 = vpack.c.b16 %v1738, %v1734
      %v2555 = vpack.c.b16 %v1739, %v1735
      %v2556 = vpack.c.b16 %v1744, %v1740
      %v2557 = vpack.c.b16 %v1745, %v1741
      %v2558 = vpack.c.b16 %v1746, %v1742
      %v2559 = vpack.c.b16 %v1747, %v1743
      %v2560 = vpack.c.b16 %v1752, %v1748
      %v2561 = vpack.c.b16 %v1753, %v1749
      %v2562 = vpack.c.b16 %v1754, %v1750
      %v2563 = vpack.c.b16 %v1755, %v1751
      %v2564 = vpack.c.b16 %v1760, %v1756
      %v2565 = vpack.c.b16 %v1761, %v1757
      %v2566 = vpack.c.b16 %v1762, %v1758
      %v2567 = vpack.c.b16 %v1763, %v1759
      %v2568 = vpack.c.b16 %v1768, %v1764
      %v2569 = vpack.c.b16 %v1769, %v1765
      %v2570 = vpack.c.b16 %v1770, %v1766
      %v2571 = vpack.c.b16 %v1771, %v1767
      %v2572 = vpack.c.b16 %v1776, %v1772
      %v2573 = vpack.c.b16 %v1777, %v1773
      %v2574 = vpack.c.b16 %v1778, %v1774
      %v2575 = vpack.c.b16 %v1779, %v1775
      %v2576 = vpack.c.b16 %v1784, %v1780
      %v2577 = vpack.c.b16 %v1785, %v1781
      %v2578 = vpack.c.b16 %v1786, %v1782
      %v2579 = vpack.c.b16 %v1787, %v1783
      %v2580 = vpack.c.b16 %v1792, %v1788
      %v2581 = vpack.c.b16 %v1793, %v1789
      %v2582 = vpack.c.b16 %v1794, %v1790
      %v2583 = vpack.c.b16 %v1795, %v1791
      %v2584 = vpack.c.b16 %v1800, %v1796
      %v2585 = vpack.c.b16 %v1801, %v1797
      %v2586 = vpack.c.b16 %v1802, %v1798
      %v2587 = vpack.c.b16 %v1803, %v1799
      %v2588 = vpack.c.b16 %v1808, %v1804
      %v2589 = vpack.c.b16 %v1809, %v1805
      %v2590 = vpack.c.b16 %v1810, %v1806
      %v2591 = vpack.c.b16 %v1811, %v1807
      %v2592 = vpack.c.b16 %v1816, %v1812
      %v2593 = vpack.c.b16 %v1817, %v1813
      %v2594 = vpack.c.b16 %v1818, %v1814
      %v2595 = vpack.c.b16 %v1819, %v1815
      %v2596 = vpack.c.b16 %v1824, %v1820
      %v2597 = vpack.c.b16 %v1825, %v1821
      %v2598 = vpack.c.b16 %v1826, %v1822
      %v2599 = vpack.c.b16 %v1827, %v1823
      %v2600 = vpack.c.b16 %v1832, %v1828
      %v2601 = vpack.c.b16 %v1833, %v1829
      %v2602 = vpack.c.b16 %v1834, %v1830
      %v2603 = vpack.c.b16 %v1835, %v1831
      %v2604 = vpack.c.b16 %v1840, %v1836
      %v2605 = vpack.c.b16 %v1841, %v1837
      %v2606 = vpack.c.b16 %v1842, %v1838
      %v2607 = vpack.c.b16 %v1843, %v1839
      %v2608 = vpack.c.b16 %v1848, %v1844
      %v2609 = vpack.c.b16 %v1849, %v1845
      %v2610 = vpack.c.b16 %v1850, %v1846
      %v2611 = vpack.c.b16 %v1851, %v1847
      %v2612 = vpack.c.b16 %v1856, %v1852
      %v2613 = vpack.c.b16 %v1857, %v1853
      %v2614 = vpack.c.b16 %v1858, %v1854
      %v2615 = vpack.c.b16 %v1859, %v1855
      %v2616 = vpack.c.b16 %v1864, %v1860
      %v2617 = vpack.c.b16 %v1865, %v1861
      %v2618 = vpack.c.b16 %v1866, %v1862
      %v2619 = vpack.c.b16 %v1867, %v1863
      %v2620 = vpack.c.b16 %v1872, %v1868
      %v2621 = vpack.c.b16 %v1873, %v1869
      %v2622 = vpack.c.b16 %v1874, %v1870
      %v2623 = vpack.c.b16 %v1875, %v1871
      %v2624 = vpack.c.b16 %v1880, %v1876
      %v2625 = vpack.c.b16 %v1881, %v1877
      %v2626 = vpack.c.b16 %v1882, %v1878
      %v2627 = vpack.c.b16 %v1883, %v1879
      %v2628 = vpack.c.b16 %v1888, %v1884
      %v2629 = vpack.c.b16 %v1889, %v1885
      %v2630 = vpack.c.b16 %v1890, %v1886
      %v2631 = vpack.c.b16 %v1891, %v1887
      %v2632 = vpack.c.b16 %v1896, %v1892
      %v2633 = vpack.c.b16 %v1897, %v1893
      %v2634 = vpack.c.b16 %v1898, %v1894
      %v2635 = vpack.c.b16 %v1899, %v1895
      %v2636 = vpack.c.b16 %v1904, %v1900
      %v2637 = vpack.c.b16 %v1905, %v1901
      %v2638 = vpack.c.b16 %v1906, %v1902
      %v2639 = vpack.c.b16 %v1907, %v1903
      %v2640 = vpack.c.b16 %v1912, %v1908
      %v2641 = vpack.c.b16 %v1913, %v1909
      %v2642 = vpack.c.b16 %v1914, %v1910
      %v2643 = vpack.c.b16 %v1915, %v1911
      %v2644 = vpack.c.b16 %v1920, %v1916
      %v2645 = vpack.c.b16 %v1921, %v1917
      %v2646 = vpack.c.b16 %v1922, %v1918
      %v2647 = vpack.c.b16 %v1923, %v1919
      %v2648 = vpack.c.b16 %v1928, %v1924
      %v2649 = vpack.c.b16 %v1929, %v1925
      %v2650 = vpack.c.b16 %v1930, %v1926
      %v2651 = vpack.c.b16 %v1931, %v1927
      %v2652 = vpack.c.b16 %v1936, %v1932
      %v2653 = vpack.c.b16 %v1937, %v1933
      %v2654 = vpack.c.b16 %v1938, %v1934
      %v2655 = vpack.c.b16 %v1939, %v1935
      %v2656 = vpack.c.b16 %v1944, %v1940
      %v2657 = vpack.c.b16 %v1945, %v1941
      %v2658 = vpack.c.b16 %v1946, %v1942
      %v2659 = vpack.c.b16 %v1947, %v1943
      %v2660 = vpack.c.b16 %v1952, %v1948
      %v2661 = vpack.c.b16 %v1953, %v1949
      %v2662 = vpack.c.b16 %v1954, %v1950
      %v2663 = vpack.c.b16 %v1955, %v1951
      %v2664 = vpack.c.b16 %v1960, %v1956
      %v2665 = vpack.c.b16 %v1961, %v1957
      %v2666 = vpack.c.b16 %v1962, %v1958
      %v2667 = vpack.c.b16 %v1963, %v1959
      %v2668 = vpack.c.b16 %v1968, %v1964
      %v2669 = vpack.c.b16 %v1969, %v1965
      %v2670 = vpack.c.b16 %v1970, %v1966
      %v2671 = vpack.c.b16 %v1971, %v1967
      %v2672 = vpack.c.b16 %v1976, %v1972
      %v2673 = vpack.c.b16 %v1977, %v1973
      %v2674 = vpack.c.b16 %v1978, %v1974
      %v2675 = vpack.c.b16 %v1979, %v1975
      %v2676 = vpack.c.b16 %v1984, %v1980
      %v2677 = vpack.c.b16 %v1985, %v1981
      %v2678 = vpack.c.b16 %v1986, %v1982
      %v2679 = vpack.c.b16 %v1987, %v1983
      %v2680 = vpack.c.b16 %v1992, %v1988
      %v2681 = vpack.c.b16 %v1993, %v1989
      %v2682 = vpack.c.b16 %v1994, %v1990
      %v2683 = vpack.c.b16 %v1995, %v1991
      %v2684 = vpack.c.b16 %v2000, %v1996
      %v2685 = vpack.c.b16 %v2001, %v1997
      %v2686 = vpack.c.b16 %v2002, %v1998
      %v2687 = vpack.c.b16 %v2003, %v1999
      %v2688 = vpack.c.b16 %v2008, %v2004
      %v2689 = vpack.c.b16 %v2009, %v2005
      %v2690 = vpack.c.b16 %v2010, %v2006
      %v2691 = vpack.c.b16 %v2011, %v2007
      %v2692 = vpack.c.b16 %v2016, %v2012
      %v2693 = vpack.c.b16 %v2017, %v2013
      %v2694 = vpack.c.b16 %v2018, %v2014
      %v2695 = vpack.c.b16 %v2019, %v2015
      %v2696 = vpack.c.b16 %v2024, %v2020
      %v2697 = vpack.c.b16 %v2025, %v2021
      %v2698 = vpack.c.b16 %v2026, %v2022
      %v2699 = vpack.c.b16 %v2027, %v2023
      %v2700 = vpack.c.b16 %v2032, %v2028
      %v2701 = vpack.c.b16 %v2033, %v2029
      %v2702 = vpack.c.b16 %v2034, %v2030
      %v2703 = vpack.c.b16 %v2035, %v2031
      %v2704 = vpack.c.b16 %v2040, %v2036
      %v2705 = vpack.c.b16 %v2041, %v2037
      %v2706 = vpack.c.b16 %v2042, %v2038
      %v2707 = vpack.c.b16 %v2043, %v2039
      %v2708 = vpack.c.b16 %v2048, %v2044
      %v2709 = vpack.c.b16 %v2049, %v2045
      %v2710 = vpack.c.b16 %v2050, %v2046
      %v2711 = vpack.c.b16 %v2051, %v2047
      %v2712 = vpack.c.b16 %v2056, %v2052
      %v2713 = vpack.c.b16 %v2057, %v2053
      %v2714 = vpack.c.b16 %v2058, %v2054
      %v2715 = vpack.c.b16 %v2059, %v2055
      %v2716 = vpack.c.b16 %v2064, %v2060
      %v2717 = vpack.c.b16 %v2065, %v2061
      %v2718 = vpack.c.b16 %v2066, %v2062
      %v2719 = vpack.c.b16 %v2067, %v2063
      %v2720 = vpack.c.b16 %v2072, %v2068
      %v2721 = vpack.c.b16 %v2073, %v2069
      %v2722 = vpack.c.b16 %v2074, %v2070
      %v2723 = vpack.c.b16 %v2075, %v2071
      %v2724 = vpack.c.b16 %v2080, %v2076
      %v2725 = vpack.c.b16 %v2081, %v2077
      %v2726 = vpack.c.b16 %v2082, %v2078
      %v2727 = vpack.c.b16 %v2083, %v2079
      %v2728 = vpack.c.b16 %v2088, %v2084
      %v2729 = vpack.c.b16 %v2089, %v2085
      %v2730 = vpack.c.b16 %v2090, %v2086
      %v2731 = vpack.c.b16 %v2091, %v2087
      %v2732 = vpack.c.b16 %v2096, %v2092
      %v2733 = vpack.c.b16 %v2097, %v2093
      %v2734 = vpack.c.b16 %v2098, %v2094
      %v2735 = vpack.c.b16 %v2099, %v2095
      %v2736 = vpack.c.b16 %v2104, %v2100
      %v2737 = vpack.c.b16 %v2105, %v2101
      %v2738 = vpack.c.b16 %v2106, %v2102
      %v2739 = vpack.c.b16 %v2107, %v2103
      %v2740 = vpack.c.b16 %v2112, %v2108
      %v2741 = vpack.c.b16 %v2113, %v2109
      %v2742 = vpack.c.b16 %v2114, %v2110
      %v2743 = vpack.c.b16 %v2115, %v2111
      %v2744 = vpack.c.b16 %v2120, %v2116
      %v2745 = vpack.c.b16 %v2121, %v2117
      %v2746 = vpack.c.b16 %v2122, %v2118
      %v2747 = vpack.c.b16 %v2123, %v2119
      %v2748 = vpack.c.b16 %v2128, %v2124
      %v2749 = vpack.c.b16 %v2129, %v2125
      %v2750 = vpack.c.b16 %v2130, %v2126
      %v2751 = vpack.c.b16 %v2131, %v2127
      %v2752 = vpack.c.b16 %v2136, %v2132
      %v2753 = vpack.c.b16 %v2137, %v2133
      %v2754 = vpack.c.b16 %v2138, %v2134
      %v2755 = vpack.c.b16 %v2139, %v2135
      %v2756 = vpack.c.b16 %v2144, %v2140
      %v2757 = vpack.c.b16 %v2145, %v2141
      %v2758 = vpack.c.b16 %v2146, %v2142
      %v2759 = vpack.c.b16 %v2147, %v2143
      %v2760 = vpack.c.b16 %v2152, %v2148
      %v2761 = vpack.c.b16 %v2153, %v2149
      %v2762 = vpack.c.b16 %v2154, %v2150
      %v2763 = vpack.c.b16 %v2155, %v2151
      %v2764 = vpack.c.b16 %v2160, %v2156
      %v2765 = vpack.c.b16 %v2161, %v2157
      %v2766 = vpack.c.b16 %v2162, %v2158
      %v2767 = vpack.c.b16 %v2163, %v2159
      %v2768 = vpack.c.b16 %v2168, %v2164
      %v2769 = vpack.c.b16 %v2169, %v2165
      %v2770 = vpack.c.b16 %v2170, %v2166
      %v2771 = vpack.c.b16 %v2171, %v2167
      %v2772 = vpack.c.b16 %v2176, %v2172
      %v2773 = vpack.c.b16 %v2177, %v2173
      %v2774 = vpack.c.b16 %v2178, %v2174
      %v2775 = vpack.c.b16 %v2179, %v2175
      %v2776 = vpack.c.b16 %v2184, %v2180
      %v2777 = vpack.c.b16 %v2185, %v2181
      %v2778 = vpack.c.b16 %v2186, %v2182
      %v2779 = vpack.c.b16 %v2187, %v2183
      %v2780 = vpack.c.b16 %v2192, %v2188
      %v2781 = vpack.c.b16 %v2193, %v2189
      %v2782 = vpack.c.b16 %v2194, %v2190
      %v2783 = vpack.c.b16 %v2195, %v2191
      %v2784 = vpack.c.b16 %v2200, %v2196
      %v2785 = vpack.c.b16 %v2201, %v2197
      %v2786 = vpack.c.b16 %v2202, %v2198
      %v2787 = vpack.c.b16 %v2203, %v2199
      %v2788 = vpack.c.b16 %v2208, %v2204
      %v2789 = vpack.c.b16 %v2209, %v2205
      %v2790 = vpack.c.b16 %v2210, %v2206
      %v2791 = vpack.c.b16 %v2211, %v2207
      %v2792 = vpack.c.b16 %v2216, %v2212
      %v2793 = vpack.c.b16 %v2217, %v2213
      %v2794 = vpack.c.b16 %v2218, %v2214
      %v2795 = vpack.c.b16 %v2219, %v2215
      %v2796 = vpack.c.b16 %v2224, %v2220
      %v2797 = vpack.c.b16 %v2225, %v2221
      %v2798 = vpack.c.b16 %v2226, %v2222
      %v2799 = vpack.c.b16 %v2227, %v2223
      %v2800 = vpack.c.b16 %v2232, %v2228
      %v2801 = vpack.c.b16 %v2233, %v2229
      %v2802 = vpack.c.b16 %v2234, %v2230
      %v2803 = vpack.c.b16 %v2235, %v2231
      %v2804 = vpack.c.b16 %v2240, %v2236
      %v2805 = vpack.c.b16 %v2241, %v2237
      %v2806 = vpack.c.b16 %v2242, %v2238
      %v2807 = vpack.c.b16 %v2243, %v2239
      %v2808 = vpack.c.b16 %v2248, %v2244
      %v2809 = vpack.c.b16 %v2249, %v2245
      %v2810 = vpack.c.b16 %v2250, %v2246
      %v2811 = vpack.c.b16 %v2251, %v2247
      %v2812 = vpack.c.b16 %v2256, %v2252
      %v2813 = vpack.c.b16 %v2257, %v2253
      %v2814 = vpack.c.b16 %v2258, %v2254
      %v2815 = vpack.c.b16 %v2259, %v2255
      %v2816 = vpack.c.b16 %v2264, %v2260
      %v2817 = vpack.c.b16 %v2265, %v2261
      %v2818 = vpack.c.b16 %v2266, %v2262
      %v2819 = vpack.c.b16 %v2267, %v2263
      %v2820 = vpack.c.b16 %v2272, %v2268
      %v2821 = vpack.c.b16 %v2273, %v2269
      %v2822 = vpack.c.b16 %v2274, %v2270
      %v2823 = vpack.c.b16 %v2275, %v2271
      %v2824 = vpack.c.b16 %v2280, %v2276
      %v2825 = vpack.c.b16 %v2281, %v2277
      %v2826 = vpack.c.b16 %v2282, %v2278
      %v2827 = vpack.c.b16 %v2283, %v2279
      %v2828 = vpack.c.b16 %v2288, %v2284
      %v2829 = vpack.c.b16 %v2289, %v2285
      %v2830 = vpack.c.b16 %v2290, %v2286
      %v2831 = vpack.c.b16 %v2291, %v2287
      %v2832 = vpack.c.b16 %v2296, %v2292
      %v2833 = vpack.c.b16 %v2297, %v2293
      %v2834 = vpack.c.b16 %v2298, %v2294
      %v2835 = vpack.c.b16 %v2299, %v2295
      %v2836 = vpack.c.b16 %v2304, %v2300
      %v2837 = vpack.c.b16 %v2305, %v2301
      %v2838 = vpack.c.b16 %v2306, %v2302
      %v2839 = vpack.c.b16 %v2307, %v2303
      %v2840 = vpack.c.b16 %v2312, %v2308
      %v2841 = vpack.c.b16 %v2313, %v2309
      %v2842 = vpack.c.b16 %v2314, %v2310
      %v2843 = vpack.c.b16 %v2315, %v2311
      %v2844 = vpack.c.b16 %v2320, %v2316
      %v2845 = vpack.c.b16 %v2321, %v2317
      %v2846 = vpack.c.b16 %v2322, %v2318
      %v2847 = vpack.c.b16 %v2323, %v2319
      %v2848 = vpack.c.b16 %v2328, %v2324
      %v2849 = vpack.c.b16 %v2329, %v2325
      %v2850 = vpack.c.b16 %v2330, %v2326
      %v2851 = vpack.c.b16 %v2331, %v2327
      %v2852 = vpack.c.b16 %v2336, %v2332
      %v2853 = vpack.c.b16 %v2337, %v2333
      %v2854 = vpack.c.b16 %v2338, %v2334
      %v2855 = vpack.c.b16 %v2339, %v2335
      %v2856 = vpack.c.b16 %v2344, %v2340
      %v2857 = vpack.c.b16 %v2345, %v2341
      %v2858 = vpack.c.b16 %v2346, %v2342
      %v2859 = vpack.c.b16 %v2347, %v2343
      %3372 = vmatprep.subr.bf16.mxu0 %v2377
      %3373 = vmatpush1.bf16.msra.mxu0 %v2376
      %3374 = vmatprep.subr.bf16.mxu0 %v2373
      %3375 = vmatpush1.bf16.msra.mxu0 %v2372
      %3376 = vmatprep.subr.bf16.mxu0 %v2369
      %3377 = vmatpush1.bf16.msra.mxu0 %v2368
      %3378 = vmatprep.subr.bf16.mxu0 %v2365
      %3379 = vmatpush1.bf16.msra.mxu0 %v2364
      %3380 = vmatprep.subr.bf16.mxu0 %v2361
      %3381 = vmatpush1.bf16.msra.mxu0 %v2360
      %3382 = vmatprep.subr.bf16.mxu0 %v2357
      %3383 = vmatpush1.bf16.msra.mxu0 %v2356
      %3384 = vmatprep.subr.bf16.mxu0 %v2353
      %3385 = vmatpush1.bf16.msra.mxu0 %v2352
      %3386 = vmatprep.subr.bf16.mxu0 %v2349
      %3387 = vmatpush1.bf16.msra.mxu0 %v2348
      %3388 = vmatprep.subr.bf16.mxu0 %v2409
      %3389 = vmatpush2.bf16.msra.mxu0 %v2408
      %3390 = vmatprep.subr.bf16.mxu0 %v2405
      %3391 = vmatpush2.bf16.msra.mxu0 %v2404
      %3392 = vmatprep.subr.bf16.mxu0 %v2401
      %3393 = vmatpush2.bf16.msra.mxu0 %v2400
      %3394 = vmatprep.subr.bf16.mxu0 %v2397
      %3395 = vmatpush2.bf16.msra.mxu0 %v2396
      %3396 = vmatprep.subr.bf16.mxu0 %v2393
      %3397 = vmatpush2.bf16.msra.mxu0 %v2392
      %3398 = vmatprep.subr.bf16.mxu0 %v2389
      %3399 = vmatpush2.bf16.msra.mxu0 %v2388
      %3400 = vmatprep.subr.bf16.mxu0 %v2385
      %3401 = vmatpush2.bf16.msra.mxu0 %v2384
      %3402 = vmatprep.subr.bf16.mxu0 %v2381
      %3403 = vmatpush2.bf16.msra.mxu0 %v2380
      %3404 = vmatprep.mubr.bf16.mxu0 %v781
      %3405 = vmatmul.mubr.bf16.gmra.mxu0 %v780
      %v3406 = vpop.f32.mrf.mxu0
      %v3407 = vadd.f32 0.0, %v3406
      %v3408 = vpop.f32.mrf.mxu0
      %v3409 = vadd.f32 0.0, %v3408
      %v3410 = vpop.f32.mrf.mxu0
      %v3411 = vpop.f32.mrf.mxu0
      %3412 = vdwg.mxu0
      %3413 = vmatprep.subr.bf16.mxu0 %v2441
      %3414 = vmatpush1.bf16.msra.mxu0 %v2440
      %3415 = vmatprep.subr.bf16.mxu0 %v2437
      %3416 = vmatpush1.bf16.msra.mxu0 %v2436
      %3417 = vmatprep.subr.bf16.mxu0 %v2433
      %3418 = vmatpush1.bf16.msra.mxu0 %v2432
      %3419 = vmatprep.subr.bf16.mxu0 %v2429
      %3420 = vmatpush1.bf16.msra.mxu0 %v2428
      %3421 = vmatprep.subr.bf16.mxu0 %v2425
      %3422 = vmatpush1.bf16.msra.mxu0 %v2424
      %3423 = vmatprep.subr.bf16.mxu0 %v2421
      %3424 = vmatpush1.bf16.msra.mxu0 %v2420
      %3425 = vmatprep.subr.bf16.mxu0 %v2417
      %3426 = vmatpush1.bf16.msra.mxu0 %v2416
      %3427 = vmatprep.subr.bf16.mxu0 %v2413
      %3428 = vmatpush1.bf16.msra.mxu0 %v2412
      %3429 = vmatprep.subr.bf16.mxu0 %v2473
      %3430 = vmatpush2.bf16.msra.mxu0 %v2472
      %3431 = vmatprep.subr.bf16.mxu0 %v2469
      %3432 = vmatpush2.bf16.msra.mxu0 %v2468
      %3433 = vmatprep.subr.bf16.mxu0 %v2465
      %3434 = vmatpush2.bf16.msra.mxu0 %v2464
      %3435 = vmatprep.subr.bf16.mxu0 %v2461
      %3436 = vmatpush2.bf16.msra.mxu0 %v2460
      %3437 = vmatprep.subr.bf16.mxu0 %v2457
      %3438 = vmatpush2.bf16.msra.mxu0 %v2456
      %3439 = vmatprep.subr.bf16.mxu0 %v2453
      %3440 = vmatpush2.bf16.msra.mxu0 %v2452
      %3441 = vmatprep.subr.bf16.mxu0 %v2449
      %3442 = vmatpush2.bf16.msra.mxu0 %v2448
      %3443 = vmatprep.subr.bf16.mxu0 %v2445
      %3444 = vmatpush2.bf16.msra.mxu0 %v2444
      %3445 = vmatprep.mubr.bf16.mxu0 %v783
      %3446 = vmatmul.mubr.bf16.gmra.mxu0 %v782
      %v3447 = vpop.f32.mrf.mxu0
      %v3448 = vadd.f32 %v3407, %v3447
      %v3449 = vpop.f32.mrf.mxu0
      %v3450 = vadd.f32 %v3409, %v3449
      %v3451 = vpop.f32.mrf.mxu0
      %v3452 = vpop.f32.mrf.mxu0
      %3453 = vdwg.mxu0
      %3454 = vmatprep.subr.bf16.mxu0 %v2505
      %3455 = vmatpush1.bf16.msra.mxu0 %v2504
      %3456 = vmatprep.subr.bf16.mxu0 %v2501
      %3457 = vmatpush1.bf16.msra.mxu0 %v2500
      %3458 = vmatprep.subr.bf16.mxu0 %v2497
      %3459 = vmatpush1.bf16.msra.mxu0 %v2496
      %3460 = vmatprep.subr.bf16.mxu0 %v2493
      %3461 = vmatpush1.bf16.msra.mxu0 %v2492
      %3462 = vmatprep.subr.bf16.mxu0 %v2489
      %3463 = vmatpush1.bf16.msra.mxu0 %v2488
      %3464 = vmatprep.subr.bf16.mxu0 %v2485
      %3465 = vmatpush1.bf16.msra.mxu0 %v2484
      %3466 = vmatprep.subr.bf16.mxu0 %v2481
      %3467 = vmatpush1.bf16.msra.mxu0 %v2480
      %3468 = vmatprep.subr.bf16.mxu0 %v2477
      %3469 = vmatpush1.bf16.msra.mxu0 %v2476
      %3470 = vmatprep.subr.bf16.mxu0 %v2537
      %3471 = vmatpush2.bf16.msra.mxu0 %v2536
      %3472 = vmatprep.subr.bf16.mxu0 %v2533
      %3473 = vmatpush2.bf16.msra.mxu0 %v2532
      %3474 = vmatprep.subr.bf16.mxu0 %v2529
      %3475 = vmatpush2.bf16.msra.mxu0 %v2528
      %3476 = vmatprep.subr.bf16.mxu0 %v2525
      %3477 = vmatpush2.bf16.msra.mxu0 %v2524
      %3478 = vmatprep.subr.bf16.mxu0 %v2521
      %3479 = vmatpush2.bf16.msra.mxu0 %v2520
      %3480 = vmatprep.subr.bf16.mxu0 %v2517
      %3481 = vmatpush2.bf16.msra.mxu0 %v2516
      %3482 = vmatprep.subr.bf16.mxu0 %v2513
      %3483 = vmatpush2.bf16.msra.mxu0 %v2512
      %3484 = vmatprep.subr.bf16.mxu0 %v2509
      %3485 = vmatpush2.bf16.msra.mxu0 %v2508
      %3486 = vmatprep.mubr.bf16.mxu0 %v785
      %3487 = vmatmul.mubr.bf16.gmra.mxu0 %v784
      %v3488 = vpop.f32.mrf.mxu0
      %v3489 = vadd.f32 %v3448, %v3488
      %v3490 = vpop.f32.mrf.mxu0
      %v3491 = vadd.f32 %v3450, %v3490
      %v3492 = vpop.f32.mrf.mxu0
      %v3493 = vpop.f32.mrf.mxu0
      %3494 = vdwg.mxu0
      %3495 = vmatprep.subr.bf16.mxu0 %v2569
      %3496 = vmatpush1.bf16.msra.mxu0 %v2568
      %3497 = vmatprep.subr.bf16.mxu0 %v2565
      %3498 = vmatpush1.bf16.msra.mxu0 %v2564
      %3499 = vmatprep.subr.bf16.mxu0 %v2561
      %3500 = vmatpush1.bf16.msra.mxu0 %v2560
      %3501 = vmatprep.subr.bf16.mxu0 %v2557
      %3502 = vmatpush1.bf16.msra.mxu0 %v2556
      %3503 = vmatprep.subr.bf16.mxu0 %v2553
      %3504 = vmatpush1.bf16.msra.mxu0 %v2552
      %3505 = vmatprep.subr.bf16.mxu0 %v2549
      %3506 = vmatpush1.bf16.msra.mxu0 %v2548
      %3507 = vmatprep.subr.bf16.mxu0 %v2545
      %3508 = vmatpush1.bf16.msra.mxu0 %v2544
      %3509 = vmatprep.subr.bf16.mxu0 %v2541
      %3510 = vmatpush1.bf16.msra.mxu0 %v2540
      %3511 = vmatprep.subr.bf16.mxu0 %v2601
      %3512 = vmatpush2.bf16.msra.mxu0 %v2600
      %3513 = vmatprep.subr.bf16.mxu0 %v2597
      %3514 = vmatpush2.bf16.msra.mxu0 %v2596
      %3515 = vmatprep.subr.bf16.mxu0 %v2593
      %3516 = vmatpush2.bf16.msra.mxu0 %v2592
      %3517 = vmatprep.subr.bf16.mxu0 %v2589
      %3518 = vmatpush2.bf16.msra.mxu0 %v2588
      %3519 = vmatprep.subr.bf16.mxu0 %v2585
      %3520 = vmatpush2.bf16.msra.mxu0 %v2584
      %3521 = vmatprep.subr.bf16.mxu0 %v2581
      %3522 = vmatpush2.bf16.msra.mxu0 %v2580
      %3523 = vmatprep.subr.bf16.mxu0 %v2577
      %3524 = vmatpush2.bf16.msra.mxu0 %v2576
      %3525 = vmatprep.subr.bf16.mxu0 %v2573
      %3526 = vmatpush2.bf16.msra.mxu0 %v2572
      %3527 = vmatprep.mubr.bf16.mxu0 %v787
      %3528 = vmatmul.mubr.bf16.gmra.mxu0 %v786
      %v3529 = vpop.f32.mrf.mxu0
      %v3530 = vadd.f32 %v3489, %v3529
      %v3531 = vpop.f32.mrf.mxu0
      %v3532 = vadd.f32 %v3491, %v3531
      %v3533 = vpop.f32.mrf.mxu0
      %v3534 = vpop.f32.mrf.mxu0
      %3535 = vdwg.mxu0
      %3536 = vmatprep.subr.bf16.mxu0 %v2633
      %3537 = vmatpush1.bf16.msra.mxu0 %v2632
      %3538 = vmatprep.subr.bf16.mxu0 %v2629
      %3539 = vmatpush1.bf16.msra.mxu0 %v2628
      %3540 = vmatprep.subr.bf16.mxu0 %v2625
      %3541 = vmatpush1.bf16.msra.mxu0 %v2624
      %3542 = vmatprep.subr.bf16.mxu0 %v2621
      %3543 = vmatpush1.bf16.msra.mxu0 %v2620
      %3544 = vmatprep.subr.bf16.mxu0 %v2617
      %3545 = vmatpush1.bf16.msra.mxu0 %v2616
      %3546 = vmatprep.subr.bf16.mxu0 %v2613
      %3547 = vmatpush1.bf16.msra.mxu0 %v2612
      %3548 = vmatprep.subr.bf16.mxu0 %v2609
      %3549 = vmatpush1.bf16.msra.mxu0 %v2608
      %3550 = vmatprep.subr.bf16.mxu0 %v2605
      %3551 = vmatpush1.bf16.msra.mxu0 %v2604
      %3552 = vmatprep.subr.bf16.mxu0 %v2665
      %3553 = vmatpush2.bf16.msra.mxu0 %v2664
      %3554 = vmatprep.subr.bf16.mxu0 %v2661
      %3555 = vmatpush2.bf16.msra.mxu0 %v2660
      %3556 = vmatprep.subr.bf16.mxu0 %v2657
      %3557 = vmatpush2.bf16.msra.mxu0 %v2656
      %3558 = vmatprep.subr.bf16.mxu0 %v2653
      %3559 = vmatpush2.bf16.msra.mxu0 %v2652
      %3560 = vmatprep.subr.bf16.mxu0 %v2649
      %3561 = vmatpush2.bf16.msra.mxu0 %v2648
      %3562 = vmatprep.subr.bf16.mxu0 %v2645
      %3563 = vmatpush2.bf16.msra.mxu0 %v2644
      %3564 = vmatprep.subr.bf16.mxu0 %v2641
      %3565 = vmatpush2.bf16.msra.mxu0 %v2640
      %3566 = vmatprep.subr.bf16.mxu0 %v2637
      %3567 = vmatpush2.bf16.msra.mxu0 %v2636
      %3568 = vmatprep.mubr.bf16.mxu0 %v789
      %3569 = vmatmul.mubr.bf16.gmra.mxu0 %v788
      %v3570 = vpop.f32.mrf.mxu0
      %v3571 = vadd.f32 %v3530, %v3570
      %v3572 = vpop.f32.mrf.mxu0
      %v3573 = vadd.f32 %v3532, %v3572
      %v3574 = vpop.f32.mrf.mxu0
      %v3575 = vpop.f32.mrf.mxu0
      %3576 = vdwg.mxu0
      %3577 = vmatprep.subr.bf16.mxu0 %v2697
      %3578 = vmatpush1.bf16.msra.mxu0 %v2696
      %3579 = vmatprep.subr.bf16.mxu0 %v2693
      %3580 = vmatpush1.bf16.msra.mxu0 %v2692
      %3581 = vmatprep.subr.bf16.mxu0 %v2689
      %3582 = vmatpush1.bf16.msra.mxu0 %v2688
      %3583 = vmatprep.subr.bf16.mxu0 %v2685
      %3584 = vmatpush1.bf16.msra.mxu0 %v2684
      %3585 = vmatprep.subr.bf16.mxu0 %v2681
      %3586 = vmatpush1.bf16.msra.mxu0 %v2680
      %3587 = vmatprep.subr.bf16.mxu0 %v2677
      %3588 = vmatpush1.bf16.msra.mxu0 %v2676
      %3589 = vmatprep.subr.bf16.mxu0 %v2673
      %3590 = vmatpush1.bf16.msra.mxu0 %v2672
      %3591 = vmatprep.subr.bf16.mxu0 %v2669
      %3592 = vmatpush1.bf16.msra.mxu0 %v2668
      %3593 = vmatprep.subr.bf16.mxu0 %v2729
      %3594 = vmatpush2.bf16.msra.mxu0 %v2728
      %3595 = vmatprep.subr.bf16.mxu0 %v2725
      %3596 = vmatpush2.bf16.msra.mxu0 %v2724
      %3597 = vmatprep.subr.bf16.mxu0 %v2721
      %3598 = vmatpush2.bf16.msra.mxu0 %v2720
      %3599 = vmatprep.subr.bf16.mxu0 %v2717
      %3600 = vmatpush2.bf16.msra.mxu0 %v2716
      %3601 = vmatprep.subr.bf16.mxu0 %v2713
      %3602 = vmatpush2.bf16.msra.mxu0 %v2712
      %3603 = vmatprep.subr.bf16.mxu0 %v2709
      %3604 = vmatpush2.bf16.msra.mxu0 %v2708
      %3605 = vmatprep.subr.bf16.mxu0 %v2705
      %3606 = vmatpush2.bf16.msra.mxu0 %v2704
      %3607 = vmatprep.subr.bf16.mxu0 %v2701
      %3608 = vmatpush2.bf16.msra.mxu0 %v2700
      %3609 = vmatprep.mubr.bf16.mxu0 %v791
      %3610 = vmatmul.mubr.bf16.gmra.mxu0 %v790
      %v3611 = vpop.f32.mrf.mxu0
      %v3612 = vadd.f32 %v3571, %v3611
      %v3613 = vpop.f32.mrf.mxu0
      %v3614 = vadd.f32 %v3573, %v3613
      %v3615 = vpop.f32.mrf.mxu0
      %v3616 = vpop.f32.mrf.mxu0
      %3617 = vdwg.mxu0
      %3618 = vmatprep.subr.bf16.mxu0 %v2761
      %3619 = vmatpush1.bf16.msra.mxu0 %v2760
      %3620 = vmatprep.subr.bf16.mxu0 %v2757
      %3621 = vmatpush1.bf16.msra.mxu0 %v2756
      %3622 = vmatprep.subr.bf16.mxu0 %v2753
      %3623 = vmatpush1.bf16.msra.mxu0 %v2752
      %3624 = vmatprep.subr.bf16.mxu0 %v2749
      %3625 = vmatpush1.bf16.msra.mxu0 %v2748
      %3626 = vmatprep.subr.bf16.mxu0 %v2745
      %3627 = vmatpush1.bf16.msra.mxu0 %v2744
      %3628 = vmatprep.subr.bf16.mxu0 %v2741
      %3629 = vmatpush1.bf16.msra.mxu0 %v2740
      %3630 = vmatprep.subr.bf16.mxu0 %v2737
      %3631 = vmatpush1.bf16.msra.mxu0 %v2736
      %3632 = vmatprep.subr.bf16.mxu0 %v2733
      %3633 = vmatpush1.bf16.msra.mxu0 %v2732
      %3634 = vmatprep.subr.bf16.mxu0 %v2793
      %3635 = vmatpush2.bf16.msra.mxu0 %v2792
      %3636 = vmatprep.subr.bf16.mxu0 %v2789
      %3637 = vmatpush2.bf16.msra.mxu0 %v2788
      %3638 = vmatprep.subr.bf16.mxu0 %v2785
      %3639 = vmatpush2.bf16.msra.mxu0 %v2784
      %3640 = vmatprep.subr.bf16.mxu0 %v2781
      %3641 = vmatpush2.bf16.msra.mxu0 %v2780
      %3642 = vmatprep.subr.bf16.mxu0 %v2777
      %3643 = vmatpush2.bf16.msra.mxu0 %v2776
      %3644 = vmatprep.subr.bf16.mxu0 %v2773
      %3645 = vmatpush2.bf16.msra.mxu0 %v2772
      %3646 = vmatprep.subr.bf16.mxu0 %v2769
      %3647 = vmatpush2.bf16.msra.mxu0 %v2768
      %3648 = vmatprep.subr.bf16.mxu0 %v2765
      %3649 = vmatpush2.bf16.msra.mxu0 %v2764
      %3650 = vmatprep.mubr.bf16.mxu0 %v793
      %3651 = vmatmul.mubr.bf16.gmra.mxu0 %v792
      %v3652 = vpop.f32.mrf.mxu0
      %v3653 = vadd.f32 %v3612, %v3652
      %v3654 = vpop.f32.mrf.mxu0
      %v3655 = vadd.f32 %v3614, %v3654
      %v3656 = vpop.f32.mrf.mxu0
      %v3657 = vpop.f32.mrf.mxu0
      %3658 = vdwg.mxu0
      %3659 = vmatprep.subr.bf16.mxu0 %v2825
      %3660 = vmatpush1.bf16.msra.mxu0 %v2824
      %3661 = vmatprep.subr.bf16.mxu0 %v2821
      %3662 = vmatpush1.bf16.msra.mxu0 %v2820
      %3663 = vmatprep.subr.bf16.mxu0 %v2817
      %3664 = vmatpush1.bf16.msra.mxu0 %v2816
      %3665 = vmatprep.subr.bf16.mxu0 %v2813
      %3666 = vmatpush1.bf16.msra.mxu0 %v2812
      %3667 = vmatprep.subr.bf16.mxu0 %v2809
      %3668 = vmatpush1.bf16.msra.mxu0 %v2808
      %3669 = vmatprep.subr.bf16.mxu0 %v2805
      %3670 = vmatpush1.bf16.msra.mxu0 %v2804
      %3671 = vmatprep.subr.bf16.mxu0 %v2801
      %3672 = vmatpush1.bf16.msra.mxu0 %v2800
      %3673 = vmatprep.subr.bf16.mxu0 %v2797
      %3674 = vmatpush1.bf16.msra.mxu0 %v2796
      %3675 = vmatprep.subr.bf16.mxu0 %v2857
      %3676 = vmatpush2.bf16.msra.mxu0 %v2856
      %3677 = vmatprep.subr.bf16.mxu0 %v2853
      %3678 = vmatpush2.bf16.msra.mxu0 %v2852
      %3679 = vmatprep.subr.bf16.mxu0 %v2849
      %3680 = vmatpush2.bf16.msra.mxu0 %v2848
      %3681 = vmatprep.subr.bf16.mxu0 %v2845
      %3682 = vmatpush2.bf16.msra.mxu0 %v2844
      %3683 = vmatprep.subr.bf16.mxu0 %v2841
      %3684 = vmatpush2.bf16.msra.mxu0 %v2840
      %3685 = vmatprep.subr.bf16.mxu0 %v2837
      %3686 = vmatpush2.bf16.msra.mxu0 %v2836
      %3687 = vmatprep.subr.bf16.mxu0 %v2833
      %3688 = vmatpush2.bf16.msra.mxu0 %v2832
      %3689 = vmatprep.subr.bf16.mxu0 %v2829
      %3690 = vmatpush2.bf16.msra.mxu0 %v2828
      %3691 = vmatprep.mubr.bf16.mxu0 %v795
      %3692 = vmatmul.mubr.bf16.gmra.mxu0 %v794
      %v3693 = vpop.f32.mrf.mxu0
      %v3694 = vadd.f32 %v3653, %v3693
      %v3695 = vpop.f32.mrf.mxu0
      %v3696 = vadd.f32 %v3655, %v3695
      %v3697 = vpop.f32.mrf.mxu0
      %v3698 = vpop.f32.mrf.mxu0
      %3699 = vdwg.mxu0
      %3700 = vmatprep.subr.bf16.mxu0 %v2379
      %3701 = vmatpush1.bf16.msra.mxu0 %v2378
      %3702 = vmatprep.subr.bf16.mxu0 %v2375
      %3703 = vmatpush1.bf16.msra.mxu0 %v2374
      %3704 = vmatprep.subr.bf16.mxu0 %v2371
      %3705 = vmatpush1.bf16.msra.mxu0 %v2370
      %3706 = vmatprep.subr.bf16.mxu0 %v2367
      %3707 = vmatpush1.bf16.msra.mxu0 %v2366
      %3708 = vmatprep.subr.bf16.mxu0 %v2363
      %3709 = vmatpush1.bf16.msra.mxu0 %v2362
      %3710 = vmatprep.subr.bf16.mxu0 %v2359
      %3711 = vmatpush1.bf16.msra.mxu0 %v2358
      %3712 = vmatprep.subr.bf16.mxu0 %v2355
      %3713 = vmatpush1.bf16.msra.mxu0 %v2354
      %3714 = vmatprep.subr.bf16.mxu0 %v2351
      %3715 = vmatpush1.bf16.msra.mxu0 %v2350
      %3716 = vmatprep.subr.bf16.mxu0 %v2411
      %3717 = vmatpush2.bf16.msra.mxu0 %v2410
      %3718 = vmatprep.subr.bf16.mxu0 %v2407
      %3719 = vmatpush2.bf16.msra.mxu0 %v2406
      %3720 = vmatprep.subr.bf16.mxu0 %v2403
      %3721 = vmatpush2.bf16.msra.mxu0 %v2402
      %3722 = vmatprep.subr.bf16.mxu0 %v2399
      %3723 = vmatpush2.bf16.msra.mxu0 %v2398
      %3724 = vmatprep.subr.bf16.mxu0 %v2395
      %3725 = vmatpush2.bf16.msra.mxu0 %v2394
      %3726 = vmatprep.subr.bf16.mxu0 %v2391
      %3727 = vmatpush2.bf16.msra.mxu0 %v2390
      %3728 = vmatprep.subr.bf16.mxu0 %v2387
      %3729 = vmatpush2.bf16.msra.mxu0 %v2386
      %3730 = vmatprep.subr.bf16.mxu0 %v2383
      %3731 = vmatpush2.bf16.msra.mxu0 %v2382
      %3732 = vmatprep.mubr.bf16.mxu0 %v781
      %3733 = vmatmul.mubr.bf16.gmra.mxu0 %v780
      %v3734 = vpop.f32.mrf.mxu0
      %v3735 = vadd.f32 0.0, %v3734
      %v3736 = vpop.f32.mrf.mxu0
      %v3737 = vadd.f32 0.0, %v3736
      %v3738 = vpop.f32.mrf.mxu0
      %v3739 = vpop.f32.mrf.mxu0
      %3740 = vdwg.mxu0
      %3741 = vmatprep.subr.bf16.mxu0 %v2443
      %3742 = vmatpush1.bf16.msra.mxu0 %v2442
      %3743 = vmatprep.subr.bf16.mxu0 %v2439
      %3744 = vmatpush1.bf16.msra.mxu0 %v2438
      %3745 = vmatprep.subr.bf16.mxu0 %v2435
      %3746 = vmatpush1.bf16.msra.mxu0 %v2434
      %3747 = vmatprep.subr.bf16.mxu0 %v2431
      %3748 = vmatpush1.bf16.msra.mxu0 %v2430
      %3749 = vmatprep.subr.bf16.mxu0 %v2427
      %3750 = vmatpush1.bf16.msra.mxu0 %v2426
      %3751 = vmatprep.subr.bf16.mxu0 %v2423
      %3752 = vmatpush1.bf16.msra.mxu0 %v2422
      %3753 = vmatprep.subr.bf16.mxu0 %v2419
      %3754 = vmatpush1.bf16.msra.mxu0 %v2418
      %3755 = vmatprep.subr.bf16.mxu0 %v2415
      %3756 = vmatpush1.bf16.msra.mxu0 %v2414
      %3757 = vmatprep.subr.bf16.mxu0 %v2475
      %3758 = vmatpush2.bf16.msra.mxu0 %v2474
      %3759 = vmatprep.subr.bf16.mxu0 %v2471
      %3760 = vmatpush2.bf16.msra.mxu0 %v2470
      %3761 = vmatprep.subr.bf16.mxu0 %v2467
      %3762 = vmatpush2.bf16.msra.mxu0 %v2466
      %3763 = vmatprep.subr.bf16.mxu0 %v2463
      %3764 = vmatpush2.bf16.msra.mxu0 %v2462
      %3765 = vmatprep.subr.bf16.mxu0 %v2459
      %3766 = vmatpush2.bf16.msra.mxu0 %v2458
      %3767 = vmatprep.subr.bf16.mxu0 %v2455
      %3768 = vmatpush2.bf16.msra.mxu0 %v2454
      %3769 = vmatprep.subr.bf16.mxu0 %v2451
      %3770 = vmatpush2.bf16.msra.mxu0 %v2450
      %3771 = vmatprep.subr.bf16.mxu0 %v2447
      %3772 = vmatpush2.bf16.msra.mxu0 %v2446
      %3773 = vmatprep.mubr.bf16.mxu0 %v783
      %3774 = vmatmul.mubr.bf16.gmra.mxu0 %v782
      %v3775 = vpop.f32.mrf.mxu0
      %v3776 = vadd.f32 %v3735, %v3775
      %v3777 = vpop.f32.mrf.mxu0
      %v3778 = vadd.f32 %v3737, %v3777
      %v3779 = vpop.f32.mrf.mxu0
      %v3780 = vpop.f32.mrf.mxu0
      %3781 = vdwg.mxu0
      %3782 = vmatprep.subr.bf16.mxu0 %v2507
      %3783 = vmatpush1.bf16.msra.mxu0 %v2506
      %3784 = vmatprep.subr.bf16.mxu0 %v2503
      %3785 = vmatpush1.bf16.msra.mxu0 %v2502
      %3786 = vmatprep.subr.bf16.mxu0 %v2499
      %3787 = vmatpush1.bf16.msra.mxu0 %v2498
      %3788 = vmatprep.subr.bf16.mxu0 %v2495
      %3789 = vmatpush1.bf16.msra.mxu0 %v2494
      %3790 = vmatprep.subr.bf16.mxu0 %v2491
      %3791 = vmatpush1.bf16.msra.mxu0 %v2490
      %3792 = vmatprep.subr.bf16.mxu0 %v2487
      %3793 = vmatpush1.bf16.msra.mxu0 %v2486
      %3794 = vmatprep.subr.bf16.mxu0 %v2483
      %3795 = vmatpush1.bf16.msra.mxu0 %v2482
      %3796 = vmatprep.subr.bf16.mxu0 %v2479
      %3797 = vmatpush1.bf16.msra.mxu0 %v2478
      %3798 = vmatprep.subr.bf16.mxu0 %v2539
      %3799 = vmatpush2.bf16.msra.mxu0 %v2538
      %3800 = vmatprep.subr.bf16.mxu0 %v2535
      %3801 = vmatpush2.bf16.msra.mxu0 %v2534
      %3802 = vmatprep.subr.bf16.mxu0 %v2531
      %3803 = vmatpush2.bf16.msra.mxu0 %v2530
      %3804 = vmatprep.subr.bf16.mxu0 %v2527
      %3805 = vmatpush2.bf16.msra.mxu0 %v2526
      %3806 = vmatprep.subr.bf16.mxu0 %v2523
      %3807 = vmatpush2.bf16.msra.mxu0 %v2522
      %3808 = vmatprep.subr.bf16.mxu0 %v2519
      %3809 = vmatpush2.bf16.msra.mxu0 %v2518
      %3810 = vmatprep.subr.bf16.mxu0 %v2515
      %3811 = vmatpush2.bf16.msra.mxu0 %v2514
      %3812 = vmatprep.subr.bf16.mxu0 %v2511
      %3813 = vmatpush2.bf16.msra.mxu0 %v2510
      %3814 = vmatprep.mubr.bf16.mxu0 %v785
      %3815 = vmatmul.mubr.bf16.gmra.mxu0 %v784
      %v3816 = vpop.f32.mrf.mxu0
      %v3817 = vadd.f32 %v3776, %v3816
      %v3818 = vpop.f32.mrf.mxu0
      %v3819 = vadd.f32 %v3778, %v3818
      %v3820 = vpop.f32.mrf.mxu0
      %v3821 = vpop.f32.mrf.mxu0
      %3822 = vdwg.mxu0
      %3823 = vmatprep.subr.bf16.mxu0 %v2571
      %3824 = vmatpush1.bf16.msra.mxu0 %v2570
      %3825 = vmatprep.subr.bf16.mxu0 %v2567
      %3826 = vmatpush1.bf16.msra.mxu0 %v2566
      %3827 = vmatprep.subr.bf16.mxu0 %v2563
      %3828 = vmatpush1.bf16.msra.mxu0 %v2562
      %3829 = vmatprep.subr.bf16.mxu0 %v2559
      %3830 = vmatpush1.bf16.msra.mxu0 %v2558
      %3831 = vmatprep.subr.bf16.mxu0 %v2555
      %3832 = vmatpush1.bf16.msra.mxu0 %v2554
      %3833 = vmatprep.subr.bf16.mxu0 %v2551
      %3834 = vmatpush1.bf16.msra.mxu0 %v2550
      %3835 = vmatprep.subr.bf16.mxu0 %v2547
      %3836 = vmatpush1.bf16.msra.mxu0 %v2546
      %3837 = vmatprep.subr.bf16.mxu0 %v2543
      %3838 = vmatpush1.bf16.msra.mxu0 %v2542
      %3839 = vmatprep.subr.bf16.mxu0 %v2603
      %3840 = vmatpush2.bf16.msra.mxu0 %v2602
      %3841 = vmatprep.subr.bf16.mxu0 %v2599
      %3842 = vmatpush2.bf16.msra.mxu0 %v2598
      %3843 = vmatprep.subr.bf16.mxu0 %v2595
      %3844 = vmatpush2.bf16.msra.mxu0 %v2594
      %3845 = vmatprep.subr.bf16.mxu0 %v2591
      %3846 = vmatpush2.bf16.msra.mxu0 %v2590
      %3847 = vmatprep.subr.bf16.mxu0 %v2587
      %3848 = vmatpush2.bf16.msra.mxu0 %v2586
      %3849 = vmatprep.subr.bf16.mxu0 %v2583
      %3850 = vmatpush2.bf16.msra.mxu0 %v2582
      %3851 = vmatprep.subr.bf16.mxu0 %v2579
      %3852 = vmatpush2.bf16.msra.mxu0 %v2578
      %3853 = vmatprep.subr.bf16.mxu0 %v2575
      %3854 = vmatpush2.bf16.msra.mxu0 %v2574
      %3855 = vmatprep.mubr.bf16.mxu0 %v787
      %3856 = vmatmul.mubr.bf16.gmra.mxu0 %v786
      %v3857 = vpop.f32.mrf.mxu0
      %v3858 = vadd.f32 %v3817, %v3857
      %v3859 = vpop.f32.mrf.mxu0
      %v3860 = vadd.f32 %v3819, %v3859
      %v3861 = vpop.f32.mrf.mxu0
      %v3862 = vpop.f32.mrf.mxu0
      %3863 = vdwg.mxu0
      %3864 = vmatprep.subr.bf16.mxu0 %v2635
      %3865 = vmatpush1.bf16.msra.mxu0 %v2634
      %3866 = vmatprep.subr.bf16.mxu0 %v2631
      %3867 = vmatpush1.bf16.msra.mxu0 %v2630
      %3868 = vmatprep.subr.bf16.mxu0 %v2627
      %3869 = vmatpush1.bf16.msra.mxu0 %v2626
      %3870 = vmatprep.subr.bf16.mxu0 %v2623
      %3871 = vmatpush1.bf16.msra.mxu0 %v2622
      %3872 = vmatprep.subr.bf16.mxu0 %v2619
      %3873 = vmatpush1.bf16.msra.mxu0 %v2618
      %3874 = vmatprep.subr.bf16.mxu0 %v2615
      %3875 = vmatpush1.bf16.msra.mxu0 %v2614
      %3876 = vmatprep.subr.bf16.mxu0 %v2611
      %3877 = vmatpush1.bf16.msra.mxu0 %v2610
      %3878 = vmatprep.subr.bf16.mxu0 %v2607
      %3879 = vmatpush1.bf16.msra.mxu0 %v2606
      %3880 = vmatprep.subr.bf16.mxu0 %v2667
      %3881 = vmatpush2.bf16.msra.mxu0 %v2666
      %3882 = vmatprep.subr.bf16.mxu0 %v2663
      %3883 = vmatpush2.bf16.msra.mxu0 %v2662
      %3884 = vmatprep.subr.bf16.mxu0 %v2659
      %3885 = vmatpush2.bf16.msra.mxu0 %v2658
      %3886 = vmatprep.subr.bf16.mxu0 %v2655
      %3887 = vmatpush2.bf16.msra.mxu0 %v2654
      %3888 = vmatprep.subr.bf16.mxu0 %v2651
      %3889 = vmatpush2.bf16.msra.mxu0 %v2650
      %3890 = vmatprep.subr.bf16.mxu0 %v2647
      %3891 = vmatpush2.bf16.msra.mxu0 %v2646
      %3892 = vmatprep.subr.bf16.mxu0 %v2643
      %3893 = vmatpush2.bf16.msra.mxu0 %v2642
      %3894 = vmatprep.subr.bf16.mxu0 %v2639
      %3895 = vmatpush2.bf16.msra.mxu0 %v2638
      %3896 = vmatprep.mubr.bf16.mxu0 %v789
      %3897 = vmatmul.mubr.bf16.gmra.mxu0 %v788
      %v3898 = vpop.f32.mrf.mxu0
      %v3899 = vadd.f32 %v3858, %v3898
      %v3900 = vpop.f32.mrf.mxu0
      %v3901 = vadd.f32 %v3860, %v3900
      %v3902 = vpop.f32.mrf.mxu0
      %v3903 = vpop.f32.mrf.mxu0
      %3904 = vdwg.mxu0
      %3905 = vmatprep.subr.bf16.mxu0 %v2699
      %3906 = vmatpush1.bf16.msra.mxu0 %v2698
      %3907 = vmatprep.subr.bf16.mxu0 %v2695
      %3908 = vmatpush1.bf16.msra.mxu0 %v2694
      %3909 = vmatprep.subr.bf16.mxu0 %v2691
      %3910 = vmatpush1.bf16.msra.mxu0 %v2690
      %3911 = vmatprep.subr.bf16.mxu0 %v2687
      %3912 = vmatpush1.bf16.msra.mxu0 %v2686
      %3913 = vmatprep.subr.bf16.mxu0 %v2683
      %3914 = vmatpush1.bf16.msra.mxu0 %v2682
      %3915 = vmatprep.subr.bf16.mxu0 %v2679
      %3916 = vmatpush1.bf16.msra.mxu0 %v2678
      %3917 = vmatprep.subr.bf16.mxu0 %v2675
      %3918 = vmatpush1.bf16.msra.mxu0 %v2674
      %3919 = vmatprep.subr.bf16.mxu0 %v2671
      %3920 = vmatpush1.bf16.msra.mxu0 %v2670
      %3921 = vmatprep.subr.bf16.mxu0 %v2731
      %3922 = vmatpush2.bf16.msra.mxu0 %v2730
      %3923 = vmatprep.subr.bf16.mxu0 %v2727
      %3924 = vmatpush2.bf16.msra.mxu0 %v2726
      %3925 = vmatprep.subr.bf16.mxu0 %v2723
      %3926 = vmatpush2.bf16.msra.mxu0 %v2722
      %3927 = vmatprep.subr.bf16.mxu0 %v2719
      %3928 = vmatpush2.bf16.msra.mxu0 %v2718
      %3929 = vmatprep.subr.bf16.mxu0 %v2715
      %3930 = vmatpush2.bf16.msra.mxu0 %v2714
      %3931 = vmatprep.subr.bf16.mxu0 %v2711
      %3932 = vmatpush2.bf16.msra.mxu0 %v2710
      %3933 = vmatprep.subr.bf16.mxu0 %v2707
      %3934 = vmatpush2.bf16.msra.mxu0 %v2706
      %3935 = vmatprep.subr.bf16.mxu0 %v2703
      %3936 = vmatpush2.bf16.msra.mxu0 %v2702
      %3937 = vmatprep.mubr.bf16.mxu0 %v791
      %3938 = vmatmul.mubr.bf16.gmra.mxu0 %v790
      %v3939 = vpop.f32.mrf.mxu0
      %v3940 = vadd.f32 %v3899, %v3939
      %v3941 = vpop.f32.mrf.mxu0
      %v3942 = vadd.f32 %v3901, %v3941
      %v3943 = vpop.f32.mrf.mxu0
      %v3944 = vpop.f32.mrf.mxu0
      %3945 = vdwg.mxu0
      %3946 = vmatprep.subr.bf16.mxu0 %v2763
      %3947 = vmatpush1.bf16.msra.mxu0 %v2762
      %3948 = vmatprep.subr.bf16.mxu0 %v2759
      %3949 = vmatpush1.bf16.msra.mxu0 %v2758
      %3950 = vmatprep.subr.bf16.mxu0 %v2755
      %3951 = vmatpush1.bf16.msra.mxu0 %v2754
      %3952 = vmatprep.subr.bf16.mxu0 %v2751
      %3953 = vmatpush1.bf16.msra.mxu0 %v2750
      %3954 = vmatprep.subr.bf16.mxu0 %v2747
      %3955 = vmatpush1.bf16.msra.mxu0 %v2746
      %3956 = vmatprep.subr.bf16.mxu0 %v2743
      %3957 = vmatpush1.bf16.msra.mxu0 %v2742
      %3958 = vmatprep.subr.bf16.mxu0 %v2739
      %3959 = vmatpush1.bf16.msra.mxu0 %v2738
      %3960 = vmatprep.subr.bf16.mxu0 %v2735
      %3961 = vmatpush1.bf16.msra.mxu0 %v2734
      %3962 = vmatprep.subr.bf16.mxu0 %v2795
      %3963 = vmatpush2.bf16.msra.mxu0 %v2794
      %3964 = vmatprep.subr.bf16.mxu0 %v2791
      %3965 = vmatpush2.bf16.msra.mxu0 %v2790
      %3966 = vmatprep.subr.bf16.mxu0 %v2787
      %3967 = vmatpush2.bf16.msra.mxu0 %v2786
      %3968 = vmatprep.subr.bf16.mxu0 %v2783
      %3969 = vmatpush2.bf16.msra.mxu0 %v2782
      %3970 = vmatprep.subr.bf16.mxu0 %v2779
      %3971 = vmatpush2.bf16.msra.mxu0 %v2778
      %3972 = vmatprep.subr.bf16.mxu0 %v2775
      %3973 = vmatpush2.bf16.msra.mxu0 %v2774
      %3974 = vmatprep.subr.bf16.mxu0 %v2771
      %3975 = vmatpush2.bf16.msra.mxu0 %v2770
      %3976 = vmatprep.subr.bf16.mxu0 %v2767
      %3977 = vmatpush2.bf16.msra.mxu0 %v2766
      %3978 = vmatprep.mubr.bf16.mxu0 %v793
      %3979 = vmatmul.mubr.bf16.gmra.mxu0 %v792
      %v3980 = vpop.f32.mrf.mxu0
      %v3981 = vadd.f32 %v3940, %v3980
      %v3982 = vpop.f32.mrf.mxu0
      %v3983 = vadd.f32 %v3942, %v3982
      %v3984 = vpop.f32.mrf.mxu0
      %v3985 = vpop.f32.mrf.mxu0
      %3986 = vdwg.mxu0
      %3987 = vmatprep.subr.bf16.mxu0 %v2827
      %3988 = vmatpush1.bf16.msra.mxu0 %v2826
      %3989 = vmatprep.subr.bf16.mxu0 %v2823
      %3990 = vmatpush1.bf16.msra.mxu0 %v2822
      %3991 = vmatprep.subr.bf16.mxu0 %v2819
      %3992 = vmatpush1.bf16.msra.mxu0 %v2818
      %3993 = vmatprep.subr.bf16.mxu0 %v2815
      %3994 = vmatpush1.bf16.msra.mxu0 %v2814
      %3995 = vmatprep.subr.bf16.mxu0 %v2811
      %3996 = vmatpush1.bf16.msra.mxu0 %v2810
      %3997 = vmatprep.subr.bf16.mxu0 %v2807
      %3998 = vmatpush1.bf16.msra.mxu0 %v2806
      %3999 = vmatprep.subr.bf16.mxu0 %v2803
      %4000 = vmatpush1.bf16.msra.mxu0 %v2802
      %4001 = vmatprep.subr.bf16.mxu0 %v2799
      %4002 = vmatpush1.bf16.msra.mxu0 %v2798
      %4003 = vmatprep.subr.bf16.mxu0 %v2859
      %4004 = vmatpush2.bf16.msra.mxu0 %v2858
      %4005 = vmatprep.subr.bf16.mxu0 %v2855
      %4006 = vmatpush2.bf16.msra.mxu0 %v2854
      %4007 = vmatprep.subr.bf16.mxu0 %v2851
      %4008 = vmatpush2.bf16.msra.mxu0 %v2850
      %4009 = vmatprep.subr.bf16.mxu0 %v2847
      %4010 = vmatpush2.bf16.msra.mxu0 %v2846
      %4011 = vmatprep.subr.bf16.mxu0 %v2843
      %4012 = vmatpush2.bf16.msra.mxu0 %v2842
      %4013 = vmatprep.subr.bf16.mxu0 %v2839
      %4014 = vmatpush2.bf16.msra.mxu0 %v2838
      %4015 = vmatprep.subr.bf16.mxu0 %v2835
      %4016 = vmatpush2.bf16.msra.mxu0 %v2834
      %4017 = vmatprep.subr.bf16.mxu0 %v2831
      %4018 = vmatpush2.bf16.msra.mxu0 %v2830
      %4019 = vmatprep.mubr.bf16.mxu0 %v795
      %4020 = vmatmul.mubr.bf16.gmra.mxu0 %v794
      %v4021 = vpop.f32.mrf.mxu0
      %v4022 = vadd.f32 %v3981, %v4021
      %v4023 = vpop.f32.mrf.mxu0
      %v4024 = vadd.f32 %v3983, %v4023
      %v4025 = vpop.f32.mrf.mxu0
      %v4026 = vpop.f32.mrf.mxu0
      %4027 = vdwg.mxu0
      %v4028 = vadd.f32 %v232, %v3694
      %v4029 = vadd.f32 %v233, %v3696
      %v4030 = vadd.f32 %v234, %v4022
      %v4031 = vadd.f32 %v235, %v4024
      %4032 = vst [vmem:[#allocation2] sm:$0xff] %v4028
      %4033 = vst [vmem:[#allocation2 + $0x8] sm:$0xff] %v4029
      %4034 = vst [vmem:[#allocation2 + $0x10] sm:$0xff] %v4030
      %4035 = vst [vmem:[#allocation2 + $0x18] sm:$0xff] %v4031
      %p4036 = scmp.eq.s32.totalorder %s19, 1
      // Predicated region
      $region37: #{discriminator_forward.8} parent=31 // pred_check
        %p4037 = pneg %p4036
      $region38: #{discriminator_forward.8} parent=31 // pred_check_branch
        %4039 = sbr.rel (%p4037) target = $region40
      $region39: #{discriminator_forward.8} parent=31 // pred_region
        %v4040 = vld [vmem:[#allocation2] sm:$0xff]
        %v4041 = vld [vmem:[#allocation2 + $0x8] sm:$0xff]
        %v4042 = vld [vmem:[#allocation2 + $0x10] sm:$0xff]
        %v4043 = vld [vmem:[#allocation2 + $0x18] sm:$0xff]
        %v4044 = vld [vmem:[%s2] sm:$0xf]
        %v4046 = vlaneseq
        %v4047 = vshrl.u32 %v4046, 7
        %v4048 = vsub.s32 0, %v4047
        %v4049 = vrot.slane %v4044, %v4048
        %v4050 = vlaneseq
        %v4051 = vshrl.u32 %v4050, 7
        %v4052 = vsub.s32 1, %v4051
        %v4053 = vrot.slane %v4044, %v4052
        %v4054 = vlaneseq
        %v4055 = vshrl.u32 %v4054, 7
        %v4056 = vsub.s32 2, %v4055
        %v4057 = vrot.slane %v4044, %v4056
        %v4058 = vlaneseq
        %v4059 = vshrl.u32 %v4058, 7
        %v4060 = vsub.s32 3, %v4059
        %v4061 = vrot.slane %v4044, %v4060
        %v4066 = vadd.f32 %v4040, %v4049
        %v4067 = vadd.f32 %v4041, %v4053
        %v4068 = vadd.f32 %v4042, %v4057
        %v4069 = vadd.f32 %v4043, %v4061
        %vm4070 = vcmp.ge.f32.partialorder %v4066, 0.0
        %vm4071 = vcmp.ge.f32.partialorder %v4067, 0.0
        %vm4072 = vcmp.ge.f32.partialorder %v4068, 0.0
        %vm4073 = vcmp.ge.f32.partialorder %v4069, 0.0
        %v4074 = vmul.f32 %v4066, 0.2
        %v4075 = vmul.f32 %v4067, 0.2
        %v4076 = vmul.f32 %v4068, 0.2
        %v4077 = vmul.f32 %v4069, 0.2
        %v4078 = vsel %vm4070, %v4066, %v4074
        %v4079 = vsel %vm4071, %v4067, %v4075
        %v4080 = vsel %vm4072, %v4068, %v4076
        %v4081 = vsel %vm4073, %v4069, %v4077
        %v4082 = vpack.c.bf16 %v4078, %v4078
        %v4083 = vpack.c.bf16 %v4079, %v4079
        %v4084 = vpack.c.bf16 %v4080, %v4080
        %v4085 = vpack.c.bf16 %v4081, %v4081
        %v4090 = vunpack.c.l.b16 %v4082
        %v4091 = vunpack.c.l.b16 %v4083
        %v4092 = vunpack.c.l.b16 %v4084
        %v4093 = vunpack.c.l.b16 %v4085
        %v4094 = vpack.c.b16 %v4091, %v4090
        %v4095 = vpack.c.b16 %v4093, %v4092
        %4098 = vst [vmem:[%s223] sm:$0xff] %v4094
        %4099 = vst [vmem:[%s223 + $0x8] sm:$0xff] %v4095
      $region40: #{discriminator_forward.8} parent=31 // pred_fallthru
        _
      %p4100 = scmp.lt.s32.totalorder %s18, 0
      %s4101 = scalar_select %p4100, %s18, 0
      %s4102 = smul.addr %s4101, 4
      %s4103 = smul.addr %s4102, 4
      %s4104 = scalar_lea.vmem %s3, %s4103
      // Predicated region
      $region41: #{discriminator_forward.8} parent=31 // pred_check
        %p4105 = pneg %p119
      $region42: #{discriminator_forward.8} parent=31 // pred_check_branch
        %4107 = sbr.rel (%p4105) target = $region44
      $region43: #{discriminator_forward.8} parent=31 // pred_region
        _
      $region44: #{discriminator_forward.8} parent=31 // pred_fallthru
        _
      // Predicated region
      $region45: #{discriminator_forward.8} parent=31 // pred_check
        %p4108 = pneg %p119
      $region46: #{discriminator_forward.8} parent=31 // pred_check_branch
        %4110 = sbr.rel (%p4108) target = $region48
      $region47: #{discriminator_forward.8} parent=31 // pred_region
        %p4111 = scmp.lt.s32.totalorder %s18, 0
        %s4112 = scalar_select %p4111, %s18, 0
        %s4113 = smul.addr %s4112, 4
        %s4114 = smul.addr %s4113, 4
        %s4115 = scalar_lea.vmem %s3, %s4114
      $region48: #{discriminator_forward.8} parent=31 // pred_fallthru
        _
    $region32: #{discriminator_forward.8} parent=5 // pred_fallthru
      _
    %p4116 = scmp.le.s32.totalorder 2, %s9
    // Predicated region
    $region49: #{discriminator_forward.8} parent=5 // pred_check
      %p4117 = pneg %p4116
    $region50: #{discriminator_forward.8} parent=5 // pred_check_branch
      %4119 = sbr.rel (%p4117) target = $region52
    $region51: #{discriminator_forward.8} parent=5 // pred_region
      %s4120 = ssub.s32 %s9, 2
    $region52: #{discriminator_forward.8} parent=5 // pred_fallthru
      _
  $region6: #{discriminator_forward.8} parent=0 // loop_footer
    %s13 = sadd.s32 1, %s9
  $region7: #{discriminator_forward.8} parent=0 // loop_footer_branch
    %8 = sbr.rel target = $region3
  $region8: #{discriminator_forward.8} parent=0 // loop_exit
    _

// kernel: discriminator_forward.9
$region0: #{discriminator_forward.9}
  #allocation0 [shape = 'u32[]', space=smem, size = 0x4, offset = 0x4, fixed_abs, tag = 'smem constant byte address 0x4 - core index']
  #allocation1 [shape = 'u32[144,128]{1,0:T(1,128)}', space=vmem, size = 0x12000, scoped, tag = 'internal scratch']
  #allocation2 [shape = 'f32[1,1]{1,0:T(1,128)S(1)}', space=vmem, size = 0x200, scoped, tag = 'scoped memory for discriminator_forward.9']
  %s0 = inlined_call_operand.vmem [shape: bf16[2,8192], index: 0, kind: input, shape index: {}]
  %s1 = inlined_call_operand.vmem [shape: bf16[1,8192], index: 1, kind: input, shape index: {}]
  %s2 = inlined_call_operand.<no memory space> [shape: f32[1,1], index: 2, kind: input, shape index: {}]
  %s3 = inlined_call_operand.vmem [shape: f32[2,1], index: 3, kind: output, shape index: {}]
  %s4 = sld [smem:[#allocation0]]
  $region22: #{discriminator_forward.9} parent=0
    _
  %s6 = ssub.s32 1, %s4
  %s7 = scalar_select 0, %s6, %s4
  %v8 = vstv %s2
  %9 = vst [vmem:[#allocation2] sm:$0x1] %v8
  // Predicated region
  $region2: #{discriminator_forward.9} parent=0 // pred_check
    _
  $region3: #{discriminator_forward.9} parent=0 // pred_check_branch
    %11 = sbr.rel (0) target = $region5
  $region4: #{discriminator_forward.9} parent=0 // pred_region
    _
  $region5: #{discriminator_forward.9} parent=0 // pred_fallthru
    _
  // Predicated region
  $region6: #{discriminator_forward.9} parent=0 // pred_check
    _
  $region7: #{discriminator_forward.9} parent=0 // pred_check_branch
    %13 = sbr.rel (0) target = $region9
  $region8: #{discriminator_forward.9} parent=0 // pred_region
    _
  $region9: #{discriminator_forward.9} parent=0 // pred_fallthru
    _
  // Predicated region
  $region10: #{discriminator_forward.9} parent=0 // pred_check
    _
  $region11: #{discriminator_forward.9} parent=0 // pred_check_branch
    %15 = sbr.rel (0) target = $region13
  $region12: #{discriminator_forward.9} parent=0 // pred_region
    _
  $region13: #{discriminator_forward.9} parent=0 // pred_fallthru
    _
  %v16 = vld [vmem:[%s0] sm:$0xff]
  %v17 = vld [vmem:[%s0 + $0x8] sm:$0xff]
  %v18 = vld [vmem:[%s0 + $0x10] sm:$0xff]
  %v19 = vld [vmem:[%s0 + $0x18] sm:$0xff]
  %v20 = vld [vmem:[%s0 + $0x20] sm:$0xff]
  %v21 = vld [vmem:[%s0 + $0x28] sm:$0xff]
  %v22 = vld [vmem:[%s0 + $0x30] sm:$0xff]
  %v23 = vld [vmem:[%s0 + $0x38] sm:$0xff]
  %v24 = vunpack.c.l.bf16 %v16
  %v25 = vunpack.c.h.bf16 %v16
  %v26 = vunpack.c.l.bf16 %v17
  %v27 = vunpack.c.h.bf16 %v17
  %v28 = vunpack.c.l.bf16 %v18
  %v29 = vunpack.c.h.bf16 %v18
  %v30 = vunpack.c.l.bf16 %v19
  %v31 = vunpack.c.h.bf16 %v19
  %v32 = vunpack.c.l.bf16 %v20
  %v33 = vunpack.c.h.bf16 %v20
  %v34 = vunpack.c.l.bf16 %v21
  %v35 = vunpack.c.h.bf16 %v21
  %v36 = vunpack.c.l.bf16 %v22
  %v37 = vunpack.c.h.bf16 %v22
  %v38 = vunpack.c.l.bf16 %v23
  %v39 = vunpack.c.h.bf16 %v23
  %v40 = vld [vmem:[%s1] sm:$0xff]
  %v41 = vld [vmem:[%s1 + $0x8] sm:$0xff]
  %v42 = vld [vmem:[%s1 + $0x10] sm:$0xff]
  %v43 = vld [vmem:[%s1 + $0x18] sm:$0xff]
  %v44 = vld [vmem:[%s1 + $0x20] sm:$0xff]
  %v45 = vld [vmem:[%s1 + $0x28] sm:$0xff]
  %v46 = vld [vmem:[%s1 + $0x30] sm:$0xff]
  %v47 = vld [vmem:[%s1 + $0x38] sm:$0xff]
  %v48 = vunpack.c.l.bf16 %v40
  %v49 = vunpack.c.h.bf16 %v40
  %v50 = vunpack.c.l.bf16 %v41
  %v51 = vunpack.c.h.bf16 %v41
  %v52 = vunpack.c.l.bf16 %v42
  %v53 = vunpack.c.h.bf16 %v42
  %v54 = vunpack.c.l.bf16 %v43
  %v55 = vunpack.c.h.bf16 %v43
  %v56 = vunpack.c.l.bf16 %v44
  %v57 = vunpack.c.h.bf16 %v44
  %v58 = vunpack.c.l.bf16 %v45
  %v59 = vunpack.c.h.bf16 %v45
  %v60 = vunpack.c.l.bf16 %v46
  %v61 = vunpack.c.h.bf16 %v46
  %v62 = vunpack.c.l.bf16 %v47
  %v63 = vunpack.c.h.bf16 %v47
  %v80 = vlaneseq
  %v81 = vshrl.u32 %v80, 7
  %v82 = vsub.s32 0, %v81
  %v83 = vrot.slane %v48, %v82
  %v84 = vlaneseq
  %v85 = vshrl.u32 %v84, 7
  %v86 = vsub.s32 2, %v85
  %v87 = vrot.slane %v48, %v86
  %v88 = vlaneseq
  %v89 = vshrl.u32 %v88, 7
  %v90 = vsub.s32 4, %v89
  %v91 = vrot.slane %v48, %v90
  %v92 = vlaneseq
  %v93 = vshrl.u32 %v92, 7
  %v94 = vsub.s32 6, %v93
  %v95 = vrot.slane %v48, %v94
  %v96 = vlaneseq
  %v97 = vshrl.u32 %v96, 7
  %v98 = vsub.s32 0, %v97
  %v99 = vrot.slane %v49, %v98
  %v100 = vlaneseq
  %v101 = vshrl.u32 %v100, 7
  %v102 = vsub.s32 2, %v101
  %v103 = vrot.slane %v49, %v102
  %v104 = vlaneseq
  %v105 = vshrl.u32 %v104, 7
  %v106 = vsub.s32 4, %v105
  %v107 = vrot.slane %v49, %v106
  %v108 = vlaneseq
  %v109 = vshrl.u32 %v108, 7
  %v110 = vsub.s32 6, %v109
  %v111 = vrot.slane %v49, %v110
  %v112 = vlaneseq
  %v113 = vshrl.u32 %v112, 7
  %v114 = vsub.s32 0, %v113
  %v115 = vrot.slane %v50, %v114
  %v116 = vlaneseq
  %v117 = vshrl.u32 %v116, 7
  %v118 = vsub.s32 2, %v117
  %v119 = vrot.slane %v50, %v118
  %v120 = vlaneseq
  %v121 = vshrl.u32 %v120, 7
  %v122 = vsub.s32 4, %v121
  %v123 = vrot.slane %v50, %v122
  %v124 = vlaneseq
  %v125 = vshrl.u32 %v124, 7
  %v126 = vsub.s32 6, %v125
  %v127 = vrot.slane %v50, %v126
  %v128 = vlaneseq
  %v129 = vshrl.u32 %v128, 7
  %v130 = vsub.s32 0, %v129
  %v131 = vrot.slane %v51, %v130
  %v132 = vlaneseq
  %v133 = vshrl.u32 %v132, 7
  %v134 = vsub.s32 2, %v133
  %v135 = vrot.slane %v51, %v134
  %v136 = vlaneseq
  %v137 = vshrl.u32 %v136, 7
  %v138 = vsub.s32 4, %v137
  %v139 = vrot.slane %v51, %v138
  %v140 = vlaneseq
  %v141 = vshrl.u32 %v140, 7
  %v142 = vsub.s32 6, %v141
  %v143 = vrot.slane %v51, %v142
  %v144 = vlaneseq
  %v145 = vshrl.u32 %v144, 7
  %v146 = vsub.s32 0, %v145
  %v147 = vrot.slane %v52, %v146
  %v148 = vlaneseq
  %v149 = vshrl.u32 %v148, 7
  %v150 = vsub.s32 2, %v149
  %v151 = vrot.slane %v52, %v150
  %v152 = vlaneseq
  %v153 = vshrl.u32 %v152, 7
  %v154 = vsub.s32 4, %v153
  %v155 = vrot.slane %v52, %v154
  %v156 = vlaneseq
  %v157 = vshrl.u32 %v156, 7
  %v158 = vsub.s32 6, %v157
  %v159 = vrot.slane %v52, %v158
  %v160 = vlaneseq
  %v161 = vshrl.u32 %v160, 7
  %v162 = vsub.s32 0, %v161
  %v163 = vrot.slane %v53, %v162
  %v164 = vlaneseq
  %v165 = vshrl.u32 %v164, 7
  %v166 = vsub.s32 2, %v165
  %v167 = vrot.slane %v53, %v166
  %v168 = vlaneseq
  %v169 = vshrl.u32 %v168, 7
  %v170 = vsub.s32 4, %v169
  %v171 = vrot.slane %v53, %v170
  %v172 = vlaneseq
  %v173 = vshrl.u32 %v172, 7
  %v174 = vsub.s32 6, %v173
  %v175 = vrot.slane %v53, %v174
  %v176 = vlaneseq
  %v177 = vshrl.u32 %v176, 7
  %v178 = vsub.s32 0, %v177
  %v179 = vrot.slane %v54, %v178
  %v180 = vlaneseq
  %v181 = vshrl.u32 %v180, 7
  %v182 = vsub.s32 2, %v181
  %v183 = vrot.slane %v54, %v182
  %v184 = vlaneseq
  %v185 = vshrl.u32 %v184, 7
  %v186 = vsub.s32 4, %v185
  %v187 = vrot.slane %v54, %v186
  %v188 = vlaneseq
  %v189 = vshrl.u32 %v188, 7
  %v190 = vsub.s32 6, %v189
  %v191 = vrot.slane %v54, %v190
  %v192 = vlaneseq
  %v193 = vshrl.u32 %v192, 7
  %v194 = vsub.s32 0, %v193
  %v195 = vrot.slane %v55, %v194
  %v196 = vlaneseq
  %v197 = vshrl.u32 %v196, 7
  %v198 = vsub.s32 2, %v197
  %v199 = vrot.slane %v55, %v198
  %v200 = vlaneseq
  %v201 = vshrl.u32 %v200, 7
  %v202 = vsub.s32 4, %v201
  %v203 = vrot.slane %v55, %v202
  %v204 = vlaneseq
  %v205 = vshrl.u32 %v204, 7
  %v206 = vsub.s32 6, %v205
  %v207 = vrot.slane %v55, %v206
  %v208 = vlaneseq
  %v209 = vshrl.u32 %v208, 7
  %v210 = vsub.s32 0, %v209
  %v211 = vrot.slane %v56, %v210
  %v212 = vlaneseq
  %v213 = vshrl.u32 %v212, 7
  %v214 = vsub.s32 2, %v213
  %v215 = vrot.slane %v56, %v214
  %v216 = vlaneseq
  %v217 = vshrl.u32 %v216, 7
  %v218 = vsub.s32 4, %v217
  %v219 = vrot.slane %v56, %v218
  %v220 = vlaneseq
  %v221 = vshrl.u32 %v220, 7
  %v222 = vsub.s32 6, %v221
  %v223 = vrot.slane %v56, %v222
  %v224 = vlaneseq
  %v225 = vshrl.u32 %v224, 7
  %v226 = vsub.s32 0, %v225
  %v227 = vrot.slane %v57, %v226
  %v228 = vlaneseq
  %v229 = vshrl.u32 %v228, 7
  %v230 = vsub.s32 2, %v229
  %v231 = vrot.slane %v57, %v230
  %v232 = vlaneseq
  %v233 = vshrl.u32 %v232, 7
  %v234 = vsub.s32 4, %v233
  %v235 = vrot.slane %v57, %v234
  %v236 = vlaneseq
  %v237 = vshrl.u32 %v236, 7
  %v238 = vsub.s32 6, %v237
  %v239 = vrot.slane %v57, %v238
  %v240 = vlaneseq
  %v241 = vshrl.u32 %v240, 7
  %v242 = vsub.s32 0, %v241
  %v243 = vrot.slane %v58, %v242
  %v244 = vlaneseq
  %v245 = vshrl.u32 %v244, 7
  %v246 = vsub.s32 2, %v245
  %v247 = vrot.slane %v58, %v246
  %v248 = vlaneseq
  %v249 = vshrl.u32 %v248, 7
  %v250 = vsub.s32 4, %v249
  %v251 = vrot.slane %v58, %v250
  %v252 = vlaneseq
  %v253 = vshrl.u32 %v252, 7
  %v254 = vsub.s32 6, %v253
  %v255 = vrot.slane %v58, %v254
  %v256 = vlaneseq
  %v257 = vshrl.u32 %v256, 7
  %v258 = vsub.s32 0, %v257
  %v259 = vrot.slane %v59, %v258
  %v260 = vlaneseq
  %v261 = vshrl.u32 %v260, 7
  %v262 = vsub.s32 2, %v261
  %v263 = vrot.slane %v59, %v262
  %v264 = vlaneseq
  %v265 = vshrl.u32 %v264, 7
  %v266 = vsub.s32 4, %v265
  %v267 = vrot.slane %v59, %v266
  %v268 = vlaneseq
  %v269 = vshrl.u32 %v268, 7
  %v270 = vsub.s32 6, %v269
  %v271 = vrot.slane %v59, %v270
  %v272 = vlaneseq
  %v273 = vshrl.u32 %v272, 7
  %v274 = vsub.s32 0, %v273
  %v275 = vrot.slane %v60, %v274
  %v276 = vlaneseq
  %v277 = vshrl.u32 %v276, 7
  %v278 = vsub.s32 2, %v277
  %v279 = vrot.slane %v60, %v278
  %v280 = vlaneseq
  %v281 = vshrl.u32 %v280, 7
  %v282 = vsub.s32 4, %v281
  %v283 = vrot.slane %v60, %v282
  %v284 = vlaneseq
  %v285 = vshrl.u32 %v284, 7
  %v286 = vsub.s32 6, %v285
  %v287 = vrot.slane %v60, %v286
  %v288 = vlaneseq
  %v289 = vshrl.u32 %v288, 7
  %v290 = vsub.s32 0, %v289
  %v291 = vrot.slane %v61, %v290
  %v292 = vlaneseq
  %v293 = vshrl.u32 %v292, 7
  %v294 = vsub.s32 2, %v293
  %v295 = vrot.slane %v61, %v294
  %v296 = vlaneseq
  %v297 = vshrl.u32 %v296, 7
  %v298 = vsub.s32 4, %v297
  %v299 = vrot.slane %v61, %v298
  %v300 = vlaneseq
  %v301 = vshrl.u32 %v300, 7
  %v302 = vsub.s32 6, %v301
  %v303 = vrot.slane %v61, %v302
  %v304 = vlaneseq
  %v305 = vshrl.u32 %v304, 7
  %v306 = vsub.s32 0, %v305
  %v307 = vrot.slane %v62, %v306
  %v308 = vlaneseq
  %v309 = vshrl.u32 %v308, 7
  %v310 = vsub.s32 2, %v309
  %v311 = vrot.slane %v62, %v310
  %v312 = vlaneseq
  %v313 = vshrl.u32 %v312, 7
  %v314 = vsub.s32 4, %v313
  %v315 = vrot.slane %v62, %v314
  %v316 = vlaneseq
  %v317 = vshrl.u32 %v316, 7
  %v318 = vsub.s32 6, %v317
  %v319 = vrot.slane %v62, %v318
  %v320 = vlaneseq
  %v321 = vshrl.u32 %v320, 7
  %v322 = vsub.s32 0, %v321
  %v323 = vrot.slane %v63, %v322
  %v324 = vlaneseq
  %v325 = vshrl.u32 %v324, 7
  %v326 = vsub.s32 2, %v325
  %v327 = vrot.slane %v63, %v326
  %v328 = vlaneseq
  %v329 = vshrl.u32 %v328, 7
  %v330 = vsub.s32 4, %v329
  %v331 = vrot.slane %v63, %v330
  %v332 = vlaneseq
  %v333 = vshrl.u32 %v332, 7
  %v334 = vsub.s32 6, %v333
  %v335 = vrot.slane %v63, %v334
  %v400 = vlaneseq
  %v401 = vshrl.u32 %v400, 7
  %v402 = vsub.s32 0, %v401
  %v403 = vrot.slane %v83, %v402
  %v404 = vlaneseq
  %v405 = vshrl.u32 %v404, 7
  %v406 = vsub.s32 0, %v405
  %v407 = vrot.slane %v87, %v406
  %v408 = vlaneseq
  %v409 = vshrl.u32 %v408, 7
  %v410 = vsub.s32 0, %v409
  %v411 = vrot.slane %v91, %v410
  %v412 = vlaneseq
  %v413 = vshrl.u32 %v412, 7
  %v414 = vsub.s32 0, %v413
  %v415 = vrot.slane %v95, %v414
  %v416 = vlaneseq
  %v417 = vshrl.u32 %v416, 7
  %v418 = vsub.s32 0, %v417
  %v419 = vrot.slane %v99, %v418
  %v420 = vlaneseq
  %v421 = vshrl.u32 %v420, 7
  %v422 = vsub.s32 0, %v421
  %v423 = vrot.slane %v103, %v422
  %v424 = vlaneseq
  %v425 = vshrl.u32 %v424, 7
  %v426 = vsub.s32 0, %v425
  %v427 = vrot.slane %v107, %v426
  %v428 = vlaneseq
  %v429 = vshrl.u32 %v428, 7
  %v430 = vsub.s32 0, %v429
  %v431 = vrot.slane %v111, %v430
  %v432 = vlaneseq
  %v433 = vshrl.u32 %v432, 7
  %v434 = vsub.s32 0, %v433
  %v435 = vrot.slane %v115, %v434
  %v436 = vlaneseq
  %v437 = vshrl.u32 %v436, 7
  %v438 = vsub.s32 0, %v437
  %v439 = vrot.slane %v119, %v438
  %v440 = vlaneseq
  %v441 = vshrl.u32 %v440, 7
  %v442 = vsub.s32 0, %v441
  %v443 = vrot.slane %v123, %v442
  %v444 = vlaneseq
  %v445 = vshrl.u32 %v444, 7
  %v446 = vsub.s32 0, %v445
  %v447 = vrot.slane %v127, %v446
  %v448 = vlaneseq
  %v449 = vshrl.u32 %v448, 7
  %v450 = vsub.s32 0, %v449
  %v451 = vrot.slane %v131, %v450
  %v452 = vlaneseq
  %v453 = vshrl.u32 %v452, 7
  %v454 = vsub.s32 0, %v453
  %v455 = vrot.slane %v135, %v454
  %v456 = vlaneseq
  %v457 = vshrl.u32 %v456, 7
  %v458 = vsub.s32 0, %v457
  %v459 = vrot.slane %v139, %v458
  %v460 = vlaneseq
  %v461 = vshrl.u32 %v460, 7
  %v462 = vsub.s32 0, %v461
  %v463 = vrot.slane %v143, %v462
  %v464 = vlaneseq
  %v465 = vshrl.u32 %v464, 7
  %v466 = vsub.s32 0, %v465
  %v467 = vrot.slane %v147, %v466
  %v468 = vlaneseq
  %v469 = vshrl.u32 %v468, 7
  %v470 = vsub.s32 0, %v469
  %v471 = vrot.slane %v151, %v470
  %v472 = vlaneseq
  %v473 = vshrl.u32 %v472, 7
  %v474 = vsub.s32 0, %v473
  %v475 = vrot.slane %v155, %v474
  %v476 = vlaneseq
  %v477 = vshrl.u32 %v476, 7
  %v478 = vsub.s32 0, %v477
  %v479 = vrot.slane %v159, %v478
  %v480 = vlaneseq
  %v481 = vshrl.u32 %v480, 7
  %v482 = vsub.s32 0, %v481
  %v483 = vrot.slane %v163, %v482
  %v484 = vlaneseq
  %v485 = vshrl.u32 %v484, 7
  %v486 = vsub.s32 0, %v485
  %v487 = vrot.slane %v167, %v486
  %v488 = vlaneseq
  %v489 = vshrl.u32 %v488, 7
  %v490 = vsub.s32 0, %v489
  %v491 = vrot.slane %v171, %v490
  %v492 = vlaneseq
  %v493 = vshrl.u32 %v492, 7
  %v494 = vsub.s32 0, %v493
  %v495 = vrot.slane %v175, %v494
  %v496 = vlaneseq
  %v497 = vshrl.u32 %v496, 7
  %v498 = vsub.s32 0, %v497
  %v499 = vrot.slane %v179, %v498
  %v500 = vlaneseq
  %v501 = vshrl.u32 %v500, 7
  %v502 = vsub.s32 0, %v501
  %v503 = vrot.slane %v183, %v502
  %v504 = vlaneseq
  %v505 = vshrl.u32 %v504, 7
  %v506 = vsub.s32 0, %v505
  %v507 = vrot.slane %v187, %v506
  %v508 = vlaneseq
  %v509 = vshrl.u32 %v508, 7
  %v510 = vsub.s32 0, %v509
  %v511 = vrot.slane %v191, %v510
  %v512 = vlaneseq
  %v513 = vshrl.u32 %v512, 7
  %v514 = vsub.s32 0, %v513
  %v515 = vrot.slane %v195, %v514
  %v516 = vlaneseq
  %v517 = vshrl.u32 %v516, 7
  %v518 = vsub.s32 0, %v517
  %v519 = vrot.slane %v199, %v518
  %v520 = vlaneseq
  %v521 = vshrl.u32 %v520, 7
  %v522 = vsub.s32 0, %v521
  %v523 = vrot.slane %v203, %v522
  %v524 = vlaneseq
  %v525 = vshrl.u32 %v524, 7
  %v526 = vsub.s32 0, %v525
  %v527 = vrot.slane %v207, %v526
  %v528 = vlaneseq
  %v529 = vshrl.u32 %v528, 7
  %v530 = vsub.s32 0, %v529
  %v531 = vrot.slane %v211, %v530
  %v532 = vlaneseq
  %v533 = vshrl.u32 %v532, 7
  %v534 = vsub.s32 0, %v533
  %v535 = vrot.slane %v215, %v534
  %v536 = vlaneseq
  %v537 = vshrl.u32 %v536, 7
  %v538 = vsub.s32 0, %v537
  %v539 = vrot.slane %v219, %v538
  %v540 = vlaneseq
  %v541 = vshrl.u32 %v540, 7
  %v542 = vsub.s32 0, %v541
  %v543 = vrot.slane %v223, %v542
  %v544 = vlaneseq
  %v545 = vshrl.u32 %v544, 7
  %v546 = vsub.s32 0, %v545
  %v547 = vrot.slane %v227, %v546
  %v548 = vlaneseq
  %v549 = vshrl.u32 %v548, 7
  %v550 = vsub.s32 0, %v549
  %v551 = vrot.slane %v231, %v550
  %v552 = vlaneseq
  %v553 = vshrl.u32 %v552, 7
  %v554 = vsub.s32 0, %v553
  %v555 = vrot.slane %v235, %v554
  %v556 = vlaneseq
  %v557 = vshrl.u32 %v556, 7
  %v558 = vsub.s32 0, %v557
  %v559 = vrot.slane %v239, %v558
  %v560 = vlaneseq
  %v561 = vshrl.u32 %v560, 7
  %v562 = vsub.s32 0, %v561
  %v563 = vrot.slane %v243, %v562
  %v564 = vlaneseq
  %v565 = vshrl.u32 %v564, 7
  %v566 = vsub.s32 0, %v565
  %v567 = vrot.slane %v247, %v566
  %v568 = vlaneseq
  %v569 = vshrl.u32 %v568, 7
  %v570 = vsub.s32 0, %v569
  %v571 = vrot.slane %v251, %v570
  %v572 = vlaneseq
  %v573 = vshrl.u32 %v572, 7
  %v574 = vsub.s32 0, %v573
  %v575 = vrot.slane %v255, %v574
  %v576 = vlaneseq
  %v577 = vshrl.u32 %v576, 7
  %v578 = vsub.s32 0, %v577
  %v579 = vrot.slane %v259, %v578
  %v580 = vlaneseq
  %v581 = vshrl.u32 %v580, 7
  %v582 = vsub.s32 0, %v581
  %v583 = vrot.slane %v263, %v582
  %v584 = vlaneseq
  %v585 = vshrl.u32 %v584, 7
  %v586 = vsub.s32 0, %v585
  %v587 = vrot.slane %v267, %v586
  %v588 = vlaneseq
  %v589 = vshrl.u32 %v588, 7
  %v590 = vsub.s32 0, %v589
  %v591 = vrot.slane %v271, %v590
  %v592 = vlaneseq
  %v593 = vshrl.u32 %v592, 7
  %v594 = vsub.s32 0, %v593
  %v595 = vrot.slane %v275, %v594
  %v596 = vlaneseq
  %v597 = vshrl.u32 %v596, 7
  %v598 = vsub.s32 0, %v597
  %v599 = vrot.slane %v279, %v598
  %v600 = vlaneseq
  %v601 = vshrl.u32 %v600, 7
  %v602 = vsub.s32 0, %v601
  %v603 = vrot.slane %v283, %v602
  %v604 = vlaneseq
  %v605 = vshrl.u32 %v604, 7
  %v606 = vsub.s32 0, %v605
  %v607 = vrot.slane %v287, %v606
  %v608 = vlaneseq
  %v609 = vshrl.u32 %v608, 7
  %v610 = vsub.s32 0, %v609
  %v611 = vrot.slane %v291, %v610
  %v612 = vlaneseq
  %v613 = vshrl.u32 %v612, 7
  %v614 = vsub.s32 0, %v613
  %v615 = vrot.slane %v295, %v614
  %v616 = vlaneseq
  %v617 = vshrl.u32 %v616, 7
  %v618 = vsub.s32 0, %v617
  %v619 = vrot.slane %v299, %v618
  %v620 = vlaneseq
  %v621 = vshrl.u32 %v620, 7
  %v622 = vsub.s32 0, %v621
  %v623 = vrot.slane %v303, %v622
  %v624 = vlaneseq
  %v625 = vshrl.u32 %v624, 7
  %v626 = vsub.s32 0, %v625
  %v627 = vrot.slane %v307, %v626
  %v628 = vlaneseq
  %v629 = vshrl.u32 %v628, 7
  %v630 = vsub.s32 0, %v629
  %v631 = vrot.slane %v311, %v630
  %v632 = vlaneseq
  %v633 = vshrl.u32 %v632, 7
  %v634 = vsub.s32 0, %v633
  %v635 = vrot.slane %v315, %v634
  %v636 = vlaneseq
  %v637 = vshrl.u32 %v636, 7
  %v638 = vsub.s32 0, %v637
  %v639 = vrot.slane %v319, %v638
  %v640 = vlaneseq
  %v641 = vshrl.u32 %v640, 7
  %v642 = vsub.s32 0, %v641
  %v643 = vrot.slane %v323, %v642
  %v644 = vlaneseq
  %v645 = vshrl.u32 %v644, 7
  %v646 = vsub.s32 0, %v645
  %v647 = vrot.slane %v327, %v646
  %v648 = vlaneseq
  %v649 = vshrl.u32 %v648, 7
  %v650 = vsub.s32 0, %v649
  %v651 = vrot.slane %v331, %v650
  %v652 = vlaneseq
  %v653 = vshrl.u32 %v652, 7
  %v654 = vsub.s32 0, %v653
  %v655 = vrot.slane %v335, %v654
  %v720 = vcombine.low %v403, %v407
  %v721 = vcombine.low %v411, %v415
  %v723 = vunpack.c.l.s4 1983009808
  %v724 = vunpack.c.0.s8 %v723
  %v725 = vlaneseq
  %v726 = vshrl.u32 %v725, 7
  %v727 = vsub.s32 %v724, %v726
  %v728 = vrot.slane %v720, %v727
  %v730 = vunpack.c.l.s4 1983009808
  %v731 = vunpack.c.0.s8 %v730
  %v732 = vlaneseq
  %v733 = vshrl.u32 %v732, 7
  %v734 = vsub.s32 %v731, %v733
  %v735 = vrot.slane %v721, %v734
  %v736 = vcombine.low %v728, %v735
  %v737 = vcombine.low %v419, %v423
  %v738 = vcombine.low %v427, %v431
  %v740 = vunpack.c.l.s4 1983009808
  %v741 = vunpack.c.0.s8 %v740
  %v742 = vlaneseq
  %v743 = vshrl.u32 %v742, 7
  %v744 = vsub.s32 %v741, %v743
  %v745 = vrot.slane %v737, %v744
  %v747 = vunpack.c.l.s4 1983009808
  %v748 = vunpack.c.0.s8 %v747
  %v749 = vlaneseq
  %v750 = vshrl.u32 %v749, 7
  %v751 = vsub.s32 %v748, %v750
  %v752 = vrot.slane %v738, %v751
  %v753 = vcombine.low %v745, %v752
  %v754 = vcombine.low %v435, %v439
  %v755 = vcombine.low %v443, %v447
  %v757 = vunpack.c.l.s4 1983009808
  %v758 = vunpack.c.0.s8 %v757
  %v759 = vlaneseq
  %v760 = vshrl.u32 %v759, 7
  %v761 = vsub.s32 %v758, %v760
  %v762 = vrot.slane %v754, %v761
  %v764 = vunpack.c.l.s4 1983009808
  %v765 = vunpack.c.0.s8 %v764
  %v766 = vlaneseq
  %v767 = vshrl.u32 %v766, 7
  %v768 = vsub.s32 %v765, %v767
  %v769 = vrot.slane %v755, %v768
  %v770 = vcombine.low %v762, %v769
  %v771 = vcombine.low %v451, %v455
  %v772 = vcombine.low %v459, %v463
  %v774 = vunpack.c.l.s4 1983009808
  %v775 = vunpack.c.0.s8 %v774
  %v776 = vlaneseq
  %v777 = vshrl.u32 %v776, 7
  %v778 = vsub.s32 %v775, %v777
  %v779 = vrot.slane %v771, %v778
  %v781 = vunpack.c.l.s4 1983009808
  %v782 = vunpack.c.0.s8 %v781
  %v783 = vlaneseq
  %v784 = vshrl.u32 %v783, 7
  %v785 = vsub.s32 %v782, %v784
  %v786 = vrot.slane %v772, %v785
  %v787 = vcombine.low %v779, %v786
  %v788 = vcombine.low %v467, %v471
  %v789 = vcombine.low %v475, %v479
  %v791 = vunpack.c.l.s4 1983009808
  %v792 = vunpack.c.0.s8 %v791
  %v793 = vlaneseq
  %v794 = vshrl.u32 %v793, 7
  %v795 = vsub.s32 %v792, %v794
  %v796 = vrot.slane %v788, %v795
  %v798 = vunpack.c.l.s4 1983009808
  %v799 = vunpack.c.0.s8 %v798
  %v800 = vlaneseq
  %v801 = vshrl.u32 %v800, 7
  %v802 = vsub.s32 %v799, %v801
  %v803 = vrot.slane %v789, %v802
  %v804 = vcombine.low %v796, %v803
  %v805 = vcombine.low %v483, %v487
  %v806 = vcombine.low %v491, %v495
  %v808 = vunpack.c.l.s4 1983009808
  %v809 = vunpack.c.0.s8 %v808
  %v810 = vlaneseq
  %v811 = vshrl.u32 %v810, 7
  %v812 = vsub.s32 %v809, %v811
  %v813 = vrot.slane %v805, %v812
  %v815 = vunpack.c.l.s4 1983009808
  %v816 = vunpack.c.0.s8 %v815
  %v817 = vlaneseq
  %v818 = vshrl.u32 %v817, 7
  %v819 = vsub.s32 %v816, %v818
  %v820 = vrot.slane %v806, %v819
  %v821 = vcombine.low %v813, %v820
  %v822 = vcombine.low %v499, %v503
  %v823 = vcombine.low %v507, %v511
  %v825 = vunpack.c.l.s4 1983009808
  %v826 = vunpack.c.0.s8 %v825
  %v827 = vlaneseq
  %v828 = vshrl.u32 %v827, 7
  %v829 = vsub.s32 %v826, %v828
  %v830 = vrot.slane %v822, %v829
  %v832 = vunpack.c.l.s4 1983009808
  %v833 = vunpack.c.0.s8 %v832
  %v834 = vlaneseq
  %v835 = vshrl.u32 %v834, 7
  %v836 = vsub.s32 %v833, %v835
  %v837 = vrot.slane %v823, %v836
  %v838 = vcombine.low %v830, %v837
  %v839 = vcombine.low %v515, %v519
  %v840 = vcombine.low %v523, %v527
  %v842 = vunpack.c.l.s4 1983009808
  %v843 = vunpack.c.0.s8 %v842
  %v844 = vlaneseq
  %v845 = vshrl.u32 %v844, 7
  %v846 = vsub.s32 %v843, %v845
  %v847 = vrot.slane %v839, %v846
  %v849 = vunpack.c.l.s4 1983009808
  %v850 = vunpack.c.0.s8 %v849
  %v851 = vlaneseq
  %v852 = vshrl.u32 %v851, 7
  %v853 = vsub.s32 %v850, %v852
  %v854 = vrot.slane %v840, %v853
  %v855 = vcombine.low %v847, %v854
  %v856 = vcombine.low %v531, %v535
  %v857 = vcombine.low %v539, %v543
  %v859 = vunpack.c.l.s4 1983009808
  %v860 = vunpack.c.0.s8 %v859
  %v861 = vlaneseq
  %v862 = vshrl.u32 %v861, 7
  %v863 = vsub.s32 %v860, %v862
  %v864 = vrot.slane %v856, %v863
  %v866 = vunpack.c.l.s4 1983009808
  %v867 = vunpack.c.0.s8 %v866
  %v868 = vlaneseq
  %v869 = vshrl.u32 %v868, 7
  %v870 = vsub.s32 %v867, %v869
  %v871 = vrot.slane %v857, %v870
  %v872 = vcombine.low %v864, %v871
  %v873 = vcombine.low %v547, %v551
  %v874 = vcombine.low %v555, %v559
  %v876 = vunpack.c.l.s4 1983009808
  %v877 = vunpack.c.0.s8 %v876
  %v878 = vlaneseq
  %v879 = vshrl.u32 %v878, 7
  %v880 = vsub.s32 %v877, %v879
  %v881 = vrot.slane %v873, %v880
  %v883 = vunpack.c.l.s4 1983009808
  %v884 = vunpack.c.0.s8 %v883
  %v885 = vlaneseq
  %v886 = vshrl.u32 %v885, 7
  %v887 = vsub.s32 %v884, %v886
  %v888 = vrot.slane %v874, %v887
  %v889 = vcombine.low %v881, %v888
  %v890 = vcombine.low %v563, %v567
  %v891 = vcombine.low %v571, %v575
  %v893 = vunpack.c.l.s4 1983009808
  %v894 = vunpack.c.0.s8 %v893
  %v895 = vlaneseq
  %v896 = vshrl.u32 %v895, 7
  %v897 = vsub.s32 %v894, %v896
  %v898 = vrot.slane %v890, %v897
  %v900 = vunpack.c.l.s4 1983009808
  %v901 = vunpack.c.0.s8 %v900
  %v902 = vlaneseq
  %v903 = vshrl.u32 %v902, 7
  %v904 = vsub.s32 %v901, %v903
  %v905 = vrot.slane %v891, %v904
  %v906 = vcombine.low %v898, %v905
  %v907 = vcombine.low %v579, %v583
  %v908 = vcombine.low %v587, %v591
  %v910 = vunpack.c.l.s4 1983009808
  %v911 = vunpack.c.0.s8 %v910
  %v912 = vlaneseq
  %v913 = vshrl.u32 %v912, 7
  %v914 = vsub.s32 %v911, %v913
  %v915 = vrot.slane %v907, %v914
  %v917 = vunpack.c.l.s4 1983009808
  %v918 = vunpack.c.0.s8 %v917
  %v919 = vlaneseq
  %v920 = vshrl.u32 %v919, 7
  %v921 = vsub.s32 %v918, %v920
  %v922 = vrot.slane %v908, %v921
  %v923 = vcombine.low %v915, %v922
  %v924 = vcombine.low %v595, %v599
  %v925 = vcombine.low %v603, %v607
  %v927 = vunpack.c.l.s4 1983009808
  %v928 = vunpack.c.0.s8 %v927
  %v929 = vlaneseq
  %v930 = vshrl.u32 %v929, 7
  %v931 = vsub.s32 %v928, %v930
  %v932 = vrot.slane %v924, %v931
  %v934 = vunpack.c.l.s4 1983009808
  %v935 = vunpack.c.0.s8 %v934
  %v936 = vlaneseq
  %v937 = vshrl.u32 %v936, 7
  %v938 = vsub.s32 %v935, %v937
  %v939 = vrot.slane %v925, %v938
  %v940 = vcombine.low %v932, %v939
  %v941 = vcombine.low %v611, %v615
  %v942 = vcombine.low %v619, %v623
  %v944 = vunpack.c.l.s4 1983009808
  %v945 = vunpack.c.0.s8 %v944
  %v946 = vlaneseq
  %v947 = vshrl.u32 %v946, 7
  %v948 = vsub.s32 %v945, %v947
  %v949 = vrot.slane %v941, %v948
  %v951 = vunpack.c.l.s4 1983009808
  %v952 = vunpack.c.0.s8 %v951
  %v953 = vlaneseq
  %v954 = vshrl.u32 %v953, 7
  %v955 = vsub.s32 %v952, %v954
  %v956 = vrot.slane %v942, %v955
  %v957 = vcombine.low %v949, %v956
  %v958 = vcombine.low %v627, %v631
  %v959 = vcombine.low %v635, %v639
  %v961 = vunpack.c.l.s4 1983009808
  %v962 = vunpack.c.0.s8 %v961
  %v963 = vlaneseq
  %v964 = vshrl.u32 %v963, 7
  %v965 = vsub.s32 %v962, %v964
  %v966 = vrot.slane %v958, %v965
  %v968 = vunpack.c.l.s4 1983009808
  %v969 = vunpack.c.0.s8 %v968
  %v970 = vlaneseq
  %v971 = vshrl.u32 %v970, 7
  %v972 = vsub.s32 %v969, %v971
  %v973 = vrot.slane %v959, %v972
  %v974 = vcombine.low %v966, %v973
  %v975 = vcombine.low %v643, %v647
  %v976 = vcombine.low %v651, %v655
  %v978 = vunpack.c.l.s4 1983009808
  %v979 = vunpack.c.0.s8 %v978
  %v980 = vlaneseq
  %v981 = vshrl.u32 %v980, 7
  %v982 = vsub.s32 %v979, %v981
  %v983 = vrot.slane %v975, %v982
  %v985 = vunpack.c.l.s4 1983009808
  %v986 = vunpack.c.0.s8 %v985
  %v987 = vlaneseq
  %v988 = vshrl.u32 %v987, 7
  %v989 = vsub.s32 %v986, %v988
  %v990 = vrot.slane %v976, %v989
  %v991 = vcombine.low %v983, %v990
  %v1008 = vmul.f32 %v24, %v736
  %v1009 = vmul.f32 %v25, %v753
  %v1010 = vmul.f32 %v26, %v770
  %v1011 = vmul.f32 %v27, %v787
  %v1012 = vmul.f32 %v28, %v804
  %v1013 = vmul.f32 %v29, %v821
  %v1014 = vmul.f32 %v30, %v838
  %v1015 = vmul.f32 %v31, %v855
  %v1016 = vmul.f32 %v32, %v872
  %v1017 = vmul.f32 %v33, %v889
  %v1018 = vmul.f32 %v34, %v906
  %v1019 = vmul.f32 %v35, %v923
  %v1020 = vmul.f32 %v36, %v940
  %v1021 = vmul.f32 %v37, %v957
  %v1022 = vmul.f32 %v38, %v974
  %v1023 = vmul.f32 %v39, %v991
  %v1040 = vcombine.high %v1008, %v1008
  %v1042 = vunpack.c.l.s4 1983009808
  %v1043 = vunpack.c.0.s8 %v1042
  %v1044 = vlaneseq
  %v1045 = vshrl.u32 %v1044, 7
  %v1046 = vsub.s32 %v1043, %v1045
  %v1047 = vrot.slane %v1008, %v1046
  %v1049 = vunpack.c.l.s4 1983009808
  %v1050 = vunpack.c.0.s8 %v1049
  %v1051 = vlaneseq
  %v1052 = vshrl.u32 %v1051, 7
  %v1053 = vsub.s32 %v1050, %v1052
  %v1054 = vrot.slane %v1040, %v1053
  %v1055 = vcombine.high %v1047, %v1047
  %v1056 = vcombine.high %v1054, %v1054
  %v1057 = vcombine.high %v1009, %v1009
  %v1059 = vunpack.c.l.s4 1983009808
  %v1060 = vunpack.c.0.s8 %v1059
  %v1061 = vlaneseq
  %v1062 = vshrl.u32 %v1061, 7
  %v1063 = vsub.s32 %v1060, %v1062
  %v1064 = vrot.slane %v1009, %v1063
  %v1066 = vunpack.c.l.s4 1983009808
  %v1067 = vunpack.c.0.s8 %v1066
  %v1068 = vlaneseq
  %v1069 = vshrl.u32 %v1068, 7
  %v1070 = vsub.s32 %v1067, %v1069
  %v1071 = vrot.slane %v1057, %v1070
  %v1072 = vcombine.high %v1064, %v1064
  %v1073 = vcombine.high %v1071, %v1071
  %v1074 = vcombine.high %v1010, %v1010
  %v1076 = vunpack.c.l.s4 1983009808
  %v1077 = vunpack.c.0.s8 %v1076
  %v1078 = vlaneseq
  %v1079 = vshrl.u32 %v1078, 7
  %v1080 = vsub.s32 %v1077, %v1079
  %v1081 = vrot.slane %v1010, %v1080
  %v1083 = vunpack.c.l.s4 1983009808
  %v1084 = vunpack.c.0.s8 %v1083
  %v1085 = vlaneseq
  %v1086 = vshrl.u32 %v1085, 7
  %v1087 = vsub.s32 %v1084, %v1086
  %v1088 = vrot.slane %v1074, %v1087
  %v1089 = vcombine.high %v1081, %v1081
  %v1090 = vcombine.high %v1088, %v1088
  %v1091 = vcombine.high %v1011, %v1011
  %v1093 = vunpack.c.l.s4 1983009808
  %v1094 = vunpack.c.0.s8 %v1093
  %v1095 = vlaneseq
  %v1096 = vshrl.u32 %v1095, 7
  %v1097 = vsub.s32 %v1094, %v1096
  %v1098 = vrot.slane %v1011, %v1097
  %v1100 = vunpack.c.l.s4 1983009808
  %v1101 = vunpack.c.0.s8 %v1100
  %v1102 = vlaneseq
  %v1103 = vshrl.u32 %v1102, 7
  %v1104 = vsub.s32 %v1101, %v1103
  %v1105 = vrot.slane %v1091, %v1104
  %v1106 = vcombine.high %v1098, %v1098
  %v1107 = vcombine.high %v1105, %v1105
  %v1108 = vcombine.high %v1012, %v1012
  %v1110 = vunpack.c.l.s4 1983009808
  %v1111 = vunpack.c.0.s8 %v1110
  %v1112 = vlaneseq
  %v1113 = vshrl.u32 %v1112, 7
  %v1114 = vsub.s32 %v1111, %v1113
  %v1115 = vrot.slane %v1012, %v1114
  %v1117 = vunpack.c.l.s4 1983009808
  %v1118 = vunpack.c.0.s8 %v1117
  %v1119 = vlaneseq
  %v1120 = vshrl.u32 %v1119, 7
  %v1121 = vsub.s32 %v1118, %v1120
  %v1122 = vrot.slane %v1108, %v1121
  %v1123 = vcombine.high %v1115, %v1115
  %v1124 = vcombine.high %v1122, %v1122
  %v1125 = vcombine.high %v1013, %v1013
  %v1127 = vunpack.c.l.s4 1983009808
  %v1128 = vunpack.c.0.s8 %v1127
  %v1129 = vlaneseq
  %v1130 = vshrl.u32 %v1129, 7
  %v1131 = vsub.s32 %v1128, %v1130
  %v1132 = vrot.slane %v1013, %v1131
  %v1134 = vunpack.c.l.s4 1983009808
  %v1135 = vunpack.c.0.s8 %v1134
  %v1136 = vlaneseq
  %v1137 = vshrl.u32 %v1136, 7
  %v1138 = vsub.s32 %v1135, %v1137
  %v1139 = vrot.slane %v1125, %v1138
  %v1140 = vcombine.high %v1132, %v1132
  %v1141 = vcombine.high %v1139, %v1139
  %v1142 = vcombine.high %v1014, %v1014
  %v1144 = vunpack.c.l.s4 1983009808
  %v1145 = vunpack.c.0.s8 %v1144
  %v1146 = vlaneseq
  %v1147 = vshrl.u32 %v1146, 7
  %v1148 = vsub.s32 %v1145, %v1147
  %v1149 = vrot.slane %v1014, %v1148
  %v1151 = vunpack.c.l.s4 1983009808
  %v1152 = vunpack.c.0.s8 %v1151
  %v1153 = vlaneseq
  %v1154 = vshrl.u32 %v1153, 7
  %v1155 = vsub.s32 %v1152, %v1154
  %v1156 = vrot.slane %v1142, %v1155
  %v1157 = vcombine.high %v1149, %v1149
  %v1158 = vcombine.high %v1156, %v1156
  %v1159 = vcombine.high %v1015, %v1015
  %v1161 = vunpack.c.l.s4 1983009808
  %v1162 = vunpack.c.0.s8 %v1161
  %v1163 = vlaneseq
  %v1164 = vshrl.u32 %v1163, 7
  %v1165 = vsub.s32 %v1162, %v1164
  %v1166 = vrot.slane %v1015, %v1165
  %v1168 = vunpack.c.l.s4 1983009808
  %v1169 = vunpack.c.0.s8 %v1168
  %v1170 = vlaneseq
  %v1171 = vshrl.u32 %v1170, 7
  %v1172 = vsub.s32 %v1169, %v1171
  %v1173 = vrot.slane %v1159, %v1172
  %v1174 = vcombine.high %v1166, %v1166
  %v1175 = vcombine.high %v1173, %v1173
  %v1176 = vcombine.high %v1016, %v1016
  %v1178 = vunpack.c.l.s4 1983009808
  %v1179 = vunpack.c.0.s8 %v1178
  %v1180 = vlaneseq
  %v1181 = vshrl.u32 %v1180, 7
  %v1182 = vsub.s32 %v1179, %v1181
  %v1183 = vrot.slane %v1016, %v1182
  %v1185 = vunpack.c.l.s4 1983009808
  %v1186 = vunpack.c.0.s8 %v1185
  %v1187 = vlaneseq
  %v1188 = vshrl.u32 %v1187, 7
  %v1189 = vsub.s32 %v1186, %v1188
  %v1190 = vrot.slane %v1176, %v1189
  %v1191 = vcombine.high %v1183, %v1183
  %v1192 = vcombine.high %v1190, %v1190
  %v1193 = vcombine.high %v1017, %v1017
  %v1195 = vunpack.c.l.s4 1983009808
  %v1196 = vunpack.c.0.s8 %v1195
  %v1197 = vlaneseq
  %v1198 = vshrl.u32 %v1197, 7
  %v1199 = vsub.s32 %v1196, %v1198
  %v1200 = vrot.slane %v1017, %v1199
  %v1202 = vunpack.c.l.s4 1983009808
  %v1203 = vunpack.c.0.s8 %v1202
  %v1204 = vlaneseq
  %v1205 = vshrl.u32 %v1204, 7
  %v1206 = vsub.s32 %v1203, %v1205
  %v1207 = vrot.slane %v1193, %v1206
  %v1208 = vcombine.high %v1200, %v1200
  %v1209 = vcombine.high %v1207, %v1207
  %v1210 = vcombine.high %v1018, %v1018
  %v1212 = vunpack.c.l.s4 1983009808
  %v1213 = vunpack.c.0.s8 %v1212
  %v1214 = vlaneseq
  %v1215 = vshrl.u32 %v1214, 7
  %v1216 = vsub.s32 %v1213, %v1215
  %v1217 = vrot.slane %v1018, %v1216
  %v1219 = vunpack.c.l.s4 1983009808
  %v1220 = vunpack.c.0.s8 %v1219
  %v1221 = vlaneseq
  %v1222 = vshrl.u32 %v1221, 7
  %v1223 = vsub.s32 %v1220, %v1222
  %v1224 = vrot.slane %v1210, %v1223
  %v1225 = vcombine.high %v1217, %v1217
  %v1226 = vcombine.high %v1224, %v1224
  %v1227 = vcombine.high %v1019, %v1019
  %v1229 = vunpack.c.l.s4 1983009808
  %v1230 = vunpack.c.0.s8 %v1229
  %v1231 = vlaneseq
  %v1232 = vshrl.u32 %v1231, 7
  %v1233 = vsub.s32 %v1230, %v1232
  %v1234 = vrot.slane %v1019, %v1233
  %v1236 = vunpack.c.l.s4 1983009808
  %v1237 = vunpack.c.0.s8 %v1236
  %v1238 = vlaneseq
  %v1239 = vshrl.u32 %v1238, 7
  %v1240 = vsub.s32 %v1237, %v1239
  %v1241 = vrot.slane %v1227, %v1240
  %v1242 = vcombine.high %v1234, %v1234
  %v1243 = vcombine.high %v1241, %v1241
  %v1244 = vcombine.high %v1020, %v1020
  %v1246 = vunpack.c.l.s4 1983009808
  %v1247 = vunpack.c.0.s8 %v1246
  %v1248 = vlaneseq
  %v1249 = vshrl.u32 %v1248, 7
  %v1250 = vsub.s32 %v1247, %v1249
  %v1251 = vrot.slane %v1020, %v1250
  %v1253 = vunpack.c.l.s4 1983009808
  %v1254 = vunpack.c.0.s8 %v1253
  %v1255 = vlaneseq
  %v1256 = vshrl.u32 %v1255, 7
  %v1257 = vsub.s32 %v1254, %v1256
  %v1258 = vrot.slane %v1244, %v1257
  %v1259 = vcombine.high %v1251, %v1251
  %v1260 = vcombine.high %v1258, %v1258
  %v1261 = vcombine.high %v1021, %v1021
  %v1263 = vunpack.c.l.s4 1983009808
  %v1264 = vunpack.c.0.s8 %v1263
  %v1265 = vlaneseq
  %v1266 = vshrl.u32 %v1265, 7
  %v1267 = vsub.s32 %v1264, %v1266
  %v1268 = vrot.slane %v1021, %v1267
  %v1270 = vunpack.c.l.s4 1983009808
  %v1271 = vunpack.c.0.s8 %v1270
  %v1272 = vlaneseq
  %v1273 = vshrl.u32 %v1272, 7
  %v1274 = vsub.s32 %v1271, %v1273
  %v1275 = vrot.slane %v1261, %v1274
  %v1276 = vcombine.high %v1268, %v1268
  %v1277 = vcombine.high %v1275, %v1275
  %v1278 = vcombine.high %v1022, %v1022
  %v1280 = vunpack.c.l.s4 1983009808
  %v1281 = vunpack.c.0.s8 %v1280
  %v1282 = vlaneseq
  %v1283 = vshrl.u32 %v1282, 7
  %v1284 = vsub.s32 %v1281, %v1283
  %v1285 = vrot.slane %v1022, %v1284
  %v1287 = vunpack.c.l.s4 1983009808
  %v1288 = vunpack.c.0.s8 %v1287
  %v1289 = vlaneseq
  %v1290 = vshrl.u32 %v1289, 7
  %v1291 = vsub.s32 %v1288, %v1290
  %v1292 = vrot.slane %v1278, %v1291
  %v1293 = vcombine.high %v1285, %v1285
  %v1294 = vcombine.high %v1292, %v1292
  %v1295 = vcombine.high %v1023, %v1023
  %v1297 = vunpack.c.l.s4 1983009808
  %v1298 = vunpack.c.0.s8 %v1297
  %v1299 = vlaneseq
  %v1300 = vshrl.u32 %v1299, 7
  %v1301 = vsub.s32 %v1298, %v1300
  %v1302 = vrot.slane %v1023, %v1301
  %v1304 = vunpack.c.l.s4 1983009808
  %v1305 = vunpack.c.0.s8 %v1304
  %v1306 = vlaneseq
  %v1307 = vshrl.u32 %v1306, 7
  %v1308 = vsub.s32 %v1305, %v1307
  %v1309 = vrot.slane %v1295, %v1308
  %v1310 = vcombine.high %v1302, %v1302
  %v1311 = vcombine.high %v1309, %v1309
  %vm1376 = vcmask 1041408
  %v1377 = vsel %vm1376, %v1047, 0.0
  %v1378 = vsel %vm1376, %v1055, 0.0
  %v1379 = vadd.f32 %v1377, %v1378
  %v1380 = vsel %vm1376, %v1054, 0.0
  %v1381 = vadd.f32 %v1379, %v1380
  %v1382 = vsel %vm1376, %v1056, 0.0
  %v1383 = vadd.f32 %v1381, %v1382
  %v1384 = vsel %vm1376, %v1064, 0.0
  %v1385 = vadd.f32 %v1383, %v1384
  %v1386 = vsel %vm1376, %v1072, 0.0
  %v1387 = vadd.f32 %v1385, %v1386
  %v1388 = vsel %vm1376, %v1071, 0.0
  %v1389 = vadd.f32 %v1387, %v1388
  %v1390 = vsel %vm1376, %v1073, 0.0
  %v1391 = vadd.f32 %v1389, %v1390
  %v1392 = vsel %vm1376, %v1081, 0.0
  %v1393 = vadd.f32 %v1391, %v1392
  %v1394 = vsel %vm1376, %v1089, 0.0
  %v1395 = vadd.f32 %v1393, %v1394
  %v1396 = vsel %vm1376, %v1088, 0.0
  %v1397 = vadd.f32 %v1395, %v1396
  %v1398 = vsel %vm1376, %v1090, 0.0
  %v1399 = vadd.f32 %v1397, %v1398
  %v1400 = vsel %vm1376, %v1098, 0.0
  %v1401 = vadd.f32 %v1399, %v1400
  %v1402 = vsel %vm1376, %v1106, 0.0
  %v1403 = vadd.f32 %v1401, %v1402
  %v1404 = vsel %vm1376, %v1105, 0.0
  %v1405 = vadd.f32 %v1403, %v1404
  %v1406 = vsel %vm1376, %v1107, 0.0
  %v1407 = vadd.f32 %v1405, %v1406
  %v1408 = vsel %vm1376, %v1115, 0.0
  %v1409 = vadd.f32 %v1407, %v1408
  %v1410 = vsel %vm1376, %v1123, 0.0
  %v1411 = vadd.f32 %v1409, %v1410
  %v1412 = vsel %vm1376, %v1122, 0.0
  %v1413 = vadd.f32 %v1411, %v1412
  %v1414 = vsel %vm1376, %v1124, 0.0
  %v1415 = vadd.f32 %v1413, %v1414
  %v1416 = vsel %vm1376, %v1132, 0.0
  %v1417 = vadd.f32 %v1415, %v1416
  %v1418 = vsel %vm1376, %v1140, 0.0
  %v1419 = vadd.f32 %v1417, %v1418
  %v1420 = vsel %vm1376, %v1139, 0.0
  %v1421 = vadd.f32 %v1419, %v1420
  %v1422 = vsel %vm1376, %v1141, 0.0
  %v1423 = vadd.f32 %v1421, %v1422
  %v1424 = vsel %vm1376, %v1149, 0.0
  %v1425 = vadd.f32 %v1423, %v1424
  %v1426 = vsel %vm1376, %v1157, 0.0
  %v1427 = vadd.f32 %v1425, %v1426
  %v1428 = vsel %vm1376, %v1156, 0.0
  %v1429 = vadd.f32 %v1427, %v1428
  %v1430 = vsel %vm1376, %v1158, 0.0
  %v1431 = vadd.f32 %v1429, %v1430
  %v1432 = vsel %vm1376, %v1166, 0.0
  %v1433 = vadd.f32 %v1431, %v1432
  %v1434 = vsel %vm1376, %v1174, 0.0
  %v1435 = vadd.f32 %v1433, %v1434
  %v1436 = vsel %vm1376, %v1173, 0.0
  %v1437 = vadd.f32 %v1435, %v1436
  %v1438 = vsel %vm1376, %v1175, 0.0
  %v1439 = vadd.f32 %v1437, %v1438
  %v1440 = vsel %vm1376, %v1183, 0.0
  %v1441 = vadd.f32 %v1439, %v1440
  %v1442 = vsel %vm1376, %v1191, 0.0
  %v1443 = vadd.f32 %v1441, %v1442
  %v1444 = vsel %vm1376, %v1190, 0.0
  %v1445 = vadd.f32 %v1443, %v1444
  %v1446 = vsel %vm1376, %v1192, 0.0
  %v1447 = vadd.f32 %v1445, %v1446
  %v1448 = vsel %vm1376, %v1200, 0.0
  %v1449 = vadd.f32 %v1447, %v1448
  %v1450 = vsel %vm1376, %v1208, 0.0
  %v1451 = vadd.f32 %v1449, %v1450
  %v1452 = vsel %vm1376, %v1207, 0.0
  %v1453 = vadd.f32 %v1451, %v1452
  %v1454 = vsel %vm1376, %v1209, 0.0
  %v1455 = vadd.f32 %v1453, %v1454
  %v1456 = vsel %vm1376, %v1217, 0.0
  %v1457 = vadd.f32 %v1455, %v1456
  %v1458 = vsel %vm1376, %v1225, 0.0
  %v1459 = vadd.f32 %v1457, %v1458
  %v1460 = vsel %vm1376, %v1224, 0.0
  %v1461 = vadd.f32 %v1459, %v1460
  %v1462 = vsel %vm1376, %v1226, 0.0
  %v1463 = vadd.f32 %v1461, %v1462
  %v1464 = vsel %vm1376, %v1234, 0.0
  %v1465 = vadd.f32 %v1463, %v1464
  %v1466 = vsel %vm1376, %v1242, 0.0
  %v1467 = vadd.f32 %v1465, %v1466
  %v1468 = vsel %vm1376, %v1241, 0.0
  %v1469 = vadd.f32 %v1467, %v1468
  %v1470 = vsel %vm1376, %v1243, 0.0
  %v1471 = vadd.f32 %v1469, %v1470
  %v1472 = vsel %vm1376, %v1251, 0.0
  %v1473 = vadd.f32 %v1471, %v1472
  %v1474 = vsel %vm1376, %v1259, 0.0
  %v1475 = vadd.f32 %v1473, %v1474
  %v1476 = vsel %vm1376, %v1258, 0.0
  %v1477 = vadd.f32 %v1475, %v1476
  %v1478 = vsel %vm1376, %v1260, 0.0
  %v1479 = vadd.f32 %v1477, %v1478
  %v1480 = vsel %vm1376, %v1268, 0.0
  %v1481 = vadd.f32 %v1479, %v1480
  %v1482 = vsel %vm1376, %v1276, 0.0
  %v1483 = vadd.f32 %v1481, %v1482
  %v1484 = vsel %vm1376, %v1275, 0.0
  %v1485 = vadd.f32 %v1483, %v1484
  %v1486 = vsel %vm1376, %v1277, 0.0
  %v1487 = vadd.f32 %v1485, %v1486
  %v1488 = vsel %vm1376, %v1285, 0.0
  %v1489 = vadd.f32 %v1487, %v1488
  %v1490 = vsel %vm1376, %v1293, 0.0
  %v1491 = vadd.f32 %v1489, %v1490
  %v1492 = vsel %vm1376, %v1292, 0.0
  %v1493 = vadd.f32 %v1491, %v1492
  %v1494 = vsel %vm1376, %v1294, 0.0
  %v1495 = vadd.f32 %v1493, %v1494
  %v1496 = vsel %vm1376, %v1302, 0.0
  %v1497 = vadd.f32 %v1495, %v1496
  %v1498 = vsel %vm1376, %v1310, 0.0
  %v1499 = vadd.f32 %v1497, %v1498
  %v1500 = vsel %vm1376, %v1309, 0.0
  %v1501 = vadd.f32 %v1499, %v1500
  %v1502 = vsel %vm1376, %v1311, 0.0
  %v1503 = vadd.f32 %v1501, %v1502
  %1504 = vadd.xlane.f32.xlu0 %v1503
  %v1505 = vpop.xlane.xlu0 %1504
  %v1506 = vld [vmem:[#allocation2] sm:$0x1]
  %v1508 = vlaneseq
  %v1509 = vshrl.u32 %v1508, 7
  %v1510 = vsub.s32 0, %v1509
  %v1511 = vrot.slane %v1506, %v1510
  %v1513 = vadd.f32 %v1505, %v1511
  %vm1514 = vcmask 1024
  %1515 = vst.msk [vmem:[%s3] sm:$0x3] %vm1514, %v1513
  // Predicated region
  $region14: #{discriminator_forward.9} parent=0 // pred_check
    _
  $region15: #{discriminator_forward.9} parent=0 // pred_check_branch
    %1517 = sbr.rel (0) target = $region17
  $region16: #{discriminator_forward.9} parent=0 // pred_region
    _
  $region17: #{discriminator_forward.9} parent=0 // pred_fallthru
    _
  // Predicated region
  $region18: #{discriminator_forward.9} parent=0 // pred_check
    _
  $region19: #{discriminator_forward.9} parent=0 // pred_check_branch
    %1519 = sbr.rel (0) target = $region21
  $region20: #{discriminator_forward.9} parent=0 // pred_region
    _
  $region21: #{discriminator_forward.9} parent=0 // pred_fallthru
    _

</llo_original>
